<compile_context>
chip_gen: v6e
topology: v6e:2x2x1
jax: 0.10.0
libtpu: 0.0.40
codegen_flags: <defaults>
</compile_context>

<pallas_src>
import math
from functools import partial

import jax
import jax.numpy as jnp
from jax import lax
from jax.experimental import pallas as pl
from jax.experimental.pallas import tpu as pltpu

BN_EPS = 1e-5
LANE = 128


def _round_up(x, m):
    return (x + m - 1) // m * m


_VMEM_LIMIT_CACHE = None


def _vmem_limit_bytes():
    """Generation-aware scoped-VMEM limit (half of physical, clamped to [32, 96] MiB)."""
    global _VMEM_LIMIT_CACHE
    if _VMEM_LIMIT_CACHE is None:
        cap = 128 * 1024 * 1024
        try:
            cap = int(getattr(pltpu.get_tpu_info(), "vmem_capacity_bytes", cap))
        except Exception:
            pass
        _VMEM_LIMIT_CACHE = max(32 * 1024 * 1024, min(cap // 2, 96 * 1024 * 1024))
    return _VMEM_LIMIT_CACHE


# ---------------------------------------------------------------------------
# Fused BasicBlock kernel (one image per grid step)
# ---------------------------------------------------------------------------

def _basic_block_kernel(*refs, stride, oh, ow, ci, cslab, p, pslab, has_ds):
    """out = relu( bn2(conv2( relu(bn1(conv1(x))) )) + identity )

    identity = x (no downsample) or bn_d(conv1x1_stride_s(x)); BN folded into weights.

    refs (stride 1): x (1,H,W,ci) | w1 (9*cslab,p) | w2 (9*pslab,p) | [wd (ci,p)]
                     | o (1,OH,OW,p) | xin | mid | pm   (VMEM scratches)
    refs (stride 2): x (1,2,2,OH,OW,ci)  phase-split: x[0,a,b] = x_orig[a::2, b::2]
    """
    if has_ds:
        x_ref, w1_ref, w2_ref, wd_ref, o_ref, xin_ref, mid_ref, pm_ref = refs
    else:
        x_ref, w1_ref, w2_ref, o_ref, xin_ref, mid_ref, pm_ref = refs
        wd_ref = None
    m = oh * ow
    f32 = jnp.float32

    # ---- stage x into a zero-padded f32 VMEM scratch (conv1's spatial pad=1) ----
    xin_ref[...] = jnp.zeros_like(xin_ref)
    if stride == 1:
        xin_ref[1:1 + oh, 1:1 + ow, :ci] = x_ref[0].astype(f32)
    else:
        # xin phase [A, B][r, q] == xpad[2r + A, 2q + B]  (xpad = spatial pad 1)
        xin_ref[0, 0, 1:, 1:, :ci] = x_ref[0, 1, 1].astype(f32)
        xin_ref[0, 1, 1:, :ow, :ci] = x_ref[0, 1, 0].astype(f32)
        xin_ref[1, 0, :oh, 1:, :ci] = x_ref[0, 0, 1].astype(f32)
        xin_ref[1, 1, :oh, :ow, :ci] = x_ref[0, 0, 0].astype(f32)

    def im2col(slab, window):
        # Build the (m, 9*slab) bf16 patch matrix in VMEM from static slices of the
        # resident padded block -> a single big-K MXU matmul (f32 accum) follows.
        t = 0
        for dy in range(3):
            for dx in range(3):
                win = window(dy, dx)                              # (oh, ow, slab) f32
                pm_ref[:, t * slab:(t + 1) * slab] = (
                    win.reshape(m, slab).astype(pm_ref.dtype))
                t += 1
        return pm_ref[:, :9 * slab]

    # ---- conv1 + bn1 + relu : one K = 9*cslab matmul ----------------------------
    if stride == 1:
        win1 = lambda dy, dx: xin_ref[dy:dy + oh, dx:dx + ow, :]
    else:
        win1 = lambda dy, dx: xin_ref[dy % 2, dx % 2,
                                      dy // 2:dy // 2 + oh,
                                      dx // 2:dx // 2 + ow, :]
    y1 = jnp.dot(im2col(cslab, win1), w1_ref[...],
                 preferred_element_type=f32)                      # (m, p)
    y1 = jnp.maximum(y1, 0.0)

    # ---- conv2 + bn2 : conv1 output never leaves VMEM ---------------------------
    mid_ref[...] = jnp.zeros_like(mid_ref)
    mid_ref[1:1 + oh, 1:1 + ow, :p] = y1.reshape(oh, ow, p)
    win2 = lambda dy, dx: mid_ref[dy:dy + oh, dx:dx + ow, :]
    y2 = jnp.dot(im2col(pslab, win2), w2_ref[...],
                 preferred_element_type=f32)                      # (m, p)

    # ---- residual: identity from the resident block / fused 1x1 downsample ------
    if stride == 1:
        xid = xin_ref[1:1 + oh, 1:1 + ow, :ci]                    # == x
    else:
        xid = xin_ref[1, 1, :oh, :ow, :ci]                        # == x[::2, ::2]
    xid = xid.reshape(m, ci)
    if has_ds:
        ident = jnp.dot(xid.astype(jnp.bfloat16), wd_ref[...],
                        preferred_element_type=f32)
    else:
        ident = xid                                               # ci == p
    # TODO(synk): BAM/CBAM attention (self.ext) skipped -- class defs not provided.
    out = jnp.maximum(y2 + ident, 0.0)                            # fused add + ReLU
    o_ref[0] = out.reshape(oh, ow, p).astype(o_ref.dtype)


def basic_block_pallas(x, w, *, stride):
    """x: (N, H, W, Cin) bf16 NHWC -> (N, OH, OW, planes) bf16 for one BasicBlock."""
    n, h, wdt, ci = x.shape
    k1, p = w['w1'].shape
    k2, p2 = w['w2'].shape
    assert p == p2 and k1 % 9 == 0 and k2 % 9 == 0
    cslab, pslab = k1 // 9, k2 // 9
    assert cslab == _round_up(ci, LANE) and pslab == _round_up(p, LANE)
    has_ds = 'wd' in w
    if not has_ds:
        assert stride == 1 and ci == p

    if stride == 1:
        oh, ow = h, wdt
        x_in = x                                                  # no wrapper copies
        x_spec = pl.BlockSpec((1, h, wdt, ci), lambda i: (i, 0, 0, 0))
        xin_scratch = pltpu.VMEM((h + 2, wdt + 2, cslab), jnp.float32)
    elif stride == 2:
        assert h % 2 == 0 and wdt % 2 == 0
        oh, ow = h // 2, wdt // 2
        # One phase-split copy of x per downsample block (pad itself is in-kernel).
        x_in = x.reshape(n, oh, 2, ow, 2, ci).transpose(0, 2, 4, 1, 3, 5)
        x_spec = pl.BlockSpec((1, 2, 2, oh, ow, ci), lambda i: (i, 0, 0, 0, 0, 0))
        xin_scratch = pltpu.VMEM((2, 2, oh + 1, ow + 1, cslab), jnp.float32)
    else:
        raise NotImplementedError("stride must be 1 or 2")
    assert ow % 8 == 0, "kernel assumes a sublane-aligned output width"
    m = oh * ow

    in_specs = [x_spec,
                pl.BlockSpec((k1, p), lambda i: (0, 0)),
                pl.BlockSpec((k2, p), lambda i: (0, 0))]
    args = [x_in, w['w1'], w['w2']]
    if has_ds:
        in_specs.append(pl.BlockSpec(w['wd'].shape, lambda i: (0, 0)))
        args.append(w['wd'])

    flops = n * (2 * m * k1 * p + 2 * m * k2 * p + (2 * m * ci * p if has_ds else 0))
    bytes_accessed = 2 * (x_in.size + w['w1'].size + w['w2'].size
                          + (w['wd'].size if has_ds else 0) + n * m * p)

    out = pl.pallas_call(
        partial(_basic_block_kernel, stride=stride, oh=oh, ow=ow,
                ci=ci, cslab=cslab, p=p, pslab=pslab, has_ds=has_ds),
        out_shape=jax.ShapeDtypeStruct((n, oh, ow, p), jnp.bfloat16),
        grid_spec=pltpu.PrefetchScalarGridSpec(
            num_scalar_prefetch=0,
            grid=(n,),                       # batch only: clean megacore split,
            in_specs=in_specs,               # weight blocks stay VMEM-resident
            out_specs=pl.BlockSpec((1, oh, ow, p), lambda i: (i, 0, 0, 0)),
            scratch_shapes=[xin_scratch,
                            pltpu.VMEM((oh + 2, ow + 2, pslab), jnp.float32),
                            pltpu.VMEM((m, 9 * max(cslab, pslab)), jnp.bfloat16)]),
        compiler_params=pltpu.CompilerParams(
            dimension_semantics=("parallel",),
            vmem_limit_bytes=_vmem_limit_bytes()),
        cost_estimate=pl.CostEstimate(flops=flops, transcendentals=0,
                                      bytes_accessed=bytes_accessed),
    )(*args)
    return out


# ---------------------------------------------------------------------------
# Parameters (kaiming fan_out like nn.Conv2d init in the module) and prep
# ---------------------------------------------------------------------------

def kaiming(key, shape):
    kh, kw, _, cout = shape
    std = math.sqrt(2.0 / (kh * kw * cout))      # kaiming_normal_, mode='fan_out'
    return jax.random.normal(key, shape, jnp.float32) * std


def init_block_weights(key, inplanes, planes, stride):
    """Raw f32 HWIO conv weights for one BasicBlock (bias-free convs + BN)."""
    k1, k2, kd = jax.random.split(key, 3)
    w = {'w1': kaiming(k1, (3, 3, inplanes, planes)),
         'w2': kaiming(k2, (3, 3, planes, planes))}
    if stride != 1 or inplanes != planes:
        w['wd'] = kaiming(kd, (1, 1, inplanes, planes))   # 1x1 downsample conv
    return w


def prep_conv_weight(w, pad_cin_to=None):
    """Fold eval-mode BN into the weight, optionally pad input channels to a lane
    multiple, and flatten to (kh*kw*Cin_slab, Cout) bf16, tap-major rows."""
    kh, kw, cin, cout = w.shape
    bn_scale = 1.0 / math.sqrt(1.0 + BN_EPS)     # gamma=1, beta=0, mean=0, var=1
    if pad_cin_to is None:
        pad_cin_to = cin
    wp = jnp.pad(w * bn_scale, ((0, 0), (0, 0), (0, pad_cin_to - cin), (0, 0)))
    return wp.reshape(kh * kw * pad_cin_to, cout).astype(jnp.bfloat16)


def prep_block_weights(w):
    ci = w['w1'].shape[2]
    p = w['w1'].shape[3]
    out = {'w1': prep_conv_weight(w['w1'], pad_cin_to=_round_up(ci, LANE)),
           'w2': prep_conv_weight(w['w2'], pad_cin_to=_round_up(p, LANE))}
    if 'wd' in w:
        out['wd'] = prep_conv_weight(w['wd'])    # (Cin, planes), dense
    return out


# ---------------------------------------------------------------------------
# Forward pass (BasicBlock semantics, method='none')
# ---------------------------------------------------------------------------

def make_forward(cfgs):
    """cfgs (strides / channel counts) are static; only weights/input are traced."""
    @jax.jit
    def forward(weights, x_nchw):
        x = jnp.transpose(x_nchw, (0, 2, 3, 1)).astype(jnp.bfloat16)   # NCHW -> NHWC
        for cfg, w in zip(cfgs, weights):
            x = basic_block_pallas(x, w, stride=cfg['stride'])
        return jnp.transpose(x.astype(jnp.float32), (0, 3, 1, 2))      # NHWC -> NCHW
    return forward


# ---------------------------------------------------------------------------
# Pure-JAX reference (validation only)
# ---------------------------------------------------------------------------

def _ref_conv_bn(x, w, stride, pad):
    y = lax.conv_general_dilated(x, w, window_strides=(stride, stride),
                                 padding=((pad, pad), (pad, pad)),
                                 dimension_numbers=("NHWC", "HWIO", "NHWC"))
    return y * (1.0 / math.sqrt(1.0 + BN_EPS))


def reference_forward(cfgs, weights, x_nchw):
    x = jnp.transpose(x_nchw, (0, 2, 3, 1))
    for cfg, w in zip(cfgs, weights):
        s = cfg['stride']
        out = jax.nn.relu(_ref_conv_bn(x, w['w1'], s, 1))
        out = _ref_conv_bn(out, w['w2'], 1, 1)
        identity = _ref_conv_bn(x, w['wd'], s, 0) if 'wd' in w else x
        x = jax.nn.relu(out + identity)
    return jnp.transpose(x, (0, 3, 1, 2))


# ---------------------------------------------------------------------------

if __name__ == "__main__":
    key = jax.random.PRNGKey(0)
    kb1, kb2, kx = jax.random.split(key, 3)

    # Two BasicBlocks as used inside a ResNet stage transition:
    #   block 1: 64 -> 64,  stride 1, plain identity shortcut
    #   block 2: 64 -> 128, stride 2, 1x1-conv downsample shortcut (fused in-kernel)
    cfgs = [dict(inplanes=64, planes=64, stride=1),
            dict(inplanes=64, planes=128, stride=2)]
    raw = [init_block_weights(kb1, **cfgs[0]),
           init_block_weights(kb2, **cfgs[1])]
    weights = [prep_block_weights(w) for w in raw]

    x = jax.random.normal(kx, (2, 64, 16, 16), jnp.float32)    # NCHW, like PyTorch

    fwd = make_forward(cfgs)
    out = jax.block_until_ready(fwd(weights, x))

    assert out.shape == (2, 128, 8, 8)
    assert bool(jnp.all(jnp.isfinite(out)))
    assert bool(jnp.all(out >= 0.0))                           # trailing ReLU

    ref = reference_forward(cfgs, raw, x)                      # f32 XLA reference
    assert bool(jnp.allclose(out, ref, atol=0.15, rtol=0.1)), \
        float(jnp.max(jnp.abs(out - ref)))

    print("KERNEL_OK")
</pallas_src>

<mosaic_0001>
module attributes {stable_mosaic.version = 11 : i64} {
  func.func @_basic_block_kernel(%arg0: i32, %arg1: memref<1x16x16x64xbf16, #tpu.memory_space<vmem>>, %arg2: memref<1152x64xbf16, #tpu.memory_space<vmem>>, %arg3: memref<1152x64xbf16, #tpu.memory_space<vmem>>, %arg4: memref<1x16x16x64xbf16, #tpu.memory_space<vmem>>, %arg5: memref<18x18x128xf32, #tpu.memory_space<vmem>>, %arg6: memref<18x18x128xf32, #tpu.memory_space<vmem>>, %arg7: memref<256x1152xbf16, #tpu.memory_space<vmem>>) attributes {dimension_semantics = [#tpu.dimension_semantics<parallel>], iteration_bounds = array<i64: 2>, scalar_prefetch = 0 : i64, scratch_operands = 3 : i64, tpu.core_type = #tpu.core_type<tc>, window_params = [{transform_indices = @transform_0, window_bounds = array<i64: 1, 16, 16, 64>}, {pipeline_mode = #tpu.pipeline_mode<synchronous>, transform_indices = @transform_1, window_bounds = array<i64: 1152, 64>}, {pipeline_mode = #tpu.pipeline_mode<synchronous>, transform_indices = @transform_2, window_bounds = array<i64: 1152, 64>}, {transform_indices = @transform_3, window_bounds = array<i64: 1, 16, 16, 64>}]} {
    %cst = arith.constant 0.000000e+00 : f32
    %0 = vector.broadcast %cst : f32 to vector<18x18x128xf32>
    %c0 = arith.constant 0 : index
    %c0_0 = arith.constant 0 : index
    %c0_1 = arith.constant 0 : index
    %1 = vector.load %arg5[%c0, %c0_0, %c0_1] : memref<18x18x128xf32, #tpu.memory_space<vmem>>, vector<18x18x128xf32>
    tpu.vector_store %arg5[%c0, %c0_0, %c0_1], %0 {strides = array<i32>} : memref<18x18x128xf32, #tpu.memory_space<vmem>>, vector<18x18x128xf32>,
    %c0_2 = arith.constant 0 : index
    %c0_3 = arith.constant 0 : index
    %c0_4 = arith.constant 0 : index
    %c0_5 = arith.constant 0 : index
    %2 = vector.load %arg1[%c0_2, %c0_3, %c0_4, %c0_5] : memref<1x16x16x64xbf16, #tpu.memory_space<vmem>>, vector<1x16x16x64xbf16>
    %3 = vector.shape_cast %2 : vector<1x16x16x64xbf16> to vector<16x16x64xbf16>
    %4 = arith.extf %3 : vector<16x16x64xbf16> to vector<16x16x64xf32>
    %c1 = arith.constant 1 : index
    %c1_6 = arith.constant 1 : index
    %c0_7 = arith.constant 0 : index
    %5 = vector.load %arg5[%c1, %c1_6, %c0_7] : memref<18x18x128xf32, #tpu.memory_space<vmem>>, vector<16x16x64xf32>
    tpu.vector_store %arg5[%c1, %c1_6, %c0_7], %4 {strides = array<i32>} : memref<18x18x128xf32, #tpu.memory_space<vmem>>, vector<16x16x64xf32>,
    %c0_8 = arith.constant 0 : index
    %c0_9 = arith.constant 0 : index
    %c0_10 = arith.constant 0 : index
    %6 = vector.load %arg5[%c0_8, %c0_9, %c0_10] : memref<18x18x128xf32, #tpu.memory_space<vmem>>, vector<16x16x128xf32>
    %7 = vector.shape_cast %6 : vector<16x16x128xf32> to vector<256x128xf32>
    %8 = arith.truncf %7 : vector<256x128xf32> to vector<256x128xbf16>
    %c0_11 = arith.constant 0 : index
    %c0_12 = arith.constant 0 : index
    %9 = vector.load %arg7[%c0_11, %c0_12] : memref<256x1152xbf16, #tpu.memory_space<vmem>>, vector<256x128xbf16>
    tpu.vector_store %arg7[%c0_11, %c0_12], %8 {strides = array<i32>} : memref<256x1152xbf16, #tpu.memory_space<vmem>>, vector<256x128xbf16>,
    %c0_13 = arith.constant 0 : index
    %c1_14 = arith.constant 1 : index
    %c0_15 = arith.constant 0 : index
    %10 = vector.load %arg5[%c0_13, %c1_14, %c0_15] : memref<18x18x128xf32, #tpu.memory_space<vmem>>, vector<16x16x128xf32>
    %11 = vector.shape_cast %10 : vector<16x16x128xf32> to vector<256x128xf32>
    %12 = arith.truncf %11 : vector<256x128xf32> to vector<256x128xbf16>
    %c0_16 = arith.constant 0 : index
    %c128 = arith.constant 128 : index
    %13 = vector.load %arg7[%c0_16, %c128] : memref<256x1152xbf16, #tpu.memory_space<vmem>>, vector<256x128xbf16>
    tpu.vector_store %arg7[%c0_16, %c128], %12 {strides = array<i32>} : memref<256x1152xbf16, #tpu.memory_space<vmem>>, vector<256x128xbf16>,
    %c0_17 = arith.constant 0 : index
    %c2 = arith.constant 2 : index
    %c0_18 = arith.constant 0 : index
    %14 = vector.load %arg5[%c0_17, %c2, %c0_18] : memref<18x18x128xf32, #tpu.memory_space<vmem>>, vector<16x16x128xf32>
    %15 = vector.shape_cast %14 : vector<16x16x128xf32> to vector<256x128xf32>
    %16 = arith.truncf %15 : vector<256x128xf32> to vector<256x128xbf16>
    %c0_19 = arith.constant 0 : index
    %c256 = arith.constant 256 : index
    %17 = vector.load %arg7[%c0_19, %c256] : memref<256x1152xbf16, #tpu.memory_space<vmem>>, vector<256x128xbf16>
    tpu.vector_store %arg7[%c0_19, %c256], %16 {strides = array<i32>} : memref<256x1152xbf16, #tpu.memory_space<vmem>>, vector<256x128xbf16>,
    %c1_20 = arith.constant 1 : index
    %c0_21 = arith.constant 0 : index
    %c0_22 = arith.constant 0 : index
    %18 = vector.load %arg5[%c1_20, %c0_21, %c0_22] : memref<18x18x128xf32, #tpu.memory_space<vmem>>, vector<16x16x128xf32>
    %19 = vector.shape_cast %18 : vector<16x16x128xf32> to vector<256x128xf32>
    %20 = arith.truncf %19 : vector<256x128xf32> to vector<256x128xbf16>
    %c0_23 = arith.constant 0 : index
    %c384 = arith.constant 384 : index
    %21 = vector.load %arg7[%c0_23, %c384] : memref<256x1152xbf16, #tpu.memory_space<vmem>>, vector<256x128xbf16>
    tpu.vector_store %arg7[%c0_23, %c384], %20 {strides = array<i32>} : memref<256x1152xbf16, #tpu.memory_space<vmem>>, vector<256x128xbf16>,
    %c1_24 = arith.constant 1 : index
    %c1_25 = arith.constant 1 : index
    %c0_26 = arith.constant 0 : index
    %22 = vector.load %arg5[%c1_24, %c1_25, %c0_26] : memref<18x18x128xf32, #tpu.memory_space<vmem>>, vector<16x16x128xf32>
    %23 = vector.shape_cast %22 : vector<16x16x128xf32> to vector<256x128xf32>
    %24 = arith.truncf %23 : vector<256x128xf32> to vector<256x128xbf16>
    %c0_27 = arith.constant 0 : index
    %c512 = arith.constant 512 : index
    %25 = vector.load %arg7[%c0_27, %c512] : memref<256x1152xbf16, #tpu.memory_space<vmem>>, vector<256x128xbf16>
    tpu.vector_store %arg7[%c0_27, %c512], %24 {strides = array<i32>} : memref<256x1152xbf16, #tpu.memory_space<vmem>>, vector<256x128xbf16>,
    %c1_28 = arith.constant 1 : index
    %c2_29 = arith.constant 2 : index
    %c0_30 = arith.constant 0 : index
    %26 = vector.load %arg5[%c1_28, %c2_29, %c0_30] : memref<18x18x128xf32, #tpu.memory_space<vmem>>, vector<16x16x128xf32>
    %27 = vector.shape_cast %26 : vector<16x16x128xf32> to vector<256x128xf32>
    %28 = arith.truncf %27 : vector<256x128xf32> to vector<256x128xbf16>
    %c0_31 = arith.constant 0 : index
    %c640 = arith.constant 640 : index
    %29 = vector.load %arg7[%c0_31, %c640] : memref<256x1152xbf16, #tpu.memory_space<vmem>>, vector<256x128xbf16>
    tpu.vector_store %arg7[%c0_31, %c640], %28 {strides = array<i32>} : memref<256x1152xbf16, #tpu.memory_space<vmem>>, vector<256x128xbf16>,
    %c2_32 = arith.constant 2 : index
    %c0_33 = arith.constant 0 : index
    %c0_34 = arith.constant 0 : index
    %30 = vector.load %arg5[%c2_32, %c0_33, %c0_34] : memref<18x18x128xf32, #tpu.memory_space<vmem>>, vector<16x16x128xf32>
    %31 = vector.shape_cast %30 : vector<16x16x128xf32> to vector<256x128xf32>
    %32 = arith.truncf %31 : vector<256x128xf32> to vector<256x128xbf16>
    %c0_35 = arith.constant 0 : index
    %c768 = arith.constant 768 : index
    %33 = vector.load %arg7[%c0_35, %c768] : memref<256x1152xbf16, #tpu.memory_space<vmem>>, vector<256x128xbf16>
    tpu.vector_store %arg7[%c0_35, %c768], %32 {strides = array<i32>} : memref<256x1152xbf16, #tpu.memory_space<vmem>>, vector<256x128xbf16>,
    %c2_36 = arith.constant 2 : index
    %c1_37 = arith.constant 1 : index
    %c0_38 = arith.constant 0 : index
    %34 = vector.load %arg5[%c2_36, %c1_37, %c0_38] : memref<18x18x128xf32, #tpu.memory_space<vmem>>, vector<16x16x128xf32>
    %35 = vector.shape_cast %34 : vector<16x16x128xf32> to vector<256x128xf32>
    %36 = arith.truncf %35 : vector<256x128xf32> to vector<256x128xbf16>
    %c0_39 = arith.constant 0 : index
    %c896 = arith.constant 896 : index
    %37 = vector.load %arg7[%c0_39, %c896] : memref<256x1152xbf16, #tpu.memory_space<vmem>>, vector<256x128xbf16>
    tpu.vector_store %arg7[%c0_39, %c896], %36 {strides = array<i32>} : memref<256x1152xbf16, #tpu.memory_space<vmem>>, vector<256x128xbf16>,
    %c2_40 = arith.constant 2 : index
    %c2_41 = arith.constant 2 : index
    %c0_42 = arith.constant 0 : index
    %38 = vector.load %arg5[%c2_40, %c2_41, %c0_42] : memref<18x18x128xf32, #tpu.memory_space<vmem>>, vector<16x16x128xf32>
    %39 = vector.shape_cast %38 : vector<16x16x128xf32> to vector<256x128xf32>
    %40 = arith.truncf %39 : vector<256x128xf32> to vector<256x128xbf16>
    %c0_43 = arith.constant 0 : index
    %c1024 = arith.constant 1024 : index
    %41 = vector.load %arg7[%c0_43, %c1024] : memref<256x1152xbf16, #tpu.memory_space<vmem>>, vector<256x128xbf16>
    tpu.vector_store %arg7[%c0_43, %c1024], %40 {strides = array<i32>} : memref<256x1152xbf16, #tpu.memory_space<vmem>>, vector<256x128xbf16>,
    %c0_44 = arith.constant 0 : index
    %c0_45 = arith.constant 0 : index
    %42 = vector.load %arg7[%c0_44, %c0_45] : memref<256x1152xbf16, #tpu.memory_space<vmem>>, vector<256x1152xbf16>
    %c0_46 = arith.constant 0 : index
    %c0_47 = arith.constant 0 : index
    %43 = vector.load %arg2[%c0_46, %c0_47] : memref<1152x64xbf16, #tpu.memory_space<vmem>>, vector<1152x64xbf16>
    %cst_48 = arith.constant dense<0.000000e+00> : vector<256x64xf32>
    %44 = tpu.matmul %42, %43, %cst_48 {dimension_numbers = #tpu.dot_dimension_numbers<[1], [0], [0], [1], [0, 0, 1, 1], [], []>} : vector<256x1152xbf16>, vector<1152x64xbf16>, vector<256x64xf32> -> vector<256x64xf32>
    %cst_49 = arith.constant 0.000000e+00 : f32
    %45 = vector.broadcast %cst_49 : f32 to vector<256x64xf32>
    %46 = arith.maximumf %44, %45 : vector<256x64xf32>
    %cst_50 = arith.constant 0.000000e+00 : f32
    %47 = vector.broadcast %cst_50 : f32 to vector<18x18x128xf32>
    %c0_51 = arith.constant 0 : index
    %c0_52 = arith.constant 0 : index
    %c0_53 = arith.constant 0 : index
    %48 = vector.load %arg6[%c0_51, %c0_52, %c0_53] : memref<18x18x128xf32, #tpu.memory_space<vmem>>, vector<18x18x128xf32>
    tpu.vector_store %arg6[%c0_51, %c0_52, %c0_53], %47 {strides = array<i32>} : memref<18x18x128xf32, #tpu.memory_space<vmem>>, vector<18x18x128xf32>,
    %49 = vector.shape_cast %46 : vector<256x64xf32> to vector<16x16x64xf32>
    %c1_54 = arith.constant 1 : index
    %c1_55 = arith.constant 1 : index
    %c0_56 = arith.constant 0 : index
    %50 = vector.load %arg6[%c1_54, %c1_55, %c0_56] : memref<18x18x128xf32, #tpu.memory_space<vmem>>, vector<16x16x64xf32>
    tpu.vector_store %arg6[%c1_54, %c1_55, %c0_56], %49 {strides = array<i32>} : memref<18x18x128xf32, #tpu.memory_space<vmem>>, vector<16x16x64xf32>,
    %c0_57 = arith.constant 0 : index
    %c0_58 = arith.constant 0 : index
    %c0_59 = arith.constant 0 : index
    %51 = vector.load %arg6[%c0_57, %c0_58, %c0_59] : memref<18x18x128xf32, #tpu.memory_space<vmem>>, vector<16x16x128xf32>
    %52 = vector.shape_cast %51 : vector<16x16x128xf32> to vector<256x128xf32>
    %53 = arith.truncf %52 : vector<256x128xf32> to vector<256x128xbf16>
    %c0_60 = arith.constant 0 : index
    %c0_61 = arith.constant 0 : index
    %54 = vector.load %arg7[%c0_60, %c0_61] : memref<256x1152xbf16, #tpu.memory_space<vmem>>, vector<256x128xbf16>
    tpu.vector_store %arg7[%c0_60, %c0_61], %53 {strides = array<i32>} : memref<256x1152xbf16, #tpu.memory_space<vmem>>, vector<256x128xbf16>,
    %c0_62 = arith.constant 0 : index
    %c1_63 = arith.constant 1 : index
    %c0_64 = arith.constant 0 : index
    %55 = vector.load %arg6[%c0_62, %c1_63, %c0_64] : memref<18x18x128xf32, #tpu.memory_space<vmem>>, vector<16x16x128xf32>
    %56 = vector.shape_cast %55 : vector<16x16x128xf32> to vector<256x128xf32>
    %57 = arith.truncf %56 : vector<256x128xf32> to vector<256x128xbf16>
    %c0_65 = arith.constant 0 : index
    %c128_66 = arith.constant 128 : index
    %58 = vector.load %arg7[%c0_65, %c128_66] : memref<256x1152xbf16, #tpu.memory_space<vmem>>, vector<256x128xbf16>
    tpu.vector_store %arg7[%c0_65, %c128_66], %57 {strides = array<i32>} : memref<256x1152xbf16, #tpu.memory_space<vmem>>, vector<256x128xbf16>,
    %c0_67 = arith.constant 0 : index
    %c2_68 = arith.constant 2 : index
    %c0_69 = arith.constant 0 : index
    %59 = vector.load %arg6[%c0_67, %c2_68, %c0_69] : memref<18x18x128xf32, #tpu.memory_space<vmem>>, vector<16x16x128xf32>
    %60 = vector.shape_cast %59 : vector<16x16x128xf32> to vector<256x128xf32>
    %61 = arith.truncf %60 : vector<256x128xf32> to vector<256x128xbf16>
    %c0_70 = arith.constant 0 : index
    %c256_71 = arith.constant 256 : index
    %62 = vector.load %arg7[%c0_70, %c256_71] : memref<256x1152xbf16, #tpu.memory_space<vmem>>, vector<256x128xbf16>
    tpu.vector_store %arg7[%c0_70, %c256_71], %61 {strides = array<i32>} : memref<256x1152xbf16, #tpu.memory_space<vmem>>, vector<256x128xbf16>,
    %c1_72 = arith.constant 1 : index
    %c0_73 = arith.constant 0 : index
    %c0_74 = arith.constant 0 : index
    %63 = vector.load %arg6[%c1_72, %c0_73, %c0_74] : memref<18x18x128xf32, #tpu.memory_space<vmem>>, vector<16x16x128xf32>
    %64 = vector.shape_cast %63 : vector<16x16x128xf32> to vector<256x128xf32>
    %65 = arith.truncf %64 : vector<256x128xf32> to vector<256x128xbf16>
    %c0_75 = arith.constant 0 : index
    %c384_76 = arith.constant 384 : index
    %66 = vector.load %arg7[%c0_75, %c384_76] : memref<256x1152xbf16, #tpu.memory_space<vmem>>, vector<256x128xbf16>
    tpu.vector_store %arg7[%c0_75, %c384_76], %65 {strides = array<i32>} : memref<256x1152xbf16, #tpu.memory_space<vmem>>, vector<256x128xbf16>,
    %c1_77 = arith.constant 1 : index
    %c1_78 = arith.constant 1 : index
    %c0_79 = arith.constant 0 : index
    %67 = vector.load %arg6[%c1_77, %c1_78, %c0_79] : memref<18x18x128xf32, #tpu.memory_space<vmem>>, vector<16x16x128xf32>
    %68 = vector.shape_cast %67 : vector<16x16x128xf32> to vector<256x128xf32>
    %69 = arith.truncf %68 : vector<256x128xf32> to vector<256x128xbf16>
    %c0_80 = arith.constant 0 : index
    %c512_81 = arith.constant 512 : index
    %70 = vector.load %arg7[%c0_80, %c512_81] : memref<256x1152xbf16, #tpu.memory_space<vmem>>, vector<256x128xbf16>
    tpu.vector_store %arg7[%c0_80, %c512_81], %69 {strides = array<i32>} : memref<256x1152xbf16, #tpu.memory_space<vmem>>, vector<256x128xbf16>,
    %c1_82 = arith.constant 1 : index
    %c2_83 = arith.constant 2 : index
    %c0_84 = arith.constant 0 : index
    %71 = vector.load %arg6[%c1_82, %c2_83, %c0_84] : memref<18x18x128xf32, #tpu.memory_space<vmem>>, vector<16x16x128xf32>
    %72 = vector.shape_cast %71 : vector<16x16x128xf32> to vector<256x128xf32>
    %73 = arith.truncf %72 : vector<256x128xf32> to vector<256x128xbf16>
    %c0_85 = arith.constant 0 : index
    %c640_86 = arith.constant 640 : index
    %74 = vector.load %arg7[%c0_85, %c640_86] : memref<256x1152xbf16, #tpu.memory_space<vmem>>, vector<256x128xbf16>
    tpu.vector_store %arg7[%c0_85, %c640_86], %73 {strides = array<i32>} : memref<256x1152xbf16, #tpu.memory_space<vmem>>, vector<256x128xbf16>,
    %c2_87 = arith.constant 2 : index
    %c0_88 = arith.constant 0 : index
    %c0_89 = arith.constant 0 : index
    %75 = vector.load %arg6[%c2_87, %c0_88, %c0_89] : memref<18x18x128xf32, #tpu.memory_space<vmem>>, vector<16x16x128xf32>
    %76 = vector.shape_cast %75 : vector<16x16x128xf32> to vector<256x128xf32>
    %77 = arith.truncf %76 : vector<256x128xf32> to vector<256x128xbf16>
    %c0_90 = arith.constant 0 : index
    %c768_91 = arith.constant 768 : index
    %78 = vector.load %arg7[%c0_90, %c768_91] : memref<256x1152xbf16, #tpu.memory_space<vmem>>, vector<256x128xbf16>
    tpu.vector_store %arg7[%c0_90, %c768_91], %77 {strides = array<i32>} : memref<256x1152xbf16, #tpu.memory_space<vmem>>, vector<256x128xbf16>,
    %c2_92 = arith.constant 2 : index
    %c1_93 = arith.constant 1 : index
    %c0_94 = arith.constant 0 : index
    %79 = vector.load %arg6[%c2_92, %c1_93, %c0_94] : memref<18x18x128xf32, #tpu.memory_space<vmem>>, vector<16x16x128xf32>
    %80 = vector.shape_cast %79 : vector<16x16x128xf32> to vector<256x128xf32>
    %81 = arith.truncf %80 : vector<256x128xf32> to vector<256x128xbf16>
    %c0_95 = arith.constant 0 : index
    %c896_96 = arith.constant 896 : index
    %82 = vector.load %arg7[%c0_95, %c896_96] : memref<256x1152xbf16, #tpu.memory_space<vmem>>, vector<256x128xbf16>
    tpu.vector_store %arg7[%c0_95, %c896_96], %81 {strides = array<i32>} : memref<256x1152xbf16, #tpu.memory_space<vmem>>, vector<256x128xbf16>,
    %c2_97 = arith.constant 2 : index
    %c2_98 = arith.constant 2 : index
    %c0_99 = arith.constant 0 : index
    %83 = vector.load %arg6[%c2_97, %c2_98, %c0_99] : memref<18x18x128xf32, #tpu.memory_space<vmem>>, vector<16x16x128xf32>
    %84 = vector.shape_cast %83 : vector<16x16x128xf32> to vector<256x128xf32>
    %85 = arith.truncf %84 : vector<256x128xf32> to vector<256x128xbf16>
    %c0_100 = arith.constant 0 : index
    %c1024_101 = arith.constant 1024 : index
    %86 = vector.load %arg7[%c0_100, %c1024_101] : memref<256x1152xbf16, #tpu.memory_space<vmem>>, vector<256x128xbf16>
    tpu.vector_store %arg7[%c0_100, %c1024_101], %85 {strides = array<i32>} : memref<256x1152xbf16, #tpu.memory_space<vmem>>, vector<256x128xbf16>,
    %c0_102 = arith.constant 0 : index
    %c0_103 = arith.constant 0 : index
    %87 = vector.load %arg7[%c0_102, %c0_103] : memref<256x1152xbf16, #tpu.memory_space<vmem>>, vector<256x1152xbf16>
    %c0_104 = arith.constant 0 : index
    %c0_105 = arith.constant 0 : index
    %88 = vector.load %arg3[%c0_104, %c0_105] : memref<1152x64xbf16, #tpu.memory_space<vmem>>, vector<1152x64xbf16>
    %cst_106 = arith.constant dense<0.000000e+00> : vector<256x64xf32>
    %89 = tpu.matmul %87, %88, %cst_106 {dimension_numbers = #tpu.dot_dimension_numbers<[1], [0], [0], [1], [0, 0, 1, 1], [], []>} : vector<256x1152xbf16>, vector<1152x64xbf16>, vector<256x64xf32> -> vector<256x64xf32>
    %c1_107 = arith.constant 1 : index
    %c1_108 = arith.constant 1 : index
    %c0_109 = arith.constant 0 : index
    %90 = vector.load %arg5[%c1_107, %c1_108, %c0_109] : memref<18x18x128xf32, #tpu.memory_space<vmem>>, vector<16x16x64xf32>
    %91 = vector.shape_cast %90 : vector<16x16x64xf32> to vector<256x64xf32>
    %92 = arith.addf %89, %91 : vector<256x64xf32>
    %cst_110 = arith.constant 0.000000e+00 : f32
    %93 = vector.broadcast %cst_110 : f32 to vector<256x64xf32>
    %94 = arith.maximumf %92, %93 : vector<256x64xf32>
    %95 = vector.shape_cast %94 : vector<256x64xf32> to vector<16x16x64xf32>
    %96 = arith.truncf %95 : vector<16x16x64xf32> to vector<16x16x64xbf16>
    %c0_111 = arith.constant 0 : index
    %c0_112 = arith.constant 0 : index
    %c0_113 = arith.constant 0 : index
    %c0_114 = arith.constant 0 : index
    %97 = vector.load %arg4[%c0_111, %c0_112, %c0_113, %c0_114] : memref<1x16x16x64xbf16, #tpu.memory_space<vmem>>, vector<1x16x16x64xbf16>
    %98 = vector.shape_cast %97 : vector<1x16x16x64xbf16> to vector<16x16x64xbf16>
    %99 = vector.shape_cast %96 : vector<16x16x64xbf16> to vector<1x16x16x64xbf16>
    tpu.vector_store %arg4[%c0_111, %c0_112, %c0_113, %c0_114], %99 {strides = array<i32>} : memref<1x16x16x64xbf16, #tpu.memory_space<vmem>>, vector<1x16x16x64xbf16>,
    return
  }
  func.func @transform_0(%arg0: i32) -> (i32, i32, i32, i32) {
    %c0_i32 = arith.constant 0 : i32
    %c0_i32_0 = arith.constant 0 : i32
    %c0_i32_1 = arith.constant 0 : i32
    %c0_i32_2 = arith.constant 0 : i32
    return %arg0, %c0_i32, %c0_i32_0, %c0_i32_1 : i32, i32, i32, i32
  }
  func.func @transform_1(%arg0: i32) -> (i32, i32) {
    %c0_i32 = arith.constant 0 : i32
    %c0_i32_0 = arith.constant 0 : i32
    %c0_i32_1 = arith.constant 0 : i32
    return %c0_i32, %c0_i32_0 : i32, i32
  }
  func.func @transform_2(%arg0: i32) -> (i32, i32) {
    %c0_i32 = arith.constant 0 : i32
    %c0_i32_0 = arith.constant 0 : i32
    %c0_i32_1 = arith.constant 0 : i32
    return %c0_i32, %c0_i32_0 : i32, i32
  }
  func.func @transform_3(%arg0: i32) -> (i32, i32, i32, i32) {
    %c0_i32 = arith.constant 0 : i32
    %c0_i32_0 = arith.constant 0 : i32
    %c0_i32_1 = arith.constant 0 : i32
    %c0_i32_2 = arith.constant 0 : i32
    return %arg0, %c0_i32, %c0_i32_0, %c0_i32_1 : i32, i32, i32, i32
  }
}

module attributes {stable_mosaic.version = 11 : i64} {
  func.func @_basic_block_kernel(%arg0: i32, %arg1: memref<1x2x2x8x8x64xbf16, #tpu.memory_space<vmem>>, %arg2: memref<1152x128xbf16, #tpu.memory_space<vmem>>, %arg3: memref<1152x128xbf16, #tpu.memory_space<vmem>>, %arg4: memref<64x128xbf16, #tpu.memory_space<vmem>>, %arg5: memref<1x8x8x128xbf16, #tpu.memory_space<vmem>>, %arg6: memref<2x2x9x9x128xf32, #tpu.memory_space<vmem>>, %arg7: memref<10x10x128xf32, #tpu.memory_space<vmem>>, %arg8: memref<64x1152xbf16, #tpu.memory_space<vmem>>) attributes {dimension_semantics = [#tpu.dimension_semantics<parallel>], iteration_bounds = array<i64: 2>, scalar_prefetch = 0 : i64, scratch_operands = 3 : i64, tpu.core_type = #tpu.core_type<tc>, window_params = [{transform_indices = @transform_0, window_bounds = array<i64: 1, 2, 2, 8, 8, 64>}, {pipeline_mode = #tpu.pipeline_mode<synchronous>, transform_indices = @transform_1, window_bounds = array<i64: 1152, 128>}, {pipeline_mode = #tpu.pipeline_mode<synchronous>, transform_indices = @transform_2, window_bounds = array<i64: 1152, 128>}, {pipeline_mode = #tpu.pipeline_mode<synchronous>, transform_indices = @transform_3, window_bounds = array<i64: 64, 128>}, {transform_indices = @transform_4, window_bounds = array<i64: 1, 8, 8, 128>}]} {
    %cst = arith.constant 0.000000e+00 : f32
    %0 = vector.broadcast %cst : f32 to vector<2x2x9x9x128xf32>
    %c0 = arith.constant 0 : index
    %c0_0 = arith.constant 0 : index
    %c0_1 = arith.constant 0 : index
    %c0_2 = arith.constant 0 : index
    %c0_3 = arith.constant 0 : index
    %1 = vector.load %arg6[%c0, %c0_0, %c0_1, %c0_2, %c0_3] : memref<2x2x9x9x128xf32, #tpu.memory_space<vmem>>, vector<2x2x9x9x128xf32>
    tpu.vector_store %arg6[%c0, %c0_0, %c0_1, %c0_2, %c0_3], %0 {strides = array<i32>} : memref<2x2x9x9x128xf32, #tpu.memory_space<vmem>>, vector<2x2x9x9x128xf32>,
    %c0_4 = arith.constant 0 : index
    %c1 = arith.constant 1 : index
    %c1_5 = arith.constant 1 : index
    %c0_6 = arith.constant 0 : index
    %c0_7 = arith.constant 0 : index
    %c0_8 = arith.constant 0 : index
    %2 = vector.load %arg1[%c0_4, %c1, %c1_5, %c0_6, %c0_7, %c0_8] : memref<1x2x2x8x8x64xbf16, #tpu.memory_space<vmem>>, vector<1x1x1x8x8x64xbf16>
    %3 = vector.shape_cast %2 : vector<1x1x1x8x8x64xbf16> to vector<8x8x64xbf16>
    %4 = arith.extf %3 : vector<8x8x64xbf16> to vector<8x8x64xf32>
    %c0_9 = arith.constant 0 : index
    %c0_10 = arith.constant 0 : index
    %c1_11 = arith.constant 1 : index
    %c1_12 = arith.constant 1 : index
    %c0_13 = arith.constant 0 : index
    %5 = vector.load %arg6[%c0_9, %c0_10, %c1_11, %c1_12, %c0_13] : memref<2x2x9x9x128xf32, #tpu.memory_space<vmem>>, vector<1x1x8x8x64xf32>
    %6 = vector.shape_cast %5 : vector<1x1x8x8x64xf32> to vector<8x8x64xf32>
    %7 = vector.shape_cast %4 : vector<8x8x64xf32> to vector<1x1x8x8x64xf32>
    tpu.vector_store %arg6[%c0_9, %c0_10, %c1_11, %c1_12, %c0_13], %7 {strides = array<i32>} : memref<2x2x9x9x128xf32, #tpu.memory_space<vmem>>, vector<1x1x8x8x64xf32>,
    %c0_14 = arith.constant 0 : index
    %c1_15 = arith.constant 1 : index
    %c0_16 = arith.constant 0 : index
    %c0_17 = arith.constant 0 : index
    %c0_18 = arith.constant 0 : index
    %c0_19 = arith.constant 0 : index
    %8 = vector.load %arg1[%c0_14, %c1_15, %c0_16, %c0_17, %c0_18, %c0_19] : memref<1x2x2x8x8x64xbf16, #tpu.memory_space<vmem>>, vector<1x1x1x8x8x64xbf16>
    %9 = vector.shape_cast %8 : vector<1x1x1x8x8x64xbf16> to vector<8x8x64xbf16>
    %10 = arith.extf %9 : vector<8x8x64xbf16> to vector<8x8x64xf32>
    %c0_20 = arith.constant 0 : index
    %c1_21 = arith.constant 1 : index
    %c1_22 = arith.constant 1 : index
    %c0_23 = arith.constant 0 : index
    %c0_24 = arith.constant 0 : index
    %11 = vector.load %arg6[%c0_20, %c1_21, %c1_22, %c0_23, %c0_24] : memref<2x2x9x9x128xf32, #tpu.memory_space<vmem>>, vector<1x1x8x8x64xf32>
    %12 = vector.shape_cast %11 : vector<1x1x8x8x64xf32> to vector<8x8x64xf32>
    %13 = vector.shape_cast %10 : vector<8x8x64xf32> to vector<1x1x8x8x64xf32>
    tpu.vector_store %arg6[%c0_20, %c1_21, %c1_22, %c0_23, %c0_24], %13 {strides = array<i32>} : memref<2x2x9x9x128xf32, #tpu.memory_space<vmem>>, vector<1x1x8x8x64xf32>,
    %c0_25 = arith.constant 0 : index
    %c0_26 = arith.constant 0 : index
    %c1_27 = arith.constant 1 : index
    %c0_28 = arith.constant 0 : index
    %c0_29 = arith.constant 0 : index
    %c0_30 = arith.constant 0 : index
    %14 = vector.load %arg1[%c0_25, %c0_26, %c1_27, %c0_28, %c0_29, %c0_30] : memref<1x2x2x8x8x64xbf16, #tpu.memory_space<vmem>>, vector<1x1x1x8x8x64xbf16>
    %15 = vector.shape_cast %14 : vector<1x1x1x8x8x64xbf16> to vector<8x8x64xbf16>
    %16 = arith.extf %15 : vector<8x8x64xbf16> to vector<8x8x64xf32>
    %c1_31 = arith.constant 1 : index
    %c0_32 = arith.constant 0 : index
    %c0_33 = arith.constant 0 : index
    %c1_34 = arith.constant 1 : index
    %c0_35 = arith.constant 0 : index
    %17 = vector.load %arg6[%c1_31, %c0_32, %c0_33, %c1_34, %c0_35] : memref<2x2x9x9x128xf32, #tpu.memory_space<vmem>>, vector<1x1x8x8x64xf32>
    %18 = vector.shape_cast %17 : vector<1x1x8x8x64xf32> to vector<8x8x64xf32>
    %19 = vector.shape_cast %16 : vector<8x8x64xf32> to vector<1x1x8x8x64xf32>
    tpu.vector_store %arg6[%c1_31, %c0_32, %c0_33, %c1_34, %c0_35], %19 {strides = array<i32>} : memref<2x2x9x9x128xf32, #tpu.memory_space<vmem>>, vector<1x1x8x8x64xf32>,
    %c0_36 = arith.constant 0 : index
    %c0_37 = arith.constant 0 : index
    %c0_38 = arith.constant 0 : index
    %c0_39 = arith.constant 0 : index
    %c0_40 = arith.constant 0 : index
    %c0_41 = arith.constant 0 : index
    %20 = vector.load %arg1[%c0_36, %c0_37, %c0_38, %c0_39, %c0_40, %c0_41] : memref<1x2x2x8x8x64xbf16, #tpu.memory_space<vmem>>, vector<1x1x1x8x8x64xbf16>
    %21 = vector.shape_cast %20 : vector<1x1x1x8x8x64xbf16> to vector<8x8x64xbf16>
    %22 = arith.extf %21 : vector<8x8x64xbf16> to vector<8x8x64xf32>
    %c1_42 = arith.constant 1 : index
    %c1_43 = arith.constant 1 : index
    %c0_44 = arith.constant 0 : index
    %c0_45 = arith.constant 0 : index
    %c0_46 = arith.constant 0 : index
    %23 = vector.load %arg6[%c1_42, %c1_43, %c0_44, %c0_45, %c0_46] : memref<2x2x9x9x128xf32, #tpu.memory_space<vmem>>, vector<1x1x8x8x64xf32>
    %24 = vector.shape_cast %23 : vector<1x1x8x8x64xf32> to vector<8x8x64xf32>
    %25 = vector.shape_cast %22 : vector<8x8x64xf32> to vector<1x1x8x8x64xf32>
    tpu.vector_store %arg6[%c1_42, %c1_43, %c0_44, %c0_45, %c0_46], %25 {strides = array<i32>} : memref<2x2x9x9x128xf32, #tpu.memory_space<vmem>>, vector<1x1x8x8x64xf32>,
    %c0_47 = arith.constant 0 : index
    %c0_48 = arith.constant 0 : index
    %c0_49 = arith.constant 0 : index
    %c0_50 = arith.constant 0 : index
    %c0_51 = arith.constant 0 : index
    %26 = vector.load %arg6[%c0_47, %c0_48, %c0_49, %c0_50, %c0_51] : memref<2x2x9x9x128xf32, #tpu.memory_space<vmem>>, vector<1x1x8x8x128xf32>
    %27 = vector.shape_cast %26 : vector<1x1x8x8x128xf32> to vector<8x8x128xf32>
    %28 = vector.shape_cast %27 : vector<8x8x128xf32> to vector<64x128xf32>
    %29 = arith.truncf %28 : vector<64x128xf32> to vector<64x128xbf16>
    %c0_52 = arith.constant 0 : index
    %c0_53 = arith.constant 0 : index
    %30 = vector.load %arg8[%c0_52, %c0_53] : memref<64x1152xbf16, #tpu.memory_space<vmem>>, vector<64x128xbf16>
    tpu.vector_store %arg8[%c0_52, %c0_53], %29 {strides = array<i32>} : memref<64x1152xbf16, #tpu.memory_space<vmem>>, vector<64x128xbf16>,
    %c0_54 = arith.constant 0 : index
    %c1_55 = arith.constant 1 : index
    %c0_56 = arith.constant 0 : index
    %c0_57 = arith.constant 0 : index
    %c0_58 = arith.constant 0 : index
    %31 = vector.load %arg6[%c0_54, %c1_55, %c0_56, %c0_57, %c0_58] : memref<2x2x9x9x128xf32, #tpu.memory_space<vmem>>, vector<1x1x8x8x128xf32>
    %32 = vector.shape_cast %31 : vector<1x1x8x8x128xf32> to vector<8x8x128xf32>
    %33 = vector.shape_cast %32 : vector<8x8x128xf32> to vector<64x128xf32>
    %34 = arith.truncf %33 : vector<64x128xf32> to vector<64x128xbf16>
    %c0_59 = arith.constant 0 : index
    %c128 = arith.constant 128 : index
    %35 = vector.load %arg8[%c0_59, %c128] : memref<64x1152xbf16, #tpu.memory_space<vmem>>, vector<64x128xbf16>
    tpu.vector_store %arg8[%c0_59, %c128], %34 {strides = array<i32>} : memref<64x1152xbf16, #tpu.memory_space<vmem>>, vector<64x128xbf16>,
    %c0_60 = arith.constant 0 : index
    %c0_61 = arith.constant 0 : index
    %c0_62 = arith.constant 0 : index
    %c1_63 = arith.constant 1 : index
    %c0_64 = arith.constant 0 : index
    %36 = vector.load %arg6[%c0_60, %c0_61, %c0_62, %c1_63, %c0_64] : memref<2x2x9x9x128xf32, #tpu.memory_space<vmem>>, vector<1x1x8x8x128xf32>
    %37 = vector.shape_cast %36 : vector<1x1x8x8x128xf32> to vector<8x8x128xf32>
    %38 = vector.shape_cast %37 : vector<8x8x128xf32> to vector<64x128xf32>
    %39 = arith.truncf %38 : vector<64x128xf32> to vector<64x128xbf16>
    %c0_65 = arith.constant 0 : index
    %c256 = arith.constant 256 : index
    %40 = vector.load %arg8[%c0_65, %c256] : memref<64x1152xbf16, #tpu.memory_space<vmem>>, vector<64x128xbf16>
    tpu.vector_store %arg8[%c0_65, %c256], %39 {strides = array<i32>} : memref<64x1152xbf16, #tpu.memory_space<vmem>>, vector<64x128xbf16>,
    %c1_66 = arith.constant 1 : index
    %c0_67 = arith.constant 0 : index
    %c0_68 = arith.constant 0 : index
    %c0_69 = arith.constant 0 : index
    %c0_70 = arith.constant 0 : index
    %41 = vector.load %arg6[%c1_66, %c0_67, %c0_68, %c0_69, %c0_70] : memref<2x2x9x9x128xf32, #tpu.memory_space<vmem>>, vector<1x1x8x8x128xf32>
    %42 = vector.shape_cast %41 : vector<1x1x8x8x128xf32> to vector<8x8x128xf32>
    %43 = vector.shape_cast %42 : vector<8x8x128xf32> to vector<64x128xf32>
    %44 = arith.truncf %43 : vector<64x128xf32> to vector<64x128xbf16>
    %c0_71 = arith.constant 0 : index
    %c384 = arith.constant 384 : index
    %45 = vector.load %arg8[%c0_71, %c384] : memref<64x1152xbf16, #tpu.memory_space<vmem>>, vector<64x128xbf16>
    tpu.vector_store %arg8[%c0_71, %c384], %44 {strides = array<i32>} : memref<64x1152xbf16, #tpu.memory_space<vmem>>, vector<64x128xbf16>,
    %c1_72 = arith.constant 1 : index
    %c1_73 = arith.constant 1 : index
    %c0_74 = arith.constant 0 : index
    %c0_75 = arith.constant 0 : index
    %c0_76 = arith.constant 0 : index
    %46 = vector.load %arg6[%c1_72, %c1_73, %c0_74, %c0_75, %c0_76] : memref<2x2x9x9x128xf32, #tpu.memory_space<vmem>>, vector<1x1x8x8x128xf32>
    %47 = vector.shape_cast %46 : vector<1x1x8x8x128xf32> to vector<8x8x128xf32>
    %48 = vector.shape_cast %47 : vector<8x8x128xf32> to vector<64x128xf32>
    %49 = arith.truncf %48 : vector<64x128xf32> to vector<64x128xbf16>
    %c0_77 = arith.constant 0 : index
    %c512 = arith.constant 512 : index
    %50 = vector.load %arg8[%c0_77, %c512] : memref<64x1152xbf16, #tpu.memory_space<vmem>>, vector<64x128xbf16>
    tpu.vector_store %arg8[%c0_77, %c512], %49 {strides = array<i32>} : memref<64x1152xbf16, #tpu.memory_space<vmem>>, vector<64x128xbf16>,
    %c1_78 = arith.constant 1 : index
    %c0_79 = arith.constant 0 : index
    %c0_80 = arith.constant 0 : index
    %c1_81 = arith.constant 1 : index
    %c0_82 = arith.constant 0 : index
    %51 = vector.load %arg6[%c1_78, %c0_79, %c0_80, %c1_81, %c0_82] : memref<2x2x9x9x128xf32, #tpu.memory_space<vmem>>, vector<1x1x8x8x128xf32>
    %52 = vector.shape_cast %51 : vector<1x1x8x8x128xf32> to vector<8x8x128xf32>
    %53 = vector.shape_cast %52 : vector<8x8x128xf32> to vector<64x128xf32>
    %54 = arith.truncf %53 : vector<64x128xf32> to vector<64x128xbf16>
    %c0_83 = arith.constant 0 : index
    %c640 = arith.constant 640 : index
    %55 = vector.load %arg8[%c0_83, %c640] : memref<64x1152xbf16, #tpu.memory_space<vmem>>, vector<64x128xbf16>
    tpu.vector_store %arg8[%c0_83, %c640], %54 {strides = array<i32>} : memref<64x1152xbf16, #tpu.memory_space<vmem>>, vector<64x128xbf16>,
    %c0_84 = arith.constant 0 : index
    %c0_85 = arith.constant 0 : index
    %c1_86 = arith.constant 1 : index
    %c0_87 = arith.constant 0 : index
    %c0_88 = arith.constant 0 : index
    %56 = vector.load %arg6[%c0_84, %c0_85, %c1_86, %c0_87, %c0_88] : memref<2x2x9x9x128xf32, #tpu.memory_space<vmem>>, vector<1x1x8x8x128xf32>
    %57 = vector.shape_cast %56 : vector<1x1x8x8x128xf32> to vector<8x8x128xf32>
    %58 = vector.shape_cast %57 : vector<8x8x128xf32> to vector<64x128xf32>
    %59 = arith.truncf %58 : vector<64x128xf32> to vector<64x128xbf16>
    %c0_89 = arith.constant 0 : index
    %c768 = arith.constant 768 : index
    %60 = vector.load %arg8[%c0_89, %c768] : memref<64x1152xbf16, #tpu.memory_space<vmem>>, vector<64x128xbf16>
    tpu.vector_store %arg8[%c0_89, %c768], %59 {strides = array<i32>} : memref<64x1152xbf16, #tpu.memory_space<vmem>>, vector<64x128xbf16>,
    %c0_90 = arith.constant 0 : index
    %c1_91 = arith.constant 1 : index
    %c1_92 = arith.constant 1 : index
    %c0_93 = arith.constant 0 : index
    %c0_94 = arith.constant 0 : index
    %61 = vector.load %arg6[%c0_90, %c1_91, %c1_92, %c0_93, %c0_94] : memref<2x2x9x9x128xf32, #tpu.memory_space<vmem>>, vector<1x1x8x8x128xf32>
    %62 = vector.shape_cast %61 : vector<1x1x8x8x128xf32> to vector<8x8x128xf32>
    %63 = vector.shape_cast %62 : vector<8x8x128xf32> to vector<64x128xf32>
    %64 = arith.truncf %63 : vector<64x128xf32> to vector<64x128xbf16>
    %c0_95 = arith.constant 0 : index
    %c896 = arith.constant 896 : index
    %65 = vector.load %arg8[%c0_95, %c896] : memref<64x1152xbf16, #tpu.memory_space<vmem>>, vector<64x128xbf16>
    tpu.vector_store %arg8[%c0_95, %c896], %64 {strides = array<i32>} : memref<64x1152xbf16, #tpu.memory_space<vmem>>, vector<64x128xbf16>,
    %c0_96 = arith.constant 0 : index
    %c0_97 = arith.constant 0 : index
    %c1_98 = arith.constant 1 : index
    %c1_99 = arith.constant 1 : index
    %c0_100 = arith.constant 0 : index
    %66 = vector.load %arg6[%c0_96, %c0_97, %c1_98, %c1_99, %c0_100] : memref<2x2x9x9x128xf32, #tpu.memory_space<vmem>>, vector<1x1x8x8x128xf32>
    %67 = vector.shape_cast %66 : vector<1x1x8x8x128xf32> to vector<8x8x128xf32>
    %68 = vector.shape_cast %67 : vector<8x8x128xf32> to vector<64x128xf32>
    %69 = arith.truncf %68 : vector<64x128xf32> to vector<64x128xbf16>
    %c0_101 = arith.constant 0 : index
    %c1024 = arith.constant 1024 : index
    %70 = vector.load %arg8[%c0_101, %c1024] : memref<64x1152xbf16, #tpu.memory_space<vmem>>, vector<64x128xbf16>
    tpu.vector_store %arg8[%c0_101, %c1024], %69 {strides = array<i32>} : memref<64x1152xbf16, #tpu.memory_space<vmem>>, vector<64x128xbf16>,
    %c0_102 = arith.constant 0 : index
    %c0_103 = arith.constant 0 : index
    %71 = vector.load %arg8[%c0_102, %c0_103] : memref<64x1152xbf16, #tpu.memory_space<vmem>>, vector<64x1152xbf16>
    %c0_104 = arith.constant 0 : index
    %c0_105 = arith.constant 0 : index
    %72 = vector.load %arg2[%c0_104, %c0_105] : memref<1152x128xbf16, #tpu.memory_space<vmem>>, vector<1152x128xbf16>
    %cst_106 = arith.constant dense<0.000000e+00> : vector<64x128xf32>
    %73 = tpu.matmul %71, %72, %cst_106 {dimension_numbers = #tpu.dot_dimension_numbers<[1], [0], [0], [1], [0, 0, 1, 1], [], []>} : vector<64x1152xbf16>, vector<1152x128xbf16>, vector<64x128xf32> -> vector<64x128xf32>
    %cst_107 = arith.constant 0.000000e+00 : f32
    %74 = vector.broadcast %cst_107 : f32 to vector<64x128xf32>
    %75 = arith.maximumf %73, %74 : vector<64x128xf32>
    %cst_108 = arith.constant 0.000000e+00 : f32
    %76 = vector.broadcast %cst_108 : f32 to vector<10x10x128xf32>
    %c0_109 = arith.constant 0 : index
    %c0_110 = arith.constant 0 : index
    %c0_111 = arith.constant 0 : index
    %77 = vector.load %arg7[%c0_109, %c0_110, %c0_111] : memref<10x10x128xf32, #tpu.memory_space<vmem>>, vector<10x10x128xf32>
    tpu.vector_store %arg7[%c0_109, %c0_110, %c0_111], %76 {strides = array<i32>} : memref<10x10x128xf32, #tpu.memory_space<vmem>>, vector<10x10x128xf32>,
    %78 = vector.shape_cast %75 : vector<64x128xf32> to vector<8x8x128xf32>
    %c1_112 = arith.constant 1 : index
    %c1_113 = arith.constant 1 : index
    %c0_114 = arith.constant 0 : index
    %79 = vector.load %arg7[%c1_112, %c1_113, %c0_114] : memref<10x10x128xf32, #tpu.memory_space<vmem>>, vector<8x8x128xf32>
    tpu.vector_store %arg7[%c1_112, %c1_113, %c0_114], %78 {strides = array<i32>} : memref<10x10x128xf32, #tpu.memory_space<vmem>>, vector<8x8x128xf32>,
    %c0_115 = arith.constant 0 : index
    %c0_116 = arith.constant 0 : index
    %c0_117 = arith.constant 0 : index
    %80 = vector.load %arg7[%c0_115, %c0_116, %c0_117] : memref<10x10x128xf32, #tpu.memory_space<vmem>>, vector<8x8x128xf32>
    %81 = vector.shape_cast %80 : vector<8x8x128xf32> to vector<64x128xf32>
    %82 = arith.truncf %81 : vector<64x128xf32> to vector<64x128xbf16>
    %c0_118 = arith.constant 0 : index
    %c0_119 = arith.constant 0 : index
    %83 = vector.load %arg8[%c0_118, %c0_119] : memref<64x1152xbf16, #tpu.memory_space<vmem>>, vector<64x128xbf16>
    tpu.vector_store %arg8[%c0_118, %c0_119], %82 {strides = array<i32>} : memref<64x1152xbf16, #tpu.memory_space<vmem>>, vector<64x128xbf16>,
    %c0_120 = arith.constant 0 : index
    %c1_121 = arith.constant 1 : index
    %c0_122 = arith.constant 0 : index
    %84 = vector.load %arg7[%c0_120, %c1_121, %c0_122] : memref<10x10x128xf32, #tpu.memory_space<vmem>>, vector<8x8x128xf32>
    %85 = vector.shape_cast %84 : vector<8x8x128xf32> to vector<64x128xf32>
    %86 = arith.truncf %85 : vector<64x128xf32> to vector<64x128xbf16>
    %c0_123 = arith.constant 0 : index
    %c128_124 = arith.constant 128 : index
    %87 = vector.load %arg8[%c0_123, %c128_124] : memref<64x1152xbf16, #tpu.memory_space<vmem>>, vector<64x128xbf16>
    tpu.vector_store %arg8[%c0_123, %c128_124], %86 {strides = array<i32>} : memref<64x1152xbf16, #tpu.memory_space<vmem>>, vector<64x128xbf16>,
    %c0_125 = arith.constant 0 : index
    %c2 = arith.constant 2 : index
    %c0_126 = arith.constant 0 : index
    %88 = vector.load %arg7[%c0_125, %c2, %c0_126] : memref<10x10x128xf32, #tpu.memory_space<vmem>>, vector<8x8x128xf32>
    %89 = vector.shape_cast %88 : vector<8x8x128xf32> to vector<64x128xf32>
    %90 = arith.truncf %89 : vector<64x128xf32> to vector<64x128xbf16>
    %c0_127 = arith.constant 0 : index
    %c256_128 = arith.constant 256 : index
    %91 = vector.load %arg8[%c0_127, %c256_128] : memref<64x1152xbf16, #tpu.memory_space<vmem>>, vector<64x128xbf16>
    tpu.vector_store %arg8[%c0_127, %c256_128], %90 {strides = array<i32>} : memref<64x1152xbf16, #tpu.memory_space<vmem>>, vector<64x128xbf16>,
    %c1_129 = arith.constant 1 : index
    %c0_130 = arith.constant 0 : index
    %c0_131 = arith.constant 0 : index
    %92 = vector.load %arg7[%c1_129, %c0_130, %c0_131] : memref<10x10x128xf32, #tpu.memory_space<vmem>>, vector<8x8x128xf32>
    %93 = vector.shape_cast %92 : vector<8x8x128xf32> to vector<64x128xf32>
    %94 = arith.truncf %93 : vector<64x128xf32> to vector<64x128xbf16>
    %c0_132 = arith.constant 0 : index
    %c384_133 = arith.constant 384 : index
    %95 = vector.load %arg8[%c0_132, %c384_133] : memref<64x1152xbf16, #tpu.memory_space<vmem>>, vector<64x128xbf16>
    tpu.vector_store %arg8[%c0_132, %c384_133], %94 {strides = array<i32>} : memref<64x1152xbf16, #tpu.memory_space<vmem>>, vector<64x128xbf16>,
    %c1_134 = arith.constant 1 : index
    %c1_135 = arith.constant 1 : index
    %c0_136 = arith.constant 0 : index
    %96 = vector.load %arg7[%c1_134, %c1_135, %c0_136] : memref<10x10x128xf32, #tpu.memory_space<vmem>>, vector<8x8x128xf32>
    %97 = vector.shape_cast %96 : vector<8x8x128xf32> to vector<64x128xf32>
    %98 = arith.truncf %97 : vector<64x128xf32> to vector<64x128xbf16>
    %c0_137 = arith.constant 0 : index
    %c512_138 = arith.constant 512 : index
    %99 = vector.load %arg8[%c0_137, %c512_138] : memref<64x1152xbf16, #tpu.memory_space<vmem>>, vector<64x128xbf16>
    tpu.vector_store %arg8[%c0_137, %c512_138], %98 {strides = array<i32>} : memref<64x1152xbf16, #tpu.memory_space<vmem>>, vector<64x128xbf16>,
    %c1_139 = arith.constant 1 : index
    %c2_140 = arith.constant 2 : index
    %c0_141 = arith.constant 0 : index
    %100 = vector.load %arg7[%c1_139, %c2_140, %c0_141] : memref<10x10x128xf32, #tpu.memory_space<vmem>>, vector<8x8x128xf32>
    %101 = vector.shape_cast %100 : vector<8x8x128xf32> to vector<64x128xf32>
    %102 = arith.truncf %101 : vector<64x128xf32> to vector<64x128xbf16>
    %c0_142 = arith.constant 0 : index
    %c640_143 = arith.constant 640 : index
    %103 = vector.load %arg8[%c0_142, %c640_143] : memref<64x1152xbf16, #tpu.memory_space<vmem>>, vector<64x128xbf16>
    tpu.vector_store %arg8[%c0_142, %c640_143], %102 {strides = array<i32>} : memref<64x1152xbf16, #tpu.memory_space<vmem>>, vector<64x128xbf16>,
    %c2_144 = arith.constant 2 : index
    %c0_145 = arith.constant 0 : index
    %c0_146 = arith.constant 0 : index
    %104 = vector.load %arg7[%c2_144, %c0_145, %c0_146] : memref<10x10x128xf32, #tpu.memory_space<vmem>>, vector<8x8x128xf32>
    %105 = vector.shape_cast %104 : vector<8x8x128xf32> to vector<64x128xf32>
    %106 = arith.truncf %105 : vector<64x128xf32> to vector<64x128xbf16>
    %c0_147 = arith.constant 0 : index
    %c768_148 = arith.constant 768 : index
    %107 = vector.load %arg8[%c0_147, %c768_148] : memref<64x1152xbf16, #tpu.memory_space<vmem>>, vector<64x128xbf16>
    tpu.vector_store %arg8[%c0_147, %c768_148], %106 {strides = array<i32>} : memref<64x1152xbf16, #tpu.memory_space<vmem>>, vector<64x128xbf16>,
    %c2_149 = arith.constant 2 : index
    %c1_150 = arith.constant 1 : index
    %c0_151 = arith.constant 0 : index
    %108 = vector.load %arg7[%c2_149, %c1_150, %c0_151] : memref<10x10x128xf32, #tpu.memory_space<vmem>>, vector<8x8x128xf32>
    %109 = vector.shape_cast %108 : vector<8x8x128xf32> to vector<64x128xf32>
    %110 = arith.truncf %109 : vector<64x128xf32> to vector<64x128xbf16>
    %c0_152 = arith.constant 0 : index
    %c896_153 = arith.constant 896 : index
    %111 = vector.load %arg8[%c0_152, %c896_153] : memref<64x1152xbf16, #tpu.memory_space<vmem>>, vector<64x128xbf16>
    tpu.vector_store %arg8[%c0_152, %c896_153], %110 {strides = array<i32>} : memref<64x1152xbf16, #tpu.memory_space<vmem>>, vector<64x128xbf16>,
    %c2_154 = arith.constant 2 : index
    %c2_155 = arith.constant 2 : index
    %c0_156 = arith.constant 0 : index
    %112 = vector.load %arg7[%c2_154, %c2_155, %c0_156] : memref<10x10x128xf32, #tpu.memory_space<vmem>>, vector<8x8x128xf32>
    %113 = vector.shape_cast %112 : vector<8x8x128xf32> to vector<64x128xf32>
    %114 = arith.truncf %113 : vector<64x128xf32> to vector<64x128xbf16>
    %c0_157 = arith.constant 0 : index
    %c1024_158 = arith.constant 1024 : index
    %115 = vector.load %arg8[%c0_157, %c1024_158] : memref<64x1152xbf16, #tpu.memory_space<vmem>>, vector<64x128xbf16>
    tpu.vector_store %arg8[%c0_157, %c1024_158], %114 {strides = array<i32>} : memref<64x1152xbf16, #tpu.memory_space<vmem>>, vector<64x128xbf16>,
    %c0_159 = arith.constant 0 : index
    %c0_160 = arith.constant 0 : index
    %116 = vector.load %arg8[%c0_159, %c0_160] : memref<64x1152xbf16, #tpu.memory_space<vmem>>, vector<64x1152xbf16>
    %c0_161 = arith.constant 0 : index
    %c0_162 = arith.constant 0 : index
    %117 = vector.load %arg3[%c0_161, %c0_162] : memref<1152x128xbf16, #tpu.memory_space<vmem>>, vector<1152x128xbf16>
    %cst_163 = arith.constant dense<0.000000e+00> : vector<64x128xf32>
    %118 = tpu.matmul %116, %117, %cst_163 {dimension_numbers = #tpu.dot_dimension_numbers<[1], [0], [0], [1], [0, 0, 1, 1], [], []>} : vector<64x1152xbf16>, vector<1152x128xbf16>, vector<64x128xf32> -> vector<64x128xf32>
    %c1_164 = arith.constant 1 : index
    %c1_165 = arith.constant 1 : index
    %c0_166 = arith.constant 0 : index
    %c0_167 = arith.constant 0 : index
    %c0_168 = arith.constant 0 : index
    %119 = vector.load %arg6[%c1_164, %c1_165, %c0_166, %c0_167, %c0_168] : memref<2x2x9x9x128xf32, #tpu.memory_space<vmem>>, vector<1x1x8x8x64xf32>
    %120 = vector.shape_cast %119 : vector<1x1x8x8x64xf32> to vector<8x8x64xf32>
    %121 = vector.shape_cast %120 : vector<8x8x64xf32> to vector<64x64xf32>
    %122 = arith.truncf %121 : vector<64x64xf32> to vector<64x64xbf16>
    %c0_169 = arith.constant 0 : index
    %c0_170 = arith.constant 0 : index
    %123 = vector.load %arg4[%c0_169, %c0_170] : memref<64x128xbf16, #tpu.memory_space<vmem>>, vector<64x128xbf16>
    %cst_171 = arith.constant dense<0.000000e+00> : vector<64x128xf32>
    %124 = tpu.matmul %122, %123, %cst_171 {dimension_numbers = #tpu.dot_dimension_numbers<[1], [0], [0], [1], [0, 0, 1, 1], [], []>} : vector<64x64xbf16>, vector<64x128xbf16>, vector<64x128xf32> -> vector<64x128xf32>
    %125 = arith.addf %118, %124 : vector<64x128xf32>
    %cst_172 = arith.constant 0.000000e+00 : f32
    %126 = vector.broadcast %cst_172 : f32 to vector<64x128xf32>
    %127 = arith.maximumf %125, %126 : vector<64x128xf32>
    %128 = vector.shape_cast %127 : vector<64x128xf32> to vector<8x8x128xf32>
    %129 = arith.truncf %128 : vector<8x8x128xf32> to vector<8x8x128xbf16>
    %c0_173 = arith.constant 0 : index
    %c0_174 = arith.constant 0 : index
    %c0_175 = arith.constant 0 : index
    %c0_176 = arith.constant 0 : index
    %130 = vector.load %arg5[%c0_173, %c0_174, %c0_175, %c0_176] : memref<1x8x8x128xbf16, #tpu.memory_space<vmem>>, vector<1x8x8x128xbf16>
    %131 = vector.shape_cast %130 : vector<1x8x8x128xbf16> to vector<8x8x128xbf16>
    %132 = vector.shape_cast %129 : vector<8x8x128xbf16> to vector<1x8x8x128xbf16>
    tpu.vector_store %arg5[%c0_173, %c0_174, %c0_175, %c0_176], %132 {strides = array<i32>} : memref<1x8x8x128xbf16, #tpu.memory_space<vmem>>, vector<1x8x8x128xbf16>,
    return
  }
  func.func @transform_0(%arg0: i32) -> (i32, i32, i32, i32, i32, i32) {
    %c0_i32 = arith.constant 0 : i32
    %c0_i32_0 = arith.constant 0 : i32
    %c0_i32_1 = arith.constant 0 : i32
    %c0_i32_2 = arith.constant 0 : i32
    %c0_i32_3 = arith.constant 0 : i32
    %c0_i32_4 = arith.constant 0 : i32
    return %arg0, %c0_i32, %c0_i32_0, %c0_i32_1, %c0_i32_2, %c0_i32_3 : i32, i32, i32, i32, i32, i32
  }
  func.func @transform_1(%arg0: i32) -> (i32, i32) {
    %c0_i32 = arith.constant 0 : i32
    %c0_i32_0 = arith.constant 0 : i32
    %c0_i32_1 = arith.constant 0 : i32
    return %c0_i32, %c0_i32_0 : i32, i32
  }
  func.func @transform_2(%arg0: i32) -> (i32, i32) {
    %c0_i32 = arith.constant 0 : i32
    %c0_i32_0 = arith.constant 0 : i32
    %c0_i32_1 = arith.constant 0 : i32
    return %c0_i32, %c0_i32_0 : i32, i32
  }
  func.func @transform_3(%arg0: i32) -> (i32, i32) {
    %c0_i32 = arith.constant 0 : i32
    %c0_i32_0 = arith.constant 0 : i32
    %c0_i32_1 = arith.constant 0 : i32
    return %c0_i32, %c0_i32_0 : i32, i32
  }
  func.func @transform_4(%arg0: i32) -> (i32, i32, i32, i32) {
    %c0_i32 = arith.constant 0 : i32
    %c0_i32_0 = arith.constant 0 : i32
    %c0_i32_1 = arith.constant 0 : i32
    %c0_i32_2 = arith.constant 0 : i32
    return %arg0, %c0_i32, %c0_i32_0, %c0_i32_1 : i32, i32, i32, i32
  }
}

</mosaic_0001>

<llo_original>
// kernel: forward.3
$region0: #{forward.3}
  #allocation0 [shape = 'u32[]', space=smem, size = 0x4, offset = 0x4, fixed_abs, tag = 'smem constant byte address 0x4 - core index']
  #allocation1 [shape = 'u32[144,128]{1,0:T(1,128)}', space=vmem, size = 0x12000, scoped, tag = 'internal scratch']
  #allocation2 [shape = 'f32[2,2,9,9,128]{4,3,2,1,0:T(8,128)}', space=vmem, size = 0x48000, scoped, tag = 'scratch operand']
  #allocation3 [shape = 'f32[10,10,128]{2,1,0:T(8,128)}', space=vmem, size = 0x14000, scoped, tag = 'scratch operand']
  #allocation4 [shape = 'bf16[64,1152]{1,0:T(8,128)(2,1)}', space=vmem, size = 0x24000, scoped, tag = 'scratch operand']
  %s0 = inlined_call_operand.vmem [shape: bf16[2,2,2,8,8,64], index: 0, kind: input, shape index: {}]
  %s1 = inlined_call_operand.vmem [shape: bf16[1152,128], index: 1, kind: input, shape index: {}]
  %s2 = inlined_call_operand.vmem [shape: bf16[1152,128], index: 2, kind: input, shape index: {}]
  %s3 = inlined_call_operand.vmem [shape: bf16[64,128], index: 3, kind: input, shape index: {}]
  %s4 = inlined_call_operand.vmem [shape: bf16[2,8,8,128], index: 4, kind: output, shape index: {}]
  %s5 = sld [smem:[#allocation0]]
  $region49: #{forward.3} parent=0
    _
  %s7 = ssub.s32 1, %s5
  %s8 = scalar_select 0, %s7, %s5
  loop: start=0, step=1, limit=4
  $region2: #{forward.3} parent=0 // loop_pre_header
    _
  $region3: #{forward.3} parent=0 // loop_header
    %s10 = sphi 0, %s14
    %p11 = scmp.ge.s32.totalorder %s10, 4
    %s20 = sphi 0, %s22
    %s23 = sphi 0, %s20
    %s24 = sphi 0, %s23
    %s40 = sphi 0, %s24
    %s44 = sphi 0, %s44
    %s46 = sphi 0, %s44
    %s47 = sphi 0, %s46
    %s61 = sphi 0, %s47
    %s65 = sphi 0, %s65
    %s67 = sphi 0, %s65
    %s68 = sphi 0, %s67
    %s82 = sphi 0, %s68
    %s86 = sphi 0, %s86
    %s88 = sphi 0, %s86
    %s89 = sphi 0, %s88
    %s103 = sphi 0, %s89
    %s109 = sphi 0, %s111
    %s112 = sphi 0, %s109
    %s113 = sphi 0, %s112
    %s129 = sphi 0, %s113
  $region4: #{forward.3} parent=0 // loop_header_branch
    %13 = sbr.rel (%p11) target = $region8
  $region5: #{forward.3} parent=0 // loop_body
    %s15 = ssub.s32 %s10, 1
    %s16 = ssub.s32 %s10, 2
    %s17 = sadd.s32 %s10, 1
    %s18 = ssub.s32 %s10, %s17
    %p19 = scmp.eq.s32.totalorder %s18, 0
    %s21 = sadd.s32 %s20, 1
    %s22 = scalar_select %p19, %s20, %s21
    %p25 = pneg %p19
    %p26 = scmp.eq.s32.totalorder %s10, 1
    %p27 = por %p25, %p26
    %p28 = scmp.ne.s32.totalorder %s20, %s23
    %p29 = scmp.eq.s32.totalorder %s10, 0
    %p30 = por %p28, %p29
    %p31 = scmp.ne.s32.totalorder %s20, %s23
    %p32 = scmp.eq.s32.totalorder %s15, 1
    %p33 = por %p31, %p32
    %p34 = scmp.ne.s32.totalorder %s23, %s24
    %p35 = scmp.eq.s32.totalorder %s15, 0
    %p36 = por %p34, %p35
    %p37 = scmp.ne.s32.totalorder %s23, %s24
    %p38 = scmp.eq.s32.totalorder %s16, 1
    %p39 = por %p37, %p38
    %p41 = scmp.ne.s32.totalorder %s24, %s40
    %p42 = scmp.eq.s32.totalorder %s16, 0
    %p43 = por %p41, %p42
    %s45 = sadd.s32 %s44, 1
    %p48 = scmp.eq.s32.totalorder %s10, 1
    %p49 = scmp.ne.s32.totalorder %s44, %s46
    %p50 = scmp.eq.s32.totalorder %s10, 0
    %p51 = por %p49, %p50
    %p52 = scmp.ne.s32.totalorder %s44, %s46
    %p53 = scmp.eq.s32.totalorder %s15, 1
    %p54 = por %p52, %p53
    %p55 = scmp.ne.s32.totalorder %s46, %s47
    %p56 = scmp.eq.s32.totalorder %s15, 0
    %p57 = por %p55, %p56
    %p58 = scmp.ne.s32.totalorder %s46, %s47
    %p59 = scmp.eq.s32.totalorder %s16, 1
    %p60 = por %p58, %p59
    %p62 = scmp.ne.s32.totalorder %s47, %s61
    %p63 = scmp.eq.s32.totalorder %s16, 0
    %p64 = por %p62, %p63
    %s66 = sadd.s32 %s65, 1
    %p69 = scmp.eq.s32.totalorder %s10, 1
    %p70 = scmp.ne.s32.totalorder %s65, %s67
    %p71 = scmp.eq.s32.totalorder %s10, 0
    %p72 = por %p70, %p71
    %p73 = scmp.ne.s32.totalorder %s65, %s67
    %p74 = scmp.eq.s32.totalorder %s15, 1
    %p75 = por %p73, %p74
    %p76 = scmp.ne.s32.totalorder %s67, %s68
    %p77 = scmp.eq.s32.totalorder %s15, 0
    %p78 = por %p76, %p77
    %p79 = scmp.ne.s32.totalorder %s67, %s68
    %p80 = scmp.eq.s32.totalorder %s16, 1
    %p81 = por %p79, %p80
    %p83 = scmp.ne.s32.totalorder %s68, %s82
    %p84 = scmp.eq.s32.totalorder %s16, 0
    %p85 = por %p83, %p84
    %s87 = sadd.s32 %s86, 1
    %p90 = scmp.eq.s32.totalorder %s10, 1
    %p91 = scmp.ne.s32.totalorder %s86, %s88
    %p92 = scmp.eq.s32.totalorder %s10, 0
    %p93 = por %p91, %p92
    %p94 = scmp.ne.s32.totalorder %s86, %s88
    %p95 = scmp.eq.s32.totalorder %s15, 1
    %p96 = por %p94, %p95
    %p97 = scmp.ne.s32.totalorder %s88, %s89
    %p98 = scmp.eq.s32.totalorder %s15, 0
    %p99 = por %p97, %p98
    %p100 = scmp.ne.s32.totalorder %s88, %s89
    %p101 = scmp.eq.s32.totalorder %s16, 1
    %p102 = por %p100, %p101
    %p104 = scmp.ne.s32.totalorder %s89, %s103
    %p105 = scmp.eq.s32.totalorder %s16, 0
    %p106 = por %p104, %p105
    %s107 = ssub.s32 %s10, %s17
    %p108 = scmp.eq.s32.totalorder %s107, 0
    %s110 = sadd.s32 %s109, 1
    %s111 = scalar_select %p108, %s109, %s110
    %p114 = pneg %p108
    %p115 = scmp.eq.s32.totalorder %s10, 1
    %p116 = por %p114, %p115
    %p117 = scmp.ne.s32.totalorder %s109, %s112
    %p118 = scmp.eq.s32.totalorder %s10, 0
    %p119 = por %p117, %p118
    %p120 = scmp.ne.s32.totalorder %s109, %s112
    %p121 = scmp.eq.s32.totalorder %s15, 1
    %p122 = por %p120, %p121
    %p123 = scmp.ne.s32.totalorder %s112, %s113
    %p124 = scmp.eq.s32.totalorder %s15, 0
    %p125 = por %p123, %p124
    %p126 = scmp.ne.s32.totalorder %s112, %s113
    %p127 = scmp.eq.s32.totalorder %s16, 1
    %p128 = por %p126, %p127
    %p130 = scmp.ne.s32.totalorder %s113, %s129
    %p131 = scmp.eq.s32.totalorder %s16, 0
    %p132 = por %p130, %p131
    %p133 = scmp.le.s32.totalorder 1, %s10
    %p134 = scmp.lt.s32.totalorder %s10, 3
    %p135 = pnand %p133, %p134
    %p136 = pneg %p135
    // Predicated region
    $region9: #{forward.3} parent=5 // pred_check
      _
    $region10: #{forward.3} parent=5 // pred_check_branch
      %138 = sbr.rel (%p135) target = $region12
    $region11: #{forward.3} parent=5 // pred_region
      %s139 = ssub.s32 %s10, 1
      // Predicated region
      $region13: #{forward.3} parent=11 // pred_check
        %p140 = pneg %p57
      $region14: #{forward.3} parent=11 // pred_check_branch
        %142 = sbr.rel (%p140) target = $region16
      $region15: #{forward.3} parent=11 // pred_region
        _
      $region16: #{forward.3} parent=11 // pred_fallthru
        _
      // Predicated region
      $region17: #{forward.3} parent=11 // pred_check
        %p143 = pneg %p78
      $region18: #{forward.3} parent=11 // pred_check_branch
        %145 = sbr.rel (%p143) target = $region20
      $region19: #{forward.3} parent=11 // pred_region
        _
      $region20: #{forward.3} parent=11 // pred_fallthru
        _
      // Predicated region
      $region21: #{forward.3} parent=11 // pred_check
        %p146 = pneg %p99
      $region22: #{forward.3} parent=11 // pred_check_branch
        %148 = sbr.rel (%p146) target = $region24
      $region23: #{forward.3} parent=11 // pred_region
        _
      $region24: #{forward.3} parent=11 // pred_fallthru
        _
    $region12: #{forward.3} parent=5 // pred_fallthru
      _
    %p149 = scmp.lt.s32.totalorder %s10, 2
    // Predicated region
    $region25: #{forward.3} parent=5 // pred_check
      %p150 = pneg %p149
    $region26: #{forward.3} parent=5 // pred_check_branch
      %152 = sbr.rel (%p150) target = $region28
    $region27: #{forward.3} parent=5 // pred_region
      // Predicated region
      $region29: #{forward.3} parent=27 // pred_check
        %p153 = pneg %p30
      $region30: #{forward.3} parent=27 // pred_check_branch
        %155 = sbr.rel (%p153) target = $region32
      $region31: #{forward.3} parent=27 // pred_region
        %p156 = scmp.lt.s32.totalorder %s10, 1
        %s157 = scalar_select %p156, %s10, 1
        %s158 = smul.addr %s157, 32
        %s159 = smul.addr %s158, 4
        %s160 = scalar_lea.vmem %s0, %s159
      $region32: #{forward.3} parent=27 // pred_fallthru
        _
    $region28: #{forward.3} parent=5 // pred_fallthru
      _
    %p161 = scmp.le.s32.totalorder 1, %s10
    %p162 = scmp.lt.s32.totalorder %s10, 3
    %p163 = pnand %p161, %p162
    %p164 = pneg %p163
    // Predicated region
    $region33: #{forward.3} parent=5 // pred_check
      _
    $region34: #{forward.3} parent=5 // pred_check_branch
      %166 = sbr.rel (%p163) target = $region36
    $region35: #{forward.3} parent=5 // pred_region
      %s167 = ssub.s32 %s10, 1
      %p168 = scmp.lt.s32.totalorder %s15, 1
      %s169 = scalar_select %p168, %s15, 1
      %s170 = smul.addr %s169, 32
      %s171 = smul.addr %s170, 4
      %s172 = scalar_lea.vmem %s0, %s171
      %p173 = pneg %p36
      %p174 = pneg %p33
      %p175 = pneg %p57
      %p176 = pneg %p54
      %p177 = pneg %p78
      %p178 = pneg %p75
      %p179 = pneg %p99
      %p180 = pneg %p96
      %p181 = pneg %p125
      %p182 = pneg %p122
      %p183 = scmp.lt.s32.totalorder %s15, 1
      %s184 = scalar_select %p183, %s15, 1
      %s185 = smul.addr %s184, 8
      %s186 = smul.addr %s185, 4
      %s187 = scalar_lea.vmem %s4, %s186
      %p188 = scmp.lt.s32.totalorder %s15, 1
      %s189 = scalar_select %p188, %s15, 1
      %s190 = smul.addr %s189, 32
      %s191 = smul.addr %s190, 4
      %s192 = scalar_lea.vmem %s0, %s191
      %p193 = scmp.lt.s32.totalorder %s15, 1
      %s194 = scalar_select %p193, %s15, 1
      %s195 = smul.addr %s194, 8
      %s196 = smul.addr %s195, 4
      %s197 = scalar_lea.vmem %s4, %s196
      %199 = vst [vmem:[#allocation2] sm:$0xff] 0.0
      %200 = vst [vmem:[#allocation2 + $0x8] sm:$0x1] 0.0
      %201 = vst [vmem:[#allocation2 + $0x10] sm:$0xff] 0.0
      %202 = vst [vmem:[#allocation2 + $0x18] sm:$0x1] 0.0
      %203 = vst [vmem:[#allocation2 + $0x20] sm:$0xff] 0.0
      %204 = vst [vmem:[#allocation2 + $0x28] sm:$0x1] 0.0
      %205 = vst [vmem:[#allocation2 + $0x30] sm:$0xff] 0.0
      %206 = vst [vmem:[#allocation2 + $0x38] sm:$0x1] 0.0
      %207 = vst [vmem:[#allocation2 + $0x40] sm:$0xff] 0.0
      %208 = vst [vmem:[#allocation2 + $0x48] sm:$0x1] 0.0
      %209 = vst [vmem:[#allocation2 + $0x50] sm:$0xff] 0.0
      %210 = vst [vmem:[#allocation2 + $0x58] sm:$0x1] 0.0
      %211 = vst [vmem:[#allocation2 + $0x60] sm:$0xff] 0.0
      %212 = vst [vmem:[#allocation2 + $0x68] sm:$0x1] 0.0
      %213 = vst [vmem:[#allocation2 + $0x70] sm:$0xff] 0.0
      %214 = vst [vmem:[#allocation2 + $0x78] sm:$0x1] 0.0
      %215 = vst [vmem:[#allocation2 + $0x80] sm:$0xff] 0.0
      %216 = vst [vmem:[#allocation2 + $0x88] sm:$0x1] 0.0
      %217 = vst [vmem:[#allocation2 + $0x90] sm:$0xff] 0.0
      %218 = vst [vmem:[#allocation2 + $0x98] sm:$0x1] 0.0
      %219 = vst [vmem:[#allocation2 + $0xa0] sm:$0xff] 0.0
      %220 = vst [vmem:[#allocation2 + $0xa8] sm:$0x1] 0.0
      %221 = vst [vmem:[#allocation2 + $0xb0] sm:$0xff] 0.0
      %222 = vst [vmem:[#allocation2 + $0xb8] sm:$0x1] 0.0
      %223 = vst [vmem:[#allocation2 + $0xc0] sm:$0xff] 0.0
      %224 = vst [vmem:[#allocation2 + $0xc8] sm:$0x1] 0.0
      %225 = vst [vmem:[#allocation2 + $0xd0] sm:$0xff] 0.0
      %226 = vst [vmem:[#allocation2 + $0xd8] sm:$0x1] 0.0
      %227 = vst [vmem:[#allocation2 + $0xe0] sm:$0xff] 0.0
      %228 = vst [vmem:[#allocation2 + $0xe8] sm:$0x1] 0.0
      %229 = vst [vmem:[#allocation2 + $0xf0] sm:$0xff] 0.0
      %230 = vst [vmem:[#allocation2 + $0xf8] sm:$0x1] 0.0
      %231 = vst [vmem:[#allocation2 + $0x100] sm:$0xff] 0.0
      %232 = vst [vmem:[#allocation2 + $0x108] sm:$0x1] 0.0
      %233 = vst [vmem:[#allocation2 + $0x110] sm:$0xff] 0.0
      %234 = vst [vmem:[#allocation2 + $0x118] sm:$0x1] 0.0
      %235 = vst [vmem:[#allocation2 + $0x120] sm:$0xff] 0.0
      %236 = vst [vmem:[#allocation2 + $0x128] sm:$0x1] 0.0
      %237 = vst [vmem:[#allocation2 + $0x130] sm:$0xff] 0.0
      %238 = vst [vmem:[#allocation2 + $0x138] sm:$0x1] 0.0
      %239 = vst [vmem:[#allocation2 + $0x140] sm:$0xff] 0.0
      %240 = vst [vmem:[#allocation2 + $0x148] sm:$0x1] 0.0
      %241 = vst [vmem:[#allocation2 + $0x150] sm:$0xff] 0.0
      %242 = vst [vmem:[#allocation2 + $0x158] sm:$0x1] 0.0
      %243 = vst [vmem:[#allocation2 + $0x160] sm:$0xff] 0.0
      %244 = vst [vmem:[#allocation2 + $0x168] sm:$0x1] 0.0
      %245 = vst [vmem:[#allocation2 + $0x170] sm:$0xff] 0.0
      %246 = vst [vmem:[#allocation2 + $0x178] sm:$0x1] 0.0
      %247 = vst [vmem:[#allocation2 + $0x180] sm:$0xff] 0.0
      %248 = vst [vmem:[#allocation2 + $0x188] sm:$0x1] 0.0
      %249 = vst [vmem:[#allocation2 + $0x190] sm:$0xff] 0.0
      %250 = vst [vmem:[#allocation2 + $0x198] sm:$0x1] 0.0
      %251 = vst [vmem:[#allocation2 + $0x1a0] sm:$0xff] 0.0
      %252 = vst [vmem:[#allocation2 + $0x1a8] sm:$0x1] 0.0
      %253 = vst [vmem:[#allocation2 + $0x1b0] sm:$0xff] 0.0
      %254 = vst [vmem:[#allocation2 + $0x1b8] sm:$0x1] 0.0
      %255 = vst [vmem:[#allocation2 + $0x1c0] sm:$0xff] 0.0
      %256 = vst [vmem:[#allocation2 + $0x1c8] sm:$0x1] 0.0
      %257 = vst [vmem:[#allocation2 + $0x1d0] sm:$0xff] 0.0
      %258 = vst [vmem:[#allocation2 + $0x1d8] sm:$0x1] 0.0
      %259 = vst [vmem:[#allocation2 + $0x1e0] sm:$0xff] 0.0
      %260 = vst [vmem:[#allocation2 + $0x1e8] sm:$0x1] 0.0
      %261 = vst [vmem:[#allocation2 + $0x1f0] sm:$0xff] 0.0
      %262 = vst [vmem:[#allocation2 + $0x1f8] sm:$0x1] 0.0
      %263 = vst [vmem:[#allocation2 + $0x200] sm:$0xff] 0.0
      %264 = vst [vmem:[#allocation2 + $0x208] sm:$0x1] 0.0
      %265 = vst [vmem:[#allocation2 + $0x210] sm:$0xff] 0.0
      %266 = vst [vmem:[#allocation2 + $0x218] sm:$0x1] 0.0
      %267 = vst [vmem:[#allocation2 + $0x220] sm:$0xff] 0.0
      %268 = vst [vmem:[#allocation2 + $0x228] sm:$0x1] 0.0
      %269 = vst [vmem:[#allocation2 + $0x230] sm:$0xff] 0.0
      %270 = vst [vmem:[#allocation2 + $0x238] sm:$0x1] 0.0
      %s271 = scalar_lea.vmem %s192, 96
      %v272 = vld [vmem:[%s271] sm:$0xf]
      %v273 = vld [vmem:[%s271 + $0x4] sm:$0xf]
      %v274 = vld [vmem:[%s271 + $0x8] sm:$0xf]
      %v275 = vld [vmem:[%s271 + $0xc] sm:$0xf]
      %v276 = vld [vmem:[%s271 + $0x10] sm:$0xf]
      %v277 = vld [vmem:[%s271 + $0x14] sm:$0xf]
      %v278 = vld [vmem:[%s271 + $0x18] sm:$0xf]
      %v279 = vld [vmem:[%s271 + $0x1c] sm:$0xf]
      %v280 = vunpack.c.l.bf16 %v272
      %v281 = vunpack.c.l.bf16 %v273
      %v282 = vunpack.c.l.bf16 %v274
      %v283 = vunpack.c.l.bf16 %v275
      %v284 = vunpack.c.l.bf16 %v276
      %v285 = vunpack.c.l.bf16 %v277
      %v286 = vunpack.c.l.bf16 %v278
      %v287 = vunpack.c.l.bf16 %v279
      %s288 = scalar_lea.vmem [#allocation2], 16
      %vm289 = vcmask 523264
      %290 = vst.msk [vmem:[%s288 + $0x1] sm:$0xff] %vm289, %v280
      %291 = vst.msk [vmem:[%s288 + $0x11] sm:$0xff] %vm289, %v281
      %292 = vst.msk [vmem:[%s288 + $0x21] sm:$0xff] %vm289, %v282
      %293 = vst.msk [vmem:[%s288 + $0x31] sm:$0xff] %vm289, %v283
      %294 = vst.msk [vmem:[%s288 + $0x41] sm:$0xff] %vm289, %v284
      %295 = vst.msk [vmem:[%s288 + $0x51] sm:$0xff] %vm289, %v285
      %296 = vst.msk [vmem:[%s288 + $0x61] sm:$0xff] %vm289, %v286
      %297 = vst.msk [vmem:[%s288 + $0x71] sm:$0xff] %vm289, %v287
      %s298 = scalar_lea.vmem %s192, 64
      %v299 = vld [vmem:[%s298] sm:$0xf]
      %v300 = vld [vmem:[%s298 + $0x4] sm:$0xf]
      %v301 = vld [vmem:[%s298 + $0x8] sm:$0xf]
      %v302 = vld [vmem:[%s298 + $0xc] sm:$0xf]
      %v303 = vld [vmem:[%s298 + $0x10] sm:$0xf]
      %v304 = vld [vmem:[%s298 + $0x14] sm:$0xf]
      %v305 = vld [vmem:[%s298 + $0x18] sm:$0xf]
      %v306 = vld [vmem:[%s298 + $0x1c] sm:$0xf]
      %v307 = vunpack.c.l.bf16 %v299
      %v308 = vunpack.c.l.bf16 %v300
      %v309 = vunpack.c.l.bf16 %v301
      %v310 = vunpack.c.l.bf16 %v302
      %v311 = vunpack.c.l.bf16 %v303
      %v312 = vunpack.c.l.bf16 %v304
      %v313 = vunpack.c.l.bf16 %v305
      %v314 = vunpack.c.l.bf16 %v306
      %s315 = scalar_lea.vmem [#allocation2], 160
      %316 = vst.msk [vmem:[%s315] sm:$0xff] %vm289, %v307
      %317 = vst.msk [vmem:[%s315 + $0x10] sm:$0xff] %vm289, %v308
      %318 = vst.msk [vmem:[%s315 + $0x20] sm:$0xff] %vm289, %v309
      %319 = vst.msk [vmem:[%s315 + $0x30] sm:$0xff] %vm289, %v310
      %320 = vst.msk [vmem:[%s315 + $0x40] sm:$0xff] %vm289, %v311
      %321 = vst.msk [vmem:[%s315 + $0x50] sm:$0xff] %vm289, %v312
      %322 = vst.msk [vmem:[%s315 + $0x60] sm:$0xff] %vm289, %v313
      %323 = vst.msk [vmem:[%s315 + $0x70] sm:$0xff] %vm289, %v314
      %s324 = scalar_lea.vmem %s192, 32
      %v325 = vld [vmem:[%s324] sm:$0xf]
      %v326 = vld [vmem:[%s324 + $0x4] sm:$0xf]
      %v327 = vld [vmem:[%s324 + $0x8] sm:$0xf]
      %v328 = vld [vmem:[%s324 + $0xc] sm:$0xf]
      %v329 = vld [vmem:[%s324 + $0x10] sm:$0xf]
      %v330 = vld [vmem:[%s324 + $0x14] sm:$0xf]
      %v331 = vld [vmem:[%s324 + $0x18] sm:$0xf]
      %v332 = vld [vmem:[%s324 + $0x1c] sm:$0xf]
      %v333 = vunpack.c.l.bf16 %v325
      %v334 = vunpack.c.l.bf16 %v326
      %v335 = vunpack.c.l.bf16 %v327
      %v336 = vunpack.c.l.bf16 %v328
      %v337 = vunpack.c.l.bf16 %v329
      %v338 = vunpack.c.l.bf16 %v330
      %v339 = vunpack.c.l.bf16 %v331
      %v340 = vunpack.c.l.bf16 %v332
      %s341 = scalar_lea.vmem [#allocation2], 288
      %342 = vst.msk [vmem:[%s341 + $0x1] sm:$0xff] %vm289, %v333
      %343 = vst.msk [vmem:[%s341 + $0x11] sm:$0xff] %vm289, %v334
      %344 = vst.msk [vmem:[%s341 + $0x21] sm:$0xff] %vm289, %v335
      %345 = vst.msk [vmem:[%s341 + $0x31] sm:$0xff] %vm289, %v336
      %346 = vst.msk [vmem:[%s341 + $0x41] sm:$0xff] %vm289, %v337
      %347 = vst.msk [vmem:[%s341 + $0x51] sm:$0xff] %vm289, %v338
      %348 = vst.msk [vmem:[%s341 + $0x61] sm:$0xff] %vm289, %v339
      %349 = vst.msk [vmem:[%s341 + $0x71] sm:$0xff] %vm289, %v340
      %v350 = vld [vmem:[%s192] sm:$0xf]
      %v351 = vld [vmem:[%s192 + $0x4] sm:$0xf]
      %v352 = vld [vmem:[%s192 + $0x8] sm:$0xf]
      %v353 = vld [vmem:[%s192 + $0xc] sm:$0xf]
      %v354 = vld [vmem:[%s192 + $0x10] sm:$0xf]
      %v355 = vld [vmem:[%s192 + $0x14] sm:$0xf]
      %v356 = vld [vmem:[%s192 + $0x18] sm:$0xf]
      %v357 = vld [vmem:[%s192 + $0x1c] sm:$0xf]
      %v358 = vunpack.c.l.bf16 %v350
      %v359 = vunpack.c.l.bf16 %v351
      %v360 = vunpack.c.l.bf16 %v352
      %v361 = vunpack.c.l.bf16 %v353
      %v362 = vunpack.c.l.bf16 %v354
      %v363 = vunpack.c.l.bf16 %v355
      %v364 = vunpack.c.l.bf16 %v356
      %v365 = vunpack.c.l.bf16 %v357
      %s366 = scalar_lea.vmem [#allocation2], 432
      %367 = vst.msk [vmem:[%s366] sm:$0xff] %vm289, %v358
      %368 = vst.msk [vmem:[%s366 + $0x10] sm:$0xff] %vm289, %v359
      %369 = vst.msk [vmem:[%s366 + $0x20] sm:$0xff] %vm289, %v360
      %370 = vst.msk [vmem:[%s366 + $0x30] sm:$0xff] %vm289, %v361
      %371 = vst.msk [vmem:[%s366 + $0x40] sm:$0xff] %vm289, %v362
      %372 = vst.msk [vmem:[%s366 + $0x50] sm:$0xff] %vm289, %v363
      %373 = vst.msk [vmem:[%s366 + $0x60] sm:$0xff] %vm289, %v364
      %374 = vst.msk [vmem:[%s366 + $0x70] sm:$0xff] %vm289, %v365
      %v375 = vld [vmem:[#allocation2] sm:$0xff]
      %v376 = vld [vmem:[#allocation2 + $0x10] sm:$0xff]
      %v377 = vld [vmem:[#allocation2 + $0x20] sm:$0xff]
      %v378 = vld [vmem:[#allocation2 + $0x30] sm:$0xff]
      %v379 = vld [vmem:[#allocation2 + $0x40] sm:$0xff]
      %v380 = vld [vmem:[#allocation2 + $0x50] sm:$0xff]
      %v381 = vld [vmem:[#allocation2 + $0x60] sm:$0xff]
      %v382 = vld [vmem:[#allocation2 + $0x70] sm:$0xff]
      %v383 = vpack.c.bf16 %v376, %v375
      %v384 = vpack.c.bf16 %v378, %v377
      %v385 = vpack.c.bf16 %v380, %v379
      %v386 = vpack.c.bf16 %v382, %v381
      %v391 = vunpack.c.l.b16 %v383
      %v392 = vunpack.c.h.b16 %v383
      %v393 = vunpack.c.l.b16 %v384
      %v394 = vunpack.c.h.b16 %v384
      %v395 = vunpack.c.l.b16 %v385
      %v396 = vunpack.c.h.b16 %v385
      %v397 = vunpack.c.l.b16 %v386
      %v398 = vunpack.c.h.b16 %v386
      %v399 = vpack.c.b16 %v391, %v391
      %v400 = vpack.c.b16 %v392, %v392
      %v401 = vpack.c.b16 %v393, %v393
      %v402 = vpack.c.b16 %v394, %v394
      %v403 = vpack.c.b16 %v395, %v395
      %v404 = vpack.c.b16 %v396, %v396
      %v405 = vpack.c.b16 %v397, %v397
      %v406 = vpack.c.b16 %v398, %v398
      %415 = vst [vmem:[#allocation4] sm:$0xf] %v399
      %416 = vst [vmem:[#allocation4 + $0x24] sm:$0xf] %v400
      %417 = vst [vmem:[#allocation4 + $0x48] sm:$0xf] %v401
      %418 = vst [vmem:[#allocation4 + $0x6c] sm:$0xf] %v402
      %419 = vst [vmem:[#allocation4 + $0x90] sm:$0xf] %v403
      %420 = vst [vmem:[#allocation4 + $0xb4] sm:$0xf] %v404
      %421 = vst [vmem:[#allocation4 + $0xd8] sm:$0xf] %v405
      %422 = vst [vmem:[#allocation4 + $0xfc] sm:$0xf] %v406
      %s423 = scalar_lea.vmem [#allocation2], 144
      %v424 = vld [vmem:[%s423] sm:$0xff]
      %v425 = vld [vmem:[%s423 + $0x10] sm:$0xff]
      %v426 = vld [vmem:[%s423 + $0x20] sm:$0xff]
      %v427 = vld [vmem:[%s423 + $0x30] sm:$0xff]
      %v428 = vld [vmem:[%s423 + $0x40] sm:$0xff]
      %v429 = vld [vmem:[%s423 + $0x50] sm:$0xff]
      %v430 = vld [vmem:[%s423 + $0x60] sm:$0xff]
      %v431 = vld [vmem:[%s423 + $0x70] sm:$0xff]
      %v432 = vpack.c.bf16 %v425, %v424
      %v433 = vpack.c.bf16 %v427, %v426
      %v434 = vpack.c.bf16 %v429, %v428
      %v435 = vpack.c.bf16 %v431, %v430
      %v440 = vunpack.c.l.b16 %v432
      %v441 = vunpack.c.h.b16 %v432
      %v442 = vunpack.c.l.b16 %v433
      %v443 = vunpack.c.h.b16 %v433
      %v444 = vunpack.c.l.b16 %v434
      %v445 = vunpack.c.h.b16 %v434
      %v446 = vunpack.c.l.b16 %v435
      %v447 = vunpack.c.h.b16 %v435
      %v448 = vpack.c.b16 %v440, %v440
      %v449 = vpack.c.b16 %v441, %v441
      %v450 = vpack.c.b16 %v442, %v442
      %v451 = vpack.c.b16 %v443, %v443
      %v452 = vpack.c.b16 %v444, %v444
      %v453 = vpack.c.b16 %v445, %v445
      %v454 = vpack.c.b16 %v446, %v446
      %v455 = vpack.c.b16 %v447, %v447
      %464 = vst [vmem:[#allocation4 + $0x4] sm:$0xf] %v448
      %465 = vst [vmem:[#allocation4 + $0x28] sm:$0xf] %v449
      %466 = vst [vmem:[#allocation4 + $0x4c] sm:$0xf] %v450
      %467 = vst [vmem:[#allocation4 + $0x70] sm:$0xf] %v451
      %468 = vst [vmem:[#allocation4 + $0x94] sm:$0xf] %v452
      %469 = vst [vmem:[#allocation4 + $0xb8] sm:$0xf] %v453
      %470 = vst [vmem:[#allocation4 + $0xdc] sm:$0xf] %v454
      %471 = vst [vmem:[#allocation4 + $0x100] sm:$0xf] %v455
      %v472 = vld [vmem:[#allocation2 + $0x1] sm:$0xff]
      %v473 = vld [vmem:[#allocation2 + $0x11] sm:$0xff]
      %v474 = vld [vmem:[#allocation2 + $0x21] sm:$0xff]
      %v475 = vld [vmem:[#allocation2 + $0x31] sm:$0xff]
      %v476 = vld [vmem:[#allocation2 + $0x41] sm:$0xff]
      %v477 = vld [vmem:[#allocation2 + $0x51] sm:$0xff]
      %v478 = vld [vmem:[#allocation2 + $0x61] sm:$0xff]
      %v479 = vld [vmem:[#allocation2 + $0x71] sm:$0xff]
      %v480 = vpack.c.bf16 %v473, %v472
      %v481 = vpack.c.bf16 %v475, %v474
      %v482 = vpack.c.bf16 %v477, %v476
      %v483 = vpack.c.bf16 %v479, %v478
      %v488 = vunpack.c.l.b16 %v480
      %v489 = vunpack.c.h.b16 %v480
      %v490 = vunpack.c.l.b16 %v481
      %v491 = vunpack.c.h.b16 %v481
      %v492 = vunpack.c.l.b16 %v482
      %v493 = vunpack.c.h.b16 %v482
      %v494 = vunpack.c.l.b16 %v483
      %v495 = vunpack.c.h.b16 %v483
      %v496 = vpack.c.b16 %v488, %v488
      %v497 = vpack.c.b16 %v489, %v489
      %v498 = vpack.c.b16 %v490, %v490
      %v499 = vpack.c.b16 %v491, %v491
      %v500 = vpack.c.b16 %v492, %v492
      %v501 = vpack.c.b16 %v493, %v493
      %v502 = vpack.c.b16 %v494, %v494
      %v503 = vpack.c.b16 %v495, %v495
      %512 = vst [vmem:[#allocation4 + $0x8] sm:$0xf] %v496
      %513 = vst [vmem:[#allocation4 + $0x2c] sm:$0xf] %v497
      %514 = vst [vmem:[#allocation4 + $0x50] sm:$0xf] %v498
      %515 = vst [vmem:[#allocation4 + $0x74] sm:$0xf] %v499
      %516 = vst [vmem:[#allocation4 + $0x98] sm:$0xf] %v500
      %517 = vst [vmem:[#allocation4 + $0xbc] sm:$0xf] %v501
      %518 = vst [vmem:[#allocation4 + $0xe0] sm:$0xf] %v502
      %519 = vst [vmem:[#allocation4 + $0x104] sm:$0xf] %v503
      %v520 = vld [vmem:[%s341] sm:$0xff]
      %v521 = vld [vmem:[%s341 + $0x10] sm:$0xff]
      %v522 = vld [vmem:[%s341 + $0x20] sm:$0xff]
      %v523 = vld [vmem:[%s341 + $0x30] sm:$0xff]
      %v524 = vld [vmem:[%s341 + $0x40] sm:$0xff]
      %v525 = vld [vmem:[%s341 + $0x50] sm:$0xff]
      %v526 = vld [vmem:[%s341 + $0x60] sm:$0xff]
      %v527 = vld [vmem:[%s341 + $0x70] sm:$0xff]
      %v528 = vpack.c.bf16 %v521, %v520
      %v529 = vpack.c.bf16 %v523, %v522
      %v530 = vpack.c.bf16 %v525, %v524
      %v531 = vpack.c.bf16 %v527, %v526
      %v536 = vunpack.c.l.b16 %v528
      %v537 = vunpack.c.h.b16 %v528
      %v538 = vunpack.c.l.b16 %v529
      %v539 = vunpack.c.h.b16 %v529
      %v540 = vunpack.c.l.b16 %v530
      %v541 = vunpack.c.h.b16 %v530
      %v542 = vunpack.c.l.b16 %v531
      %v543 = vunpack.c.h.b16 %v531
      %v544 = vpack.c.b16 %v536, %v536
      %v545 = vpack.c.b16 %v537, %v537
      %v546 = vpack.c.b16 %v538, %v538
      %v547 = vpack.c.b16 %v539, %v539
      %v548 = vpack.c.b16 %v540, %v540
      %v549 = vpack.c.b16 %v541, %v541
      %v550 = vpack.c.b16 %v542, %v542
      %v551 = vpack.c.b16 %v543, %v543
      %560 = vst [vmem:[#allocation4 + $0xc] sm:$0xf] %v544
      %561 = vst [vmem:[#allocation4 + $0x30] sm:$0xf] %v545
      %562 = vst [vmem:[#allocation4 + $0x54] sm:$0xf] %v546
      %563 = vst [vmem:[#allocation4 + $0x78] sm:$0xf] %v547
      %564 = vst [vmem:[#allocation4 + $0x9c] sm:$0xf] %v548
      %565 = vst [vmem:[#allocation4 + $0xc0] sm:$0xf] %v549
      %566 = vst [vmem:[#allocation4 + $0xe4] sm:$0xf] %v550
      %567 = vst [vmem:[#allocation4 + $0x108] sm:$0xf] %v551
      %v568 = vld [vmem:[%s366] sm:$0xff]
      %v569 = vld [vmem:[%s366 + $0x10] sm:$0xff]
      %v570 = vld [vmem:[%s366 + $0x20] sm:$0xff]
      %v571 = vld [vmem:[%s366 + $0x30] sm:$0xff]
      %v572 = vld [vmem:[%s366 + $0x40] sm:$0xff]
      %v573 = vld [vmem:[%s366 + $0x50] sm:$0xff]
      %v574 = vld [vmem:[%s366 + $0x60] sm:$0xff]
      %v575 = vld [vmem:[%s366 + $0x70] sm:$0xff]
      %v576 = vpack.c.bf16 %v569, %v568
      %v577 = vpack.c.bf16 %v571, %v570
      %v578 = vpack.c.bf16 %v573, %v572
      %v579 = vpack.c.bf16 %v575, %v574
      %v584 = vunpack.c.l.b16 %v576
      %v585 = vunpack.c.h.b16 %v576
      %v586 = vunpack.c.l.b16 %v577
      %v587 = vunpack.c.h.b16 %v577
      %v588 = vunpack.c.l.b16 %v578
      %v589 = vunpack.c.h.b16 %v578
      %v590 = vunpack.c.l.b16 %v579
      %v591 = vunpack.c.h.b16 %v579
      %v592 = vpack.c.b16 %v584, %v584
      %v593 = vpack.c.b16 %v585, %v585
      %v594 = vpack.c.b16 %v586, %v586
      %v595 = vpack.c.b16 %v587, %v587
      %v596 = vpack.c.b16 %v588, %v588
      %v597 = vpack.c.b16 %v589, %v589
      %v598 = vpack.c.b16 %v590, %v590
      %v599 = vpack.c.b16 %v591, %v591
      %608 = vst [vmem:[#allocation4 + $0x10] sm:$0xf] %v592
      %609 = vst [vmem:[#allocation4 + $0x34] sm:$0xf] %v593
      %610 = vst [vmem:[#allocation4 + $0x58] sm:$0xf] %v594
      %611 = vst [vmem:[#allocation4 + $0x7c] sm:$0xf] %v595
      %612 = vst [vmem:[#allocation4 + $0xa0] sm:$0xf] %v596
      %613 = vst [vmem:[#allocation4 + $0xc4] sm:$0xf] %v597
      %614 = vst [vmem:[#allocation4 + $0xe8] sm:$0xf] %v598
      %615 = vst [vmem:[#allocation4 + $0x10c] sm:$0xf] %v599
      %v616 = vld [vmem:[%s341 + $0x1] sm:$0xff]
      %v617 = vld [vmem:[%s341 + $0x11] sm:$0xff]
      %v618 = vld [vmem:[%s341 + $0x21] sm:$0xff]
      %v619 = vld [vmem:[%s341 + $0x31] sm:$0xff]
      %v620 = vld [vmem:[%s341 + $0x41] sm:$0xff]
      %v621 = vld [vmem:[%s341 + $0x51] sm:$0xff]
      %v622 = vld [vmem:[%s341 + $0x61] sm:$0xff]
      %v623 = vld [vmem:[%s341 + $0x71] sm:$0xff]
      %v624 = vpack.c.bf16 %v617, %v616
      %v625 = vpack.c.bf16 %v619, %v618
      %v626 = vpack.c.bf16 %v621, %v620
      %v627 = vpack.c.bf16 %v623, %v622
      %v632 = vunpack.c.l.b16 %v624
      %v633 = vunpack.c.h.b16 %v624
      %v634 = vunpack.c.l.b16 %v625
      %v635 = vunpack.c.h.b16 %v625
      %v636 = vunpack.c.l.b16 %v626
      %v637 = vunpack.c.h.b16 %v626
      %v638 = vunpack.c.l.b16 %v627
      %v639 = vunpack.c.h.b16 %v627
      %v640 = vpack.c.b16 %v632, %v632
      %v641 = vpack.c.b16 %v633, %v633
      %v642 = vpack.c.b16 %v634, %v634
      %v643 = vpack.c.b16 %v635, %v635
      %v644 = vpack.c.b16 %v636, %v636
      %v645 = vpack.c.b16 %v637, %v637
      %v646 = vpack.c.b16 %v638, %v638
      %v647 = vpack.c.b16 %v639, %v639
      %656 = vst [vmem:[#allocation4 + $0x14] sm:$0xf] %v640
      %657 = vst [vmem:[#allocation4 + $0x38] sm:$0xf] %v641
      %658 = vst [vmem:[#allocation4 + $0x5c] sm:$0xf] %v642
      %659 = vst [vmem:[#allocation4 + $0x80] sm:$0xf] %v643
      %660 = vst [vmem:[#allocation4 + $0xa4] sm:$0xf] %v644
      %661 = vst [vmem:[#allocation4 + $0xc8] sm:$0xf] %v645
      %662 = vst [vmem:[#allocation4 + $0xec] sm:$0xf] %v646
      %663 = vst [vmem:[#allocation4 + $0x110] sm:$0xf] %v647
      %v664 = vld [vmem:[%s288] sm:$0xff]
      %v665 = vld [vmem:[%s288 + $0x10] sm:$0xff]
      %v666 = vld [vmem:[%s288 + $0x20] sm:$0xff]
      %v667 = vld [vmem:[%s288 + $0x30] sm:$0xff]
      %v668 = vld [vmem:[%s288 + $0x40] sm:$0xff]
      %v669 = vld [vmem:[%s288 + $0x50] sm:$0xff]
      %v670 = vld [vmem:[%s288 + $0x60] sm:$0xff]
      %v671 = vld [vmem:[%s288 + $0x70] sm:$0xff]
      %v672 = vpack.c.bf16 %v665, %v664
      %v673 = vpack.c.bf16 %v667, %v666
      %v674 = vpack.c.bf16 %v669, %v668
      %v675 = vpack.c.bf16 %v671, %v670
      %v680 = vunpack.c.l.b16 %v672
      %v681 = vunpack.c.h.b16 %v672
      %v682 = vunpack.c.l.b16 %v673
      %v683 = vunpack.c.h.b16 %v673
      %v684 = vunpack.c.l.b16 %v674
      %v685 = vunpack.c.h.b16 %v674
      %v686 = vunpack.c.l.b16 %v675
      %v687 = vunpack.c.h.b16 %v675
      %v688 = vpack.c.b16 %v680, %v680
      %v689 = vpack.c.b16 %v681, %v681
      %v690 = vpack.c.b16 %v682, %v682
      %v691 = vpack.c.b16 %v683, %v683
      %v692 = vpack.c.b16 %v684, %v684
      %v693 = vpack.c.b16 %v685, %v685
      %v694 = vpack.c.b16 %v686, %v686
      %v695 = vpack.c.b16 %v687, %v687
      %704 = vst [vmem:[#allocation4 + $0x18] sm:$0xf] %v688
      %705 = vst [vmem:[#allocation4 + $0x3c] sm:$0xf] %v689
      %706 = vst [vmem:[#allocation4 + $0x60] sm:$0xf] %v690
      %707 = vst [vmem:[#allocation4 + $0x84] sm:$0xf] %v691
      %708 = vst [vmem:[#allocation4 + $0xa8] sm:$0xf] %v692
      %709 = vst [vmem:[#allocation4 + $0xcc] sm:$0xf] %v693
      %710 = vst [vmem:[#allocation4 + $0xf0] sm:$0xf] %v694
      %711 = vst [vmem:[#allocation4 + $0x114] sm:$0xf] %v695
      %v712 = vld [vmem:[%s315] sm:$0xff]
      %v713 = vld [vmem:[%s315 + $0x10] sm:$0xff]
      %v714 = vld [vmem:[%s315 + $0x20] sm:$0xff]
      %v715 = vld [vmem:[%s315 + $0x30] sm:$0xff]
      %v716 = vld [vmem:[%s315 + $0x40] sm:$0xff]
      %v717 = vld [vmem:[%s315 + $0x50] sm:$0xff]
      %v718 = vld [vmem:[%s315 + $0x60] sm:$0xff]
      %v719 = vld [vmem:[%s315 + $0x70] sm:$0xff]
      %v720 = vpack.c.bf16 %v713, %v712
      %v721 = vpack.c.bf16 %v715, %v714
      %v722 = vpack.c.bf16 %v717, %v716
      %v723 = vpack.c.bf16 %v719, %v718
      %v728 = vunpack.c.l.b16 %v720
      %v729 = vunpack.c.h.b16 %v720
      %v730 = vunpack.c.l.b16 %v721
      %v731 = vunpack.c.h.b16 %v721
      %v732 = vunpack.c.l.b16 %v722
      %v733 = vunpack.c.h.b16 %v722
      %v734 = vunpack.c.l.b16 %v723
      %v735 = vunpack.c.h.b16 %v723
      %v736 = vpack.c.b16 %v728, %v728
      %v737 = vpack.c.b16 %v729, %v729
      %v738 = vpack.c.b16 %v730, %v730
      %v739 = vpack.c.b16 %v731, %v731
      %v740 = vpack.c.b16 %v732, %v732
      %v741 = vpack.c.b16 %v733, %v733
      %v742 = vpack.c.b16 %v734, %v734
      %v743 = vpack.c.b16 %v735, %v735
      %752 = vst [vmem:[#allocation4 + $0x1c] sm:$0xf] %v736
      %753 = vst [vmem:[#allocation4 + $0x40] sm:$0xf] %v737
      %754 = vst [vmem:[#allocation4 + $0x64] sm:$0xf] %v738
      %755 = vst [vmem:[#allocation4 + $0x88] sm:$0xf] %v739
      %756 = vst [vmem:[#allocation4 + $0xac] sm:$0xf] %v740
      %757 = vst [vmem:[#allocation4 + $0xd0] sm:$0xf] %v741
      %758 = vst [vmem:[#allocation4 + $0xf4] sm:$0xf] %v742
      %759 = vst [vmem:[#allocation4 + $0x118] sm:$0xf] %v743
      %v760 = vld [vmem:[%s288 + $0x1] sm:$0xff]
      %v761 = vld [vmem:[%s288 + $0x11] sm:$0xff]
      %v762 = vld [vmem:[%s288 + $0x21] sm:$0xff]
      %v763 = vld [vmem:[%s288 + $0x31] sm:$0xff]
      %v764 = vld [vmem:[%s288 + $0x41] sm:$0xff]
      %v765 = vld [vmem:[%s288 + $0x51] sm:$0xff]
      %v766 = vld [vmem:[%s288 + $0x61] sm:$0xff]
      %v767 = vld [vmem:[%s288 + $0x71] sm:$0xff]
      %v768 = vpack.c.bf16 %v761, %v760
      %v769 = vpack.c.bf16 %v763, %v762
      %v770 = vpack.c.bf16 %v765, %v764
      %v771 = vpack.c.bf16 %v767, %v766
      %v776 = vunpack.c.l.b16 %v768
      %v777 = vunpack.c.h.b16 %v768
      %v778 = vunpack.c.l.b16 %v769
      %v779 = vunpack.c.h.b16 %v769
      %v780 = vunpack.c.l.b16 %v770
      %v781 = vunpack.c.h.b16 %v770
      %v782 = vunpack.c.l.b16 %v771
      %v783 = vunpack.c.h.b16 %v771
      %v784 = vpack.c.b16 %v776, %v776
      %v785 = vpack.c.b16 %v777, %v777
      %v786 = vpack.c.b16 %v778, %v778
      %v787 = vpack.c.b16 %v779, %v779
      %v788 = vpack.c.b16 %v780, %v780
      %v789 = vpack.c.b16 %v781, %v781
      %v790 = vpack.c.b16 %v782, %v782
      %v791 = vpack.c.b16 %v783, %v783
      %800 = vst [vmem:[#allocation4 + $0x20] sm:$0xf] %v784
      %801 = vst [vmem:[#allocation4 + $0x44] sm:$0xf] %v785
      %802 = vst [vmem:[#allocation4 + $0x68] sm:$0xf] %v786
      %803 = vst [vmem:[#allocation4 + $0x8c] sm:$0xf] %v787
      %804 = vst [vmem:[#allocation4 + $0xb0] sm:$0xf] %v788
      %805 = vst [vmem:[#allocation4 + $0xd4] sm:$0xf] %v789
      %806 = vst [vmem:[#allocation4 + $0xf8] sm:$0xf] %v790
      %807 = vst [vmem:[#allocation4 + $0x11c] sm:$0xf] %v791
      %v808 = vld [vmem:[#allocation4] sm:$0xff]
      %v809 = vld [vmem:[#allocation4 + $0x8] sm:$0xff]
      %v810 = vld [vmem:[#allocation4 + $0x10] sm:$0xff]
      %v811 = vld [vmem:[#allocation4 + $0x18] sm:$0xff]
      %v812 = vld [vmem:[#allocation4 + $0x20] sm:$0xf]
      %v813 = vld [vmem:[#allocation4 + $0x24] sm:$0xff]
      %v814 = vld [vmem:[#allocation4 + $0x2c] sm:$0xff]
      %v815 = vld [vmem:[#allocation4 + $0x34] sm:$0xff]
      %v816 = vld [vmem:[#allocation4 + $0x3c] sm:$0xff]
      %v817 = vld [vmem:[#allocation4 + $0x44] sm:$0xf]
      %v818 = vld [vmem:[#allocation4 + $0x48] sm:$0xff]
      %v819 = vld [vmem:[#allocation4 + $0x50] sm:$0xff]
      %v820 = vld [vmem:[#allocation4 + $0x58] sm:$0xff]
      %v821 = vld [vmem:[#allocation4 + $0x60] sm:$0xff]
      %v822 = vld [vmem:[#allocation4 + $0x68] sm:$0xf]
      %v823 = vld [vmem:[#allocation4 + $0x6c] sm:$0xff]
      %v824 = vld [vmem:[#allocation4 + $0x74] sm:$0xff]
      %v825 = vld [vmem:[#allocation4 + $0x7c] sm:$0xff]
      %v826 = vld [vmem:[#allocation4 + $0x84] sm:$0xff]
      %v827 = vld [vmem:[#allocation4 + $0x8c] sm:$0xf]
      %v828 = vld [vmem:[#allocation4 + $0x90] sm:$0xff]
      %v829 = vld [vmem:[#allocation4 + $0x98] sm:$0xff]
      %v830 = vld [vmem:[#allocation4 + $0xa0] sm:$0xff]
      %v831 = vld [vmem:[#allocation4 + $0xa8] sm:$0xff]
      %v832 = vld [vmem:[#allocation4 + $0xb0] sm:$0xf]
      %v833 = vld [vmem:[#allocation4 + $0xb4] sm:$0xff]
      %v834 = vld [vmem:[#allocation4 + $0xbc] sm:$0xff]
      %v835 = vld [vmem:[#allocation4 + $0xc4] sm:$0xff]
      %v836 = vld [vmem:[#allocation4 + $0xcc] sm:$0xff]
      %v837 = vld [vmem:[#allocation4 + $0xd4] sm:$0xf]
      %v838 = vld [vmem:[#allocation4 + $0xd8] sm:$0xff]
      %v839 = vld [vmem:[#allocation4 + $0xe0] sm:$0xff]
      %v840 = vld [vmem:[#allocation4 + $0xe8] sm:$0xff]
      %v841 = vld [vmem:[#allocation4 + $0xf0] sm:$0xff]
      %v842 = vld [vmem:[#allocation4 + $0xf8] sm:$0xf]
      %v843 = vld [vmem:[#allocation4 + $0xfc] sm:$0xff]
      %v844 = vld [vmem:[#allocation4 + $0x104] sm:$0xff]
      %v845 = vld [vmem:[#allocation4 + $0x10c] sm:$0xff]
      %v846 = vld [vmem:[#allocation4 + $0x114] sm:$0xff]
      %v847 = vld [vmem:[#allocation4 + $0x11c] sm:$0xf]
      %v848 = vld [vmem:[%s1] sm:$0xf]
      %v849 = vld [vmem:[%s1 + $0x4] sm:$0xf]
      %v850 = vld [vmem:[%s1 + $0x8] sm:$0xf]
      %v851 = vld [vmem:[%s1 + $0xc] sm:$0xf]
      %v852 = vld [vmem:[%s1 + $0x10] sm:$0xf]
      %v853 = vld [vmem:[%s1 + $0x14] sm:$0xf]
      %v854 = vld [vmem:[%s1 + $0x18] sm:$0xf]
      %v855 = vld [vmem:[%s1 + $0x1c] sm:$0xf]
      %v856 = vld [vmem:[%s1 + $0x20] sm:$0xf]
      %v857 = vld [vmem:[%s1 + $0x24] sm:$0xf]
      %v858 = vld [vmem:[%s1 + $0x28] sm:$0xf]
      %v859 = vld [vmem:[%s1 + $0x2c] sm:$0xf]
      %v860 = vld [vmem:[%s1 + $0x30] sm:$0xf]
      %v861 = vld [vmem:[%s1 + $0x34] sm:$0xf]
      %v862 = vld [vmem:[%s1 + $0x38] sm:$0xf]
      %v863 = vld [vmem:[%s1 + $0x3c] sm:$0xf]
      %v864 = vld [vmem:[%s1 + $0x40] sm:$0xf]
      %v865 = vld [vmem:[%s1 + $0x44] sm:$0xf]
      %v866 = vld [vmem:[%s1 + $0x48] sm:$0xf]
      %v867 = vld [vmem:[%s1 + $0x4c] sm:$0xf]
      %v868 = vld [vmem:[%s1 + $0x50] sm:$0xf]
      %v869 = vld [vmem:[%s1 + $0x54] sm:$0xf]
      %v870 = vld [vmem:[%s1 + $0x58] sm:$0xf]
      %v871 = vld [vmem:[%s1 + $0x5c] sm:$0xf]
      %v872 = vld [vmem:[%s1 + $0x60] sm:$0xf]
      %v873 = vld [vmem:[%s1 + $0x64] sm:$0xf]
      %v874 = vld [vmem:[%s1 + $0x68] sm:$0xf]
      %v875 = vld [vmem:[%s1 + $0x6c] sm:$0xf]
      %v876 = vld [vmem:[%s1 + $0x70] sm:$0xf]
      %v877 = vld [vmem:[%s1 + $0x74] sm:$0xf]
      %v878 = vld [vmem:[%s1 + $0x78] sm:$0xf]
      %v879 = vld [vmem:[%s1 + $0x7c] sm:$0xf]
      %v880 = vld [vmem:[%s1 + $0x80] sm:$0xf]
      %v881 = vld [vmem:[%s1 + $0x84] sm:$0xf]
      %v882 = vld [vmem:[%s1 + $0x88] sm:$0xf]
      %v883 = vld [vmem:[%s1 + $0x8c] sm:$0xf]
      %v884 = vld [vmem:[%s1 + $0x90] sm:$0xf]
      %v885 = vld [vmem:[%s1 + $0x94] sm:$0xf]
      %v886 = vld [vmem:[%s1 + $0x98] sm:$0xf]
      %v887 = vld [vmem:[%s1 + $0x9c] sm:$0xf]
      %v888 = vld [vmem:[%s1 + $0xa0] sm:$0xf]
      %v889 = vld [vmem:[%s1 + $0xa4] sm:$0xf]
      %v890 = vld [vmem:[%s1 + $0xa8] sm:$0xf]
      %v891 = vld [vmem:[%s1 + $0xac] sm:$0xf]
      %v892 = vld [vmem:[%s1 + $0xb0] sm:$0xf]
      %v893 = vld [vmem:[%s1 + $0xb4] sm:$0xf]
      %v894 = vld [vmem:[%s1 + $0xb8] sm:$0xf]
      %v895 = vld [vmem:[%s1 + $0xbc] sm:$0xf]
      %v896 = vld [vmem:[%s1 + $0xc0] sm:$0xf]
      %v897 = vld [vmem:[%s1 + $0xc4] sm:$0xf]
      %v898 = vld [vmem:[%s1 + $0xc8] sm:$0xf]
      %v899 = vld [vmem:[%s1 + $0xcc] sm:$0xf]
      %v900 = vld [vmem:[%s1 + $0xd0] sm:$0xf]
      %v901 = vld [vmem:[%s1 + $0xd4] sm:$0xf]
      %v902 = vld [vmem:[%s1 + $0xd8] sm:$0xf]
      %v903 = vld [vmem:[%s1 + $0xdc] sm:$0xf]
      %v904 = vld [vmem:[%s1 + $0xe0] sm:$0xf]
      %v905 = vld [vmem:[%s1 + $0xe4] sm:$0xf]
      %v906 = vld [vmem:[%s1 + $0xe8] sm:$0xf]
      %v907 = vld [vmem:[%s1 + $0xec] sm:$0xf]
      %v908 = vld [vmem:[%s1 + $0xf0] sm:$0xf]
      %v909 = vld [vmem:[%s1 + $0xf4] sm:$0xf]
      %v910 = vld [vmem:[%s1 + $0xf8] sm:$0xf]
      %v911 = vld [vmem:[%s1 + $0xfc] sm:$0xf]
      %v912 = vld [vmem:[%s1 + $0x100] sm:$0xf]
      %v913 = vld [vmem:[%s1 + $0x104] sm:$0xf]
      %v914 = vld [vmem:[%s1 + $0x108] sm:$0xf]
      %v915 = vld [vmem:[%s1 + $0x10c] sm:$0xf]
      %v916 = vld [vmem:[%s1 + $0x110] sm:$0xf]
      %v917 = vld [vmem:[%s1 + $0x114] sm:$0xf]
      %v918 = vld [vmem:[%s1 + $0x118] sm:$0xf]
      %v919 = vld [vmem:[%s1 + $0x11c] sm:$0xf]
      %v920 = vld [vmem:[%s1 + $0x120] sm:$0xf]
      %v921 = vld [vmem:[%s1 + $0x124] sm:$0xf]
      %v922 = vld [vmem:[%s1 + $0x128] sm:$0xf]
      %v923 = vld [vmem:[%s1 + $0x12c] sm:$0xf]
      %v924 = vld [vmem:[%s1 + $0x130] sm:$0xf]
      %v925 = vld [vmem:[%s1 + $0x134] sm:$0xf]
      %v926 = vld [vmem:[%s1 + $0x138] sm:$0xf]
      %v927 = vld [vmem:[%s1 + $0x13c] sm:$0xf]
      %v928 = vld [vmem:[%s1 + $0x140] sm:$0xf]
      %v929 = vld [vmem:[%s1 + $0x144] sm:$0xf]
      %v930 = vld [vmem:[%s1 + $0x148] sm:$0xf]
      %v931 = vld [vmem:[%s1 + $0x14c] sm:$0xf]
      %v932 = vld [vmem:[%s1 + $0x150] sm:$0xf]
      %v933 = vld [vmem:[%s1 + $0x154] sm:$0xf]
      %v934 = vld [vmem:[%s1 + $0x158] sm:$0xf]
      %v935 = vld [vmem:[%s1 + $0x15c] sm:$0xf]
      %v936 = vld [vmem:[%s1 + $0x160] sm:$0xf]
      %v937 = vld [vmem:[%s1 + $0x164] sm:$0xf]
      %v938 = vld [vmem:[%s1 + $0x168] sm:$0xf]
      %v939 = vld [vmem:[%s1 + $0x16c] sm:$0xf]
      %v940 = vld [vmem:[%s1 + $0x170] sm:$0xf]
      %v941 = vld [vmem:[%s1 + $0x174] sm:$0xf]
      %v942 = vld [vmem:[%s1 + $0x178] sm:$0xf]
      %v943 = vld [vmem:[%s1 + $0x17c] sm:$0xf]
      %v944 = vld [vmem:[%s1 + $0x180] sm:$0xf]
      %v945 = vld [vmem:[%s1 + $0x184] sm:$0xf]
      %v946 = vld [vmem:[%s1 + $0x188] sm:$0xf]
      %v947 = vld [vmem:[%s1 + $0x18c] sm:$0xf]
      %v948 = vld [vmem:[%s1 + $0x190] sm:$0xf]
      %v949 = vld [vmem:[%s1 + $0x194] sm:$0xf]
      %v950 = vld [vmem:[%s1 + $0x198] sm:$0xf]
      %v951 = vld [vmem:[%s1 + $0x19c] sm:$0xf]
      %v952 = vld [vmem:[%s1 + $0x1a0] sm:$0xf]
      %v953 = vld [vmem:[%s1 + $0x1a4] sm:$0xf]
      %v954 = vld [vmem:[%s1 + $0x1a8] sm:$0xf]
      %v955 = vld [vmem:[%s1 + $0x1ac] sm:$0xf]
      %v956 = vld [vmem:[%s1 + $0x1b0] sm:$0xf]
      %v957 = vld [vmem:[%s1 + $0x1b4] sm:$0xf]
      %v958 = vld [vmem:[%s1 + $0x1b8] sm:$0xf]
      %v959 = vld [vmem:[%s1 + $0x1bc] sm:$0xf]
      %v960 = vld [vmem:[%s1 + $0x1c0] sm:$0xf]
      %v961 = vld [vmem:[%s1 + $0x1c4] sm:$0xf]
      %v962 = vld [vmem:[%s1 + $0x1c8] sm:$0xf]
      %v963 = vld [vmem:[%s1 + $0x1cc] sm:$0xf]
      %v964 = vld [vmem:[%s1 + $0x1d0] sm:$0xf]
      %v965 = vld [vmem:[%s1 + $0x1d4] sm:$0xf]
      %v966 = vld [vmem:[%s1 + $0x1d8] sm:$0xf]
      %v967 = vld [vmem:[%s1 + $0x1dc] sm:$0xf]
      %v968 = vld [vmem:[%s1 + $0x1e0] sm:$0xf]
      %v969 = vld [vmem:[%s1 + $0x1e4] sm:$0xf]
      %v970 = vld [vmem:[%s1 + $0x1e8] sm:$0xf]
      %v971 = vld [vmem:[%s1 + $0x1ec] sm:$0xf]
      %v972 = vld [vmem:[%s1 + $0x1f0] sm:$0xf]
      %v973 = vld [vmem:[%s1 + $0x1f4] sm:$0xf]
      %v974 = vld [vmem:[%s1 + $0x1f8] sm:$0xf]
      %v975 = vld [vmem:[%s1 + $0x1fc] sm:$0xf]
      %v976 = vld [vmem:[%s1 + $0x200] sm:$0xf]
      %v977 = vld [vmem:[%s1 + $0x204] sm:$0xf]
      %v978 = vld [vmem:[%s1 + $0x208] sm:$0xf]
      %v979 = vld [vmem:[%s1 + $0x20c] sm:$0xf]
      %v980 = vld [vmem:[%s1 + $0x210] sm:$0xf]
      %v981 = vld [vmem:[%s1 + $0x214] sm:$0xf]
      %v982 = vld [vmem:[%s1 + $0x218] sm:$0xf]
      %v983 = vld [vmem:[%s1 + $0x21c] sm:$0xf]
      %v984 = vld [vmem:[%s1 + $0x220] sm:$0xf]
      %v985 = vld [vmem:[%s1 + $0x224] sm:$0xf]
      %v986 = vld [vmem:[%s1 + $0x228] sm:$0xf]
      %v987 = vld [vmem:[%s1 + $0x22c] sm:$0xf]
      %v988 = vld [vmem:[%s1 + $0x230] sm:$0xf]
      %v989 = vld [vmem:[%s1 + $0x234] sm:$0xf]
      %v990 = vld [vmem:[%s1 + $0x238] sm:$0xf]
      %v991 = vld [vmem:[%s1 + $0x23c] sm:$0xf]
      %v1032 = vunpack.c.l.b16 %v808
      %v1033 = vunpack.c.h.b16 %v808
      %v1034 = vunpack.c.l.b16 %v809
      %v1035 = vunpack.c.h.b16 %v809
      %v1036 = vunpack.c.l.b16 %v810
      %v1037 = vunpack.c.h.b16 %v810
      %v1038 = vunpack.c.l.b16 %v811
      %v1039 = vunpack.c.h.b16 %v811
      %v1040 = vunpack.c.l.b16 %v812
      %v1041 = vunpack.c.l.b16 %v813
      %v1042 = vunpack.c.h.b16 %v813
      %v1043 = vunpack.c.l.b16 %v814
      %v1044 = vunpack.c.h.b16 %v814
      %v1045 = vunpack.c.l.b16 %v815
      %v1046 = vunpack.c.h.b16 %v815
      %v1047 = vunpack.c.l.b16 %v816
      %v1048 = vunpack.c.h.b16 %v816
      %v1049 = vunpack.c.l.b16 %v817
      %v1050 = vunpack.c.l.b16 %v818
      %v1051 = vunpack.c.h.b16 %v818
      %v1052 = vunpack.c.l.b16 %v819
      %v1053 = vunpack.c.h.b16 %v819
      %v1054 = vunpack.c.l.b16 %v820
      %v1055 = vunpack.c.h.b16 %v820
      %v1056 = vunpack.c.l.b16 %v821
      %v1057 = vunpack.c.h.b16 %v821
      %v1058 = vunpack.c.l.b16 %v822
      %v1059 = vunpack.c.l.b16 %v823
      %v1060 = vunpack.c.h.b16 %v823
      %v1061 = vunpack.c.l.b16 %v824
      %v1062 = vunpack.c.h.b16 %v824
      %v1063 = vunpack.c.l.b16 %v825
      %v1064 = vunpack.c.h.b16 %v825
      %v1065 = vunpack.c.l.b16 %v826
      %v1066 = vunpack.c.h.b16 %v826
      %v1067 = vunpack.c.l.b16 %v827
      %v1068 = vunpack.c.l.b16 %v828
      %v1069 = vunpack.c.h.b16 %v828
      %v1070 = vunpack.c.l.b16 %v829
      %v1071 = vunpack.c.h.b16 %v829
      %v1072 = vunpack.c.l.b16 %v830
      %v1073 = vunpack.c.h.b16 %v830
      %v1074 = vunpack.c.l.b16 %v831
      %v1075 = vunpack.c.h.b16 %v831
      %v1076 = vunpack.c.l.b16 %v832
      %v1077 = vunpack.c.l.b16 %v833
      %v1078 = vunpack.c.h.b16 %v833
      %v1079 = vunpack.c.l.b16 %v834
      %v1080 = vunpack.c.h.b16 %v834
      %v1081 = vunpack.c.l.b16 %v835
      %v1082 = vunpack.c.h.b16 %v835
      %v1083 = vunpack.c.l.b16 %v836
      %v1084 = vunpack.c.h.b16 %v836
      %v1085 = vunpack.c.l.b16 %v837
      %v1086 = vunpack.c.l.b16 %v838
      %v1087 = vunpack.c.h.b16 %v838
      %v1088 = vunpack.c.l.b16 %v839
      %v1089 = vunpack.c.h.b16 %v839
      %v1090 = vunpack.c.l.b16 %v840
      %v1091 = vunpack.c.h.b16 %v840
      %v1092 = vunpack.c.l.b16 %v841
      %v1093 = vunpack.c.h.b16 %v841
      %v1094 = vunpack.c.l.b16 %v842
      %v1095 = vunpack.c.l.b16 %v843
      %v1096 = vunpack.c.h.b16 %v843
      %v1097 = vunpack.c.l.b16 %v844
      %v1098 = vunpack.c.h.b16 %v844
      %v1099 = vunpack.c.l.b16 %v845
      %v1100 = vunpack.c.h.b16 %v845
      %v1101 = vunpack.c.l.b16 %v846
      %v1102 = vunpack.c.h.b16 %v846
      %v1103 = vunpack.c.l.b16 %v847
      %v1104 = vpack.c.b16 %v1041, %v1032
      %v1105 = vpack.c.b16 %v1042, %v1033
      %v1106 = vpack.c.b16 %v1043, %v1034
      %v1107 = vpack.c.b16 %v1044, %v1035
      %v1108 = vpack.c.b16 %v1045, %v1036
      %v1109 = vpack.c.b16 %v1046, %v1037
      %v1110 = vpack.c.b16 %v1047, %v1038
      %v1111 = vpack.c.b16 %v1048, %v1039
      %v1112 = vpack.c.b16 %v1049, %v1040
      %v1113 = vpack.c.b16 %v1059, %v1050
      %v1114 = vpack.c.b16 %v1060, %v1051
      %v1115 = vpack.c.b16 %v1061, %v1052
      %v1116 = vpack.c.b16 %v1062, %v1053
      %v1117 = vpack.c.b16 %v1063, %v1054
      %v1118 = vpack.c.b16 %v1064, %v1055
      %v1119 = vpack.c.b16 %v1065, %v1056
      %v1120 = vpack.c.b16 %v1066, %v1057
      %v1121 = vpack.c.b16 %v1067, %v1058
      %v1122 = vpack.c.b16 %v1077, %v1068
      %v1123 = vpack.c.b16 %v1078, %v1069
      %v1124 = vpack.c.b16 %v1079, %v1070
      %v1125 = vpack.c.b16 %v1080, %v1071
      %v1126 = vpack.c.b16 %v1081, %v1072
      %v1127 = vpack.c.b16 %v1082, %v1073
      %v1128 = vpack.c.b16 %v1083, %v1074
      %v1129 = vpack.c.b16 %v1084, %v1075
      %v1130 = vpack.c.b16 %v1085, %v1076
      %v1131 = vpack.c.b16 %v1095, %v1086
      %v1132 = vpack.c.b16 %v1096, %v1087
      %v1133 = vpack.c.b16 %v1097, %v1088
      %v1134 = vpack.c.b16 %v1098, %v1089
      %v1135 = vpack.c.b16 %v1099, %v1090
      %v1136 = vpack.c.b16 %v1100, %v1091
      %v1137 = vpack.c.b16 %v1101, %v1092
      %v1138 = vpack.c.b16 %v1102, %v1093
      %v1139 = vpack.c.b16 %v1103, %v1094
      %v1320 = vunpack.c.l.b16 %v848
      %v1321 = vunpack.c.l.b16 %v849
      %v1322 = vunpack.c.l.b16 %v850
      %v1323 = vunpack.c.l.b16 %v851
      %v1324 = vunpack.c.l.b16 %v852
      %v1325 = vunpack.c.l.b16 %v853
      %v1326 = vunpack.c.l.b16 %v854
      %v1327 = vunpack.c.l.b16 %v855
      %v1328 = vunpack.c.l.b16 %v856
      %v1329 = vunpack.c.l.b16 %v857
      %v1330 = vunpack.c.l.b16 %v858
      %v1331 = vunpack.c.l.b16 %v859
      %v1332 = vunpack.c.l.b16 %v860
      %v1333 = vunpack.c.l.b16 %v861
      %v1334 = vunpack.c.l.b16 %v862
      %v1335 = vunpack.c.l.b16 %v863
      %v1336 = vunpack.c.l.b16 %v864
      %v1337 = vunpack.c.l.b16 %v865
      %v1338 = vunpack.c.l.b16 %v866
      %v1339 = vunpack.c.l.b16 %v867
      %v1340 = vunpack.c.l.b16 %v868
      %v1341 = vunpack.c.l.b16 %v869
      %v1342 = vunpack.c.l.b16 %v870
      %v1343 = vunpack.c.l.b16 %v871
      %v1344 = vunpack.c.l.b16 %v872
      %v1345 = vunpack.c.l.b16 %v873
      %v1346 = vunpack.c.l.b16 %v874
      %v1347 = vunpack.c.l.b16 %v875
      %v1348 = vunpack.c.l.b16 %v876
      %v1349 = vunpack.c.l.b16 %v877
      %v1350 = vunpack.c.l.b16 %v878
      %v1351 = vunpack.c.l.b16 %v879
      %v1352 = vunpack.c.l.b16 %v880
      %v1353 = vunpack.c.l.b16 %v881
      %v1354 = vunpack.c.l.b16 %v882
      %v1355 = vunpack.c.l.b16 %v883
      %v1356 = vunpack.c.l.b16 %v884
      %v1357 = vunpack.c.l.b16 %v885
      %v1358 = vunpack.c.l.b16 %v886
      %v1359 = vunpack.c.l.b16 %v887
      %v1360 = vunpack.c.l.b16 %v888
      %v1361 = vunpack.c.l.b16 %v889
      %v1362 = vunpack.c.l.b16 %v890
      %v1363 = vunpack.c.l.b16 %v891
      %v1364 = vunpack.c.l.b16 %v892
      %v1365 = vunpack.c.l.b16 %v893
      %v1366 = vunpack.c.l.b16 %v894
      %v1367 = vunpack.c.l.b16 %v895
      %v1368 = vunpack.c.l.b16 %v896
      %v1369 = vunpack.c.l.b16 %v897
      %v1370 = vunpack.c.l.b16 %v898
      %v1371 = vunpack.c.l.b16 %v899
      %v1372 = vunpack.c.l.b16 %v900
      %v1373 = vunpack.c.l.b16 %v901
      %v1374 = vunpack.c.l.b16 %v902
      %v1375 = vunpack.c.l.b16 %v903
      %v1376 = vunpack.c.l.b16 %v904
      %v1377 = vunpack.c.l.b16 %v905
      %v1378 = vunpack.c.l.b16 %v906
      %v1379 = vunpack.c.l.b16 %v907
      %v1380 = vunpack.c.l.b16 %v908
      %v1381 = vunpack.c.l.b16 %v909
      %v1382 = vunpack.c.l.b16 %v910
      %v1383 = vunpack.c.l.b16 %v911
      %v1384 = vunpack.c.l.b16 %v912
      %v1385 = vunpack.c.l.b16 %v913
      %v1386 = vunpack.c.l.b16 %v914
      %v1387 = vunpack.c.l.b16 %v915
      %v1388 = vunpack.c.l.b16 %v916
      %v1389 = vunpack.c.l.b16 %v917
      %v1390 = vunpack.c.l.b16 %v918
      %v1391 = vunpack.c.l.b16 %v919
      %v1392 = vunpack.c.l.b16 %v920
      %v1393 = vunpack.c.l.b16 %v921
      %v1394 = vunpack.c.l.b16 %v922
      %v1395 = vunpack.c.l.b16 %v923
      %v1396 = vunpack.c.l.b16 %v924
      %v1397 = vunpack.c.l.b16 %v925
      %v1398 = vunpack.c.l.b16 %v926
      %v1399 = vunpack.c.l.b16 %v927
      %v1400 = vunpack.c.l.b16 %v928
      %v1401 = vunpack.c.l.b16 %v929
      %v1402 = vunpack.c.l.b16 %v930
      %v1403 = vunpack.c.l.b16 %v931
      %v1404 = vunpack.c.l.b16 %v932
      %v1405 = vunpack.c.l.b16 %v933
      %v1406 = vunpack.c.l.b16 %v934
      %v1407 = vunpack.c.l.b16 %v935
      %v1408 = vunpack.c.l.b16 %v936
      %v1409 = vunpack.c.l.b16 %v937
      %v1410 = vunpack.c.l.b16 %v938
      %v1411 = vunpack.c.l.b16 %v939
      %v1412 = vunpack.c.l.b16 %v940
      %v1413 = vunpack.c.l.b16 %v941
      %v1414 = vunpack.c.l.b16 %v942
      %v1415 = vunpack.c.l.b16 %v943
      %v1416 = vunpack.c.l.b16 %v944
      %v1417 = vunpack.c.l.b16 %v945
      %v1418 = vunpack.c.l.b16 %v946
      %v1419 = vunpack.c.l.b16 %v947
      %v1420 = vunpack.c.l.b16 %v948
      %v1421 = vunpack.c.l.b16 %v949
      %v1422 = vunpack.c.l.b16 %v950
      %v1423 = vunpack.c.l.b16 %v951
      %v1424 = vunpack.c.l.b16 %v952
      %v1425 = vunpack.c.l.b16 %v953
      %v1426 = vunpack.c.l.b16 %v954
      %v1427 = vunpack.c.l.b16 %v955
      %v1428 = vunpack.c.l.b16 %v956
      %v1429 = vunpack.c.l.b16 %v957
      %v1430 = vunpack.c.l.b16 %v958
      %v1431 = vunpack.c.l.b16 %v959
      %v1432 = vunpack.c.l.b16 %v960
      %v1433 = vunpack.c.l.b16 %v961
      %v1434 = vunpack.c.l.b16 %v962
      %v1435 = vunpack.c.l.b16 %v963
      %v1436 = vunpack.c.l.b16 %v964
      %v1437 = vunpack.c.l.b16 %v965
      %v1438 = vunpack.c.l.b16 %v966
      %v1439 = vunpack.c.l.b16 %v967
      %v1440 = vunpack.c.l.b16 %v968
      %v1441 = vunpack.c.l.b16 %v969
      %v1442 = vunpack.c.l.b16 %v970
      %v1443 = vunpack.c.l.b16 %v971
      %v1444 = vunpack.c.l.b16 %v972
      %v1445 = vunpack.c.l.b16 %v973
      %v1446 = vunpack.c.l.b16 %v974
      %v1447 = vunpack.c.l.b16 %v975
      %v1448 = vunpack.c.l.b16 %v976
      %v1449 = vunpack.c.l.b16 %v977
      %v1450 = vunpack.c.l.b16 %v978
      %v1451 = vunpack.c.l.b16 %v979
      %v1452 = vunpack.c.l.b16 %v980
      %v1453 = vunpack.c.l.b16 %v981
      %v1454 = vunpack.c.l.b16 %v982
      %v1455 = vunpack.c.l.b16 %v983
      %v1456 = vunpack.c.l.b16 %v984
      %v1457 = vunpack.c.l.b16 %v985
      %v1458 = vunpack.c.l.b16 %v986
      %v1459 = vunpack.c.l.b16 %v987
      %v1460 = vunpack.c.l.b16 %v988
      %v1461 = vunpack.c.l.b16 %v989
      %v1462 = vunpack.c.l.b16 %v990
      %v1463 = vunpack.c.l.b16 %v991
      %v1464 = vpack.c.b16 %v1321, %v1320
      %v1465 = vpack.c.b16 %v1323, %v1322
      %v1466 = vpack.c.b16 %v1325, %v1324
      %v1467 = vpack.c.b16 %v1327, %v1326
      %v1468 = vpack.c.b16 %v1329, %v1328
      %v1469 = vpack.c.b16 %v1331, %v1330
      %v1470 = vpack.c.b16 %v1333, %v1332
      %v1471 = vpack.c.b16 %v1335, %v1334
      %v1472 = vpack.c.b16 %v1337, %v1336
      %v1473 = vpack.c.b16 %v1339, %v1338
      %v1474 = vpack.c.b16 %v1341, %v1340
      %v1475 = vpack.c.b16 %v1343, %v1342
      %v1476 = vpack.c.b16 %v1345, %v1344
      %v1477 = vpack.c.b16 %v1347, %v1346
      %v1478 = vpack.c.b16 %v1349, %v1348
      %v1479 = vpack.c.b16 %v1351, %v1350
      %v1480 = vpack.c.b16 %v1353, %v1352
      %v1481 = vpack.c.b16 %v1355, %v1354
      %v1482 = vpack.c.b16 %v1357, %v1356
      %v1483 = vpack.c.b16 %v1359, %v1358
      %v1484 = vpack.c.b16 %v1361, %v1360
      %v1485 = vpack.c.b16 %v1363, %v1362
      %v1486 = vpack.c.b16 %v1365, %v1364
      %v1487 = vpack.c.b16 %v1367, %v1366
      %v1488 = vpack.c.b16 %v1369, %v1368
      %v1489 = vpack.c.b16 %v1371, %v1370
      %v1490 = vpack.c.b16 %v1373, %v1372
      %v1491 = vpack.c.b16 %v1375, %v1374
      %v1492 = vpack.c.b16 %v1377, %v1376
      %v1493 = vpack.c.b16 %v1379, %v1378
      %v1494 = vpack.c.b16 %v1381, %v1380
      %v1495 = vpack.c.b16 %v1383, %v1382
      %v1496 = vpack.c.b16 %v1385, %v1384
      %v1497 = vpack.c.b16 %v1387, %v1386
      %v1498 = vpack.c.b16 %v1389, %v1388
      %v1499 = vpack.c.b16 %v1391, %v1390
      %v1500 = vpack.c.b16 %v1393, %v1392
      %v1501 = vpack.c.b16 %v1395, %v1394
      %v1502 = vpack.c.b16 %v1397, %v1396
      %v1503 = vpack.c.b16 %v1399, %v1398
      %v1504 = vpack.c.b16 %v1401, %v1400
      %v1505 = vpack.c.b16 %v1403, %v1402
      %v1506 = vpack.c.b16 %v1405, %v1404
      %v1507 = vpack.c.b16 %v1407, %v1406
      %v1508 = vpack.c.b16 %v1409, %v1408
      %v1509 = vpack.c.b16 %v1411, %v1410
      %v1510 = vpack.c.b16 %v1413, %v1412
      %v1511 = vpack.c.b16 %v1415, %v1414
      %v1512 = vpack.c.b16 %v1417, %v1416
      %v1513 = vpack.c.b16 %v1419, %v1418
      %v1514 = vpack.c.b16 %v1421, %v1420
      %v1515 = vpack.c.b16 %v1423, %v1422
      %v1516 = vpack.c.b16 %v1425, %v1424
      %v1517 = vpack.c.b16 %v1427, %v1426
      %v1518 = vpack.c.b16 %v1429, %v1428
      %v1519 = vpack.c.b16 %v1431, %v1430
      %v1520 = vpack.c.b16 %v1433, %v1432
      %v1521 = vpack.c.b16 %v1435, %v1434
      %v1522 = vpack.c.b16 %v1437, %v1436
      %v1523 = vpack.c.b16 %v1439, %v1438
      %v1524 = vpack.c.b16 %v1441, %v1440
      %v1525 = vpack.c.b16 %v1443, %v1442
      %v1526 = vpack.c.b16 %v1445, %v1444
      %v1527 = vpack.c.b16 %v1447, %v1446
      %v1528 = vpack.c.b16 %v1449, %v1448
      %v1529 = vpack.c.b16 %v1451, %v1450
      %v1530 = vpack.c.b16 %v1453, %v1452
      %v1531 = vpack.c.b16 %v1455, %v1454
      %v1532 = vpack.c.b16 %v1457, %v1456
      %v1533 = vpack.c.b16 %v1459, %v1458
      %v1534 = vpack.c.b16 %v1461, %v1460
      %v1535 = vpack.c.b16 %v1463, %v1462
      %1608 = vmatprep.subr.bf16.mxu0 0
      %1609 = vmatpush1.bf16.msra.mxu0 %v1471
      %1610 = vmatprep.subr.bf16.mxu0 0
      %1611 = vmatpush1.bf16.msra.mxu0 %v1470
      %1612 = vmatprep.subr.bf16.mxu0 0
      %1613 = vmatpush1.bf16.msra.mxu0 %v1469
      %1614 = vmatprep.subr.bf16.mxu0 0
      %1615 = vmatpush1.bf16.msra.mxu0 %v1468
      %1616 = vmatprep.subr.bf16.mxu0 0
      %1617 = vmatpush1.bf16.msra.mxu0 %v1467
      %1618 = vmatprep.subr.bf16.mxu0 0
      %1619 = vmatpush1.bf16.msra.mxu0 %v1466
      %1620 = vmatprep.subr.bf16.mxu0 0
      %1621 = vmatpush1.bf16.msra.mxu0 %v1465
      %1622 = vmatprep.subr.bf16.mxu0 0
      %1623 = vmatpush1.bf16.msra.mxu0 %v1464
      %1624 = vmatprep.subr.bf16.mxu0 0
      %1625 = vmatpush2.bf16.msra.mxu0 %v1479
      %1626 = vmatprep.subr.bf16.mxu0 0
      %1627 = vmatpush2.bf16.msra.mxu0 %v1478
      %1628 = vmatprep.subr.bf16.mxu0 0
      %1629 = vmatpush2.bf16.msra.mxu0 %v1477
      %1630 = vmatprep.subr.bf16.mxu0 0
      %1631 = vmatpush2.bf16.msra.mxu0 %v1476
      %1632 = vmatprep.subr.bf16.mxu0 0
      %1633 = vmatpush2.bf16.msra.mxu0 %v1475
      %1634 = vmatprep.subr.bf16.mxu0 0
      %1635 = vmatpush2.bf16.msra.mxu0 %v1474
      %1636 = vmatprep.subr.bf16.mxu0 0
      %1637 = vmatpush2.bf16.msra.mxu0 %v1473
      %1638 = vmatprep.subr.bf16.mxu0 0
      %1639 = vmatpush2.bf16.msra.mxu0 %v1472
      %1640 = vmatprep.mubr.bf16.mxu0 %v1105
      %1641 = vmatmul.mubr.bf16.gmra.mxu0 %v1104
      %v1642 = vpop.f32.mrf.mxu0
      %v1643 = vadd.f32 0.0, %v1642
      %v1644 = vpop.f32.mrf.mxu0
      %v1645 = vpop.f32.mrf.mxu0
      %v1646 = vadd.f32 0.0, %v1645
      %v1647 = vpop.f32.mrf.mxu0
      %1648 = vmatprep.mubr.bf16.mxu0 %v1114
      %1649 = vmatmul.mubr.bf16.gmra.mxu0 %v1113
      %v1650 = vpop.f32.mrf.mxu0
      %v1651 = vadd.f32 0.0, %v1650
      %v1652 = vpop.f32.mrf.mxu0
      %v1653 = vpop.f32.mrf.mxu0
      %v1654 = vadd.f32 0.0, %v1653
      %v1655 = vpop.f32.mrf.mxu0
      %1656 = vmatprep.mubr.bf16.mxu0 %v1123
      %1657 = vmatmul.mubr.bf16.gmra.mxu0 %v1122
      %v1658 = vpop.f32.mrf.mxu0
      %v1659 = vadd.f32 0.0, %v1658
      %v1660 = vpop.f32.mrf.mxu0
      %v1661 = vpop.f32.mrf.mxu0
      %v1662 = vadd.f32 0.0, %v1661
      %v1663 = vpop.f32.mrf.mxu0
      %1664 = vmatprep.mubr.bf16.mxu0 %v1132
      %1665 = vmatmul.mubr.bf16.gmra.mxu0 %v1131
      %v1666 = vpop.f32.mrf.mxu0
      %v1667 = vadd.f32 0.0, %v1666
      %v1668 = vpop.f32.mrf.mxu0
      %v1669 = vpop.f32.mrf.mxu0
      %v1670 = vadd.f32 0.0, %v1669
      %v1671 = vpop.f32.mrf.mxu0
      %1672 = vdwg.mxu0
      %1673 = vmatprep.subr.bf16.mxu0 0
      %1674 = vmatpush1.bf16.msra.mxu0 %v1487
      %1675 = vmatprep.subr.bf16.mxu0 0
      %1676 = vmatpush1.bf16.msra.mxu0 %v1486
      %1677 = vmatprep.subr.bf16.mxu0 0
      %1678 = vmatpush1.bf16.msra.mxu0 %v1485
      %1679 = vmatprep.subr.bf16.mxu0 0
      %1680 = vmatpush1.bf16.msra.mxu0 %v1484
      %1681 = vmatprep.subr.bf16.mxu0 0
      %1682 = vmatpush1.bf16.msra.mxu0 %v1483
      %1683 = vmatprep.subr.bf16.mxu0 0
      %1684 = vmatpush1.bf16.msra.mxu0 %v1482
      %1685 = vmatprep.subr.bf16.mxu0 0
      %1686 = vmatpush1.bf16.msra.mxu0 %v1481
      %1687 = vmatprep.subr.bf16.mxu0 0
      %1688 = vmatpush1.bf16.msra.mxu0 %v1480
      %1689 = vmatprep.subr.bf16.mxu0 0
      %1690 = vmatpush2.bf16.msra.mxu0 %v1495
      %1691 = vmatprep.subr.bf16.mxu0 0
      %1692 = vmatpush2.bf16.msra.mxu0 %v1494
      %1693 = vmatprep.subr.bf16.mxu0 0
      %1694 = vmatpush2.bf16.msra.mxu0 %v1493
      %1695 = vmatprep.subr.bf16.mxu0 0
      %1696 = vmatpush2.bf16.msra.mxu0 %v1492
      %1697 = vmatprep.subr.bf16.mxu0 0
      %1698 = vmatpush2.bf16.msra.mxu0 %v1491
      %1699 = vmatprep.subr.bf16.mxu0 0
      %1700 = vmatpush2.bf16.msra.mxu0 %v1490
      %1701 = vmatprep.subr.bf16.mxu0 0
      %1702 = vmatpush2.bf16.msra.mxu0 %v1489
      %1703 = vmatprep.subr.bf16.mxu0 0
      %1704 = vmatpush2.bf16.msra.mxu0 %v1488
      %1705 = vmatprep.mubr.bf16.mxu0 %v1107
      %1706 = vmatmul.mubr.bf16.gmra.mxu0 %v1106
      %v1707 = vpop.f32.mrf.mxu0
      %v1708 = vadd.f32 %v1643, %v1707
      %v1709 = vpop.f32.mrf.mxu0
      %v1710 = vpop.f32.mrf.mxu0
      %v1711 = vadd.f32 %v1646, %v1710
      %v1712 = vpop.f32.mrf.mxu0
      %1713 = vmatprep.mubr.bf16.mxu0 %v1116
      %1714 = vmatmul.mubr.bf16.gmra.mxu0 %v1115
      %v1715 = vpop.f32.mrf.mxu0
      %v1716 = vadd.f32 %v1651, %v1715
      %v1717 = vpop.f32.mrf.mxu0
      %v1718 = vpop.f32.mrf.mxu0
      %v1719 = vadd.f32 %v1654, %v1718
      %v1720 = vpop.f32.mrf.mxu0
      %1721 = vmatprep.mubr.bf16.mxu0 %v1125
      %1722 = vmatmul.mubr.bf16.gmra.mxu0 %v1124
      %v1723 = vpop.f32.mrf.mxu0
      %v1724 = vadd.f32 %v1659, %v1723
      %v1725 = vpop.f32.mrf.mxu0
      %v1726 = vpop.f32.mrf.mxu0
      %v1727 = vadd.f32 %v1662, %v1726
      %v1728 = vpop.f32.mrf.mxu0
      %1729 = vmatprep.mubr.bf16.mxu0 %v1134
      %1730 = vmatmul.mubr.bf16.gmra.mxu0 %v1133
      %v1731 = vpop.f32.mrf.mxu0
      %v1732 = vadd.f32 %v1667, %v1731
      %v1733 = vpop.f32.mrf.mxu0
      %v1734 = vpop.f32.mrf.mxu0
      %v1735 = vadd.f32 %v1670, %v1734
      %v1736 = vpop.f32.mrf.mxu0
      %1737 = vdwg.mxu0
      %1738 = vmatprep.subr.bf16.mxu0 0
      %1739 = vmatpush1.bf16.msra.mxu0 %v1503
      %1740 = vmatprep.subr.bf16.mxu0 0
      %1741 = vmatpush1.bf16.msra.mxu0 %v1502
      %1742 = vmatprep.subr.bf16.mxu0 0
      %1743 = vmatpush1.bf16.msra.mxu0 %v1501
      %1744 = vmatprep.subr.bf16.mxu0 0
      %1745 = vmatpush1.bf16.msra.mxu0 %v1500
      %1746 = vmatprep.subr.bf16.mxu0 0
      %1747 = vmatpush1.bf16.msra.mxu0 %v1499
      %1748 = vmatprep.subr.bf16.mxu0 0
      %1749 = vmatpush1.bf16.msra.mxu0 %v1498
      %1750 = vmatprep.subr.bf16.mxu0 0
      %1751 = vmatpush1.bf16.msra.mxu0 %v1497
      %1752 = vmatprep.subr.bf16.mxu0 0
      %1753 = vmatpush1.bf16.msra.mxu0 %v1496
      %1754 = vmatprep.subr.bf16.mxu0 0
      %1755 = vmatpush2.bf16.msra.mxu0 %v1511
      %1756 = vmatprep.subr.bf16.mxu0 0
      %1757 = vmatpush2.bf16.msra.mxu0 %v1510
      %1758 = vmatprep.subr.bf16.mxu0 0
      %1759 = vmatpush2.bf16.msra.mxu0 %v1509
      %1760 = vmatprep.subr.bf16.mxu0 0
      %1761 = vmatpush2.bf16.msra.mxu0 %v1508
      %1762 = vmatprep.subr.bf16.mxu0 0
      %1763 = vmatpush2.bf16.msra.mxu0 %v1507
      %1764 = vmatprep.subr.bf16.mxu0 0
      %1765 = vmatpush2.bf16.msra.mxu0 %v1506
      %1766 = vmatprep.subr.bf16.mxu0 0
      %1767 = vmatpush2.bf16.msra.mxu0 %v1505
      %1768 = vmatprep.subr.bf16.mxu0 0
      %1769 = vmatpush2.bf16.msra.mxu0 %v1504
      %1770 = vmatprep.mubr.bf16.mxu0 %v1109
      %1771 = vmatmul.mubr.bf16.gmra.mxu0 %v1108
      %v1772 = vpop.f32.mrf.mxu0
      %v1773 = vadd.f32 %v1708, %v1772
      %v1774 = vpop.f32.mrf.mxu0
      %v1775 = vpop.f32.mrf.mxu0
      %v1776 = vadd.f32 %v1711, %v1775
      %v1777 = vpop.f32.mrf.mxu0
      %1778 = vmatprep.mubr.bf16.mxu0 %v1118
      %1779 = vmatmul.mubr.bf16.gmra.mxu0 %v1117
      %v1780 = vpop.f32.mrf.mxu0
      %v1781 = vadd.f32 %v1716, %v1780
      %v1782 = vpop.f32.mrf.mxu0
      %v1783 = vpop.f32.mrf.mxu0
      %v1784 = vadd.f32 %v1719, %v1783
      %v1785 = vpop.f32.mrf.mxu0
      %1786 = vmatprep.mubr.bf16.mxu0 %v1127
      %1787 = vmatmul.mubr.bf16.gmra.mxu0 %v1126
      %v1788 = vpop.f32.mrf.mxu0
      %v1789 = vadd.f32 %v1724, %v1788
      %v1790 = vpop.f32.mrf.mxu0
      %v1791 = vpop.f32.mrf.mxu0
      %v1792 = vadd.f32 %v1727, %v1791
      %v1793 = vpop.f32.mrf.mxu0
      %1794 = vmatprep.mubr.bf16.mxu0 %v1136
      %1795 = vmatmul.mubr.bf16.gmra.mxu0 %v1135
      %v1796 = vpop.f32.mrf.mxu0
      %v1797 = vadd.f32 %v1732, %v1796
      %v1798 = vpop.f32.mrf.mxu0
      %v1799 = vpop.f32.mrf.mxu0
      %v1800 = vadd.f32 %v1735, %v1799
      %v1801 = vpop.f32.mrf.mxu0
      %1802 = vdwg.mxu0
      %1803 = vmatprep.subr.bf16.mxu0 0
      %1804 = vmatpush1.bf16.msra.mxu0 %v1519
      %1805 = vmatprep.subr.bf16.mxu0 0
      %1806 = vmatpush1.bf16.msra.mxu0 %v1518
      %1807 = vmatprep.subr.bf16.mxu0 0
      %1808 = vmatpush1.bf16.msra.mxu0 %v1517
      %1809 = vmatprep.subr.bf16.mxu0 0
      %1810 = vmatpush1.bf16.msra.mxu0 %v1516
      %1811 = vmatprep.subr.bf16.mxu0 0
      %1812 = vmatpush1.bf16.msra.mxu0 %v1515
      %1813 = vmatprep.subr.bf16.mxu0 0
      %1814 = vmatpush1.bf16.msra.mxu0 %v1514
      %1815 = vmatprep.subr.bf16.mxu0 0
      %1816 = vmatpush1.bf16.msra.mxu0 %v1513
      %1817 = vmatprep.subr.bf16.mxu0 0
      %1818 = vmatpush1.bf16.msra.mxu0 %v1512
      %1819 = vmatprep.subr.bf16.mxu0 0
      %1820 = vmatpush2.bf16.msra.mxu0 %v1527
      %1821 = vmatprep.subr.bf16.mxu0 0
      %1822 = vmatpush2.bf16.msra.mxu0 %v1526
      %1823 = vmatprep.subr.bf16.mxu0 0
      %1824 = vmatpush2.bf16.msra.mxu0 %v1525
      %1825 = vmatprep.subr.bf16.mxu0 0
      %1826 = vmatpush2.bf16.msra.mxu0 %v1524
      %1827 = vmatprep.subr.bf16.mxu0 0
      %1828 = vmatpush2.bf16.msra.mxu0 %v1523
      %1829 = vmatprep.subr.bf16.mxu0 0
      %1830 = vmatpush2.bf16.msra.mxu0 %v1522
      %1831 = vmatprep.subr.bf16.mxu0 0
      %1832 = vmatpush2.bf16.msra.mxu0 %v1521
      %1833 = vmatprep.subr.bf16.mxu0 0
      %1834 = vmatpush2.bf16.msra.mxu0 %v1520
      %1835 = vmatprep.mubr.bf16.mxu0 %v1111
      %1836 = vmatmul.mubr.bf16.gmra.mxu0 %v1110
      %v1837 = vpop.f32.mrf.mxu0
      %v1838 = vadd.f32 %v1773, %v1837
      %v1839 = vpop.f32.mrf.mxu0
      %v1840 = vpop.f32.mrf.mxu0
      %v1841 = vadd.f32 %v1776, %v1840
      %v1842 = vpop.f32.mrf.mxu0
      %1843 = vmatprep.mubr.bf16.mxu0 %v1120
      %1844 = vmatmul.mubr.bf16.gmra.mxu0 %v1119
      %v1845 = vpop.f32.mrf.mxu0
      %v1846 = vadd.f32 %v1781, %v1845
      %v1847 = vpop.f32.mrf.mxu0
      %v1848 = vpop.f32.mrf.mxu0
      %v1849 = vadd.f32 %v1784, %v1848
      %v1850 = vpop.f32.mrf.mxu0
      %1851 = vmatprep.mubr.bf16.mxu0 %v1129
      %1852 = vmatmul.mubr.bf16.gmra.mxu0 %v1128
      %v1853 = vpop.f32.mrf.mxu0
      %v1854 = vadd.f32 %v1789, %v1853
      %v1855 = vpop.f32.mrf.mxu0
      %v1856 = vpop.f32.mrf.mxu0
      %v1857 = vadd.f32 %v1792, %v1856
      %v1858 = vpop.f32.mrf.mxu0
      %1859 = vmatprep.mubr.bf16.mxu0 %v1138
      %1860 = vmatmul.mubr.bf16.gmra.mxu0 %v1137
      %v1861 = vpop.f32.mrf.mxu0
      %v1862 = vadd.f32 %v1797, %v1861
      %v1863 = vpop.f32.mrf.mxu0
      %v1864 = vpop.f32.mrf.mxu0
      %v1865 = vadd.f32 %v1800, %v1864
      %v1866 = vpop.f32.mrf.mxu0
      %1867 = vdwg.mxu0
      %1868 = vmatprep.subr.bf16.mxu0 0
      %1869 = vmatpush1.bf16.msra.mxu0 %v1535
      %1870 = vmatprep.subr.bf16.mxu0 0
      %1871 = vmatpush1.bf16.msra.mxu0 %v1534
      %1872 = vmatprep.subr.bf16.mxu0 0
      %1873 = vmatpush1.bf16.msra.mxu0 %v1533
      %1874 = vmatprep.subr.bf16.mxu0 0
      %1875 = vmatpush1.bf16.msra.mxu0 %v1532
      %1876 = vmatprep.subr.bf16.mxu0 0
      %1877 = vmatpush1.bf16.msra.mxu0 %v1531
      %1878 = vmatprep.subr.bf16.mxu0 0
      %1879 = vmatpush1.bf16.msra.mxu0 %v1530
      %1880 = vmatprep.subr.bf16.mxu0 0
      %1881 = vmatpush1.bf16.msra.mxu0 %v1529
      %1882 = vmatprep.subr.bf16.mxu0 0
      %1883 = vmatpush1.bf16.msra.mxu0 %v1528
      %1884 = vmatprep.subr.bf16.mxu0 0
      %1885 = vmatpush2.bf16.msra.mxu0 0
      %1886 = vmatprep.subr.bf16.mxu0 0
      %1887 = vmatpush2.bf16.msra.mxu0 0
      %1888 = vmatprep.subr.bf16.mxu0 0
      %1889 = vmatpush2.bf16.msra.mxu0 0
      %1890 = vmatprep.subr.bf16.mxu0 0
      %1891 = vmatpush2.bf16.msra.mxu0 0
      %1892 = vmatprep.subr.bf16.mxu0 0
      %1893 = vmatpush2.bf16.msra.mxu0 0
      %1894 = vmatprep.subr.bf16.mxu0 0
      %1895 = vmatpush2.bf16.msra.mxu0 0
      %1896 = vmatprep.subr.bf16.mxu0 0
      %1897 = vmatpush2.bf16.msra.mxu0 0
      %1898 = vmatprep.subr.bf16.mxu0 0
      %1899 = vmatpush2.bf16.msra.mxu0 0
      %1900 = vmatprep.mubr.bf16.mxu0 0
      %1901 = vmatmul.mubr.bf16.gmra.mxu0 %v1112
      %v1902 = vpop.f32.mrf.mxu0
      %v1903 = vadd.f32 %v1838, %v1902
      %v1904 = vpop.f32.mrf.mxu0
      %v1905 = vpop.f32.mrf.mxu0
      %v1906 = vadd.f32 %v1841, %v1905
      %v1907 = vpop.f32.mrf.mxu0
      %1908 = vmatprep.mubr.bf16.mxu0 0
      %1909 = vmatmul.mubr.bf16.gmra.mxu0 %v1121
      %v1910 = vpop.f32.mrf.mxu0
      %v1911 = vadd.f32 %v1846, %v1910
      %v1912 = vpop.f32.mrf.mxu0
      %v1913 = vpop.f32.mrf.mxu0
      %v1914 = vadd.f32 %v1849, %v1913
      %v1915 = vpop.f32.mrf.mxu0
      %1916 = vmatprep.mubr.bf16.mxu0 0
      %1917 = vmatmul.mubr.bf16.gmra.mxu0 %v1130
      %v1918 = vpop.f32.mrf.mxu0
      %v1919 = vadd.f32 %v1854, %v1918
      %v1920 = vpop.f32.mrf.mxu0
      %v1921 = vpop.f32.mrf.mxu0
      %v1922 = vadd.f32 %v1857, %v1921
      %v1923 = vpop.f32.mrf.mxu0
      %1924 = vmatprep.mubr.bf16.mxu0 0
      %1925 = vmatmul.mubr.bf16.gmra.mxu0 %v1139
      %v1926 = vpop.f32.mrf.mxu0
      %v1927 = vadd.f32 %v1862, %v1926
      %v1928 = vpop.f32.mrf.mxu0
      %v1929 = vpop.f32.mrf.mxu0
      %v1930 = vadd.f32 %v1865, %v1929
      %v1931 = vpop.f32.mrf.mxu0
      %1932 = vdwg.mxu0
      %v1933 = vmax.f32 %v1903, 0.0
      %v1934 = vmax.f32 %v1906, 0.0
      %v1935 = vmax.f32 %v1911, 0.0
      %v1936 = vmax.f32 %v1914, 0.0
      %v1937 = vmax.f32 %v1919, 0.0
      %v1938 = vmax.f32 %v1922, 0.0
      %v1939 = vmax.f32 %v1927, 0.0
      %v1940 = vmax.f32 %v1930, 0.0
      %1941 = vst [vmem:[#allocation3] sm:$0xff] 0.0
      %1942 = vst [vmem:[#allocation3 + $0x8] sm:$0x3] 0.0
      %1943 = vst [vmem:[#allocation3 + $0x10] sm:$0xff] 0.0
      %1944 = vst [vmem:[#allocation3 + $0x18] sm:$0x3] 0.0
      %1945 = vst [vmem:[#allocation3 + $0x20] sm:$0xff] 0.0
      %1946 = vst [vmem:[#allocation3 + $0x28] sm:$0x3] 0.0
      %1947 = vst [vmem:[#allocation3 + $0x30] sm:$0xff] 0.0
      %1948 = vst [vmem:[#allocation3 + $0x38] sm:$0x3] 0.0
      %1949 = vst [vmem:[#allocation3 + $0x40] sm:$0xff] 0.0
      %1950 = vst [vmem:[#allocation3 + $0x48] sm:$0x3] 0.0
      %1951 = vst [vmem:[#allocation3 + $0x50] sm:$0xff] 0.0
      %1952 = vst [vmem:[#allocation3 + $0x58] sm:$0x3] 0.0
      %1953 = vst [vmem:[#allocation3 + $0x60] sm:$0xff] 0.0
      %1954 = vst [vmem:[#allocation3 + $0x68] sm:$0x3] 0.0
      %1955 = vst [vmem:[#allocation3 + $0x70] sm:$0xff] 0.0
      %1956 = vst [vmem:[#allocation3 + $0x78] sm:$0x3] 0.0
      %1957 = vst [vmem:[#allocation3 + $0x80] sm:$0xff] 0.0
      %1958 = vst [vmem:[#allocation3 + $0x88] sm:$0x3] 0.0
      %1959 = vst [vmem:[#allocation3 + $0x90] sm:$0xff] 0.0
      %1960 = vst [vmem:[#allocation3 + $0x98] sm:$0x3] 0.0
      %s1961 = scalar_lea.vmem [#allocation3], 16
      %1962 = vst [vmem:[%s1961 + $0x1] sm:$0xff] %v1933
      %1963 = vst [vmem:[%s1961 + $0x11] sm:$0xff] %v1934
      %1964 = vst [vmem:[%s1961 + $0x21] sm:$0xff] %v1935
      %1965 = vst [vmem:[%s1961 + $0x31] sm:$0xff] %v1936
      %1966 = vst [vmem:[%s1961 + $0x41] sm:$0xff] %v1937
      %1967 = vst [vmem:[%s1961 + $0x51] sm:$0xff] %v1938
      %1968 = vst [vmem:[%s1961 + $0x61] sm:$0xff] %v1939
      %1969 = vst [vmem:[%s1961 + $0x71] sm:$0xff] %v1940
      %v1970 = vld [vmem:[#allocation3] sm:$0xff]
      %v1971 = vld [vmem:[#allocation3 + $0x10] sm:$0xff]
      %v1972 = vld [vmem:[#allocation3 + $0x20] sm:$0xff]
      %v1973 = vld [vmem:[#allocation3 + $0x30] sm:$0xff]
      %v1974 = vld [vmem:[#allocation3 + $0x40] sm:$0xff]
      %v1975 = vld [vmem:[#allocation3 + $0x50] sm:$0xff]
      %v1976 = vld [vmem:[#allocation3 + $0x60] sm:$0xff]
      %v1977 = vld [vmem:[#allocation3 + $0x70] sm:$0xff]
      %v1978 = vpack.c.bf16 %v1971, %v1970
      %v1979 = vpack.c.bf16 %v1973, %v1972
      %v1980 = vpack.c.bf16 %v1975, %v1974
      %v1981 = vpack.c.bf16 %v1977, %v1976
      %v1986 = vunpack.c.l.b16 %v1978
      %v1987 = vunpack.c.h.b16 %v1978
      %v1988 = vunpack.c.l.b16 %v1979
      %v1989 = vunpack.c.h.b16 %v1979
      %v1990 = vunpack.c.l.b16 %v1980
      %v1991 = vunpack.c.h.b16 %v1980
      %v1992 = vunpack.c.l.b16 %v1981
      %v1993 = vunpack.c.h.b16 %v1981
      %v1994 = vpack.c.b16 %v1986, %v1986
      %v1995 = vpack.c.b16 %v1987, %v1987
      %v1996 = vpack.c.b16 %v1988, %v1988
      %v1997 = vpack.c.b16 %v1989, %v1989
      %v1998 = vpack.c.b16 %v1990, %v1990
      %v1999 = vpack.c.b16 %v1991, %v1991
      %v2000 = vpack.c.b16 %v1992, %v1992
      %v2001 = vpack.c.b16 %v1993, %v1993
      %2010 = vst [vmem:[#allocation4] sm:$0xf] %v1994
      %2011 = vst [vmem:[#allocation4 + $0x24] sm:$0xf] %v1995
      %2012 = vst [vmem:[#allocation4 + $0x48] sm:$0xf] %v1996
      %2013 = vst [vmem:[#allocation4 + $0x6c] sm:$0xf] %v1997
      %2014 = vst [vmem:[#allocation4 + $0x90] sm:$0xf] %v1998
      %2015 = vst [vmem:[#allocation4 + $0xb4] sm:$0xf] %v1999
      %2016 = vst [vmem:[#allocation4 + $0xd8] sm:$0xf] %v2000
      %2017 = vst [vmem:[#allocation4 + $0xfc] sm:$0xf] %v2001
      %v2018 = vld [vmem:[#allocation3 + $0x1] sm:$0xff]
      %v2019 = vld [vmem:[#allocation3 + $0x11] sm:$0xff]
      %v2020 = vld [vmem:[#allocation3 + $0x21] sm:$0xff]
      %v2021 = vld [vmem:[#allocation3 + $0x31] sm:$0xff]
      %v2022 = vld [vmem:[#allocation3 + $0x41] sm:$0xff]
      %v2023 = vld [vmem:[#allocation3 + $0x51] sm:$0xff]
      %v2024 = vld [vmem:[#allocation3 + $0x61] sm:$0xff]
      %v2025 = vld [vmem:[#allocation3 + $0x71] sm:$0xff]
      %v2026 = vpack.c.bf16 %v2019, %v2018
      %v2027 = vpack.c.bf16 %v2021, %v2020
      %v2028 = vpack.c.bf16 %v2023, %v2022
      %v2029 = vpack.c.bf16 %v2025, %v2024
      %v2034 = vunpack.c.l.b16 %v2026
      %v2035 = vunpack.c.h.b16 %v2026
      %v2036 = vunpack.c.l.b16 %v2027
      %v2037 = vunpack.c.h.b16 %v2027
      %v2038 = vunpack.c.l.b16 %v2028
      %v2039 = vunpack.c.h.b16 %v2028
      %v2040 = vunpack.c.l.b16 %v2029
      %v2041 = vunpack.c.h.b16 %v2029
      %v2042 = vpack.c.b16 %v2034, %v2034
      %v2043 = vpack.c.b16 %v2035, %v2035
      %v2044 = vpack.c.b16 %v2036, %v2036
      %v2045 = vpack.c.b16 %v2037, %v2037
      %v2046 = vpack.c.b16 %v2038, %v2038
      %v2047 = vpack.c.b16 %v2039, %v2039
      %v2048 = vpack.c.b16 %v2040, %v2040
      %v2049 = vpack.c.b16 %v2041, %v2041
      %2058 = vst [vmem:[#allocation4 + $0x4] sm:$0xf] %v2042
      %2059 = vst [vmem:[#allocation4 + $0x28] sm:$0xf] %v2043
      %2060 = vst [vmem:[#allocation4 + $0x4c] sm:$0xf] %v2044
      %2061 = vst [vmem:[#allocation4 + $0x70] sm:$0xf] %v2045
      %2062 = vst [vmem:[#allocation4 + $0x94] sm:$0xf] %v2046
      %2063 = vst [vmem:[#allocation4 + $0xb8] sm:$0xf] %v2047
      %2064 = vst [vmem:[#allocation4 + $0xdc] sm:$0xf] %v2048
      %2065 = vst [vmem:[#allocation4 + $0x100] sm:$0xf] %v2049
      %v2066 = vld [vmem:[#allocation3 + $0x2] sm:$0xff]
      %v2067 = vld [vmem:[#allocation3 + $0x12] sm:$0xff]
      %v2068 = vld [vmem:[#allocation3 + $0x22] sm:$0xff]
      %v2069 = vld [vmem:[#allocation3 + $0x32] sm:$0xff]
      %v2070 = vld [vmem:[#allocation3 + $0x42] sm:$0xff]
      %v2071 = vld [vmem:[#allocation3 + $0x52] sm:$0xff]
      %v2072 = vld [vmem:[#allocation3 + $0x62] sm:$0xff]
      %v2073 = vld [vmem:[#allocation3 + $0x72] sm:$0xff]
      %v2074 = vpack.c.bf16 %v2067, %v2066
      %v2075 = vpack.c.bf16 %v2069, %v2068
      %v2076 = vpack.c.bf16 %v2071, %v2070
      %v2077 = vpack.c.bf16 %v2073, %v2072
      %v2082 = vunpack.c.l.b16 %v2074
      %v2083 = vunpack.c.h.b16 %v2074
      %v2084 = vunpack.c.l.b16 %v2075
      %v2085 = vunpack.c.h.b16 %v2075
      %v2086 = vunpack.c.l.b16 %v2076
      %v2087 = vunpack.c.h.b16 %v2076
      %v2088 = vunpack.c.l.b16 %v2077
      %v2089 = vunpack.c.h.b16 %v2077
      %v2090 = vpack.c.b16 %v2082, %v2082
      %v2091 = vpack.c.b16 %v2083, %v2083
      %v2092 = vpack.c.b16 %v2084, %v2084
      %v2093 = vpack.c.b16 %v2085, %v2085
      %v2094 = vpack.c.b16 %v2086, %v2086
      %v2095 = vpack.c.b16 %v2087, %v2087
      %v2096 = vpack.c.b16 %v2088, %v2088
      %v2097 = vpack.c.b16 %v2089, %v2089
      %2106 = vst [vmem:[#allocation4 + $0x8] sm:$0xf] %v2090
      %2107 = vst [vmem:[#allocation4 + $0x2c] sm:$0xf] %v2091
      %2108 = vst [vmem:[#allocation4 + $0x50] sm:$0xf] %v2092
      %2109 = vst [vmem:[#allocation4 + $0x74] sm:$0xf] %v2093
      %2110 = vst [vmem:[#allocation4 + $0x98] sm:$0xf] %v2094
      %2111 = vst [vmem:[#allocation4 + $0xbc] sm:$0xf] %v2095
      %2112 = vst [vmem:[#allocation4 + $0xe0] sm:$0xf] %v2096
      %2113 = vst [vmem:[#allocation4 + $0x104] sm:$0xf] %v2097
      %v2114 = vld [vmem:[%s1961] sm:$0xff]
      %v2115 = vld [vmem:[%s1961 + $0x10] sm:$0xff]
      %v2116 = vld [vmem:[%s1961 + $0x20] sm:$0xff]
      %v2117 = vld [vmem:[%s1961 + $0x30] sm:$0xff]
      %v2118 = vld [vmem:[%s1961 + $0x40] sm:$0xff]
      %v2119 = vld [vmem:[%s1961 + $0x50] sm:$0xff]
      %v2120 = vld [vmem:[%s1961 + $0x60] sm:$0xff]
      %v2121 = vld [vmem:[%s1961 + $0x70] sm:$0xff]
      %v2122 = vpack.c.bf16 %v2115, %v2114
      %v2123 = vpack.c.bf16 %v2117, %v2116
      %v2124 = vpack.c.bf16 %v2119, %v2118
      %v2125 = vpack.c.bf16 %v2121, %v2120
      %v2130 = vunpack.c.l.b16 %v2122
      %v2131 = vunpack.c.h.b16 %v2122
      %v2132 = vunpack.c.l.b16 %v2123
      %v2133 = vunpack.c.h.b16 %v2123
      %v2134 = vunpack.c.l.b16 %v2124
      %v2135 = vunpack.c.h.b16 %v2124
      %v2136 = vunpack.c.l.b16 %v2125
      %v2137 = vunpack.c.h.b16 %v2125
      %v2138 = vpack.c.b16 %v2130, %v2130
      %v2139 = vpack.c.b16 %v2131, %v2131
      %v2140 = vpack.c.b16 %v2132, %v2132
      %v2141 = vpack.c.b16 %v2133, %v2133
      %v2142 = vpack.c.b16 %v2134, %v2134
      %v2143 = vpack.c.b16 %v2135, %v2135
      %v2144 = vpack.c.b16 %v2136, %v2136
      %v2145 = vpack.c.b16 %v2137, %v2137
      %2154 = vst [vmem:[#allocation4 + $0xc] sm:$0xf] %v2138
      %2155 = vst [vmem:[#allocation4 + $0x30] sm:$0xf] %v2139
      %2156 = vst [vmem:[#allocation4 + $0x54] sm:$0xf] %v2140
      %2157 = vst [vmem:[#allocation4 + $0x78] sm:$0xf] %v2141
      %2158 = vst [vmem:[#allocation4 + $0x9c] sm:$0xf] %v2142
      %2159 = vst [vmem:[#allocation4 + $0xc0] sm:$0xf] %v2143
      %2160 = vst [vmem:[#allocation4 + $0xe4] sm:$0xf] %v2144
      %2161 = vst [vmem:[#allocation4 + $0x108] sm:$0xf] %v2145
      %v2162 = vld [vmem:[%s1961 + $0x1] sm:$0xff]
      %v2163 = vld [vmem:[%s1961 + $0x11] sm:$0xff]
      %v2164 = vld [vmem:[%s1961 + $0x21] sm:$0xff]
      %v2165 = vld [vmem:[%s1961 + $0x31] sm:$0xff]
      %v2166 = vld [vmem:[%s1961 + $0x41] sm:$0xff]
      %v2167 = vld [vmem:[%s1961 + $0x51] sm:$0xff]
      %v2168 = vld [vmem:[%s1961 + $0x61] sm:$0xff]
      %v2169 = vld [vmem:[%s1961 + $0x71] sm:$0xff]
      %v2170 = vpack.c.bf16 %v2163, %v2162
      %v2171 = vpack.c.bf16 %v2165, %v2164
      %v2172 = vpack.c.bf16 %v2167, %v2166
      %v2173 = vpack.c.bf16 %v2169, %v2168
      %v2178 = vunpack.c.l.b16 %v2170
      %v2179 = vunpack.c.h.b16 %v2170
      %v2180 = vunpack.c.l.b16 %v2171
      %v2181 = vunpack.c.h.b16 %v2171
      %v2182 = vunpack.c.l.b16 %v2172
      %v2183 = vunpack.c.h.b16 %v2172
      %v2184 = vunpack.c.l.b16 %v2173
      %v2185 = vunpack.c.h.b16 %v2173
      %v2186 = vpack.c.b16 %v2178, %v2178
      %v2187 = vpack.c.b16 %v2179, %v2179
      %v2188 = vpack.c.b16 %v2180, %v2180
      %v2189 = vpack.c.b16 %v2181, %v2181
      %v2190 = vpack.c.b16 %v2182, %v2182
      %v2191 = vpack.c.b16 %v2183, %v2183
      %v2192 = vpack.c.b16 %v2184, %v2184
      %v2193 = vpack.c.b16 %v2185, %v2185
      %2202 = vst [vmem:[#allocation4 + $0x10] sm:$0xf] %v2186
      %2203 = vst [vmem:[#allocation4 + $0x34] sm:$0xf] %v2187
      %2204 = vst [vmem:[#allocation4 + $0x58] sm:$0xf] %v2188
      %2205 = vst [vmem:[#allocation4 + $0x7c] sm:$0xf] %v2189
      %2206 = vst [vmem:[#allocation4 + $0xa0] sm:$0xf] %v2190
      %2207 = vst [vmem:[#allocation4 + $0xc4] sm:$0xf] %v2191
      %2208 = vst [vmem:[#allocation4 + $0xe8] sm:$0xf] %v2192
      %2209 = vst [vmem:[#allocation4 + $0x10c] sm:$0xf] %v2193
      %v2210 = vld [vmem:[%s1961 + $0x2] sm:$0xff]
      %v2211 = vld [vmem:[%s1961 + $0x12] sm:$0xff]
      %v2212 = vld [vmem:[%s1961 + $0x22] sm:$0xff]
      %v2213 = vld [vmem:[%s1961 + $0x32] sm:$0xff]
      %v2214 = vld [vmem:[%s1961 + $0x42] sm:$0xff]
      %v2215 = vld [vmem:[%s1961 + $0x52] sm:$0xff]
      %v2216 = vld [vmem:[%s1961 + $0x62] sm:$0xff]
      %v2217 = vld [vmem:[%s1961 + $0x72] sm:$0xff]
      %v2218 = vpack.c.bf16 %v2211, %v2210
      %v2219 = vpack.c.bf16 %v2213, %v2212
      %v2220 = vpack.c.bf16 %v2215, %v2214
      %v2221 = vpack.c.bf16 %v2217, %v2216
      %v2226 = vunpack.c.l.b16 %v2218
      %v2227 = vunpack.c.h.b16 %v2218
      %v2228 = vunpack.c.l.b16 %v2219
      %v2229 = vunpack.c.h.b16 %v2219
      %v2230 = vunpack.c.l.b16 %v2220
      %v2231 = vunpack.c.h.b16 %v2220
      %v2232 = vunpack.c.l.b16 %v2221
      %v2233 = vunpack.c.h.b16 %v2221
      %v2234 = vpack.c.b16 %v2226, %v2226
      %v2235 = vpack.c.b16 %v2227, %v2227
      %v2236 = vpack.c.b16 %v2228, %v2228
      %v2237 = vpack.c.b16 %v2229, %v2229
      %v2238 = vpack.c.b16 %v2230, %v2230
      %v2239 = vpack.c.b16 %v2231, %v2231
      %v2240 = vpack.c.b16 %v2232, %v2232
      %v2241 = vpack.c.b16 %v2233, %v2233
      %2250 = vst [vmem:[#allocation4 + $0x14] sm:$0xf] %v2234
      %2251 = vst [vmem:[#allocation4 + $0x38] sm:$0xf] %v2235
      %2252 = vst [vmem:[#allocation4 + $0x5c] sm:$0xf] %v2236
      %2253 = vst [vmem:[#allocation4 + $0x80] sm:$0xf] %v2237
      %2254 = vst [vmem:[#allocation4 + $0xa4] sm:$0xf] %v2238
      %2255 = vst [vmem:[#allocation4 + $0xc8] sm:$0xf] %v2239
      %2256 = vst [vmem:[#allocation4 + $0xec] sm:$0xf] %v2240
      %2257 = vst [vmem:[#allocation4 + $0x110] sm:$0xf] %v2241
      %s2258 = scalar_lea.vmem [#allocation3], 32
      %v2259 = vld [vmem:[%s2258] sm:$0xff]
      %v2260 = vld [vmem:[%s2258 + $0x10] sm:$0xff]
      %v2261 = vld [vmem:[%s2258 + $0x20] sm:$0xff]
      %v2262 = vld [vmem:[%s2258 + $0x30] sm:$0xff]
      %v2263 = vld [vmem:[%s2258 + $0x40] sm:$0xff]
      %v2264 = vld [vmem:[%s2258 + $0x50] sm:$0xff]
      %v2265 = vld [vmem:[%s2258 + $0x60] sm:$0xff]
      %v2266 = vld [vmem:[%s2258 + $0x70] sm:$0xff]
      %v2267 = vpack.c.bf16 %v2260, %v2259
      %v2268 = vpack.c.bf16 %v2262, %v2261
      %v2269 = vpack.c.bf16 %v2264, %v2263
      %v2270 = vpack.c.bf16 %v2266, %v2265
      %v2275 = vunpack.c.l.b16 %v2267
      %v2276 = vunpack.c.h.b16 %v2267
      %v2277 = vunpack.c.l.b16 %v2268
      %v2278 = vunpack.c.h.b16 %v2268
      %v2279 = vunpack.c.l.b16 %v2269
      %v2280 = vunpack.c.h.b16 %v2269
      %v2281 = vunpack.c.l.b16 %v2270
      %v2282 = vunpack.c.h.b16 %v2270
      %v2283 = vpack.c.b16 %v2275, %v2275
      %v2284 = vpack.c.b16 %v2276, %v2276
      %v2285 = vpack.c.b16 %v2277, %v2277
      %v2286 = vpack.c.b16 %v2278, %v2278
      %v2287 = vpack.c.b16 %v2279, %v2279
      %v2288 = vpack.c.b16 %v2280, %v2280
      %v2289 = vpack.c.b16 %v2281, %v2281
      %v2290 = vpack.c.b16 %v2282, %v2282
      %2299 = vst [vmem:[#allocation4 + $0x18] sm:$0xf] %v2283
      %2300 = vst [vmem:[#allocation4 + $0x3c] sm:$0xf] %v2284
      %2301 = vst [vmem:[#allocation4 + $0x60] sm:$0xf] %v2285
      %2302 = vst [vmem:[#allocation4 + $0x84] sm:$0xf] %v2286
      %2303 = vst [vmem:[#allocation4 + $0xa8] sm:$0xf] %v2287
      %2304 = vst [vmem:[#allocation4 + $0xcc] sm:$0xf] %v2288
      %2305 = vst [vmem:[#allocation4 + $0xf0] sm:$0xf] %v2289
      %2306 = vst [vmem:[#allocation4 + $0x114] sm:$0xf] %v2290
      %v2307 = vld [vmem:[%s2258 + $0x1] sm:$0xff]
      %v2308 = vld [vmem:[%s2258 + $0x11] sm:$0xff]
      %v2309 = vld [vmem:[%s2258 + $0x21] sm:$0xff]
      %v2310 = vld [vmem:[%s2258 + $0x31] sm:$0xff]
      %v2311 = vld [vmem:[%s2258 + $0x41] sm:$0xff]
      %v2312 = vld [vmem:[%s2258 + $0x51] sm:$0xff]
      %v2313 = vld [vmem:[%s2258 + $0x61] sm:$0xff]
      %v2314 = vld [vmem:[%s2258 + $0x71] sm:$0xff]
      %v2315 = vpack.c.bf16 %v2308, %v2307
      %v2316 = vpack.c.bf16 %v2310, %v2309
      %v2317 = vpack.c.bf16 %v2312, %v2311
      %v2318 = vpack.c.bf16 %v2314, %v2313
      %v2323 = vunpack.c.l.b16 %v2315
      %v2324 = vunpack.c.h.b16 %v2315
      %v2325 = vunpack.c.l.b16 %v2316
      %v2326 = vunpack.c.h.b16 %v2316
      %v2327 = vunpack.c.l.b16 %v2317
      %v2328 = vunpack.c.h.b16 %v2317
      %v2329 = vunpack.c.l.b16 %v2318
      %v2330 = vunpack.c.h.b16 %v2318
      %v2331 = vpack.c.b16 %v2323, %v2323
      %v2332 = vpack.c.b16 %v2324, %v2324
      %v2333 = vpack.c.b16 %v2325, %v2325
      %v2334 = vpack.c.b16 %v2326, %v2326
      %v2335 = vpack.c.b16 %v2327, %v2327
      %v2336 = vpack.c.b16 %v2328, %v2328
      %v2337 = vpack.c.b16 %v2329, %v2329
      %v2338 = vpack.c.b16 %v2330, %v2330
      %2347 = vst [vmem:[#allocation4 + $0x1c] sm:$0xf] %v2331
      %2348 = vst [vmem:[#allocation4 + $0x40] sm:$0xf] %v2332
      %2349 = vst [vmem:[#allocation4 + $0x64] sm:$0xf] %v2333
      %2350 = vst [vmem:[#allocation4 + $0x88] sm:$0xf] %v2334
      %2351 = vst [vmem:[#allocation4 + $0xac] sm:$0xf] %v2335
      %2352 = vst [vmem:[#allocation4 + $0xd0] sm:$0xf] %v2336
      %2353 = vst [vmem:[#allocation4 + $0xf4] sm:$0xf] %v2337
      %2354 = vst [vmem:[#allocation4 + $0x118] sm:$0xf] %v2338
      %v2355 = vld [vmem:[%s2258 + $0x2] sm:$0xff]
      %v2356 = vld [vmem:[%s2258 + $0x12] sm:$0xff]
      %v2357 = vld [vmem:[%s2258 + $0x22] sm:$0xff]
      %v2358 = vld [vmem:[%s2258 + $0x32] sm:$0xff]
      %v2359 = vld [vmem:[%s2258 + $0x42] sm:$0xff]
      %v2360 = vld [vmem:[%s2258 + $0x52] sm:$0xff]
      %v2361 = vld [vmem:[%s2258 + $0x62] sm:$0xff]
      %v2362 = vld [vmem:[%s2258 + $0x72] sm:$0xff]
      %v2363 = vpack.c.bf16 %v2356, %v2355
      %v2364 = vpack.c.bf16 %v2358, %v2357
      %v2365 = vpack.c.bf16 %v2360, %v2359
      %v2366 = vpack.c.bf16 %v2362, %v2361
      %v2371 = vunpack.c.l.b16 %v2363
      %v2372 = vunpack.c.h.b16 %v2363
      %v2373 = vunpack.c.l.b16 %v2364
      %v2374 = vunpack.c.h.b16 %v2364
      %v2375 = vunpack.c.l.b16 %v2365
      %v2376 = vunpack.c.h.b16 %v2365
      %v2377 = vunpack.c.l.b16 %v2366
      %v2378 = vunpack.c.h.b16 %v2366
      %v2379 = vpack.c.b16 %v2371, %v2371
      %v2380 = vpack.c.b16 %v2372, %v2372
      %v2381 = vpack.c.b16 %v2373, %v2373
      %v2382 = vpack.c.b16 %v2374, %v2374
      %v2383 = vpack.c.b16 %v2375, %v2375
      %v2384 = vpack.c.b16 %v2376, %v2376
      %v2385 = vpack.c.b16 %v2377, %v2377
      %v2386 = vpack.c.b16 %v2378, %v2378
      %2395 = vst [vmem:[#allocation4 + $0x20] sm:$0xf] %v2379
      %2396 = vst [vmem:[#allocation4 + $0x44] sm:$0xf] %v2380
      %2397 = vst [vmem:[#allocation4 + $0x68] sm:$0xf] %v2381
      %2398 = vst [vmem:[#allocation4 + $0x8c] sm:$0xf] %v2382
      %2399 = vst [vmem:[#allocation4 + $0xb0] sm:$0xf] %v2383
      %2400 = vst [vmem:[#allocation4 + $0xd4] sm:$0xf] %v2384
      %2401 = vst [vmem:[#allocation4 + $0xf8] sm:$0xf] %v2385
      %2402 = vst [vmem:[#allocation4 + $0x11c] sm:$0xf] %v2386
      %v2403 = vld [vmem:[#allocation4] sm:$0xff]
      %v2404 = vld [vmem:[#allocation4 + $0x8] sm:$0xff]
      %v2405 = vld [vmem:[#allocation4 + $0x10] sm:$0xff]
      %v2406 = vld [vmem:[#allocation4 + $0x18] sm:$0xff]
      %v2407 = vld [vmem:[#allocation4 + $0x20] sm:$0xf]
      %v2408 = vld [vmem:[#allocation4 + $0x24] sm:$0xff]
      %v2409 = vld [vmem:[#allocation4 + $0x2c] sm:$0xff]
      %v2410 = vld [vmem:[#allocation4 + $0x34] sm:$0xff]
      %v2411 = vld [vmem:[#allocation4 + $0x3c] sm:$0xff]
      %v2412 = vld [vmem:[#allocation4 + $0x44] sm:$0xf]
      %v2413 = vld [vmem:[#allocation4 + $0x48] sm:$0xff]
      %v2414 = vld [vmem:[#allocation4 + $0x50] sm:$0xff]
      %v2415 = vld [vmem:[#allocation4 + $0x58] sm:$0xff]
      %v2416 = vld [vmem:[#allocation4 + $0x60] sm:$0xff]
      %v2417 = vld [vmem:[#allocation4 + $0x68] sm:$0xf]
      %v2418 = vld [vmem:[#allocation4 + $0x6c] sm:$0xff]
      %v2419 = vld [vmem:[#allocation4 + $0x74] sm:$0xff]
      %v2420 = vld [vmem:[#allocation4 + $0x7c] sm:$0xff]
      %v2421 = vld [vmem:[#allocation4 + $0x84] sm:$0xff]
      %v2422 = vld [vmem:[#allocation4 + $0x8c] sm:$0xf]
      %v2423 = vld [vmem:[#allocation4 + $0x90] sm:$0xff]
      %v2424 = vld [vmem:[#allocation4 + $0x98] sm:$0xff]
      %v2425 = vld [vmem:[#allocation4 + $0xa0] sm:$0xff]
      %v2426 = vld [vmem:[#allocation4 + $0xa8] sm:$0xff]
      %v2427 = vld [vmem:[#allocation4 + $0xb0] sm:$0xf]
      %v2428 = vld [vmem:[#allocation4 + $0xb4] sm:$0xff]
      %v2429 = vld [vmem:[#allocation4 + $0xbc] sm:$0xff]
      %v2430 = vld [vmem:[#allocation4 + $0xc4] sm:$0xff]
      %v2431 = vld [vmem:[#allocation4 + $0xcc] sm:$0xff]
      %v2432 = vld [vmem:[#allocation4 + $0xd4] sm:$0xf]
      %v2433 = vld [vmem:[#allocation4 + $0xd8] sm:$0xff]
      %v2434 = vld [vmem:[#allocation4 + $0xe0] sm:$0xff]
      %v2435 = vld [vmem:[#allocation4 + $0xe8] sm:$0xff]
      %v2436 = vld [vmem:[#allocation4 + $0xf0] sm:$0xff]
      %v2437 = vld [vmem:[#allocation4 + $0xf8] sm:$0xf]
      %v2438 = vld [vmem:[#allocation4 + $0xfc] sm:$0xff]
      %v2439 = vld [vmem:[#allocation4 + $0x104] sm:$0xff]
      %v2440 = vld [vmem:[#allocation4 + $0x10c] sm:$0xff]
      %v2441 = vld [vmem:[#allocation4 + $0x114] sm:$0xff]
      %v2442 = vld [vmem:[#allocation4 + $0x11c] sm:$0xf]
      %v2443 = vld [vmem:[%s2] sm:$0xf]
      %v2444 = vld [vmem:[%s2 + $0x4] sm:$0xf]
      %v2445 = vld [vmem:[%s2 + $0x8] sm:$0xf]
      %v2446 = vld [vmem:[%s2 + $0xc] sm:$0xf]
      %v2447 = vld [vmem:[%s2 + $0x10] sm:$0xf]
      %v2448 = vld [vmem:[%s2 + $0x14] sm:$0xf]
      %v2449 = vld [vmem:[%s2 + $0x18] sm:$0xf]
      %v2450 = vld [vmem:[%s2 + $0x1c] sm:$0xf]
      %v2451 = vld [vmem:[%s2 + $0x20] sm:$0xf]
      %v2452 = vld [vmem:[%s2 + $0x24] sm:$0xf]
      %v2453 = vld [vmem:[%s2 + $0x28] sm:$0xf]
      %v2454 = vld [vmem:[%s2 + $0x2c] sm:$0xf]
      %v2455 = vld [vmem:[%s2 + $0x30] sm:$0xf]
      %v2456 = vld [vmem:[%s2 + $0x34] sm:$0xf]
      %v2457 = vld [vmem:[%s2 + $0x38] sm:$0xf]
      %v2458 = vld [vmem:[%s2 + $0x3c] sm:$0xf]
      %v2459 = vld [vmem:[%s2 + $0x40] sm:$0xf]
      %v2460 = vld [vmem:[%s2 + $0x44] sm:$0xf]
      %v2461 = vld [vmem:[%s2 + $0x48] sm:$0xf]
      %v2462 = vld [vmem:[%s2 + $0x4c] sm:$0xf]
      %v2463 = vld [vmem:[%s2 + $0x50] sm:$0xf]
      %v2464 = vld [vmem:[%s2 + $0x54] sm:$0xf]
      %v2465 = vld [vmem:[%s2 + $0x58] sm:$0xf]
      %v2466 = vld [vmem:[%s2 + $0x5c] sm:$0xf]
      %v2467 = vld [vmem:[%s2 + $0x60] sm:$0xf]
      %v2468 = vld [vmem:[%s2 + $0x64] sm:$0xf]
      %v2469 = vld [vmem:[%s2 + $0x68] sm:$0xf]
      %v2470 = vld [vmem:[%s2 + $0x6c] sm:$0xf]
      %v2471 = vld [vmem:[%s2 + $0x70] sm:$0xf]
      %v2472 = vld [vmem:[%s2 + $0x74] sm:$0xf]
      %v2473 = vld [vmem:[%s2 + $0x78] sm:$0xf]
      %v2474 = vld [vmem:[%s2 + $0x7c] sm:$0xf]
      %v2475 = vld [vmem:[%s2 + $0x80] sm:$0xf]
      %v2476 = vld [vmem:[%s2 + $0x84] sm:$0xf]
      %v2477 = vld [vmem:[%s2 + $0x88] sm:$0xf]
      %v2478 = vld [vmem:[%s2 + $0x8c] sm:$0xf]
      %v2479 = vld [vmem:[%s2 + $0x90] sm:$0xf]
      %v2480 = vld [vmem:[%s2 + $0x94] sm:$0xf]
      %v2481 = vld [vmem:[%s2 + $0x98] sm:$0xf]
      %v2482 = vld [vmem:[%s2 + $0x9c] sm:$0xf]
      %v2483 = vld [vmem:[%s2 + $0xa0] sm:$0xf]
      %v2484 = vld [vmem:[%s2 + $0xa4] sm:$0xf]
      %v2485 = vld [vmem:[%s2 + $0xa8] sm:$0xf]
      %v2486 = vld [vmem:[%s2 + $0xac] sm:$0xf]
      %v2487 = vld [vmem:[%s2 + $0xb0] sm:$0xf]
      %v2488 = vld [vmem:[%s2 + $0xb4] sm:$0xf]
      %v2489 = vld [vmem:[%s2 + $0xb8] sm:$0xf]
      %v2490 = vld [vmem:[%s2 + $0xbc] sm:$0xf]
      %v2491 = vld [vmem:[%s2 + $0xc0] sm:$0xf]
      %v2492 = vld [vmem:[%s2 + $0xc4] sm:$0xf]
      %v2493 = vld [vmem:[%s2 + $0xc8] sm:$0xf]
      %v2494 = vld [vmem:[%s2 + $0xcc] sm:$0xf]
      %v2495 = vld [vmem:[%s2 + $0xd0] sm:$0xf]
      %v2496 = vld [vmem:[%s2 + $0xd4] sm:$0xf]
      %v2497 = vld [vmem:[%s2 + $0xd8] sm:$0xf]
      %v2498 = vld [vmem:[%s2 + $0xdc] sm:$0xf]
      %v2499 = vld [vmem:[%s2 + $0xe0] sm:$0xf]
      %v2500 = vld [vmem:[%s2 + $0xe4] sm:$0xf]
      %v2501 = vld [vmem:[%s2 + $0xe8] sm:$0xf]
      %v2502 = vld [vmem:[%s2 + $0xec] sm:$0xf]
      %v2503 = vld [vmem:[%s2 + $0xf0] sm:$0xf]
      %v2504 = vld [vmem:[%s2 + $0xf4] sm:$0xf]
      %v2505 = vld [vmem:[%s2 + $0xf8] sm:$0xf]
      %v2506 = vld [vmem:[%s2 + $0xfc] sm:$0xf]
      %v2507 = vld [vmem:[%s2 + $0x100] sm:$0xf]
      %v2508 = vld [vmem:[%s2 + $0x104] sm:$0xf]
      %v2509 = vld [vmem:[%s2 + $0x108] sm:$0xf]
      %v2510 = vld [vmem:[%s2 + $0x10c] sm:$0xf]
      %v2511 = vld [vmem:[%s2 + $0x110] sm:$0xf]
      %v2512 = vld [vmem:[%s2 + $0x114] sm:$0xf]
      %v2513 = vld [vmem:[%s2 + $0x118] sm:$0xf]
      %v2514 = vld [vmem:[%s2 + $0x11c] sm:$0xf]
      %v2515 = vld [vmem:[%s2 + $0x120] sm:$0xf]
      %v2516 = vld [vmem:[%s2 + $0x124] sm:$0xf]
      %v2517 = vld [vmem:[%s2 + $0x128] sm:$0xf]
      %v2518 = vld [vmem:[%s2 + $0x12c] sm:$0xf]
      %v2519 = vld [vmem:[%s2 + $0x130] sm:$0xf]
      %v2520 = vld [vmem:[%s2 + $0x134] sm:$0xf]
      %v2521 = vld [vmem:[%s2 + $0x138] sm:$0xf]
      %v2522 = vld [vmem:[%s2 + $0x13c] sm:$0xf]
      %v2523 = vld [vmem:[%s2 + $0x140] sm:$0xf]
      %v2524 = vld [vmem:[%s2 + $0x144] sm:$0xf]
      %v2525 = vld [vmem:[%s2 + $0x148] sm:$0xf]
      %v2526 = vld [vmem:[%s2 + $0x14c] sm:$0xf]
      %v2527 = vld [vmem:[%s2 + $0x150] sm:$0xf]
      %v2528 = vld [vmem:[%s2 + $0x154] sm:$0xf]
      %v2529 = vld [vmem:[%s2 + $0x158] sm:$0xf]
      %v2530 = vld [vmem:[%s2 + $0x15c] sm:$0xf]
      %v2531 = vld [vmem:[%s2 + $0x160] sm:$0xf]
      %v2532 = vld [vmem:[%s2 + $0x164] sm:$0xf]
      %v2533 = vld [vmem:[%s2 + $0x168] sm:$0xf]
      %v2534 = vld [vmem:[%s2 + $0x16c] sm:$0xf]
      %v2535 = vld [vmem:[%s2 + $0x170] sm:$0xf]
      %v2536 = vld [vmem:[%s2 + $0x174] sm:$0xf]
      %v2537 = vld [vmem:[%s2 + $0x178] sm:$0xf]
      %v2538 = vld [vmem:[%s2 + $0x17c] sm:$0xf]
      %v2539 = vld [vmem:[%s2 + $0x180] sm:$0xf]
      %v2540 = vld [vmem:[%s2 + $0x184] sm:$0xf]
      %v2541 = vld [vmem:[%s2 + $0x188] sm:$0xf]
      %v2542 = vld [vmem:[%s2 + $0x18c] sm:$0xf]
      %v2543 = vld [vmem:[%s2 + $0x190] sm:$0xf]
      %v2544 = vld [vmem:[%s2 + $0x194] sm:$0xf]
      %v2545 = vld [vmem:[%s2 + $0x198] sm:$0xf]
      %v2546 = vld [vmem:[%s2 + $0x19c] sm:$0xf]
      %v2547 = vld [vmem:[%s2 + $0x1a0] sm:$0xf]
      %v2548 = vld [vmem:[%s2 + $0x1a4] sm:$0xf]
      %v2549 = vld [vmem:[%s2 + $0x1a8] sm:$0xf]
      %v2550 = vld [vmem:[%s2 + $0x1ac] sm:$0xf]
      %v2551 = vld [vmem:[%s2 + $0x1b0] sm:$0xf]
      %v2552 = vld [vmem:[%s2 + $0x1b4] sm:$0xf]
      %v2553 = vld [vmem:[%s2 + $0x1b8] sm:$0xf]
      %v2554 = vld [vmem:[%s2 + $0x1bc] sm:$0xf]
      %v2555 = vld [vmem:[%s2 + $0x1c0] sm:$0xf]
      %v2556 = vld [vmem:[%s2 + $0x1c4] sm:$0xf]
      %v2557 = vld [vmem:[%s2 + $0x1c8] sm:$0xf]
      %v2558 = vld [vmem:[%s2 + $0x1cc] sm:$0xf]
      %v2559 = vld [vmem:[%s2 + $0x1d0] sm:$0xf]
      %v2560 = vld [vmem:[%s2 + $0x1d4] sm:$0xf]
      %v2561 = vld [vmem:[%s2 + $0x1d8] sm:$0xf]
      %v2562 = vld [vmem:[%s2 + $0x1dc] sm:$0xf]
      %v2563 = vld [vmem:[%s2 + $0x1e0] sm:$0xf]
      %v2564 = vld [vmem:[%s2 + $0x1e4] sm:$0xf]
      %v2565 = vld [vmem:[%s2 + $0x1e8] sm:$0xf]
      %v2566 = vld [vmem:[%s2 + $0x1ec] sm:$0xf]
      %v2567 = vld [vmem:[%s2 + $0x1f0] sm:$0xf]
      %v2568 = vld [vmem:[%s2 + $0x1f4] sm:$0xf]
      %v2569 = vld [vmem:[%s2 + $0x1f8] sm:$0xf]
      %v2570 = vld [vmem:[%s2 + $0x1fc] sm:$0xf]
      %v2571 = vld [vmem:[%s2 + $0x200] sm:$0xf]
      %v2572 = vld [vmem:[%s2 + $0x204] sm:$0xf]
      %v2573 = vld [vmem:[%s2 + $0x208] sm:$0xf]
      %v2574 = vld [vmem:[%s2 + $0x20c] sm:$0xf]
      %v2575 = vld [vmem:[%s2 + $0x210] sm:$0xf]
      %v2576 = vld [vmem:[%s2 + $0x214] sm:$0xf]
      %v2577 = vld [vmem:[%s2 + $0x218] sm:$0xf]
      %v2578 = vld [vmem:[%s2 + $0x21c] sm:$0xf]
      %v2579 = vld [vmem:[%s2 + $0x220] sm:$0xf]
      %v2580 = vld [vmem:[%s2 + $0x224] sm:$0xf]
      %v2581 = vld [vmem:[%s2 + $0x228] sm:$0xf]
      %v2582 = vld [vmem:[%s2 + $0x22c] sm:$0xf]
      %v2583 = vld [vmem:[%s2 + $0x230] sm:$0xf]
      %v2584 = vld [vmem:[%s2 + $0x234] sm:$0xf]
      %v2585 = vld [vmem:[%s2 + $0x238] sm:$0xf]
      %v2586 = vld [vmem:[%s2 + $0x23c] sm:$0xf]
      %v2587 = vld [vmem:[%s366] sm:$0xff]
      %v2588 = vld [vmem:[%s366 + $0x10] sm:$0xff]
      %v2589 = vld [vmem:[%s366 + $0x20] sm:$0xff]
      %v2590 = vld [vmem:[%s366 + $0x30] sm:$0xff]
      %v2591 = vld [vmem:[%s366 + $0x40] sm:$0xff]
      %v2592 = vld [vmem:[%s366 + $0x50] sm:$0xff]
      %v2593 = vld [vmem:[%s366 + $0x60] sm:$0xff]
      %v2594 = vld [vmem:[%s366 + $0x70] sm:$0xff]
      %v2595 = vpack.c.bf16 %v2588, %v2587
      %v2596 = vpack.c.bf16 %v2590, %v2589
      %v2597 = vpack.c.bf16 %v2592, %v2591
      %v2598 = vpack.c.bf16 %v2594, %v2593
      %v2599 = vld [vmem:[%s3] sm:$0xf]
      %v2600 = vld [vmem:[%s3 + $0x4] sm:$0xf]
      %v2601 = vld [vmem:[%s3 + $0x8] sm:$0xf]
      %v2602 = vld [vmem:[%s3 + $0xc] sm:$0xf]
      %v2603 = vld [vmem:[%s3 + $0x10] sm:$0xf]
      %v2604 = vld [vmem:[%s3 + $0x14] sm:$0xf]
      %v2605 = vld [vmem:[%s3 + $0x18] sm:$0xf]
      %v2606 = vld [vmem:[%s3 + $0x1c] sm:$0xf]
      %v2615 = vunpack.c.l.b16 %v2599
      %v2616 = vunpack.c.l.b16 %v2600
      %v2617 = vunpack.c.l.b16 %v2601
      %v2618 = vunpack.c.l.b16 %v2602
      %v2619 = vunpack.c.l.b16 %v2603
      %v2620 = vunpack.c.l.b16 %v2604
      %v2621 = vunpack.c.l.b16 %v2605
      %v2622 = vunpack.c.l.b16 %v2606
      %v2623 = vpack.c.b16 %v2616, %v2615
      %v2624 = vpack.c.b16 %v2618, %v2617
      %v2625 = vpack.c.b16 %v2620, %v2619
      %v2626 = vpack.c.b16 %v2622, %v2621
      %v2632 = vsel %vm289, %v2595, 0
      %v2635 = vsel %vm289, %v2596, 0
      %v2638 = vsel %vm289, %v2597, 0
      %v2641 = vsel %vm289, %v2598, 0
      %2643 = vmatprep.subr.bf16.mxu0 0
      %2644 = vmatpush1.bf16.msra.mxu0 0
      %2645 = vmatprep.subr.bf16.mxu0 0
      %2646 = vmatpush1.bf16.msra.mxu0 0
      %2647 = vmatprep.subr.bf16.mxu0 0
      %2648 = vmatpush1.bf16.msra.mxu0 0
      %2649 = vmatprep.subr.bf16.mxu0 0
      %2650 = vmatpush1.bf16.msra.mxu0 0
      %2651 = vmatprep.subr.bf16.mxu0 0
      %2652 = vmatpush1.bf16.msra.mxu0 %v2626
      %2653 = vmatprep.subr.bf16.mxu0 0
      %2654 = vmatpush1.bf16.msra.mxu0 %v2625
      %2655 = vmatprep.subr.bf16.mxu0 0
      %2656 = vmatpush1.bf16.msra.mxu0 %v2624
      %2657 = vmatprep.subr.bf16.mxu0 0
      %2658 = vmatpush1.bf16.msra.mxu0 %v2623
      %2659 = vmatprep.subr.bf16.mxu0 0
      %2660 = vmatpush2.bf16.msra.mxu0 0
      %2661 = vmatprep.subr.bf16.mxu0 0
      %2662 = vmatpush2.bf16.msra.mxu0 0
      %2663 = vmatprep.subr.bf16.mxu0 0
      %2664 = vmatpush2.bf16.msra.mxu0 0
      %2665 = vmatprep.subr.bf16.mxu0 0
      %2666 = vmatpush2.bf16.msra.mxu0 0
      %2667 = vmatprep.subr.bf16.mxu0 0
      %2668 = vmatpush2.bf16.msra.mxu0 0
      %2669 = vmatprep.subr.bf16.mxu0 0
      %2670 = vmatpush2.bf16.msra.mxu0 0
      %2671 = vmatprep.subr.bf16.mxu0 0
      %2672 = vmatpush2.bf16.msra.mxu0 0
      %2673 = vmatprep.subr.bf16.mxu0 0
      %2674 = vmatpush2.bf16.msra.mxu0 0
      %2675 = vmatprep.mubr.bf16.mxu0 0
      %2676 = vmatmul.mubr.bf16.gmra.mxu0 %v2632
      %v2677 = vpop.f32.mrf.mxu0
      %v2678 = vadd.f32 0.0, %v2677
      %v2679 = vpop.f32.mrf.mxu0
      %v2680 = vpop.f32.mrf.mxu0
      %v2681 = vadd.f32 0.0, %v2680
      %v2682 = vpop.f32.mrf.mxu0
      %2683 = vmatprep.mubr.bf16.mxu0 0
      %2684 = vmatmul.mubr.bf16.gmra.mxu0 %v2635
      %v2685 = vpop.f32.mrf.mxu0
      %v2686 = vadd.f32 0.0, %v2685
      %v2687 = vpop.f32.mrf.mxu0
      %v2688 = vpop.f32.mrf.mxu0
      %v2689 = vadd.f32 0.0, %v2688
      %v2690 = vpop.f32.mrf.mxu0
      %2691 = vmatprep.mubr.bf16.mxu0 0
      %2692 = vmatmul.mubr.bf16.gmra.mxu0 %v2638
      %v2693 = vpop.f32.mrf.mxu0
      %v2694 = vadd.f32 0.0, %v2693
      %v2695 = vpop.f32.mrf.mxu0
      %v2696 = vpop.f32.mrf.mxu0
      %v2697 = vadd.f32 0.0, %v2696
      %v2698 = vpop.f32.mrf.mxu0
      %2699 = vmatprep.mubr.bf16.mxu0 0
      %2700 = vmatmul.mubr.bf16.gmra.mxu0 %v2641
      %v2701 = vpop.f32.mrf.mxu0
      %v2702 = vadd.f32 0.0, %v2701
      %v2703 = vpop.f32.mrf.mxu0
      %v2704 = vpop.f32.mrf.mxu0
      %v2705 = vadd.f32 0.0, %v2704
      %v2706 = vpop.f32.mrf.mxu0
      %2707 = vdwg.mxu0
      %v2748 = vunpack.c.l.b16 %v2403
      %v2749 = vunpack.c.h.b16 %v2403
      %v2750 = vunpack.c.l.b16 %v2404
      %v2751 = vunpack.c.h.b16 %v2404
      %v2752 = vunpack.c.l.b16 %v2405
      %v2753 = vunpack.c.h.b16 %v2405
      %v2754 = vunpack.c.l.b16 %v2406
      %v2755 = vunpack.c.h.b16 %v2406
      %v2756 = vunpack.c.l.b16 %v2407
      %v2757 = vunpack.c.l.b16 %v2408
      %v2758 = vunpack.c.h.b16 %v2408
      %v2759 = vunpack.c.l.b16 %v2409
      %v2760 = vunpack.c.h.b16 %v2409
      %v2761 = vunpack.c.l.b16 %v2410
      %v2762 = vunpack.c.h.b16 %v2410
      %v2763 = vunpack.c.l.b16 %v2411
      %v2764 = vunpack.c.h.b16 %v2411
      %v2765 = vunpack.c.l.b16 %v2412
      %v2766 = vunpack.c.l.b16 %v2413
      %v2767 = vunpack.c.h.b16 %v2413
      %v2768 = vunpack.c.l.b16 %v2414
      %v2769 = vunpack.c.h.b16 %v2414
      %v2770 = vunpack.c.l.b16 %v2415
      %v2771 = vunpack.c.h.b16 %v2415
      %v2772 = vunpack.c.l.b16 %v2416
      %v2773 = vunpack.c.h.b16 %v2416
      %v2774 = vunpack.c.l.b16 %v2417
      %v2775 = vunpack.c.l.b16 %v2418
      %v2776 = vunpack.c.h.b16 %v2418
      %v2777 = vunpack.c.l.b16 %v2419
      %v2778 = vunpack.c.h.b16 %v2419
      %v2779 = vunpack.c.l.b16 %v2420
      %v2780 = vunpack.c.h.b16 %v2420
      %v2781 = vunpack.c.l.b16 %v2421
      %v2782 = vunpack.c.h.b16 %v2421
      %v2783 = vunpack.c.l.b16 %v2422
      %v2784 = vunpack.c.l.b16 %v2423
      %v2785 = vunpack.c.h.b16 %v2423
      %v2786 = vunpack.c.l.b16 %v2424
      %v2787 = vunpack.c.h.b16 %v2424
      %v2788 = vunpack.c.l.b16 %v2425
      %v2789 = vunpack.c.h.b16 %v2425
      %v2790 = vunpack.c.l.b16 %v2426
      %v2791 = vunpack.c.h.b16 %v2426
      %v2792 = vunpack.c.l.b16 %v2427
      %v2793 = vunpack.c.l.b16 %v2428
      %v2794 = vunpack.c.h.b16 %v2428
      %v2795 = vunpack.c.l.b16 %v2429
      %v2796 = vunpack.c.h.b16 %v2429
      %v2797 = vunpack.c.l.b16 %v2430
      %v2798 = vunpack.c.h.b16 %v2430
      %v2799 = vunpack.c.l.b16 %v2431
      %v2800 = vunpack.c.h.b16 %v2431
      %v2801 = vunpack.c.l.b16 %v2432
      %v2802 = vunpack.c.l.b16 %v2433
      %v2803 = vunpack.c.h.b16 %v2433
      %v2804 = vunpack.c.l.b16 %v2434
      %v2805 = vunpack.c.h.b16 %v2434
      %v2806 = vunpack.c.l.b16 %v2435
      %v2807 = vunpack.c.h.b16 %v2435
      %v2808 = vunpack.c.l.b16 %v2436
      %v2809 = vunpack.c.h.b16 %v2436
      %v2810 = vunpack.c.l.b16 %v2437
      %v2811 = vunpack.c.l.b16 %v2438
      %v2812 = vunpack.c.h.b16 %v2438
      %v2813 = vunpack.c.l.b16 %v2439
      %v2814 = vunpack.c.h.b16 %v2439
      %v2815 = vunpack.c.l.b16 %v2440
      %v2816 = vunpack.c.h.b16 %v2440
      %v2817 = vunpack.c.l.b16 %v2441
      %v2818 = vunpack.c.h.b16 %v2441
      %v2819 = vunpack.c.l.b16 %v2442
      %v2820 = vpack.c.b16 %v2757, %v2748
      %v2821 = vpack.c.b16 %v2758, %v2749
      %v2822 = vpack.c.b16 %v2759, %v2750
      %v2823 = vpack.c.b16 %v2760, %v2751
      %v2824 = vpack.c.b16 %v2761, %v2752
      %v2825 = vpack.c.b16 %v2762, %v2753
      %v2826 = vpack.c.b16 %v2763, %v2754
      %v2827 = vpack.c.b16 %v2764, %v2755
      %v2828 = vpack.c.b16 %v2765, %v2756
      %v2829 = vpack.c.b16 %v2775, %v2766
      %v2830 = vpack.c.b16 %v2776, %v2767
      %v2831 = vpack.c.b16 %v2777, %v2768
      %v2832 = vpack.c.b16 %v2778, %v2769
      %v2833 = vpack.c.b16 %v2779, %v2770
      %v2834 = vpack.c.b16 %v2780, %v2771
      %v2835 = vpack.c.b16 %v2781, %v2772
      %v2836 = vpack.c.b16 %v2782, %v2773
      %v2837 = vpack.c.b16 %v2783, %v2774
      %v2838 = vpack.c.b16 %v2793, %v2784
      %v2839 = vpack.c.b16 %v2794, %v2785
      %v2840 = vpack.c.b16 %v2795, %v2786
      %v2841 = vpack.c.b16 %v2796, %v2787
      %v2842 = vpack.c.b16 %v2797, %v2788
      %v2843 = vpack.c.b16 %v2798, %v2789
      %v2844 = vpack.c.b16 %v2799, %v2790
      %v2845 = vpack.c.b16 %v2800, %v2791
      %v2846 = vpack.c.b16 %v2801, %v2792
      %v2847 = vpack.c.b16 %v2811, %v2802
      %v2848 = vpack.c.b16 %v2812, %v2803
      %v2849 = vpack.c.b16 %v2813, %v2804
      %v2850 = vpack.c.b16 %v2814, %v2805
      %v2851 = vpack.c.b16 %v2815, %v2806
      %v2852 = vpack.c.b16 %v2816, %v2807
      %v2853 = vpack.c.b16 %v2817, %v2808
      %v2854 = vpack.c.b16 %v2818, %v2809
      %v2855 = vpack.c.b16 %v2819, %v2810
      %v3036 = vunpack.c.l.b16 %v2443
      %v3037 = vunpack.c.l.b16 %v2444
      %v3038 = vunpack.c.l.b16 %v2445
      %v3039 = vunpack.c.l.b16 %v2446
      %v3040 = vunpack.c.l.b16 %v2447
      %v3041 = vunpack.c.l.b16 %v2448
      %v3042 = vunpack.c.l.b16 %v2449
      %v3043 = vunpack.c.l.b16 %v2450
      %v3044 = vunpack.c.l.b16 %v2451
      %v3045 = vunpack.c.l.b16 %v2452
      %v3046 = vunpack.c.l.b16 %v2453
      %v3047 = vunpack.c.l.b16 %v2454
      %v3048 = vunpack.c.l.b16 %v2455
      %v3049 = vunpack.c.l.b16 %v2456
      %v3050 = vunpack.c.l.b16 %v2457
      %v3051 = vunpack.c.l.b16 %v2458
      %v3052 = vunpack.c.l.b16 %v2459
      %v3053 = vunpack.c.l.b16 %v2460
      %v3054 = vunpack.c.l.b16 %v2461
      %v3055 = vunpack.c.l.b16 %v2462
      %v3056 = vunpack.c.l.b16 %v2463
      %v3057 = vunpack.c.l.b16 %v2464
      %v3058 = vunpack.c.l.b16 %v2465
      %v3059 = vunpack.c.l.b16 %v2466
      %v3060 = vunpack.c.l.b16 %v2467
      %v3061 = vunpack.c.l.b16 %v2468
      %v3062 = vunpack.c.l.b16 %v2469
      %v3063 = vunpack.c.l.b16 %v2470
      %v3064 = vunpack.c.l.b16 %v2471
      %v3065 = vunpack.c.l.b16 %v2472
      %v3066 = vunpack.c.l.b16 %v2473
      %v3067 = vunpack.c.l.b16 %v2474
      %v3068 = vunpack.c.l.b16 %v2475
      %v3069 = vunpack.c.l.b16 %v2476
      %v3070 = vunpack.c.l.b16 %v2477
      %v3071 = vunpack.c.l.b16 %v2478
      %v3072 = vunpack.c.l.b16 %v2479
      %v3073 = vunpack.c.l.b16 %v2480
      %v3074 = vunpack.c.l.b16 %v2481
      %v3075 = vunpack.c.l.b16 %v2482
      %v3076 = vunpack.c.l.b16 %v2483
      %v3077 = vunpack.c.l.b16 %v2484
      %v3078 = vunpack.c.l.b16 %v2485
      %v3079 = vunpack.c.l.b16 %v2486
      %v3080 = vunpack.c.l.b16 %v2487
      %v3081 = vunpack.c.l.b16 %v2488
      %v3082 = vunpack.c.l.b16 %v2489
      %v3083 = vunpack.c.l.b16 %v2490
      %v3084 = vunpack.c.l.b16 %v2491
      %v3085 = vunpack.c.l.b16 %v2492
      %v3086 = vunpack.c.l.b16 %v2493
      %v3087 = vunpack.c.l.b16 %v2494
      %v3088 = vunpack.c.l.b16 %v2495
      %v3089 = vunpack.c.l.b16 %v2496
      %v3090 = vunpack.c.l.b16 %v2497
      %v3091 = vunpack.c.l.b16 %v2498
      %v3092 = vunpack.c.l.b16 %v2499
      %v3093 = vunpack.c.l.b16 %v2500
      %v3094 = vunpack.c.l.b16 %v2501
      %v3095 = vunpack.c.l.b16 %v2502
      %v3096 = vunpack.c.l.b16 %v2503
      %v3097 = vunpack.c.l.b16 %v2504
      %v3098 = vunpack.c.l.b16 %v2505
      %v3099 = vunpack.c.l.b16 %v2506
      %v3100 = vunpack.c.l.b16 %v2507
      %v3101 = vunpack.c.l.b16 %v2508
      %v3102 = vunpack.c.l.b16 %v2509
      %v3103 = vunpack.c.l.b16 %v2510
      %v3104 = vunpack.c.l.b16 %v2511
      %v3105 = vunpack.c.l.b16 %v2512
      %v3106 = vunpack.c.l.b16 %v2513
      %v3107 = vunpack.c.l.b16 %v2514
      %v3108 = vunpack.c.l.b16 %v2515
      %v3109 = vunpack.c.l.b16 %v2516
      %v3110 = vunpack.c.l.b16 %v2517
      %v3111 = vunpack.c.l.b16 %v2518
      %v3112 = vunpack.c.l.b16 %v2519
      %v3113 = vunpack.c.l.b16 %v2520
      %v3114 = vunpack.c.l.b16 %v2521
      %v3115 = vunpack.c.l.b16 %v2522
      %v3116 = vunpack.c.l.b16 %v2523
      %v3117 = vunpack.c.l.b16 %v2524
      %v3118 = vunpack.c.l.b16 %v2525
      %v3119 = vunpack.c.l.b16 %v2526
      %v3120 = vunpack.c.l.b16 %v2527
      %v3121 = vunpack.c.l.b16 %v2528
      %v3122 = vunpack.c.l.b16 %v2529
      %v3123 = vunpack.c.l.b16 %v2530
      %v3124 = vunpack.c.l.b16 %v2531
      %v3125 = vunpack.c.l.b16 %v2532
      %v3126 = vunpack.c.l.b16 %v2533
      %v3127 = vunpack.c.l.b16 %v2534
      %v3128 = vunpack.c.l.b16 %v2535
      %v3129 = vunpack.c.l.b16 %v2536
      %v3130 = vunpack.c.l.b16 %v2537
      %v3131 = vunpack.c.l.b16 %v2538
      %v3132 = vunpack.c.l.b16 %v2539
      %v3133 = vunpack.c.l.b16 %v2540
      %v3134 = vunpack.c.l.b16 %v2541
      %v3135 = vunpack.c.l.b16 %v2542
      %v3136 = vunpack.c.l.b16 %v2543
      %v3137 = vunpack.c.l.b16 %v2544
      %v3138 = vunpack.c.l.b16 %v2545
      %v3139 = vunpack.c.l.b16 %v2546
      %v3140 = vunpack.c.l.b16 %v2547
      %v3141 = vunpack.c.l.b16 %v2548
      %v3142 = vunpack.c.l.b16 %v2549
      %v3143 = vunpack.c.l.b16 %v2550
      %v3144 = vunpack.c.l.b16 %v2551
      %v3145 = vunpack.c.l.b16 %v2552
      %v3146 = vunpack.c.l.b16 %v2553
      %v3147 = vunpack.c.l.b16 %v2554
      %v3148 = vunpack.c.l.b16 %v2555
      %v3149 = vunpack.c.l.b16 %v2556
      %v3150 = vunpack.c.l.b16 %v2557
      %v3151 = vunpack.c.l.b16 %v2558
      %v3152 = vunpack.c.l.b16 %v2559
      %v3153 = vunpack.c.l.b16 %v2560
      %v3154 = vunpack.c.l.b16 %v2561
      %v3155 = vunpack.c.l.b16 %v2562
      %v3156 = vunpack.c.l.b16 %v2563
      %v3157 = vunpack.c.l.b16 %v2564
      %v3158 = vunpack.c.l.b16 %v2565
      %v3159 = vunpack.c.l.b16 %v2566
      %v3160 = vunpack.c.l.b16 %v2567
      %v3161 = vunpack.c.l.b16 %v2568
      %v3162 = vunpack.c.l.b16 %v2569
      %v3163 = vunpack.c.l.b16 %v2570
      %v3164 = vunpack.c.l.b16 %v2571
      %v3165 = vunpack.c.l.b16 %v2572
      %v3166 = vunpack.c.l.b16 %v2573
      %v3167 = vunpack.c.l.b16 %v2574
      %v3168 = vunpack.c.l.b16 %v2575
      %v3169 = vunpack.c.l.b16 %v2576
      %v3170 = vunpack.c.l.b16 %v2577
      %v3171 = vunpack.c.l.b16 %v2578
      %v3172 = vunpack.c.l.b16 %v2579
      %v3173 = vunpack.c.l.b16 %v2580
      %v3174 = vunpack.c.l.b16 %v2581
      %v3175 = vunpack.c.l.b16 %v2582
      %v3176 = vunpack.c.l.b16 %v2583
      %v3177 = vunpack.c.l.b16 %v2584
      %v3178 = vunpack.c.l.b16 %v2585
      %v3179 = vunpack.c.l.b16 %v2586
      %v3180 = vpack.c.b16 %v3037, %v3036
      %v3181 = vpack.c.b16 %v3039, %v3038
      %v3182 = vpack.c.b16 %v3041, %v3040
      %v3183 = vpack.c.b16 %v3043, %v3042
      %v3184 = vpack.c.b16 %v3045, %v3044
      %v3185 = vpack.c.b16 %v3047, %v3046
      %v3186 = vpack.c.b16 %v3049, %v3048
      %v3187 = vpack.c.b16 %v3051, %v3050
      %v3188 = vpack.c.b16 %v3053, %v3052
      %v3189 = vpack.c.b16 %v3055, %v3054
      %v3190 = vpack.c.b16 %v3057, %v3056
      %v3191 = vpack.c.b16 %v3059, %v3058
      %v3192 = vpack.c.b16 %v3061, %v3060
      %v3193 = vpack.c.b16 %v3063, %v3062
      %v3194 = vpack.c.b16 %v3065, %v3064
      %v3195 = vpack.c.b16 %v3067, %v3066
      %v3196 = vpack.c.b16 %v3069, %v3068
      %v3197 = vpack.c.b16 %v3071, %v3070
      %v3198 = vpack.c.b16 %v3073, %v3072
      %v3199 = vpack.c.b16 %v3075, %v3074
      %v3200 = vpack.c.b16 %v3077, %v3076
      %v3201 = vpack.c.b16 %v3079, %v3078
      %v3202 = vpack.c.b16 %v3081, %v3080
      %v3203 = vpack.c.b16 %v3083, %v3082
      %v3204 = vpack.c.b16 %v3085, %v3084
      %v3205 = vpack.c.b16 %v3087, %v3086
      %v3206 = vpack.c.b16 %v3089, %v3088
      %v3207 = vpack.c.b16 %v3091, %v3090
      %v3208 = vpack.c.b16 %v3093, %v3092
      %v3209 = vpack.c.b16 %v3095, %v3094
      %v3210 = vpack.c.b16 %v3097, %v3096
      %v3211 = vpack.c.b16 %v3099, %v3098
      %v3212 = vpack.c.b16 %v3101, %v3100
      %v3213 = vpack.c.b16 %v3103, %v3102
      %v3214 = vpack.c.b16 %v3105, %v3104
      %v3215 = vpack.c.b16 %v3107, %v3106
      %v3216 = vpack.c.b16 %v3109, %v3108
      %v3217 = vpack.c.b16 %v3111, %v3110
      %v3218 = vpack.c.b16 %v3113, %v3112
      %v3219 = vpack.c.b16 %v3115, %v3114
      %v3220 = vpack.c.b16 %v3117, %v3116
      %v3221 = vpack.c.b16 %v3119, %v3118
      %v3222 = vpack.c.b16 %v3121, %v3120
      %v3223 = vpack.c.b16 %v3123, %v3122
      %v3224 = vpack.c.b16 %v3125, %v3124
      %v3225 = vpack.c.b16 %v3127, %v3126
      %v3226 = vpack.c.b16 %v3129, %v3128
      %v3227 = vpack.c.b16 %v3131, %v3130
      %v3228 = vpack.c.b16 %v3133, %v3132
      %v3229 = vpack.c.b16 %v3135, %v3134
      %v3230 = vpack.c.b16 %v3137, %v3136
      %v3231 = vpack.c.b16 %v3139, %v3138
      %v3232 = vpack.c.b16 %v3141, %v3140
      %v3233 = vpack.c.b16 %v3143, %v3142
      %v3234 = vpack.c.b16 %v3145, %v3144
      %v3235 = vpack.c.b16 %v3147, %v3146
      %v3236 = vpack.c.b16 %v3149, %v3148
      %v3237 = vpack.c.b16 %v3151, %v3150
      %v3238 = vpack.c.b16 %v3153, %v3152
      %v3239 = vpack.c.b16 %v3155, %v3154
      %v3240 = vpack.c.b16 %v3157, %v3156
      %v3241 = vpack.c.b16 %v3159, %v3158
      %v3242 = vpack.c.b16 %v3161, %v3160
      %v3243 = vpack.c.b16 %v3163, %v3162
      %v3244 = vpack.c.b16 %v3165, %v3164
      %v3245 = vpack.c.b16 %v3167, %v3166
      %v3246 = vpack.c.b16 %v3169, %v3168
      %v3247 = vpack.c.b16 %v3171, %v3170
      %v3248 = vpack.c.b16 %v3173, %v3172
      %v3249 = vpack.c.b16 %v3175, %v3174
      %v3250 = vpack.c.b16 %v3177, %v3176
      %v3251 = vpack.c.b16 %v3179, %v3178
      %3324 = vmatprep.subr.bf16.mxu0 0
      %3325 = vmatpush1.bf16.msra.mxu0 %v3187
      %3326 = vmatprep.subr.bf16.mxu0 0
      %3327 = vmatpush1.bf16.msra.mxu0 %v3186
      %3328 = vmatprep.subr.bf16.mxu0 0
      %3329 = vmatpush1.bf16.msra.mxu0 %v3185
      %3330 = vmatprep.subr.bf16.mxu0 0
      %3331 = vmatpush1.bf16.msra.mxu0 %v3184
      %3332 = vmatprep.subr.bf16.mxu0 0
      %3333 = vmatpush1.bf16.msra.mxu0 %v3183
      %3334 = vmatprep.subr.bf16.mxu0 0
      %3335 = vmatpush1.bf16.msra.mxu0 %v3182
      %3336 = vmatprep.subr.bf16.mxu0 0
      %3337 = vmatpush1.bf16.msra.mxu0 %v3181
      %3338 = vmatprep.subr.bf16.mxu0 0
      %3339 = vmatpush1.bf16.msra.mxu0 %v3180
      %3340 = vmatprep.subr.bf16.mxu0 0
      %3341 = vmatpush2.bf16.msra.mxu0 %v3195
      %3342 = vmatprep.subr.bf16.mxu0 0
      %3343 = vmatpush2.bf16.msra.mxu0 %v3194
      %3344 = vmatprep.subr.bf16.mxu0 0
      %3345 = vmatpush2.bf16.msra.mxu0 %v3193
      %3346 = vmatprep.subr.bf16.mxu0 0
      %3347 = vmatpush2.bf16.msra.mxu0 %v3192
      %3348 = vmatprep.subr.bf16.mxu0 0
      %3349 = vmatpush2.bf16.msra.mxu0 %v3191
      %3350 = vmatprep.subr.bf16.mxu0 0
      %3351 = vmatpush2.bf16.msra.mxu0 %v3190
      %3352 = vmatprep.subr.bf16.mxu0 0
      %3353 = vmatpush2.bf16.msra.mxu0 %v3189
      %3354 = vmatprep.subr.bf16.mxu0 0
      %3355 = vmatpush2.bf16.msra.mxu0 %v3188
      %3356 = vmatprep.mubr.bf16.mxu0 %v2821
      %3357 = vmatmul.mubr.bf16.gmra.mxu0 %v2820
      %v3358 = vpop.f32.mrf.mxu0
      %v3359 = vadd.f32 %v2678, %v3358
      %v3360 = vpop.f32.mrf.mxu0
      %v3361 = vpop.f32.mrf.mxu0
      %v3362 = vadd.f32 %v2681, %v3361
      %v3363 = vpop.f32.mrf.mxu0
      %3364 = vmatprep.mubr.bf16.mxu0 %v2830
      %3365 = vmatmul.mubr.bf16.gmra.mxu0 %v2829
      %v3366 = vpop.f32.mrf.mxu0
      %v3367 = vadd.f32 %v2686, %v3366
      %v3368 = vpop.f32.mrf.mxu0
      %v3369 = vpop.f32.mrf.mxu0
      %v3370 = vadd.f32 %v2689, %v3369
      %v3371 = vpop.f32.mrf.mxu0
      %3372 = vmatprep.mubr.bf16.mxu0 %v2839
      %3373 = vmatmul.mubr.bf16.gmra.mxu0 %v2838
      %v3374 = vpop.f32.mrf.mxu0
      %v3375 = vadd.f32 %v2694, %v3374
      %v3376 = vpop.f32.mrf.mxu0
      %v3377 = vpop.f32.mrf.mxu0
      %v3378 = vadd.f32 %v2697, %v3377
      %v3379 = vpop.f32.mrf.mxu0
      %3380 = vmatprep.mubr.bf16.mxu0 %v2848
      %3381 = vmatmul.mubr.bf16.gmra.mxu0 %v2847
      %v3382 = vpop.f32.mrf.mxu0
      %v3383 = vadd.f32 %v2702, %v3382
      %v3384 = vpop.f32.mrf.mxu0
      %v3385 = vpop.f32.mrf.mxu0
      %v3386 = vadd.f32 %v2705, %v3385
      %v3387 = vpop.f32.mrf.mxu0
      %3388 = vdwg.mxu0
      %3389 = vmatprep.subr.bf16.mxu0 0
      %3390 = vmatpush1.bf16.msra.mxu0 %v3203
      %3391 = vmatprep.subr.bf16.mxu0 0
      %3392 = vmatpush1.bf16.msra.mxu0 %v3202
      %3393 = vmatprep.subr.bf16.mxu0 0
      %3394 = vmatpush1.bf16.msra.mxu0 %v3201
      %3395 = vmatprep.subr.bf16.mxu0 0
      %3396 = vmatpush1.bf16.msra.mxu0 %v3200
      %3397 = vmatprep.subr.bf16.mxu0 0
      %3398 = vmatpush1.bf16.msra.mxu0 %v3199
      %3399 = vmatprep.subr.bf16.mxu0 0
      %3400 = vmatpush1.bf16.msra.mxu0 %v3198
      %3401 = vmatprep.subr.bf16.mxu0 0
      %3402 = vmatpush1.bf16.msra.mxu0 %v3197
      %3403 = vmatprep.subr.bf16.mxu0 0
      %3404 = vmatpush1.bf16.msra.mxu0 %v3196
      %3405 = vmatprep.subr.bf16.mxu0 0
      %3406 = vmatpush2.bf16.msra.mxu0 %v3211
      %3407 = vmatprep.subr.bf16.mxu0 0
      %3408 = vmatpush2.bf16.msra.mxu0 %v3210
      %3409 = vmatprep.subr.bf16.mxu0 0
      %3410 = vmatpush2.bf16.msra.mxu0 %v3209
      %3411 = vmatprep.subr.bf16.mxu0 0
      %3412 = vmatpush2.bf16.msra.mxu0 %v3208
      %3413 = vmatprep.subr.bf16.mxu0 0
      %3414 = vmatpush2.bf16.msra.mxu0 %v3207
      %3415 = vmatprep.subr.bf16.mxu0 0
      %3416 = vmatpush2.bf16.msra.mxu0 %v3206
      %3417 = vmatprep.subr.bf16.mxu0 0
      %3418 = vmatpush2.bf16.msra.mxu0 %v3205
      %3419 = vmatprep.subr.bf16.mxu0 0
      %3420 = vmatpush2.bf16.msra.mxu0 %v3204
      %3421 = vmatprep.mubr.bf16.mxu0 %v2823
      %3422 = vmatmul.mubr.bf16.gmra.mxu0 %v2822
      %v3423 = vpop.f32.mrf.mxu0
      %v3424 = vadd.f32 %v3359, %v3423
      %v3425 = vpop.f32.mrf.mxu0
      %v3426 = vpop.f32.mrf.mxu0
      %v3427 = vadd.f32 %v3362, %v3426
      %v3428 = vpop.f32.mrf.mxu0
      %3429 = vmatprep.mubr.bf16.mxu0 %v2832
      %3430 = vmatmul.mubr.bf16.gmra.mxu0 %v2831
      %v3431 = vpop.f32.mrf.mxu0
      %v3432 = vadd.f32 %v3367, %v3431
      %v3433 = vpop.f32.mrf.mxu0
      %v3434 = vpop.f32.mrf.mxu0
      %v3435 = vadd.f32 %v3370, %v3434
      %v3436 = vpop.f32.mrf.mxu0
      %3437 = vmatprep.mubr.bf16.mxu0 %v2841
      %3438 = vmatmul.mubr.bf16.gmra.mxu0 %v2840
      %v3439 = vpop.f32.mrf.mxu0
      %v3440 = vadd.f32 %v3375, %v3439
      %v3441 = vpop.f32.mrf.mxu0
      %v3442 = vpop.f32.mrf.mxu0
      %v3443 = vadd.f32 %v3378, %v3442
      %v3444 = vpop.f32.mrf.mxu0
      %3445 = vmatprep.mubr.bf16.mxu0 %v2850
      %3446 = vmatmul.mubr.bf16.gmra.mxu0 %v2849
      %v3447 = vpop.f32.mrf.mxu0
      %v3448 = vadd.f32 %v3383, %v3447
      %v3449 = vpop.f32.mrf.mxu0
      %v3450 = vpop.f32.mrf.mxu0
      %v3451 = vadd.f32 %v3386, %v3450
      %v3452 = vpop.f32.mrf.mxu0
      %3453 = vdwg.mxu0
      %3454 = vmatprep.subr.bf16.mxu0 0
      %3455 = vmatpush1.bf16.msra.mxu0 %v3219
      %3456 = vmatprep.subr.bf16.mxu0 0
      %3457 = vmatpush1.bf16.msra.mxu0 %v3218
      %3458 = vmatprep.subr.bf16.mxu0 0
      %3459 = vmatpush1.bf16.msra.mxu0 %v3217
      %3460 = vmatprep.subr.bf16.mxu0 0
      %3461 = vmatpush1.bf16.msra.mxu0 %v3216
      %3462 = vmatprep.subr.bf16.mxu0 0
      %3463 = vmatpush1.bf16.msra.mxu0 %v3215
      %3464 = vmatprep.subr.bf16.mxu0 0
      %3465 = vmatpush1.bf16.msra.mxu0 %v3214
      %3466 = vmatprep.subr.bf16.mxu0 0
      %3467 = vmatpush1.bf16.msra.mxu0 %v3213
      %3468 = vmatprep.subr.bf16.mxu0 0
      %3469 = vmatpush1.bf16.msra.mxu0 %v3212
      %3470 = vmatprep.subr.bf16.mxu0 0
      %3471 = vmatpush2.bf16.msra.mxu0 %v3227
      %3472 = vmatprep.subr.bf16.mxu0 0
      %3473 = vmatpush2.bf16.msra.mxu0 %v3226
      %3474 = vmatprep.subr.bf16.mxu0 0
      %3475 = vmatpush2.bf16.msra.mxu0 %v3225
      %3476 = vmatprep.subr.bf16.mxu0 0
      %3477 = vmatpush2.bf16.msra.mxu0 %v3224
      %3478 = vmatprep.subr.bf16.mxu0 0
      %3479 = vmatpush2.bf16.msra.mxu0 %v3223
      %3480 = vmatprep.subr.bf16.mxu0 0
      %3481 = vmatpush2.bf16.msra.mxu0 %v3222
      %3482 = vmatprep.subr.bf16.mxu0 0
      %3483 = vmatpush2.bf16.msra.mxu0 %v3221
      %3484 = vmatprep.subr.bf16.mxu0 0
      %3485 = vmatpush2.bf16.msra.mxu0 %v3220
      %3486 = vmatprep.mubr.bf16.mxu0 %v2825
      %3487 = vmatmul.mubr.bf16.gmra.mxu0 %v2824
      %v3488 = vpop.f32.mrf.mxu0
      %v3489 = vadd.f32 %v3424, %v3488
      %v3490 = vpop.f32.mrf.mxu0
      %v3491 = vpop.f32.mrf.mxu0
      %v3492 = vadd.f32 %v3427, %v3491
      %v3493 = vpop.f32.mrf.mxu0
      %3494 = vmatprep.mubr.bf16.mxu0 %v2834
      %3495 = vmatmul.mubr.bf16.gmra.mxu0 %v2833
      %v3496 = vpop.f32.mrf.mxu0
      %v3497 = vadd.f32 %v3432, %v3496
      %v3498 = vpop.f32.mrf.mxu0
      %v3499 = vpop.f32.mrf.mxu0
      %v3500 = vadd.f32 %v3435, %v3499
      %v3501 = vpop.f32.mrf.mxu0
      %3502 = vmatprep.mubr.bf16.mxu0 %v2843
      %3503 = vmatmul.mubr.bf16.gmra.mxu0 %v2842
      %v3504 = vpop.f32.mrf.mxu0
      %v3505 = vadd.f32 %v3440, %v3504
      %v3506 = vpop.f32.mrf.mxu0
      %v3507 = vpop.f32.mrf.mxu0
      %v3508 = vadd.f32 %v3443, %v3507
      %v3509 = vpop.f32.mrf.mxu0
      %3510 = vmatprep.mubr.bf16.mxu0 %v2852
      %3511 = vmatmul.mubr.bf16.gmra.mxu0 %v2851
      %v3512 = vpop.f32.mrf.mxu0
      %v3513 = vadd.f32 %v3448, %v3512
      %v3514 = vpop.f32.mrf.mxu0
      %v3515 = vpop.f32.mrf.mxu0
      %v3516 = vadd.f32 %v3451, %v3515
      %v3517 = vpop.f32.mrf.mxu0
      %3518 = vdwg.mxu0
      %3519 = vmatprep.subr.bf16.mxu0 0
      %3520 = vmatpush1.bf16.msra.mxu0 %v3235
      %3521 = vmatprep.subr.bf16.mxu0 0
      %3522 = vmatpush1.bf16.msra.mxu0 %v3234
      %3523 = vmatprep.subr.bf16.mxu0 0
      %3524 = vmatpush1.bf16.msra.mxu0 %v3233
      %3525 = vmatprep.subr.bf16.mxu0 0
      %3526 = vmatpush1.bf16.msra.mxu0 %v3232
      %3527 = vmatprep.subr.bf16.mxu0 0
      %3528 = vmatpush1.bf16.msra.mxu0 %v3231
      %3529 = vmatprep.subr.bf16.mxu0 0
      %3530 = vmatpush1.bf16.msra.mxu0 %v3230
      %3531 = vmatprep.subr.bf16.mxu0 0
      %3532 = vmatpush1.bf16.msra.mxu0 %v3229
      %3533 = vmatprep.subr.bf16.mxu0 0
      %3534 = vmatpush1.bf16.msra.mxu0 %v3228
      %3535 = vmatprep.subr.bf16.mxu0 0
      %3536 = vmatpush2.bf16.msra.mxu0 %v3243
      %3537 = vmatprep.subr.bf16.mxu0 0
      %3538 = vmatpush2.bf16.msra.mxu0 %v3242
      %3539 = vmatprep.subr.bf16.mxu0 0
      %3540 = vmatpush2.bf16.msra.mxu0 %v3241
      %3541 = vmatprep.subr.bf16.mxu0 0
      %3542 = vmatpush2.bf16.msra.mxu0 %v3240
      %3543 = vmatprep.subr.bf16.mxu0 0
      %3544 = vmatpush2.bf16.msra.mxu0 %v3239
      %3545 = vmatprep.subr.bf16.mxu0 0
      %3546 = vmatpush2.bf16.msra.mxu0 %v3238
      %3547 = vmatprep.subr.bf16.mxu0 0
      %3548 = vmatpush2.bf16.msra.mxu0 %v3237
      %3549 = vmatprep.subr.bf16.mxu0 0
      %3550 = vmatpush2.bf16.msra.mxu0 %v3236
      %3551 = vmatprep.mubr.bf16.mxu0 %v2827
      %3552 = vmatmul.mubr.bf16.gmra.mxu0 %v2826
      %v3553 = vpop.f32.mrf.mxu0
      %v3554 = vadd.f32 %v3489, %v3553
      %v3555 = vpop.f32.mrf.mxu0
      %v3556 = vpop.f32.mrf.mxu0
      %v3557 = vadd.f32 %v3492, %v3556
      %v3558 = vpop.f32.mrf.mxu0
      %3559 = vmatprep.mubr.bf16.mxu0 %v2836
      %3560 = vmatmul.mubr.bf16.gmra.mxu0 %v2835
      %v3561 = vpop.f32.mrf.mxu0
      %v3562 = vadd.f32 %v3497, %v3561
      %v3563 = vpop.f32.mrf.mxu0
      %v3564 = vpop.f32.mrf.mxu0
      %v3565 = vadd.f32 %v3500, %v3564
      %v3566 = vpop.f32.mrf.mxu0
      %3567 = vmatprep.mubr.bf16.mxu0 %v2845
      %3568 = vmatmul.mubr.bf16.gmra.mxu0 %v2844
      %v3569 = vpop.f32.mrf.mxu0
      %v3570 = vadd.f32 %v3505, %v3569
      %v3571 = vpop.f32.mrf.mxu0
      %v3572 = vpop.f32.mrf.mxu0
      %v3573 = vadd.f32 %v3508, %v3572
      %v3574 = vpop.f32.mrf.mxu0
      %3575 = vmatprep.mubr.bf16.mxu0 %v2854
      %3576 = vmatmul.mubr.bf16.gmra.mxu0 %v2853
      %v3577 = vpop.f32.mrf.mxu0
      %v3578 = vadd.f32 %v3513, %v3577
      %v3579 = vpop.f32.mrf.mxu0
      %v3580 = vpop.f32.mrf.mxu0
      %v3581 = vadd.f32 %v3516, %v3580
      %v3582 = vpop.f32.mrf.mxu0
      %3583 = vdwg.mxu0
      %3584 = vmatprep.subr.bf16.mxu0 0
      %3585 = vmatpush1.bf16.msra.mxu0 %v3251
      %3586 = vmatprep.subr.bf16.mxu0 0
      %3587 = vmatpush1.bf16.msra.mxu0 %v3250
      %3588 = vmatprep.subr.bf16.mxu0 0
      %3589 = vmatpush1.bf16.msra.mxu0 %v3249
      %3590 = vmatprep.subr.bf16.mxu0 0
      %3591 = vmatpush1.bf16.msra.mxu0 %v3248
      %3592 = vmatprep.subr.bf16.mxu0 0
      %3593 = vmatpush1.bf16.msra.mxu0 %v3247
      %3594 = vmatprep.subr.bf16.mxu0 0
      %3595 = vmatpush1.bf16.msra.mxu0 %v3246
      %3596 = vmatprep.subr.bf16.mxu0 0
      %3597 = vmatpush1.bf16.msra.mxu0 %v3245
      %3598 = vmatprep.subr.bf16.mxu0 0
      %3599 = vmatpush1.bf16.msra.mxu0 %v3244
      %3600 = vmatprep.subr.bf16.mxu0 0
      %3601 = vmatpush2.bf16.msra.mxu0 0
      %3602 = vmatprep.subr.bf16.mxu0 0
      %3603 = vmatpush2.bf16.msra.mxu0 0
      %3604 = vmatprep.subr.bf16.mxu0 0
      %3605 = vmatpush2.bf16.msra.mxu0 0
      %3606 = vmatprep.subr.bf16.mxu0 0
      %3607 = vmatpush2.bf16.msra.mxu0 0
      %3608 = vmatprep.subr.bf16.mxu0 0
      %3609 = vmatpush2.bf16.msra.mxu0 0
      %3610 = vmatprep.subr.bf16.mxu0 0
      %3611 = vmatpush2.bf16.msra.mxu0 0
      %3612 = vmatprep.subr.bf16.mxu0 0
      %3613 = vmatpush2.bf16.msra.mxu0 0
      %3614 = vmatprep.subr.bf16.mxu0 0
      %3615 = vmatpush2.bf16.msra.mxu0 0
      %3616 = vmatprep.mubr.bf16.mxu0 0
      %3617 = vmatmul.mubr.bf16.gmra.mxu0 %v2828
      %v3618 = vpop.f32.mrf.mxu0
      %v3619 = vadd.f32 %v3554, %v3618
      %v3620 = vpop.f32.mrf.mxu0
      %v3621 = vpop.f32.mrf.mxu0
      %v3622 = vadd.f32 %v3557, %v3621
      %v3623 = vpop.f32.mrf.mxu0
      %3624 = vmatprep.mubr.bf16.mxu0 0
      %3625 = vmatmul.mubr.bf16.gmra.mxu0 %v2837
      %v3626 = vpop.f32.mrf.mxu0
      %v3627 = vadd.f32 %v3562, %v3626
      %v3628 = vpop.f32.mrf.mxu0
      %v3629 = vpop.f32.mrf.mxu0
      %v3630 = vadd.f32 %v3565, %v3629
      %v3631 = vpop.f32.mrf.mxu0
      %3632 = vmatprep.mubr.bf16.mxu0 0
      %3633 = vmatmul.mubr.bf16.gmra.mxu0 %v2846
      %v3634 = vpop.f32.mrf.mxu0
      %v3635 = vadd.f32 %v3570, %v3634
      %v3636 = vpop.f32.mrf.mxu0
      %v3637 = vpop.f32.mrf.mxu0
      %v3638 = vadd.f32 %v3573, %v3637
      %v3639 = vpop.f32.mrf.mxu0
      %3640 = vmatprep.mubr.bf16.mxu0 0
      %3641 = vmatmul.mubr.bf16.gmra.mxu0 %v2855
      %v3642 = vpop.f32.mrf.mxu0
      %v3643 = vadd.f32 %v3578, %v3642
      %v3644 = vpop.f32.mrf.mxu0
      %v3645 = vpop.f32.mrf.mxu0
      %v3646 = vadd.f32 %v3581, %v3645
      %v3647 = vpop.f32.mrf.mxu0
      %3648 = vdwg.mxu0
      %v3649 = vmax.f32 %v3619, 0.0
      %v3650 = vmax.f32 %v3622, 0.0
      %v3651 = vmax.f32 %v3627, 0.0
      %v3652 = vmax.f32 %v3630, 0.0
      %v3653 = vmax.f32 %v3635, 0.0
      %v3654 = vmax.f32 %v3638, 0.0
      %v3655 = vmax.f32 %v3643, 0.0
      %v3656 = vmax.f32 %v3646, 0.0
      %v3657 = vpack.c.bf16 %v3649, %v3649
      %v3658 = vpack.c.bf16 %v3650, %v3650
      %v3659 = vpack.c.bf16 %v3651, %v3651
      %v3660 = vpack.c.bf16 %v3652, %v3652
      %v3661 = vpack.c.bf16 %v3653, %v3653
      %v3662 = vpack.c.bf16 %v3654, %v3654
      %v3663 = vpack.c.bf16 %v3655, %v3655
      %v3664 = vpack.c.bf16 %v3656, %v3656
      %3665 = vst [vmem:[%s197] sm:$0xf] %v3657
      %3666 = vst [vmem:[%s197 + $0x4] sm:$0xf] %v3658
      %3667 = vst [vmem:[%s197 + $0x8] sm:$0xf] %v3659
      %3668 = vst [vmem:[%s197 + $0xc] sm:$0xf] %v3660
      %3669 = vst [vmem:[%s197 + $0x10] sm:$0xf] %v3661
      %3670 = vst [vmem:[%s197 + $0x14] sm:$0xf] %v3662
      %3671 = vst [vmem:[%s197 + $0x18] sm:$0xf] %v3663
      %3672 = vst [vmem:[%s197 + $0x1c] sm:$0xf] %v3664
      %p3673 = scmp.lt.s32.totalorder %s15, 1
      %s3674 = scalar_select %p3673, %s15, 1
      %s3675 = smul.addr %s3674, 8
      %s3676 = smul.addr %s3675, 4
      %s3677 = scalar_lea.vmem %s4, %s3676
      // Predicated region
      $region37: #{forward.3} parent=35 // pred_check
        %p3678 = pneg %p122
      $region38: #{forward.3} parent=35 // pred_check_branch
        %3680 = sbr.rel (%p3678) target = $region40
      $region39: #{forward.3} parent=35 // pred_region
        _
      $region40: #{forward.3} parent=35 // pred_fallthru
        _
    $region36: #{forward.3} parent=5 // pred_fallthru
      _
    %p3681 = scmp.le.s32.totalorder 2, %s10
    // Predicated region
    $region41: #{forward.3} parent=5 // pred_check
      %p3682 = pneg %p3681
    $region42: #{forward.3} parent=5 // pred_check_branch
      %3684 = sbr.rel (%p3682) target = $region44
    $region43: #{forward.3} parent=5 // pred_region
      %s3685 = ssub.s32 %s10, 2
      // Predicated region
      $region45: #{forward.3} parent=43 // pred_check
        %p3686 = pneg %p128
      $region46: #{forward.3} parent=43 // pred_check_branch
        %3688 = sbr.rel (%p3686) target = $region48
      $region47: #{forward.3} parent=43 // pred_region
        %p3689 = scmp.lt.s32.totalorder %s16, 1
        %s3690 = scalar_select %p3689, %s16, 1
        %s3691 = smul.addr %s3690, 8
        %s3692 = smul.addr %s3691, 4
        %s3693 = scalar_lea.vmem %s4, %s3692
      $region48: #{forward.3} parent=43 // pred_fallthru
        _
    $region44: #{forward.3} parent=5 // pred_fallthru
      _
  $region6: #{forward.3} parent=0 // loop_footer
    %s14 = sadd.s32 1, %s10
  $region7: #{forward.3} parent=0 // loop_footer_branch
    %9 = sbr.rel target = $region3
  $region8: #{forward.3} parent=0 // loop_exit
    _

// kernel: forward.2
$region0: #{forward.2}
  #allocation0 [shape = 'u32[]', space=smem, size = 0x4, offset = 0x4, fixed_abs, tag = 'smem constant byte address 0x4 - core index']
  #allocation1 [shape = 'u32[144,128]{1,0:T(1,128)}', space=vmem, size = 0x12000, scoped, tag = 'internal scratch']
  #allocation2 [shape = 'f32[18,18,128]{2,1,0:T(8,128)}', space=vmem, size = 0x36000, scoped, tag = 'scratch operand']
  #allocation3 [shape = 'f32[18,18,128]{2,1,0:T(8,128)}', space=vmem, size = 0x36000, scoped, tag = 'scratch operand']
  #allocation4 [shape = 'bf16[256,1152]{1,0:T(8,128)(2,1)}', space=vmem, size = 0x90000, scoped, tag = 'scratch operand']
  %s0 = inlined_call_operand.vmem [shape: bf16[2,16,16,64], index: 0, kind: input, shape index: {}]
  %s1 = inlined_call_operand.vmem [shape: bf16[1152,64], index: 1, kind: input, shape index: {}]
  %s2 = inlined_call_operand.vmem [shape: bf16[1152,64], index: 2, kind: input, shape index: {}]
  %s3 = inlined_call_operand.vmem [shape: bf16[2,16,16,64], index: 3, kind: output, shape index: {}]
  %s4 = sld [smem:[#allocation0]]
  $region45: #{forward.2} parent=0
    _
  %s6 = ssub.s32 1, %s4
  %s7 = scalar_select 0, %s6, %s4
  loop: start=0, step=1, limit=4
  $region2: #{forward.2} parent=0 // loop_pre_header
    _
  $region3: #{forward.2} parent=0 // loop_header
    %s9 = sphi 0, %s13
    %p10 = scmp.ge.s32.totalorder %s9, 4
    %s19 = sphi 0, %s21
    %s22 = sphi 0, %s19
    %s23 = sphi 0, %s22
    %s39 = sphi 0, %s23
    %s43 = sphi 0, %s43
    %s45 = sphi 0, %s43
    %s46 = sphi 0, %s45
    %s60 = sphi 0, %s46
    %s64 = sphi 0, %s64
    %s66 = sphi 0, %s64
    %s67 = sphi 0, %s66
    %s81 = sphi 0, %s67
    %s87 = sphi 0, %s89
    %s90 = sphi 0, %s87
    %s91 = sphi 0, %s90
    %s107 = sphi 0, %s91
  $region4: #{forward.2} parent=0 // loop_header_branch
    %12 = sbr.rel (%p10) target = $region8
  $region5: #{forward.2} parent=0 // loop_body
    %s14 = ssub.s32 %s9, 1
    %s15 = ssub.s32 %s9, 2
    %s16 = sadd.s32 %s9, 1
    %s17 = ssub.s32 %s9, %s16
    %p18 = scmp.eq.s32.totalorder %s17, 0
    %s20 = sadd.s32 %s19, 1
    %s21 = scalar_select %p18, %s19, %s20
    %p24 = pneg %p18
    %p25 = scmp.eq.s32.totalorder %s9, 1
    %p26 = por %p24, %p25
    %p27 = scmp.ne.s32.totalorder %s19, %s22
    %p28 = scmp.eq.s32.totalorder %s9, 0
    %p29 = por %p27, %p28
    %p30 = scmp.ne.s32.totalorder %s19, %s22
    %p31 = scmp.eq.s32.totalorder %s14, 1
    %p32 = por %p30, %p31
    %p33 = scmp.ne.s32.totalorder %s22, %s23
    %p34 = scmp.eq.s32.totalorder %s14, 0
    %p35 = por %p33, %p34
    %p36 = scmp.ne.s32.totalorder %s22, %s23
    %p37 = scmp.eq.s32.totalorder %s15, 1
    %p38 = por %p36, %p37
    %p40 = scmp.ne.s32.totalorder %s23, %s39
    %p41 = scmp.eq.s32.totalorder %s15, 0
    %p42 = por %p40, %p41
    %s44 = sadd.s32 %s43, 1
    %p47 = scmp.eq.s32.totalorder %s9, 1
    %p48 = scmp.ne.s32.totalorder %s43, %s45
    %p49 = scmp.eq.s32.totalorder %s9, 0
    %p50 = por %p48, %p49
    %p51 = scmp.ne.s32.totalorder %s43, %s45
    %p52 = scmp.eq.s32.totalorder %s14, 1
    %p53 = por %p51, %p52
    %p54 = scmp.ne.s32.totalorder %s45, %s46
    %p55 = scmp.eq.s32.totalorder %s14, 0
    %p56 = por %p54, %p55
    %p57 = scmp.ne.s32.totalorder %s45, %s46
    %p58 = scmp.eq.s32.totalorder %s15, 1
    %p59 = por %p57, %p58
    %p61 = scmp.ne.s32.totalorder %s46, %s60
    %p62 = scmp.eq.s32.totalorder %s15, 0
    %p63 = por %p61, %p62
    %s65 = sadd.s32 %s64, 1
    %p68 = scmp.eq.s32.totalorder %s9, 1
    %p69 = scmp.ne.s32.totalorder %s64, %s66
    %p70 = scmp.eq.s32.totalorder %s9, 0
    %p71 = por %p69, %p70
    %p72 = scmp.ne.s32.totalorder %s64, %s66
    %p73 = scmp.eq.s32.totalorder %s14, 1
    %p74 = por %p72, %p73
    %p75 = scmp.ne.s32.totalorder %s66, %s67
    %p76 = scmp.eq.s32.totalorder %s14, 0
    %p77 = por %p75, %p76
    %p78 = scmp.ne.s32.totalorder %s66, %s67
    %p79 = scmp.eq.s32.totalorder %s15, 1
    %p80 = por %p78, %p79
    %p82 = scmp.ne.s32.totalorder %s67, %s81
    %p83 = scmp.eq.s32.totalorder %s15, 0
    %p84 = por %p82, %p83
    %s85 = ssub.s32 %s9, %s16
    %p86 = scmp.eq.s32.totalorder %s85, 0
    %s88 = sadd.s32 %s87, 1
    %s89 = scalar_select %p86, %s87, %s88
    %p92 = pneg %p86
    %p93 = scmp.eq.s32.totalorder %s9, 1
    %p94 = por %p92, %p93
    %p95 = scmp.ne.s32.totalorder %s87, %s90
    %p96 = scmp.eq.s32.totalorder %s9, 0
    %p97 = por %p95, %p96
    %p98 = scmp.ne.s32.totalorder %s87, %s90
    %p99 = scmp.eq.s32.totalorder %s14, 1
    %p100 = por %p98, %p99
    %p101 = scmp.ne.s32.totalorder %s90, %s91
    %p102 = scmp.eq.s32.totalorder %s14, 0
    %p103 = por %p101, %p102
    %p104 = scmp.ne.s32.totalorder %s90, %s91
    %p105 = scmp.eq.s32.totalorder %s15, 1
    %p106 = por %p104, %p105
    %p108 = scmp.ne.s32.totalorder %s91, %s107
    %p109 = scmp.eq.s32.totalorder %s15, 0
    %p110 = por %p108, %p109
    %p111 = scmp.le.s32.totalorder 1, %s9
    %p112 = scmp.lt.s32.totalorder %s9, 3
    %p113 = pnand %p111, %p112
    %p114 = pneg %p113
    // Predicated region
    $region9: #{forward.2} parent=5 // pred_check
      _
    $region10: #{forward.2} parent=5 // pred_check_branch
      %116 = sbr.rel (%p113) target = $region12
    $region11: #{forward.2} parent=5 // pred_region
      %s117 = ssub.s32 %s9, 1
      // Predicated region
      $region13: #{forward.2} parent=11 // pred_check
        %p118 = pneg %p56
      $region14: #{forward.2} parent=11 // pred_check_branch
        %120 = sbr.rel (%p118) target = $region16
      $region15: #{forward.2} parent=11 // pred_region
        _
      $region16: #{forward.2} parent=11 // pred_fallthru
        _
      // Predicated region
      $region17: #{forward.2} parent=11 // pred_check
        %p121 = pneg %p77
      $region18: #{forward.2} parent=11 // pred_check_branch
        %123 = sbr.rel (%p121) target = $region20
      $region19: #{forward.2} parent=11 // pred_region
        _
      $region20: #{forward.2} parent=11 // pred_fallthru
        _
    $region12: #{forward.2} parent=5 // pred_fallthru
      _
    %p124 = scmp.lt.s32.totalorder %s9, 2
    // Predicated region
    $region21: #{forward.2} parent=5 // pred_check
      %p125 = pneg %p124
    $region22: #{forward.2} parent=5 // pred_check_branch
      %127 = sbr.rel (%p125) target = $region24
    $region23: #{forward.2} parent=5 // pred_region
      // Predicated region
      $region25: #{forward.2} parent=23 // pred_check
        %p128 = pneg %p29
      $region26: #{forward.2} parent=23 // pred_check_branch
        %130 = sbr.rel (%p128) target = $region28
      $region27: #{forward.2} parent=23 // pred_region
        %p131 = scmp.lt.s32.totalorder %s9, 1
        %s132 = scalar_select %p131, %s9, 1
        %s133 = smul.addr %s132, 32
        %s134 = smul.addr %s133, 4
        %s135 = scalar_lea.vmem %s0, %s134
      $region28: #{forward.2} parent=23 // pred_fallthru
        _
    $region24: #{forward.2} parent=5 // pred_fallthru
      _
    %p136 = scmp.le.s32.totalorder 1, %s9
    %p137 = scmp.lt.s32.totalorder %s9, 3
    %p138 = pnand %p136, %p137
    %p139 = pneg %p138
    // Predicated region
    $region29: #{forward.2} parent=5 // pred_check
      _
    $region30: #{forward.2} parent=5 // pred_check_branch
      %141 = sbr.rel (%p138) target = $region32
    $region31: #{forward.2} parent=5 // pred_region
      %s142 = ssub.s32 %s9, 1
      %p143 = scmp.lt.s32.totalorder %s14, 1
      %s144 = scalar_select %p143, %s14, 1
      %s145 = smul.addr %s144, 32
      %s146 = smul.addr %s145, 4
      %s147 = scalar_lea.vmem %s0, %s146
      %p148 = pneg %p35
      %p149 = pneg %p32
      %p150 = pneg %p56
      %p151 = pneg %p53
      %p152 = pneg %p77
      %p153 = pneg %p74
      %p154 = pneg %p103
      %p155 = pneg %p100
      %p156 = scmp.lt.s32.totalorder %s14, 1
      %s157 = scalar_select %p156, %s14, 1
      %s158 = smul.addr %s157, 32
      %s159 = smul.addr %s158, 4
      %s160 = scalar_lea.vmem %s3, %s159
      %p161 = scmp.lt.s32.totalorder %s14, 1
      %s162 = scalar_select %p161, %s14, 1
      %s163 = smul.addr %s162, 32
      %s164 = smul.addr %s163, 4
      %s165 = scalar_lea.vmem %s0, %s164
      %p166 = scmp.lt.s32.totalorder %s14, 1
      %s167 = scalar_select %p166, %s14, 1
      %s168 = smul.addr %s167, 32
      %s169 = smul.addr %s168, 4
      %s170 = scalar_lea.vmem %s3, %s169
      %172 = vst [vmem:[#allocation2] sm:$0xff] 0.0
      %173 = vst [vmem:[#allocation2 + $0x8] sm:$0xff] 0.0
      %174 = vst [vmem:[#allocation2 + $0x10] sm:$0x3] 0.0
      %175 = vst [vmem:[#allocation2 + $0x18] sm:$0xff] 0.0
      %176 = vst [vmem:[#allocation2 + $0x20] sm:$0xff] 0.0
      %177 = vst [vmem:[#allocation2 + $0x28] sm:$0x3] 0.0
      %178 = vst [vmem:[#allocation2 + $0x30] sm:$0xff] 0.0
      %179 = vst [vmem:[#allocation2 + $0x38] sm:$0xff] 0.0
      %180 = vst [vmem:[#allocation2 + $0x40] sm:$0x3] 0.0
      %181 = vst [vmem:[#allocation2 + $0x48] sm:$0xff] 0.0
      %182 = vst [vmem:[#allocation2 + $0x50] sm:$0xff] 0.0
      %183 = vst [vmem:[#allocation2 + $0x58] sm:$0x3] 0.0
      %184 = vst [vmem:[#allocation2 + $0x60] sm:$0xff] 0.0
      %185 = vst [vmem:[#allocation2 + $0x68] sm:$0xff] 0.0
      %186 = vst [vmem:[#allocation2 + $0x70] sm:$0x3] 0.0
      %187 = vst [vmem:[#allocation2 + $0x78] sm:$0xff] 0.0
      %188 = vst [vmem:[#allocation2 + $0x80] sm:$0xff] 0.0
      %189 = vst [vmem:[#allocation2 + $0x88] sm:$0x3] 0.0
      %190 = vst [vmem:[#allocation2 + $0x90] sm:$0xff] 0.0
      %191 = vst [vmem:[#allocation2 + $0x98] sm:$0xff] 0.0
      %192 = vst [vmem:[#allocation2 + $0xa0] sm:$0x3] 0.0
      %193 = vst [vmem:[#allocation2 + $0xa8] sm:$0xff] 0.0
      %194 = vst [vmem:[#allocation2 + $0xb0] sm:$0xff] 0.0
      %195 = vst [vmem:[#allocation2 + $0xb8] sm:$0x3] 0.0
      %196 = vst [vmem:[#allocation2 + $0xc0] sm:$0xff] 0.0
      %197 = vst [vmem:[#allocation2 + $0xc8] sm:$0xff] 0.0
      %198 = vst [vmem:[#allocation2 + $0xd0] sm:$0x3] 0.0
      %199 = vst [vmem:[#allocation2 + $0xd8] sm:$0xff] 0.0
      %200 = vst [vmem:[#allocation2 + $0xe0] sm:$0xff] 0.0
      %201 = vst [vmem:[#allocation2 + $0xe8] sm:$0x3] 0.0
      %202 = vst [vmem:[#allocation2 + $0xf0] sm:$0xff] 0.0
      %203 = vst [vmem:[#allocation2 + $0xf8] sm:$0xff] 0.0
      %204 = vst [vmem:[#allocation2 + $0x100] sm:$0x3] 0.0
      %205 = vst [vmem:[#allocation2 + $0x108] sm:$0xff] 0.0
      %206 = vst [vmem:[#allocation2 + $0x110] sm:$0xff] 0.0
      %207 = vst [vmem:[#allocation2 + $0x118] sm:$0x3] 0.0
      %208 = vst [vmem:[#allocation2 + $0x120] sm:$0xff] 0.0
      %209 = vst [vmem:[#allocation2 + $0x128] sm:$0xff] 0.0
      %210 = vst [vmem:[#allocation2 + $0x130] sm:$0x3] 0.0
      %211 = vst [vmem:[#allocation2 + $0x138] sm:$0xff] 0.0
      %212 = vst [vmem:[#allocation2 + $0x140] sm:$0xff] 0.0
      %213 = vst [vmem:[#allocation2 + $0x148] sm:$0x3] 0.0
      %214 = vst [vmem:[#allocation2 + $0x150] sm:$0xff] 0.0
      %215 = vst [vmem:[#allocation2 + $0x158] sm:$0xff] 0.0
      %216 = vst [vmem:[#allocation2 + $0x160] sm:$0x3] 0.0
      %217 = vst [vmem:[#allocation2 + $0x168] sm:$0xff] 0.0
      %218 = vst [vmem:[#allocation2 + $0x170] sm:$0xff] 0.0
      %219 = vst [vmem:[#allocation2 + $0x178] sm:$0x3] 0.0
      %220 = vst [vmem:[#allocation2 + $0x180] sm:$0xff] 0.0
      %221 = vst [vmem:[#allocation2 + $0x188] sm:$0xff] 0.0
      %222 = vst [vmem:[#allocation2 + $0x190] sm:$0x3] 0.0
      %223 = vst [vmem:[#allocation2 + $0x198] sm:$0xff] 0.0
      %224 = vst [vmem:[#allocation2 + $0x1a0] sm:$0xff] 0.0
      %225 = vst [vmem:[#allocation2 + $0x1a8] sm:$0x3] 0.0
      %v226 = vld [vmem:[%s165] sm:$0xf]
      %v227 = vld [vmem:[%s165 + $0x4] sm:$0xf]
      %v228 = vld [vmem:[%s165 + $0x8] sm:$0xf]
      %v229 = vld [vmem:[%s165 + $0xc] sm:$0xf]
      %v230 = vld [vmem:[%s165 + $0x10] sm:$0xf]
      %v231 = vld [vmem:[%s165 + $0x14] sm:$0xf]
      %v232 = vld [vmem:[%s165 + $0x18] sm:$0xf]
      %v233 = vld [vmem:[%s165 + $0x1c] sm:$0xf]
      %v234 = vld [vmem:[%s165 + $0x20] sm:$0xf]
      %v235 = vld [vmem:[%s165 + $0x24] sm:$0xf]
      %v236 = vld [vmem:[%s165 + $0x28] sm:$0xf]
      %v237 = vld [vmem:[%s165 + $0x2c] sm:$0xf]
      %v238 = vld [vmem:[%s165 + $0x30] sm:$0xf]
      %v239 = vld [vmem:[%s165 + $0x34] sm:$0xf]
      %v240 = vld [vmem:[%s165 + $0x38] sm:$0xf]
      %v241 = vld [vmem:[%s165 + $0x3c] sm:$0xf]
      %v242 = vld [vmem:[%s165 + $0x40] sm:$0xf]
      %v243 = vld [vmem:[%s165 + $0x44] sm:$0xf]
      %v244 = vld [vmem:[%s165 + $0x48] sm:$0xf]
      %v245 = vld [vmem:[%s165 + $0x4c] sm:$0xf]
      %v246 = vld [vmem:[%s165 + $0x50] sm:$0xf]
      %v247 = vld [vmem:[%s165 + $0x54] sm:$0xf]
      %v248 = vld [vmem:[%s165 + $0x58] sm:$0xf]
      %v249 = vld [vmem:[%s165 + $0x5c] sm:$0xf]
      %v250 = vld [vmem:[%s165 + $0x60] sm:$0xf]
      %v251 = vld [vmem:[%s165 + $0x64] sm:$0xf]
      %v252 = vld [vmem:[%s165 + $0x68] sm:$0xf]
      %v253 = vld [vmem:[%s165 + $0x6c] sm:$0xf]
      %v254 = vld [vmem:[%s165 + $0x70] sm:$0xf]
      %v255 = vld [vmem:[%s165 + $0x74] sm:$0xf]
      %v256 = vld [vmem:[%s165 + $0x78] sm:$0xf]
      %v257 = vld [vmem:[%s165 + $0x7c] sm:$0xf]
      %v258 = vunpack.c.l.bf16 %v226
      %v259 = vunpack.c.l.bf16 %v227
      %v260 = vunpack.c.l.bf16 %v228
      %v261 = vunpack.c.l.bf16 %v229
      %v262 = vunpack.c.l.bf16 %v230
      %v263 = vunpack.c.l.bf16 %v231
      %v264 = vunpack.c.l.bf16 %v232
      %v265 = vunpack.c.l.bf16 %v233
      %v266 = vunpack.c.l.bf16 %v234
      %v267 = vunpack.c.l.bf16 %v235
      %v268 = vunpack.c.l.bf16 %v236
      %v269 = vunpack.c.l.bf16 %v237
      %v270 = vunpack.c.l.bf16 %v238
      %v271 = vunpack.c.l.bf16 %v239
      %v272 = vunpack.c.l.bf16 %v240
      %v273 = vunpack.c.l.bf16 %v241
      %v274 = vunpack.c.l.bf16 %v242
      %v275 = vunpack.c.l.bf16 %v243
      %v276 = vunpack.c.l.bf16 %v244
      %v277 = vunpack.c.l.bf16 %v245
      %v278 = vunpack.c.l.bf16 %v246
      %v279 = vunpack.c.l.bf16 %v247
      %v280 = vunpack.c.l.bf16 %v248
      %v281 = vunpack.c.l.bf16 %v249
      %v282 = vunpack.c.l.bf16 %v250
      %v283 = vunpack.c.l.bf16 %v251
      %v284 = vunpack.c.l.bf16 %v252
      %v285 = vunpack.c.l.bf16 %v253
      %v286 = vunpack.c.l.bf16 %v254
      %v287 = vunpack.c.l.bf16 %v255
      %v288 = vunpack.c.l.bf16 %v256
      %v289 = vunpack.c.l.bf16 %v257
      %s290 = scalar_lea.vmem [#allocation2], 24
      %vm291 = vcmask 523264
      %292 = vst.msk [vmem:[%s290 + $0x1] sm:$0xff] %vm291, %v258
      %293 = vst.msk [vmem:[%s290 + $0x9] sm:$0xff] %vm291, %v259
      %294 = vst.msk [vmem:[%s290 + $0x19] sm:$0xff] %vm291, %v260
      %295 = vst.msk [vmem:[%s290 + $0x21] sm:$0xff] %vm291, %v261
      %296 = vst.msk [vmem:[%s290 + $0x31] sm:$0xff] %vm291, %v262
      %297 = vst.msk [vmem:[%s290 + $0x39] sm:$0xff] %vm291, %v263
      %298 = vst.msk [vmem:[%s290 + $0x49] sm:$0xff] %vm291, %v264
      %299 = vst.msk [vmem:[%s290 + $0x51] sm:$0xff] %vm291, %v265
      %300 = vst.msk [vmem:[%s290 + $0x61] sm:$0xff] %vm291, %v266
      %301 = vst.msk [vmem:[%s290 + $0x69] sm:$0xff] %vm291, %v267
      %302 = vst.msk [vmem:[%s290 + $0x79] sm:$0xff] %vm291, %v268
      %303 = vst.msk [vmem:[%s290 + $0x81] sm:$0xff] %vm291, %v269
      %304 = vst.msk [vmem:[%s290 + $0x91] sm:$0xff] %vm291, %v270
      %305 = vst.msk [vmem:[%s290 + $0x99] sm:$0xff] %vm291, %v271
      %306 = vst.msk [vmem:[%s290 + $0xa9] sm:$0xff] %vm291, %v272
      %307 = vst.msk [vmem:[%s290 + $0xb1] sm:$0xff] %vm291, %v273
      %308 = vst.msk [vmem:[%s290 + $0xc1] sm:$0xff] %vm291, %v274
      %309 = vst.msk [vmem:[%s290 + $0xc9] sm:$0xff] %vm291, %v275
      %310 = vst.msk [vmem:[%s290 + $0xd9] sm:$0xff] %vm291, %v276
      %311 = vst.msk [vmem:[%s290 + $0xe1] sm:$0xff] %vm291, %v277
      %312 = vst.msk [vmem:[%s290 + $0xf1] sm:$0xff] %vm291, %v278
      %313 = vst.msk [vmem:[%s290 + $0xf9] sm:$0xff] %vm291, %v279
      %314 = vst.msk [vmem:[%s290 + $0x109] sm:$0xff] %vm291, %v280
      %315 = vst.msk [vmem:[%s290 + $0x111] sm:$0xff] %vm291, %v281
      %316 = vst.msk [vmem:[%s290 + $0x121] sm:$0xff] %vm291, %v282
      %317 = vst.msk [vmem:[%s290 + $0x129] sm:$0xff] %vm291, %v283
      %318 = vst.msk [vmem:[%s290 + $0x139] sm:$0xff] %vm291, %v284
      %319 = vst.msk [vmem:[%s290 + $0x141] sm:$0xff] %vm291, %v285
      %320 = vst.msk [vmem:[%s290 + $0x151] sm:$0xff] %vm291, %v286
      %321 = vst.msk [vmem:[%s290 + $0x159] sm:$0xff] %vm291, %v287
      %322 = vst.msk [vmem:[%s290 + $0x169] sm:$0xff] %vm291, %v288
      %323 = vst.msk [vmem:[%s290 + $0x171] sm:$0xff] %vm291, %v289
      %v324 = vld [vmem:[#allocation2] sm:$0xff]
      %v325 = vld [vmem:[#allocation2 + $0x8] sm:$0xff]
      %v326 = vld [vmem:[#allocation2 + $0x18] sm:$0xff]
      %v327 = vld [vmem:[#allocation2 + $0x20] sm:$0xff]
      %v328 = vld [vmem:[#allocation2 + $0x30] sm:$0xff]
      %v329 = vld [vmem:[#allocation2 + $0x38] sm:$0xff]
      %v330 = vld [vmem:[#allocation2 + $0x48] sm:$0xff]
      %v331 = vld [vmem:[#allocation2 + $0x50] sm:$0xff]
      %v332 = vld [vmem:[#allocation2 + $0x60] sm:$0xff]
      %v333 = vld [vmem:[#allocation2 + $0x68] sm:$0xff]
      %v334 = vld [vmem:[#allocation2 + $0x78] sm:$0xff]
      %v335 = vld [vmem:[#allocation2 + $0x80] sm:$0xff]
      %v336 = vld [vmem:[#allocation2 + $0x90] sm:$0xff]
      %v337 = vld [vmem:[#allocation2 + $0x98] sm:$0xff]
      %v338 = vld [vmem:[#allocation2 + $0xa8] sm:$0xff]
      %v339 = vld [vmem:[#allocation2 + $0xb0] sm:$0xff]
      %v340 = vld [vmem:[#allocation2 + $0xc0] sm:$0xff]
      %v341 = vld [vmem:[#allocation2 + $0xc8] sm:$0xff]
      %v342 = vld [vmem:[#allocation2 + $0xd8] sm:$0xff]
      %v343 = vld [vmem:[#allocation2 + $0xe0] sm:$0xff]
      %v344 = vld [vmem:[#allocation2 + $0xf0] sm:$0xff]
      %v345 = vld [vmem:[#allocation2 + $0xf8] sm:$0xff]
      %v346 = vld [vmem:[#allocation2 + $0x108] sm:$0xff]
      %v347 = vld [vmem:[#allocation2 + $0x110] sm:$0xff]
      %v348 = vld [vmem:[#allocation2 + $0x120] sm:$0xff]
      %v349 = vld [vmem:[#allocation2 + $0x128] sm:$0xff]
      %v350 = vld [vmem:[#allocation2 + $0x138] sm:$0xff]
      %v351 = vld [vmem:[#allocation2 + $0x140] sm:$0xff]
      %v352 = vld [vmem:[#allocation2 + $0x150] sm:$0xff]
      %v353 = vld [vmem:[#allocation2 + $0x158] sm:$0xff]
      %v354 = vld [vmem:[#allocation2 + $0x168] sm:$0xff]
      %v355 = vld [vmem:[#allocation2 + $0x170] sm:$0xff]
      %v356 = vpack.c.bf16 %v325, %v324
      %v357 = vpack.c.bf16 %v327, %v326
      %v358 = vpack.c.bf16 %v329, %v328
      %v359 = vpack.c.bf16 %v331, %v330
      %v360 = vpack.c.bf16 %v333, %v332
      %v361 = vpack.c.bf16 %v335, %v334
      %v362 = vpack.c.bf16 %v337, %v336
      %v363 = vpack.c.bf16 %v339, %v338
      %v364 = vpack.c.bf16 %v341, %v340
      %v365 = vpack.c.bf16 %v343, %v342
      %v366 = vpack.c.bf16 %v345, %v344
      %v367 = vpack.c.bf16 %v347, %v346
      %v368 = vpack.c.bf16 %v349, %v348
      %v369 = vpack.c.bf16 %v351, %v350
      %v370 = vpack.c.bf16 %v353, %v352
      %v371 = vpack.c.bf16 %v355, %v354
      %v388 = vunpack.c.l.b16 %v356
      %v389 = vunpack.c.h.b16 %v356
      %v390 = vunpack.c.l.b16 %v357
      %v391 = vunpack.c.h.b16 %v357
      %v392 = vunpack.c.l.b16 %v358
      %v393 = vunpack.c.h.b16 %v358
      %v394 = vunpack.c.l.b16 %v359
      %v395 = vunpack.c.h.b16 %v359
      %v396 = vunpack.c.l.b16 %v360
      %v397 = vunpack.c.h.b16 %v360
      %v398 = vunpack.c.l.b16 %v361
      %v399 = vunpack.c.h.b16 %v361
      %v400 = vunpack.c.l.b16 %v362
      %v401 = vunpack.c.h.b16 %v362
      %v402 = vunpack.c.l.b16 %v363
      %v403 = vunpack.c.h.b16 %v363
      %v404 = vunpack.c.l.b16 %v364
      %v405 = vunpack.c.h.b16 %v364
      %v406 = vunpack.c.l.b16 %v365
      %v407 = vunpack.c.h.b16 %v365
      %v408 = vunpack.c.l.b16 %v366
      %v409 = vunpack.c.h.b16 %v366
      %v410 = vunpack.c.l.b16 %v367
      %v411 = vunpack.c.h.b16 %v367
      %v412 = vunpack.c.l.b16 %v368
      %v413 = vunpack.c.h.b16 %v368
      %v414 = vunpack.c.l.b16 %v369
      %v415 = vunpack.c.h.b16 %v369
      %v416 = vunpack.c.l.b16 %v370
      %v417 = vunpack.c.h.b16 %v370
      %v418 = vunpack.c.l.b16 %v371
      %v419 = vunpack.c.h.b16 %v371
      %v420 = vpack.c.b16 %v388, %v388
      %v421 = vpack.c.b16 %v389, %v389
      %v422 = vpack.c.b16 %v390, %v390
      %v423 = vpack.c.b16 %v391, %v391
      %v424 = vpack.c.b16 %v392, %v392
      %v425 = vpack.c.b16 %v393, %v393
      %v426 = vpack.c.b16 %v394, %v394
      %v427 = vpack.c.b16 %v395, %v395
      %v428 = vpack.c.b16 %v396, %v396
      %v429 = vpack.c.b16 %v397, %v397
      %v430 = vpack.c.b16 %v398, %v398
      %v431 = vpack.c.b16 %v399, %v399
      %v432 = vpack.c.b16 %v400, %v400
      %v433 = vpack.c.b16 %v401, %v401
      %v434 = vpack.c.b16 %v402, %v402
      %v435 = vpack.c.b16 %v403, %v403
      %v436 = vpack.c.b16 %v404, %v404
      %v437 = vpack.c.b16 %v405, %v405
      %v438 = vpack.c.b16 %v406, %v406
      %v439 = vpack.c.b16 %v407, %v407
      %v440 = vpack.c.b16 %v408, %v408
      %v441 = vpack.c.b16 %v409, %v409
      %v442 = vpack.c.b16 %v410, %v410
      %v443 = vpack.c.b16 %v411, %v411
      %v444 = vpack.c.b16 %v412, %v412
      %v445 = vpack.c.b16 %v413, %v413
      %v446 = vpack.c.b16 %v414, %v414
      %v447 = vpack.c.b16 %v415, %v415
      %v448 = vpack.c.b16 %v416, %v416
      %v449 = vpack.c.b16 %v417, %v417
      %v450 = vpack.c.b16 %v418, %v418
      %v451 = vpack.c.b16 %v419, %v419
      %484 = vst [vmem:[#allocation4] sm:$0xf] %v420
      %485 = vst [vmem:[#allocation4 + $0x24] sm:$0xf] %v421
      %486 = vst [vmem:[#allocation4 + $0x48] sm:$0xf] %v422
      %487 = vst [vmem:[#allocation4 + $0x6c] sm:$0xf] %v423
      %488 = vst [vmem:[#allocation4 + $0x90] sm:$0xf] %v424
      %489 = vst [vmem:[#allocation4 + $0xb4] sm:$0xf] %v425
      %490 = vst [vmem:[#allocation4 + $0xd8] sm:$0xf] %v426
      %491 = vst [vmem:[#allocation4 + $0xfc] sm:$0xf] %v427
      %492 = vst [vmem:[#allocation4 + $0x120] sm:$0xf] %v428
      %493 = vst [vmem:[#allocation4 + $0x144] sm:$0xf] %v429
      %494 = vst [vmem:[#allocation4 + $0x168] sm:$0xf] %v430
      %495 = vst [vmem:[#allocation4 + $0x18c] sm:$0xf] %v431
      %496 = vst [vmem:[#allocation4 + $0x1b0] sm:$0xf] %v432
      %497 = vst [vmem:[#allocation4 + $0x1d4] sm:$0xf] %v433
      %498 = vst [vmem:[#allocation4 + $0x1f8] sm:$0xf] %v434
      %499 = vst [vmem:[#allocation4 + $0x21c] sm:$0xf] %v435
      %500 = vst [vmem:[#allocation4 + $0x240] sm:$0xf] %v436
      %501 = vst [vmem:[#allocation4 + $0x264] sm:$0xf] %v437
      %502 = vst [vmem:[#allocation4 + $0x288] sm:$0xf] %v438
      %503 = vst [vmem:[#allocation4 + $0x2ac] sm:$0xf] %v439
      %504 = vst [vmem:[#allocation4 + $0x2d0] sm:$0xf] %v440
      %505 = vst [vmem:[#allocation4 + $0x2f4] sm:$0xf] %v441
      %506 = vst [vmem:[#allocation4 + $0x318] sm:$0xf] %v442
      %507 = vst [vmem:[#allocation4 + $0x33c] sm:$0xf] %v443
      %508 = vst [vmem:[#allocation4 + $0x360] sm:$0xf] %v444
      %509 = vst [vmem:[#allocation4 + $0x384] sm:$0xf] %v445
      %510 = vst [vmem:[#allocation4 + $0x3a8] sm:$0xf] %v446
      %511 = vst [vmem:[#allocation4 + $0x3cc] sm:$0xf] %v447
      %512 = vst [vmem:[#allocation4 + $0x3f0] sm:$0xf] %v448
      %513 = vst [vmem:[#allocation4 + $0x414] sm:$0xf] %v449
      %514 = vst [vmem:[#allocation4 + $0x438] sm:$0xf] %v450
      %515 = vst [vmem:[#allocation4 + $0x45c] sm:$0xf] %v451
      %v516 = vld [vmem:[#allocation2 + $0x1] sm:$0xff]
      %v517 = vld [vmem:[#allocation2 + $0x9] sm:$0xff]
      %v518 = vld [vmem:[#allocation2 + $0x19] sm:$0xff]
      %v519 = vld [vmem:[#allocation2 + $0x21] sm:$0xff]
      %v520 = vld [vmem:[#allocation2 + $0x31] sm:$0xff]
      %v521 = vld [vmem:[#allocation2 + $0x39] sm:$0xff]
      %v522 = vld [vmem:[#allocation2 + $0x49] sm:$0xff]
      %v523 = vld [vmem:[#allocation2 + $0x51] sm:$0xff]
      %v524 = vld [vmem:[#allocation2 + $0x61] sm:$0xff]
      %v525 = vld [vmem:[#allocation2 + $0x69] sm:$0xff]
      %v526 = vld [vmem:[#allocation2 + $0x79] sm:$0xff]
      %v527 = vld [vmem:[#allocation2 + $0x81] sm:$0xff]
      %v528 = vld [vmem:[#allocation2 + $0x91] sm:$0xff]
      %v529 = vld [vmem:[#allocation2 + $0x99] sm:$0xff]
      %v530 = vld [vmem:[#allocation2 + $0xa9] sm:$0xff]
      %v531 = vld [vmem:[#allocation2 + $0xb1] sm:$0xff]
      %v532 = vld [vmem:[#allocation2 + $0xc1] sm:$0xff]
      %v533 = vld [vmem:[#allocation2 + $0xc9] sm:$0xff]
      %v534 = vld [vmem:[#allocation2 + $0xd9] sm:$0xff]
      %v535 = vld [vmem:[#allocation2 + $0xe1] sm:$0xff]
      %v536 = vld [vmem:[#allocation2 + $0xf1] sm:$0xff]
      %v537 = vld [vmem:[#allocation2 + $0xf9] sm:$0xff]
      %v538 = vld [vmem:[#allocation2 + $0x109] sm:$0xff]
      %v539 = vld [vmem:[#allocation2 + $0x111] sm:$0xff]
      %v540 = vld [vmem:[#allocation2 + $0x121] sm:$0xff]
      %v541 = vld [vmem:[#allocation2 + $0x129] sm:$0xff]
      %v542 = vld [vmem:[#allocation2 + $0x139] sm:$0xff]
      %v543 = vld [vmem:[#allocation2 + $0x141] sm:$0xff]
      %v544 = vld [vmem:[#allocation2 + $0x151] sm:$0xff]
      %v545 = vld [vmem:[#allocation2 + $0x159] sm:$0xff]
      %v546 = vld [vmem:[#allocation2 + $0x169] sm:$0xff]
      %v547 = vld [vmem:[#allocation2 + $0x171] sm:$0xff]
      %v548 = vpack.c.bf16 %v517, %v516
      %v549 = vpack.c.bf16 %v519, %v518
      %v550 = vpack.c.bf16 %v521, %v520
      %v551 = vpack.c.bf16 %v523, %v522
      %v552 = vpack.c.bf16 %v525, %v524
      %v553 = vpack.c.bf16 %v527, %v526
      %v554 = vpack.c.bf16 %v529, %v528
      %v555 = vpack.c.bf16 %v531, %v530
      %v556 = vpack.c.bf16 %v533, %v532
      %v557 = vpack.c.bf16 %v535, %v534
      %v558 = vpack.c.bf16 %v537, %v536
      %v559 = vpack.c.bf16 %v539, %v538
      %v560 = vpack.c.bf16 %v541, %v540
      %v561 = vpack.c.bf16 %v543, %v542
      %v562 = vpack.c.bf16 %v545, %v544
      %v563 = vpack.c.bf16 %v547, %v546
      %v580 = vunpack.c.l.b16 %v548
      %v581 = vunpack.c.h.b16 %v548
      %v582 = vunpack.c.l.b16 %v549
      %v583 = vunpack.c.h.b16 %v549
      %v584 = vunpack.c.l.b16 %v550
      %v585 = vunpack.c.h.b16 %v550
      %v586 = vunpack.c.l.b16 %v551
      %v587 = vunpack.c.h.b16 %v551
      %v588 = vunpack.c.l.b16 %v552
      %v589 = vunpack.c.h.b16 %v552
      %v590 = vunpack.c.l.b16 %v553
      %v591 = vunpack.c.h.b16 %v553
      %v592 = vunpack.c.l.b16 %v554
      %v593 = vunpack.c.h.b16 %v554
      %v594 = vunpack.c.l.b16 %v555
      %v595 = vunpack.c.h.b16 %v555
      %v596 = vunpack.c.l.b16 %v556
      %v597 = vunpack.c.h.b16 %v556
      %v598 = vunpack.c.l.b16 %v557
      %v599 = vunpack.c.h.b16 %v557
      %v600 = vunpack.c.l.b16 %v558
      %v601 = vunpack.c.h.b16 %v558
      %v602 = vunpack.c.l.b16 %v559
      %v603 = vunpack.c.h.b16 %v559
      %v604 = vunpack.c.l.b16 %v560
      %v605 = vunpack.c.h.b16 %v560
      %v606 = vunpack.c.l.b16 %v561
      %v607 = vunpack.c.h.b16 %v561
      %v608 = vunpack.c.l.b16 %v562
      %v609 = vunpack.c.h.b16 %v562
      %v610 = vunpack.c.l.b16 %v563
      %v611 = vunpack.c.h.b16 %v563
      %v612 = vpack.c.b16 %v580, %v580
      %v613 = vpack.c.b16 %v581, %v581
      %v614 = vpack.c.b16 %v582, %v582
      %v615 = vpack.c.b16 %v583, %v583
      %v616 = vpack.c.b16 %v584, %v584
      %v617 = vpack.c.b16 %v585, %v585
      %v618 = vpack.c.b16 %v586, %v586
      %v619 = vpack.c.b16 %v587, %v587
      %v620 = vpack.c.b16 %v588, %v588
      %v621 = vpack.c.b16 %v589, %v589
      %v622 = vpack.c.b16 %v590, %v590
      %v623 = vpack.c.b16 %v591, %v591
      %v624 = vpack.c.b16 %v592, %v592
      %v625 = vpack.c.b16 %v593, %v593
      %v626 = vpack.c.b16 %v594, %v594
      %v627 = vpack.c.b16 %v595, %v595
      %v628 = vpack.c.b16 %v596, %v596
      %v629 = vpack.c.b16 %v597, %v597
      %v630 = vpack.c.b16 %v598, %v598
      %v631 = vpack.c.b16 %v599, %v599
      %v632 = vpack.c.b16 %v600, %v600
      %v633 = vpack.c.b16 %v601, %v601
      %v634 = vpack.c.b16 %v602, %v602
      %v635 = vpack.c.b16 %v603, %v603
      %v636 = vpack.c.b16 %v604, %v604
      %v637 = vpack.c.b16 %v605, %v605
      %v638 = vpack.c.b16 %v606, %v606
      %v639 = vpack.c.b16 %v607, %v607
      %v640 = vpack.c.b16 %v608, %v608
      %v641 = vpack.c.b16 %v609, %v609
      %v642 = vpack.c.b16 %v610, %v610
      %v643 = vpack.c.b16 %v611, %v611
      %676 = vst [vmem:[#allocation4 + $0x4] sm:$0xf] %v612
      %677 = vst [vmem:[#allocation4 + $0x28] sm:$0xf] %v613
      %678 = vst [vmem:[#allocation4 + $0x4c] sm:$0xf] %v614
      %679 = vst [vmem:[#allocation4 + $0x70] sm:$0xf] %v615
      %680 = vst [vmem:[#allocation4 + $0x94] sm:$0xf] %v616
      %681 = vst [vmem:[#allocation4 + $0xb8] sm:$0xf] %v617
      %682 = vst [vmem:[#allocation4 + $0xdc] sm:$0xf] %v618
      %683 = vst [vmem:[#allocation4 + $0x100] sm:$0xf] %v619
      %684 = vst [vmem:[#allocation4 + $0x124] sm:$0xf] %v620
      %685 = vst [vmem:[#allocation4 + $0x148] sm:$0xf] %v621
      %686 = vst [vmem:[#allocation4 + $0x16c] sm:$0xf] %v622
      %687 = vst [vmem:[#allocation4 + $0x190] sm:$0xf] %v623
      %688 = vst [vmem:[#allocation4 + $0x1b4] sm:$0xf] %v624
      %689 = vst [vmem:[#allocation4 + $0x1d8] sm:$0xf] %v625
      %690 = vst [vmem:[#allocation4 + $0x1fc] sm:$0xf] %v626
      %691 = vst [vmem:[#allocation4 + $0x220] sm:$0xf] %v627
      %692 = vst [vmem:[#allocation4 + $0x244] sm:$0xf] %v628
      %693 = vst [vmem:[#allocation4 + $0x268] sm:$0xf] %v629
      %694 = vst [vmem:[#allocation4 + $0x28c] sm:$0xf] %v630
      %695 = vst [vmem:[#allocation4 + $0x2b0] sm:$0xf] %v631
      %696 = vst [vmem:[#allocation4 + $0x2d4] sm:$0xf] %v632
      %697 = vst [vmem:[#allocation4 + $0x2f8] sm:$0xf] %v633
      %698 = vst [vmem:[#allocation4 + $0x31c] sm:$0xf] %v634
      %699 = vst [vmem:[#allocation4 + $0x340] sm:$0xf] %v635
      %700 = vst [vmem:[#allocation4 + $0x364] sm:$0xf] %v636
      %701 = vst [vmem:[#allocation4 + $0x388] sm:$0xf] %v637
      %702 = vst [vmem:[#allocation4 + $0x3ac] sm:$0xf] %v638
      %703 = vst [vmem:[#allocation4 + $0x3d0] sm:$0xf] %v639
      %704 = vst [vmem:[#allocation4 + $0x3f4] sm:$0xf] %v640
      %705 = vst [vmem:[#allocation4 + $0x418] sm:$0xf] %v641
      %706 = vst [vmem:[#allocation4 + $0x43c] sm:$0xf] %v642
      %707 = vst [vmem:[#allocation4 + $0x460] sm:$0xf] %v643
      %v708 = vld [vmem:[#allocation2 + $0x2] sm:$0xff]
      %v709 = vld [vmem:[#allocation2 + $0xa] sm:$0xff]
      %v710 = vld [vmem:[#allocation2 + $0x1a] sm:$0xff]
      %v711 = vld [vmem:[#allocation2 + $0x22] sm:$0xff]
      %v712 = vld [vmem:[#allocation2 + $0x32] sm:$0xff]
      %v713 = vld [vmem:[#allocation2 + $0x3a] sm:$0xff]
      %v714 = vld [vmem:[#allocation2 + $0x4a] sm:$0xff]
      %v715 = vld [vmem:[#allocation2 + $0x52] sm:$0xff]
      %v716 = vld [vmem:[#allocation2 + $0x62] sm:$0xff]
      %v717 = vld [vmem:[#allocation2 + $0x6a] sm:$0xff]
      %v718 = vld [vmem:[#allocation2 + $0x7a] sm:$0xff]
      %v719 = vld [vmem:[#allocation2 + $0x82] sm:$0xff]
      %v720 = vld [vmem:[#allocation2 + $0x92] sm:$0xff]
      %v721 = vld [vmem:[#allocation2 + $0x9a] sm:$0xff]
      %v722 = vld [vmem:[#allocation2 + $0xaa] sm:$0xff]
      %v723 = vld [vmem:[#allocation2 + $0xb2] sm:$0xff]
      %v724 = vld [vmem:[#allocation2 + $0xc2] sm:$0xff]
      %v725 = vld [vmem:[#allocation2 + $0xca] sm:$0xff]
      %v726 = vld [vmem:[#allocation2 + $0xda] sm:$0xff]
      %v727 = vld [vmem:[#allocation2 + $0xe2] sm:$0xff]
      %v728 = vld [vmem:[#allocation2 + $0xf2] sm:$0xff]
      %v729 = vld [vmem:[#allocation2 + $0xfa] sm:$0xff]
      %v730 = vld [vmem:[#allocation2 + $0x10a] sm:$0xff]
      %v731 = vld [vmem:[#allocation2 + $0x112] sm:$0xff]
      %v732 = vld [vmem:[#allocation2 + $0x122] sm:$0xff]
      %v733 = vld [vmem:[#allocation2 + $0x12a] sm:$0xff]
      %v734 = vld [vmem:[#allocation2 + $0x13a] sm:$0xff]
      %v735 = vld [vmem:[#allocation2 + $0x142] sm:$0xff]
      %v736 = vld [vmem:[#allocation2 + $0x152] sm:$0xff]
      %v737 = vld [vmem:[#allocation2 + $0x15a] sm:$0xff]
      %v738 = vld [vmem:[#allocation2 + $0x16a] sm:$0xff]
      %v739 = vld [vmem:[#allocation2 + $0x172] sm:$0xff]
      %v740 = vpack.c.bf16 %v709, %v708
      %v741 = vpack.c.bf16 %v711, %v710
      %v742 = vpack.c.bf16 %v713, %v712
      %v743 = vpack.c.bf16 %v715, %v714
      %v744 = vpack.c.bf16 %v717, %v716
      %v745 = vpack.c.bf16 %v719, %v718
      %v746 = vpack.c.bf16 %v721, %v720
      %v747 = vpack.c.bf16 %v723, %v722
      %v748 = vpack.c.bf16 %v725, %v724
      %v749 = vpack.c.bf16 %v727, %v726
      %v750 = vpack.c.bf16 %v729, %v728
      %v751 = vpack.c.bf16 %v731, %v730
      %v752 = vpack.c.bf16 %v733, %v732
      %v753 = vpack.c.bf16 %v735, %v734
      %v754 = vpack.c.bf16 %v737, %v736
      %v755 = vpack.c.bf16 %v739, %v738
      %v772 = vunpack.c.l.b16 %v740
      %v773 = vunpack.c.h.b16 %v740
      %v774 = vunpack.c.l.b16 %v741
      %v775 = vunpack.c.h.b16 %v741
      %v776 = vunpack.c.l.b16 %v742
      %v777 = vunpack.c.h.b16 %v742
      %v778 = vunpack.c.l.b16 %v743
      %v779 = vunpack.c.h.b16 %v743
      %v780 = vunpack.c.l.b16 %v744
      %v781 = vunpack.c.h.b16 %v744
      %v782 = vunpack.c.l.b16 %v745
      %v783 = vunpack.c.h.b16 %v745
      %v784 = vunpack.c.l.b16 %v746
      %v785 = vunpack.c.h.b16 %v746
      %v786 = vunpack.c.l.b16 %v747
      %v787 = vunpack.c.h.b16 %v747
      %v788 = vunpack.c.l.b16 %v748
      %v789 = vunpack.c.h.b16 %v748
      %v790 = vunpack.c.l.b16 %v749
      %v791 = vunpack.c.h.b16 %v749
      %v792 = vunpack.c.l.b16 %v750
      %v793 = vunpack.c.h.b16 %v750
      %v794 = vunpack.c.l.b16 %v751
      %v795 = vunpack.c.h.b16 %v751
      %v796 = vunpack.c.l.b16 %v752
      %v797 = vunpack.c.h.b16 %v752
      %v798 = vunpack.c.l.b16 %v753
      %v799 = vunpack.c.h.b16 %v753
      %v800 = vunpack.c.l.b16 %v754
      %v801 = vunpack.c.h.b16 %v754
      %v802 = vunpack.c.l.b16 %v755
      %v803 = vunpack.c.h.b16 %v755
      %v804 = vpack.c.b16 %v772, %v772
      %v805 = vpack.c.b16 %v773, %v773
      %v806 = vpack.c.b16 %v774, %v774
      %v807 = vpack.c.b16 %v775, %v775
      %v808 = vpack.c.b16 %v776, %v776
      %v809 = vpack.c.b16 %v777, %v777
      %v810 = vpack.c.b16 %v778, %v778
      %v811 = vpack.c.b16 %v779, %v779
      %v812 = vpack.c.b16 %v780, %v780
      %v813 = vpack.c.b16 %v781, %v781
      %v814 = vpack.c.b16 %v782, %v782
      %v815 = vpack.c.b16 %v783, %v783
      %v816 = vpack.c.b16 %v784, %v784
      %v817 = vpack.c.b16 %v785, %v785
      %v818 = vpack.c.b16 %v786, %v786
      %v819 = vpack.c.b16 %v787, %v787
      %v820 = vpack.c.b16 %v788, %v788
      %v821 = vpack.c.b16 %v789, %v789
      %v822 = vpack.c.b16 %v790, %v790
      %v823 = vpack.c.b16 %v791, %v791
      %v824 = vpack.c.b16 %v792, %v792
      %v825 = vpack.c.b16 %v793, %v793
      %v826 = vpack.c.b16 %v794, %v794
      %v827 = vpack.c.b16 %v795, %v795
      %v828 = vpack.c.b16 %v796, %v796
      %v829 = vpack.c.b16 %v797, %v797
      %v830 = vpack.c.b16 %v798, %v798
      %v831 = vpack.c.b16 %v799, %v799
      %v832 = vpack.c.b16 %v800, %v800
      %v833 = vpack.c.b16 %v801, %v801
      %v834 = vpack.c.b16 %v802, %v802
      %v835 = vpack.c.b16 %v803, %v803
      %868 = vst [vmem:[#allocation4 + $0x8] sm:$0xf] %v804
      %869 = vst [vmem:[#allocation4 + $0x2c] sm:$0xf] %v805
      %870 = vst [vmem:[#allocation4 + $0x50] sm:$0xf] %v806
      %871 = vst [vmem:[#allocation4 + $0x74] sm:$0xf] %v807
      %872 = vst [vmem:[#allocation4 + $0x98] sm:$0xf] %v808
      %873 = vst [vmem:[#allocation4 + $0xbc] sm:$0xf] %v809
      %874 = vst [vmem:[#allocation4 + $0xe0] sm:$0xf] %v810
      %875 = vst [vmem:[#allocation4 + $0x104] sm:$0xf] %v811
      %876 = vst [vmem:[#allocation4 + $0x128] sm:$0xf] %v812
      %877 = vst [vmem:[#allocation4 + $0x14c] sm:$0xf] %v813
      %878 = vst [vmem:[#allocation4 + $0x170] sm:$0xf] %v814
      %879 = vst [vmem:[#allocation4 + $0x194] sm:$0xf] %v815
      %880 = vst [vmem:[#allocation4 + $0x1b8] sm:$0xf] %v816
      %881 = vst [vmem:[#allocation4 + $0x1dc] sm:$0xf] %v817
      %882 = vst [vmem:[#allocation4 + $0x200] sm:$0xf] %v818
      %883 = vst [vmem:[#allocation4 + $0x224] sm:$0xf] %v819
      %884 = vst [vmem:[#allocation4 + $0x248] sm:$0xf] %v820
      %885 = vst [vmem:[#allocation4 + $0x26c] sm:$0xf] %v821
      %886 = vst [vmem:[#allocation4 + $0x290] sm:$0xf] %v822
      %887 = vst [vmem:[#allocation4 + $0x2b4] sm:$0xf] %v823
      %888 = vst [vmem:[#allocation4 + $0x2d8] sm:$0xf] %v824
      %889 = vst [vmem:[#allocation4 + $0x2fc] sm:$0xf] %v825
      %890 = vst [vmem:[#allocation4 + $0x320] sm:$0xf] %v826
      %891 = vst [vmem:[#allocation4 + $0x344] sm:$0xf] %v827
      %892 = vst [vmem:[#allocation4 + $0x368] sm:$0xf] %v828
      %893 = vst [vmem:[#allocation4 + $0x38c] sm:$0xf] %v829
      %894 = vst [vmem:[#allocation4 + $0x3b0] sm:$0xf] %v830
      %895 = vst [vmem:[#allocation4 + $0x3d4] sm:$0xf] %v831
      %896 = vst [vmem:[#allocation4 + $0x3f8] sm:$0xf] %v832
      %897 = vst [vmem:[#allocation4 + $0x41c] sm:$0xf] %v833
      %898 = vst [vmem:[#allocation4 + $0x440] sm:$0xf] %v834
      %899 = vst [vmem:[#allocation4 + $0x464] sm:$0xf] %v835
      %v900 = vld [vmem:[%s290] sm:$0xff]
      %v901 = vld [vmem:[%s290 + $0x8] sm:$0xff]
      %v902 = vld [vmem:[%s290 + $0x18] sm:$0xff]
      %v903 = vld [vmem:[%s290 + $0x20] sm:$0xff]
      %v904 = vld [vmem:[%s290 + $0x30] sm:$0xff]
      %v905 = vld [vmem:[%s290 + $0x38] sm:$0xff]
      %v906 = vld [vmem:[%s290 + $0x48] sm:$0xff]
      %v907 = vld [vmem:[%s290 + $0x50] sm:$0xff]
      %v908 = vld [vmem:[%s290 + $0x60] sm:$0xff]
      %v909 = vld [vmem:[%s290 + $0x68] sm:$0xff]
      %v910 = vld [vmem:[%s290 + $0x78] sm:$0xff]
      %v911 = vld [vmem:[%s290 + $0x80] sm:$0xff]
      %v912 = vld [vmem:[%s290 + $0x90] sm:$0xff]
      %v913 = vld [vmem:[%s290 + $0x98] sm:$0xff]
      %v914 = vld [vmem:[%s290 + $0xa8] sm:$0xff]
      %v915 = vld [vmem:[%s290 + $0xb0] sm:$0xff]
      %v916 = vld [vmem:[%s290 + $0xc0] sm:$0xff]
      %v917 = vld [vmem:[%s290 + $0xc8] sm:$0xff]
      %v918 = vld [vmem:[%s290 + $0xd8] sm:$0xff]
      %v919 = vld [vmem:[%s290 + $0xe0] sm:$0xff]
      %v920 = vld [vmem:[%s290 + $0xf0] sm:$0xff]
      %v921 = vld [vmem:[%s290 + $0xf8] sm:$0xff]
      %v922 = vld [vmem:[%s290 + $0x108] sm:$0xff]
      %v923 = vld [vmem:[%s290 + $0x110] sm:$0xff]
      %v924 = vld [vmem:[%s290 + $0x120] sm:$0xff]
      %v925 = vld [vmem:[%s290 + $0x128] sm:$0xff]
      %v926 = vld [vmem:[%s290 + $0x138] sm:$0xff]
      %v927 = vld [vmem:[%s290 + $0x140] sm:$0xff]
      %v928 = vld [vmem:[%s290 + $0x150] sm:$0xff]
      %v929 = vld [vmem:[%s290 + $0x158] sm:$0xff]
      %v930 = vld [vmem:[%s290 + $0x168] sm:$0xff]
      %v931 = vld [vmem:[%s290 + $0x170] sm:$0xff]
      %v932 = vpack.c.bf16 %v901, %v900
      %v933 = vpack.c.bf16 %v903, %v902
      %v934 = vpack.c.bf16 %v905, %v904
      %v935 = vpack.c.bf16 %v907, %v906
      %v936 = vpack.c.bf16 %v909, %v908
      %v937 = vpack.c.bf16 %v911, %v910
      %v938 = vpack.c.bf16 %v913, %v912
      %v939 = vpack.c.bf16 %v915, %v914
      %v940 = vpack.c.bf16 %v917, %v916
      %v941 = vpack.c.bf16 %v919, %v918
      %v942 = vpack.c.bf16 %v921, %v920
      %v943 = vpack.c.bf16 %v923, %v922
      %v944 = vpack.c.bf16 %v925, %v924
      %v945 = vpack.c.bf16 %v927, %v926
      %v946 = vpack.c.bf16 %v929, %v928
      %v947 = vpack.c.bf16 %v931, %v930
      %v964 = vunpack.c.l.b16 %v932
      %v965 = vunpack.c.h.b16 %v932
      %v966 = vunpack.c.l.b16 %v933
      %v967 = vunpack.c.h.b16 %v933
      %v968 = vunpack.c.l.b16 %v934
      %v969 = vunpack.c.h.b16 %v934
      %v970 = vunpack.c.l.b16 %v935
      %v971 = vunpack.c.h.b16 %v935
      %v972 = vunpack.c.l.b16 %v936
      %v973 = vunpack.c.h.b16 %v936
      %v974 = vunpack.c.l.b16 %v937
      %v975 = vunpack.c.h.b16 %v937
      %v976 = vunpack.c.l.b16 %v938
      %v977 = vunpack.c.h.b16 %v938
      %v978 = vunpack.c.l.b16 %v939
      %v979 = vunpack.c.h.b16 %v939
      %v980 = vunpack.c.l.b16 %v940
      %v981 = vunpack.c.h.b16 %v940
      %v982 = vunpack.c.l.b16 %v941
      %v983 = vunpack.c.h.b16 %v941
      %v984 = vunpack.c.l.b16 %v942
      %v985 = vunpack.c.h.b16 %v942
      %v986 = vunpack.c.l.b16 %v943
      %v987 = vunpack.c.h.b16 %v943
      %v988 = vunpack.c.l.b16 %v944
      %v989 = vunpack.c.h.b16 %v944
      %v990 = vunpack.c.l.b16 %v945
      %v991 = vunpack.c.h.b16 %v945
      %v992 = vunpack.c.l.b16 %v946
      %v993 = vunpack.c.h.b16 %v946
      %v994 = vunpack.c.l.b16 %v947
      %v995 = vunpack.c.h.b16 %v947
      %v996 = vpack.c.b16 %v964, %v964
      %v997 = vpack.c.b16 %v965, %v965
      %v998 = vpack.c.b16 %v966, %v966
      %v999 = vpack.c.b16 %v967, %v967
      %v1000 = vpack.c.b16 %v968, %v968
      %v1001 = vpack.c.b16 %v969, %v969
      %v1002 = vpack.c.b16 %v970, %v970
      %v1003 = vpack.c.b16 %v971, %v971
      %v1004 = vpack.c.b16 %v972, %v972
      %v1005 = vpack.c.b16 %v973, %v973
      %v1006 = vpack.c.b16 %v974, %v974
      %v1007 = vpack.c.b16 %v975, %v975
      %v1008 = vpack.c.b16 %v976, %v976
      %v1009 = vpack.c.b16 %v977, %v977
      %v1010 = vpack.c.b16 %v978, %v978
      %v1011 = vpack.c.b16 %v979, %v979
      %v1012 = vpack.c.b16 %v980, %v980
      %v1013 = vpack.c.b16 %v981, %v981
      %v1014 = vpack.c.b16 %v982, %v982
      %v1015 = vpack.c.b16 %v983, %v983
      %v1016 = vpack.c.b16 %v984, %v984
      %v1017 = vpack.c.b16 %v985, %v985
      %v1018 = vpack.c.b16 %v986, %v986
      %v1019 = vpack.c.b16 %v987, %v987
      %v1020 = vpack.c.b16 %v988, %v988
      %v1021 = vpack.c.b16 %v989, %v989
      %v1022 = vpack.c.b16 %v990, %v990
      %v1023 = vpack.c.b16 %v991, %v991
      %v1024 = vpack.c.b16 %v992, %v992
      %v1025 = vpack.c.b16 %v993, %v993
      %v1026 = vpack.c.b16 %v994, %v994
      %v1027 = vpack.c.b16 %v995, %v995
      %1060 = vst [vmem:[#allocation4 + $0xc] sm:$0xf] %v996
      %1061 = vst [vmem:[#allocation4 + $0x30] sm:$0xf] %v997
      %1062 = vst [vmem:[#allocation4 + $0x54] sm:$0xf] %v998
      %1063 = vst [vmem:[#allocation4 + $0x78] sm:$0xf] %v999
      %1064 = vst [vmem:[#allocation4 + $0x9c] sm:$0xf] %v1000
      %1065 = vst [vmem:[#allocation4 + $0xc0] sm:$0xf] %v1001
      %1066 = vst [vmem:[#allocation4 + $0xe4] sm:$0xf] %v1002
      %1067 = vst [vmem:[#allocation4 + $0x108] sm:$0xf] %v1003
      %1068 = vst [vmem:[#allocation4 + $0x12c] sm:$0xf] %v1004
      %1069 = vst [vmem:[#allocation4 + $0x150] sm:$0xf] %v1005
      %1070 = vst [vmem:[#allocation4 + $0x174] sm:$0xf] %v1006
      %1071 = vst [vmem:[#allocation4 + $0x198] sm:$0xf] %v1007
      %1072 = vst [vmem:[#allocation4 + $0x1bc] sm:$0xf] %v1008
      %1073 = vst [vmem:[#allocation4 + $0x1e0] sm:$0xf] %v1009
      %1074 = vst [vmem:[#allocation4 + $0x204] sm:$0xf] %v1010
      %1075 = vst [vmem:[#allocation4 + $0x228] sm:$0xf] %v1011
      %1076 = vst [vmem:[#allocation4 + $0x24c] sm:$0xf] %v1012
      %1077 = vst [vmem:[#allocation4 + $0x270] sm:$0xf] %v1013
      %1078 = vst [vmem:[#allocation4 + $0x294] sm:$0xf] %v1014
      %1079 = vst [vmem:[#allocation4 + $0x2b8] sm:$0xf] %v1015
      %1080 = vst [vmem:[#allocation4 + $0x2dc] sm:$0xf] %v1016
      %1081 = vst [vmem:[#allocation4 + $0x300] sm:$0xf] %v1017
      %1082 = vst [vmem:[#allocation4 + $0x324] sm:$0xf] %v1018
      %1083 = vst [vmem:[#allocation4 + $0x348] sm:$0xf] %v1019
      %1084 = vst [vmem:[#allocation4 + $0x36c] sm:$0xf] %v1020
      %1085 = vst [vmem:[#allocation4 + $0x390] sm:$0xf] %v1021
      %1086 = vst [vmem:[#allocation4 + $0x3b4] sm:$0xf] %v1022
      %1087 = vst [vmem:[#allocation4 + $0x3d8] sm:$0xf] %v1023
      %1088 = vst [vmem:[#allocation4 + $0x3fc] sm:$0xf] %v1024
      %1089 = vst [vmem:[#allocation4 + $0x420] sm:$0xf] %v1025
      %1090 = vst [vmem:[#allocation4 + $0x444] sm:$0xf] %v1026
      %1091 = vst [vmem:[#allocation4 + $0x468] sm:$0xf] %v1027
      %v1092 = vld [vmem:[%s290 + $0x1] sm:$0xff]
      %v1093 = vld [vmem:[%s290 + $0x9] sm:$0xff]
      %v1094 = vld [vmem:[%s290 + $0x19] sm:$0xff]
      %v1095 = vld [vmem:[%s290 + $0x21] sm:$0xff]
      %v1096 = vld [vmem:[%s290 + $0x31] sm:$0xff]
      %v1097 = vld [vmem:[%s290 + $0x39] sm:$0xff]
      %v1098 = vld [vmem:[%s290 + $0x49] sm:$0xff]
      %v1099 = vld [vmem:[%s290 + $0x51] sm:$0xff]
      %v1100 = vld [vmem:[%s290 + $0x61] sm:$0xff]
      %v1101 = vld [vmem:[%s290 + $0x69] sm:$0xff]
      %v1102 = vld [vmem:[%s290 + $0x79] sm:$0xff]
      %v1103 = vld [vmem:[%s290 + $0x81] sm:$0xff]
      %v1104 = vld [vmem:[%s290 + $0x91] sm:$0xff]
      %v1105 = vld [vmem:[%s290 + $0x99] sm:$0xff]
      %v1106 = vld [vmem:[%s290 + $0xa9] sm:$0xff]
      %v1107 = vld [vmem:[%s290 + $0xb1] sm:$0xff]
      %v1108 = vld [vmem:[%s290 + $0xc1] sm:$0xff]
      %v1109 = vld [vmem:[%s290 + $0xc9] sm:$0xff]
      %v1110 = vld [vmem:[%s290 + $0xd9] sm:$0xff]
      %v1111 = vld [vmem:[%s290 + $0xe1] sm:$0xff]
      %v1112 = vld [vmem:[%s290 + $0xf1] sm:$0xff]
      %v1113 = vld [vmem:[%s290 + $0xf9] sm:$0xff]
      %v1114 = vld [vmem:[%s290 + $0x109] sm:$0xff]
      %v1115 = vld [vmem:[%s290 + $0x111] sm:$0xff]
      %v1116 = vld [vmem:[%s290 + $0x121] sm:$0xff]
      %v1117 = vld [vmem:[%s290 + $0x129] sm:$0xff]
      %v1118 = vld [vmem:[%s290 + $0x139] sm:$0xff]
      %v1119 = vld [vmem:[%s290 + $0x141] sm:$0xff]
      %v1120 = vld [vmem:[%s290 + $0x151] sm:$0xff]
      %v1121 = vld [vmem:[%s290 + $0x159] sm:$0xff]
      %v1122 = vld [vmem:[%s290 + $0x169] sm:$0xff]
      %v1123 = vld [vmem:[%s290 + $0x171] sm:$0xff]
      %v1124 = vpack.c.bf16 %v1093, %v1092
      %v1125 = vpack.c.bf16 %v1095, %v1094
      %v1126 = vpack.c.bf16 %v1097, %v1096
      %v1127 = vpack.c.bf16 %v1099, %v1098
      %v1128 = vpack.c.bf16 %v1101, %v1100
      %v1129 = vpack.c.bf16 %v1103, %v1102
      %v1130 = vpack.c.bf16 %v1105, %v1104
      %v1131 = vpack.c.bf16 %v1107, %v1106
      %v1132 = vpack.c.bf16 %v1109, %v1108
      %v1133 = vpack.c.bf16 %v1111, %v1110
      %v1134 = vpack.c.bf16 %v1113, %v1112
      %v1135 = vpack.c.bf16 %v1115, %v1114
      %v1136 = vpack.c.bf16 %v1117, %v1116
      %v1137 = vpack.c.bf16 %v1119, %v1118
      %v1138 = vpack.c.bf16 %v1121, %v1120
      %v1139 = vpack.c.bf16 %v1123, %v1122
      %v1156 = vunpack.c.l.b16 %v1124
      %v1157 = vunpack.c.h.b16 %v1124
      %v1158 = vunpack.c.l.b16 %v1125
      %v1159 = vunpack.c.h.b16 %v1125
      %v1160 = vunpack.c.l.b16 %v1126
      %v1161 = vunpack.c.h.b16 %v1126
      %v1162 = vunpack.c.l.b16 %v1127
      %v1163 = vunpack.c.h.b16 %v1127
      %v1164 = vunpack.c.l.b16 %v1128
      %v1165 = vunpack.c.h.b16 %v1128
      %v1166 = vunpack.c.l.b16 %v1129
      %v1167 = vunpack.c.h.b16 %v1129
      %v1168 = vunpack.c.l.b16 %v1130
      %v1169 = vunpack.c.h.b16 %v1130
      %v1170 = vunpack.c.l.b16 %v1131
      %v1171 = vunpack.c.h.b16 %v1131
      %v1172 = vunpack.c.l.b16 %v1132
      %v1173 = vunpack.c.h.b16 %v1132
      %v1174 = vunpack.c.l.b16 %v1133
      %v1175 = vunpack.c.h.b16 %v1133
      %v1176 = vunpack.c.l.b16 %v1134
      %v1177 = vunpack.c.h.b16 %v1134
      %v1178 = vunpack.c.l.b16 %v1135
      %v1179 = vunpack.c.h.b16 %v1135
      %v1180 = vunpack.c.l.b16 %v1136
      %v1181 = vunpack.c.h.b16 %v1136
      %v1182 = vunpack.c.l.b16 %v1137
      %v1183 = vunpack.c.h.b16 %v1137
      %v1184 = vunpack.c.l.b16 %v1138
      %v1185 = vunpack.c.h.b16 %v1138
      %v1186 = vunpack.c.l.b16 %v1139
      %v1187 = vunpack.c.h.b16 %v1139
      %v1188 = vpack.c.b16 %v1156, %v1156
      %v1189 = vpack.c.b16 %v1157, %v1157
      %v1190 = vpack.c.b16 %v1158, %v1158
      %v1191 = vpack.c.b16 %v1159, %v1159
      %v1192 = vpack.c.b16 %v1160, %v1160
      %v1193 = vpack.c.b16 %v1161, %v1161
      %v1194 = vpack.c.b16 %v1162, %v1162
      %v1195 = vpack.c.b16 %v1163, %v1163
      %v1196 = vpack.c.b16 %v1164, %v1164
      %v1197 = vpack.c.b16 %v1165, %v1165
      %v1198 = vpack.c.b16 %v1166, %v1166
      %v1199 = vpack.c.b16 %v1167, %v1167
      %v1200 = vpack.c.b16 %v1168, %v1168
      %v1201 = vpack.c.b16 %v1169, %v1169
      %v1202 = vpack.c.b16 %v1170, %v1170
      %v1203 = vpack.c.b16 %v1171, %v1171
      %v1204 = vpack.c.b16 %v1172, %v1172
      %v1205 = vpack.c.b16 %v1173, %v1173
      %v1206 = vpack.c.b16 %v1174, %v1174
      %v1207 = vpack.c.b16 %v1175, %v1175
      %v1208 = vpack.c.b16 %v1176, %v1176
      %v1209 = vpack.c.b16 %v1177, %v1177
      %v1210 = vpack.c.b16 %v1178, %v1178
      %v1211 = vpack.c.b16 %v1179, %v1179
      %v1212 = vpack.c.b16 %v1180, %v1180
      %v1213 = vpack.c.b16 %v1181, %v1181
      %v1214 = vpack.c.b16 %v1182, %v1182
      %v1215 = vpack.c.b16 %v1183, %v1183
      %v1216 = vpack.c.b16 %v1184, %v1184
      %v1217 = vpack.c.b16 %v1185, %v1185
      %v1218 = vpack.c.b16 %v1186, %v1186
      %v1219 = vpack.c.b16 %v1187, %v1187
      %1252 = vst [vmem:[#allocation4 + $0x10] sm:$0xf] %v1188
      %1253 = vst [vmem:[#allocation4 + $0x34] sm:$0xf] %v1189
      %1254 = vst [vmem:[#allocation4 + $0x58] sm:$0xf] %v1190
      %1255 = vst [vmem:[#allocation4 + $0x7c] sm:$0xf] %v1191
      %1256 = vst [vmem:[#allocation4 + $0xa0] sm:$0xf] %v1192
      %1257 = vst [vmem:[#allocation4 + $0xc4] sm:$0xf] %v1193
      %1258 = vst [vmem:[#allocation4 + $0xe8] sm:$0xf] %v1194
      %1259 = vst [vmem:[#allocation4 + $0x10c] sm:$0xf] %v1195
      %1260 = vst [vmem:[#allocation4 + $0x130] sm:$0xf] %v1196
      %1261 = vst [vmem:[#allocation4 + $0x154] sm:$0xf] %v1197
      %1262 = vst [vmem:[#allocation4 + $0x178] sm:$0xf] %v1198
      %1263 = vst [vmem:[#allocation4 + $0x19c] sm:$0xf] %v1199
      %1264 = vst [vmem:[#allocation4 + $0x1c0] sm:$0xf] %v1200
      %1265 = vst [vmem:[#allocation4 + $0x1e4] sm:$0xf] %v1201
      %1266 = vst [vmem:[#allocation4 + $0x208] sm:$0xf] %v1202
      %1267 = vst [vmem:[#allocation4 + $0x22c] sm:$0xf] %v1203
      %1268 = vst [vmem:[#allocation4 + $0x250] sm:$0xf] %v1204
      %1269 = vst [vmem:[#allocation4 + $0x274] sm:$0xf] %v1205
      %1270 = vst [vmem:[#allocation4 + $0x298] sm:$0xf] %v1206
      %1271 = vst [vmem:[#allocation4 + $0x2bc] sm:$0xf] %v1207
      %1272 = vst [vmem:[#allocation4 + $0x2e0] sm:$0xf] %v1208
      %1273 = vst [vmem:[#allocation4 + $0x304] sm:$0xf] %v1209
      %1274 = vst [vmem:[#allocation4 + $0x328] sm:$0xf] %v1210
      %1275 = vst [vmem:[#allocation4 + $0x34c] sm:$0xf] %v1211
      %1276 = vst [vmem:[#allocation4 + $0x370] sm:$0xf] %v1212
      %1277 = vst [vmem:[#allocation4 + $0x394] sm:$0xf] %v1213
      %1278 = vst [vmem:[#allocation4 + $0x3b8] sm:$0xf] %v1214
      %1279 = vst [vmem:[#allocation4 + $0x3dc] sm:$0xf] %v1215
      %1280 = vst [vmem:[#allocation4 + $0x400] sm:$0xf] %v1216
      %1281 = vst [vmem:[#allocation4 + $0x424] sm:$0xf] %v1217
      %1282 = vst [vmem:[#allocation4 + $0x448] sm:$0xf] %v1218
      %1283 = vst [vmem:[#allocation4 + $0x46c] sm:$0xf] %v1219
      %v1284 = vld [vmem:[%s290 + $0x2] sm:$0xff]
      %v1285 = vld [vmem:[%s290 + $0xa] sm:$0xff]
      %v1286 = vld [vmem:[%s290 + $0x1a] sm:$0xff]
      %v1287 = vld [vmem:[%s290 + $0x22] sm:$0xff]
      %v1288 = vld [vmem:[%s290 + $0x32] sm:$0xff]
      %v1289 = vld [vmem:[%s290 + $0x3a] sm:$0xff]
      %v1290 = vld [vmem:[%s290 + $0x4a] sm:$0xff]
      %v1291 = vld [vmem:[%s290 + $0x52] sm:$0xff]
      %v1292 = vld [vmem:[%s290 + $0x62] sm:$0xff]
      %v1293 = vld [vmem:[%s290 + $0x6a] sm:$0xff]
      %v1294 = vld [vmem:[%s290 + $0x7a] sm:$0xff]
      %v1295 = vld [vmem:[%s290 + $0x82] sm:$0xff]
      %v1296 = vld [vmem:[%s290 + $0x92] sm:$0xff]
      %v1297 = vld [vmem:[%s290 + $0x9a] sm:$0xff]
      %v1298 = vld [vmem:[%s290 + $0xaa] sm:$0xff]
      %v1299 = vld [vmem:[%s290 + $0xb2] sm:$0xff]
      %v1300 = vld [vmem:[%s290 + $0xc2] sm:$0xff]
      %v1301 = vld [vmem:[%s290 + $0xca] sm:$0xff]
      %v1302 = vld [vmem:[%s290 + $0xda] sm:$0xff]
      %v1303 = vld [vmem:[%s290 + $0xe2] sm:$0xff]
      %v1304 = vld [vmem:[%s290 + $0xf2] sm:$0xff]
      %v1305 = vld [vmem:[%s290 + $0xfa] sm:$0xff]
      %v1306 = vld [vmem:[%s290 + $0x10a] sm:$0xff]
      %v1307 = vld [vmem:[%s290 + $0x112] sm:$0xff]
      %v1308 = vld [vmem:[%s290 + $0x122] sm:$0xff]
      %v1309 = vld [vmem:[%s290 + $0x12a] sm:$0xff]
      %v1310 = vld [vmem:[%s290 + $0x13a] sm:$0xff]
      %v1311 = vld [vmem:[%s290 + $0x142] sm:$0xff]
      %v1312 = vld [vmem:[%s290 + $0x152] sm:$0xff]
      %v1313 = vld [vmem:[%s290 + $0x15a] sm:$0xff]
      %v1314 = vld [vmem:[%s290 + $0x16a] sm:$0xff]
      %v1315 = vld [vmem:[%s290 + $0x172] sm:$0xff]
      %v1316 = vpack.c.bf16 %v1285, %v1284
      %v1317 = vpack.c.bf16 %v1287, %v1286
      %v1318 = vpack.c.bf16 %v1289, %v1288
      %v1319 = vpack.c.bf16 %v1291, %v1290
      %v1320 = vpack.c.bf16 %v1293, %v1292
      %v1321 = vpack.c.bf16 %v1295, %v1294
      %v1322 = vpack.c.bf16 %v1297, %v1296
      %v1323 = vpack.c.bf16 %v1299, %v1298
      %v1324 = vpack.c.bf16 %v1301, %v1300
      %v1325 = vpack.c.bf16 %v1303, %v1302
      %v1326 = vpack.c.bf16 %v1305, %v1304
      %v1327 = vpack.c.bf16 %v1307, %v1306
      %v1328 = vpack.c.bf16 %v1309, %v1308
      %v1329 = vpack.c.bf16 %v1311, %v1310
      %v1330 = vpack.c.bf16 %v1313, %v1312
      %v1331 = vpack.c.bf16 %v1315, %v1314
      %v1348 = vunpack.c.l.b16 %v1316
      %v1349 = vunpack.c.h.b16 %v1316
      %v1350 = vunpack.c.l.b16 %v1317
      %v1351 = vunpack.c.h.b16 %v1317
      %v1352 = vunpack.c.l.b16 %v1318
      %v1353 = vunpack.c.h.b16 %v1318
      %v1354 = vunpack.c.l.b16 %v1319
      %v1355 = vunpack.c.h.b16 %v1319
      %v1356 = vunpack.c.l.b16 %v1320
      %v1357 = vunpack.c.h.b16 %v1320
      %v1358 = vunpack.c.l.b16 %v1321
      %v1359 = vunpack.c.h.b16 %v1321
      %v1360 = vunpack.c.l.b16 %v1322
      %v1361 = vunpack.c.h.b16 %v1322
      %v1362 = vunpack.c.l.b16 %v1323
      %v1363 = vunpack.c.h.b16 %v1323
      %v1364 = vunpack.c.l.b16 %v1324
      %v1365 = vunpack.c.h.b16 %v1324
      %v1366 = vunpack.c.l.b16 %v1325
      %v1367 = vunpack.c.h.b16 %v1325
      %v1368 = vunpack.c.l.b16 %v1326
      %v1369 = vunpack.c.h.b16 %v1326
      %v1370 = vunpack.c.l.b16 %v1327
      %v1371 = vunpack.c.h.b16 %v1327
      %v1372 = vunpack.c.l.b16 %v1328
      %v1373 = vunpack.c.h.b16 %v1328
      %v1374 = vunpack.c.l.b16 %v1329
      %v1375 = vunpack.c.h.b16 %v1329
      %v1376 = vunpack.c.l.b16 %v1330
      %v1377 = vunpack.c.h.b16 %v1330
      %v1378 = vunpack.c.l.b16 %v1331
      %v1379 = vunpack.c.h.b16 %v1331
      %v1380 = vpack.c.b16 %v1348, %v1348
      %v1381 = vpack.c.b16 %v1349, %v1349
      %v1382 = vpack.c.b16 %v1350, %v1350
      %v1383 = vpack.c.b16 %v1351, %v1351
      %v1384 = vpack.c.b16 %v1352, %v1352
      %v1385 = vpack.c.b16 %v1353, %v1353
      %v1386 = vpack.c.b16 %v1354, %v1354
      %v1387 = vpack.c.b16 %v1355, %v1355
      %v1388 = vpack.c.b16 %v1356, %v1356
      %v1389 = vpack.c.b16 %v1357, %v1357
      %v1390 = vpack.c.b16 %v1358, %v1358
      %v1391 = vpack.c.b16 %v1359, %v1359
      %v1392 = vpack.c.b16 %v1360, %v1360
      %v1393 = vpack.c.b16 %v1361, %v1361
      %v1394 = vpack.c.b16 %v1362, %v1362
      %v1395 = vpack.c.b16 %v1363, %v1363
      %v1396 = vpack.c.b16 %v1364, %v1364
      %v1397 = vpack.c.b16 %v1365, %v1365
      %v1398 = vpack.c.b16 %v1366, %v1366
      %v1399 = vpack.c.b16 %v1367, %v1367
      %v1400 = vpack.c.b16 %v1368, %v1368
      %v1401 = vpack.c.b16 %v1369, %v1369
      %v1402 = vpack.c.b16 %v1370, %v1370
      %v1403 = vpack.c.b16 %v1371, %v1371
      %v1404 = vpack.c.b16 %v1372, %v1372
      %v1405 = vpack.c.b16 %v1373, %v1373
      %v1406 = vpack.c.b16 %v1374, %v1374
      %v1407 = vpack.c.b16 %v1375, %v1375
      %v1408 = vpack.c.b16 %v1376, %v1376
      %v1409 = vpack.c.b16 %v1377, %v1377
      %v1410 = vpack.c.b16 %v1378, %v1378
      %v1411 = vpack.c.b16 %v1379, %v1379
      %1444 = vst [vmem:[#allocation4 + $0x14] sm:$0xf] %v1380
      %1445 = vst [vmem:[#allocation4 + $0x38] sm:$0xf] %v1381
      %1446 = vst [vmem:[#allocation4 + $0x5c] sm:$0xf] %v1382
      %1447 = vst [vmem:[#allocation4 + $0x80] sm:$0xf] %v1383
      %1448 = vst [vmem:[#allocation4 + $0xa4] sm:$0xf] %v1384
      %1449 = vst [vmem:[#allocation4 + $0xc8] sm:$0xf] %v1385
      %1450 = vst [vmem:[#allocation4 + $0xec] sm:$0xf] %v1386
      %1451 = vst [vmem:[#allocation4 + $0x110] sm:$0xf] %v1387
      %1452 = vst [vmem:[#allocation4 + $0x134] sm:$0xf] %v1388
      %1453 = vst [vmem:[#allocation4 + $0x158] sm:$0xf] %v1389
      %1454 = vst [vmem:[#allocation4 + $0x17c] sm:$0xf] %v1390
      %1455 = vst [vmem:[#allocation4 + $0x1a0] sm:$0xf] %v1391
      %1456 = vst [vmem:[#allocation4 + $0x1c4] sm:$0xf] %v1392
      %1457 = vst [vmem:[#allocation4 + $0x1e8] sm:$0xf] %v1393
      %1458 = vst [vmem:[#allocation4 + $0x20c] sm:$0xf] %v1394
      %1459 = vst [vmem:[#allocation4 + $0x230] sm:$0xf] %v1395
      %1460 = vst [vmem:[#allocation4 + $0x254] sm:$0xf] %v1396
      %1461 = vst [vmem:[#allocation4 + $0x278] sm:$0xf] %v1397
      %1462 = vst [vmem:[#allocation4 + $0x29c] sm:$0xf] %v1398
      %1463 = vst [vmem:[#allocation4 + $0x2c0] sm:$0xf] %v1399
      %1464 = vst [vmem:[#allocation4 + $0x2e4] sm:$0xf] %v1400
      %1465 = vst [vmem:[#allocation4 + $0x308] sm:$0xf] %v1401
      %1466 = vst [vmem:[#allocation4 + $0x32c] sm:$0xf] %v1402
      %1467 = vst [vmem:[#allocation4 + $0x350] sm:$0xf] %v1403
      %1468 = vst [vmem:[#allocation4 + $0x374] sm:$0xf] %v1404
      %1469 = vst [vmem:[#allocation4 + $0x398] sm:$0xf] %v1405
      %1470 = vst [vmem:[#allocation4 + $0x3bc] sm:$0xf] %v1406
      %1471 = vst [vmem:[#allocation4 + $0x3e0] sm:$0xf] %v1407
      %1472 = vst [vmem:[#allocation4 + $0x404] sm:$0xf] %v1408
      %1473 = vst [vmem:[#allocation4 + $0x428] sm:$0xf] %v1409
      %1474 = vst [vmem:[#allocation4 + $0x44c] sm:$0xf] %v1410
      %1475 = vst [vmem:[#allocation4 + $0x470] sm:$0xf] %v1411
      %s1476 = scalar_lea.vmem [#allocation2], 48
      %v1477 = vld [vmem:[%s1476] sm:$0xff]
      %v1478 = vld [vmem:[%s1476 + $0x8] sm:$0xff]
      %v1479 = vld [vmem:[%s1476 + $0x18] sm:$0xff]
      %v1480 = vld [vmem:[%s1476 + $0x20] sm:$0xff]
      %v1481 = vld [vmem:[%s1476 + $0x30] sm:$0xff]
      %v1482 = vld [vmem:[%s1476 + $0x38] sm:$0xff]
      %v1483 = vld [vmem:[%s1476 + $0x48] sm:$0xff]
      %v1484 = vld [vmem:[%s1476 + $0x50] sm:$0xff]
      %v1485 = vld [vmem:[%s1476 + $0x60] sm:$0xff]
      %v1486 = vld [vmem:[%s1476 + $0x68] sm:$0xff]
      %v1487 = vld [vmem:[%s1476 + $0x78] sm:$0xff]
      %v1488 = vld [vmem:[%s1476 + $0x80] sm:$0xff]
      %v1489 = vld [vmem:[%s1476 + $0x90] sm:$0xff]
      %v1490 = vld [vmem:[%s1476 + $0x98] sm:$0xff]
      %v1491 = vld [vmem:[%s1476 + $0xa8] sm:$0xff]
      %v1492 = vld [vmem:[%s1476 + $0xb0] sm:$0xff]
      %v1493 = vld [vmem:[%s1476 + $0xc0] sm:$0xff]
      %v1494 = vld [vmem:[%s1476 + $0xc8] sm:$0xff]
      %v1495 = vld [vmem:[%s1476 + $0xd8] sm:$0xff]
      %v1496 = vld [vmem:[%s1476 + $0xe0] sm:$0xff]
      %v1497 = vld [vmem:[%s1476 + $0xf0] sm:$0xff]
      %v1498 = vld [vmem:[%s1476 + $0xf8] sm:$0xff]
      %v1499 = vld [vmem:[%s1476 + $0x108] sm:$0xff]
      %v1500 = vld [vmem:[%s1476 + $0x110] sm:$0xff]
      %v1501 = vld [vmem:[%s1476 + $0x120] sm:$0xff]
      %v1502 = vld [vmem:[%s1476 + $0x128] sm:$0xff]
      %v1503 = vld [vmem:[%s1476 + $0x138] sm:$0xff]
      %v1504 = vld [vmem:[%s1476 + $0x140] sm:$0xff]
      %v1505 = vld [vmem:[%s1476 + $0x150] sm:$0xff]
      %v1506 = vld [vmem:[%s1476 + $0x158] sm:$0xff]
      %v1507 = vld [vmem:[%s1476 + $0x168] sm:$0xff]
      %v1508 = vld [vmem:[%s1476 + $0x170] sm:$0xff]
      %v1509 = vpack.c.bf16 %v1478, %v1477
      %v1510 = vpack.c.bf16 %v1480, %v1479
      %v1511 = vpack.c.bf16 %v1482, %v1481
      %v1512 = vpack.c.bf16 %v1484, %v1483
      %v1513 = vpack.c.bf16 %v1486, %v1485
      %v1514 = vpack.c.bf16 %v1488, %v1487
      %v1515 = vpack.c.bf16 %v1490, %v1489
      %v1516 = vpack.c.bf16 %v1492, %v1491
      %v1517 = vpack.c.bf16 %v1494, %v1493
      %v1518 = vpack.c.bf16 %v1496, %v1495
      %v1519 = vpack.c.bf16 %v1498, %v1497
      %v1520 = vpack.c.bf16 %v1500, %v1499
      %v1521 = vpack.c.bf16 %v1502, %v1501
      %v1522 = vpack.c.bf16 %v1504, %v1503
      %v1523 = vpack.c.bf16 %v1506, %v1505
      %v1524 = vpack.c.bf16 %v1508, %v1507
      %v1541 = vunpack.c.l.b16 %v1509
      %v1542 = vunpack.c.h.b16 %v1509
      %v1543 = vunpack.c.l.b16 %v1510
      %v1544 = vunpack.c.h.b16 %v1510
      %v1545 = vunpack.c.l.b16 %v1511
      %v1546 = vunpack.c.h.b16 %v1511
      %v1547 = vunpack.c.l.b16 %v1512
      %v1548 = vunpack.c.h.b16 %v1512
      %v1549 = vunpack.c.l.b16 %v1513
      %v1550 = vunpack.c.h.b16 %v1513
      %v1551 = vunpack.c.l.b16 %v1514
      %v1552 = vunpack.c.h.b16 %v1514
      %v1553 = vunpack.c.l.b16 %v1515
      %v1554 = vunpack.c.h.b16 %v1515
      %v1555 = vunpack.c.l.b16 %v1516
      %v1556 = vunpack.c.h.b16 %v1516
      %v1557 = vunpack.c.l.b16 %v1517
      %v1558 = vunpack.c.h.b16 %v1517
      %v1559 = vunpack.c.l.b16 %v1518
      %v1560 = vunpack.c.h.b16 %v1518
      %v1561 = vunpack.c.l.b16 %v1519
      %v1562 = vunpack.c.h.b16 %v1519
      %v1563 = vunpack.c.l.b16 %v1520
      %v1564 = vunpack.c.h.b16 %v1520
      %v1565 = vunpack.c.l.b16 %v1521
      %v1566 = vunpack.c.h.b16 %v1521
      %v1567 = vunpack.c.l.b16 %v1522
      %v1568 = vunpack.c.h.b16 %v1522
      %v1569 = vunpack.c.l.b16 %v1523
      %v1570 = vunpack.c.h.b16 %v1523
      %v1571 = vunpack.c.l.b16 %v1524
      %v1572 = vunpack.c.h.b16 %v1524
      %v1573 = vpack.c.b16 %v1541, %v1541
      %v1574 = vpack.c.b16 %v1542, %v1542
      %v1575 = vpack.c.b16 %v1543, %v1543
      %v1576 = vpack.c.b16 %v1544, %v1544
      %v1577 = vpack.c.b16 %v1545, %v1545
      %v1578 = vpack.c.b16 %v1546, %v1546
      %v1579 = vpack.c.b16 %v1547, %v1547
      %v1580 = vpack.c.b16 %v1548, %v1548
      %v1581 = vpack.c.b16 %v1549, %v1549
      %v1582 = vpack.c.b16 %v1550, %v1550
      %v1583 = vpack.c.b16 %v1551, %v1551
      %v1584 = vpack.c.b16 %v1552, %v1552
      %v1585 = vpack.c.b16 %v1553, %v1553
      %v1586 = vpack.c.b16 %v1554, %v1554
      %v1587 = vpack.c.b16 %v1555, %v1555
      %v1588 = vpack.c.b16 %v1556, %v1556
      %v1589 = vpack.c.b16 %v1557, %v1557
      %v1590 = vpack.c.b16 %v1558, %v1558
      %v1591 = vpack.c.b16 %v1559, %v1559
      %v1592 = vpack.c.b16 %v1560, %v1560
      %v1593 = vpack.c.b16 %v1561, %v1561
      %v1594 = vpack.c.b16 %v1562, %v1562
      %v1595 = vpack.c.b16 %v1563, %v1563
      %v1596 = vpack.c.b16 %v1564, %v1564
      %v1597 = vpack.c.b16 %v1565, %v1565
      %v1598 = vpack.c.b16 %v1566, %v1566
      %v1599 = vpack.c.b16 %v1567, %v1567
      %v1600 = vpack.c.b16 %v1568, %v1568
      %v1601 = vpack.c.b16 %v1569, %v1569
      %v1602 = vpack.c.b16 %v1570, %v1570
      %v1603 = vpack.c.b16 %v1571, %v1571
      %v1604 = vpack.c.b16 %v1572, %v1572
      %1637 = vst [vmem:[#allocation4 + $0x18] sm:$0xf] %v1573
      %1638 = vst [vmem:[#allocation4 + $0x3c] sm:$0xf] %v1574
      %1639 = vst [vmem:[#allocation4 + $0x60] sm:$0xf] %v1575
      %1640 = vst [vmem:[#allocation4 + $0x84] sm:$0xf] %v1576
      %1641 = vst [vmem:[#allocation4 + $0xa8] sm:$0xf] %v1577
      %1642 = vst [vmem:[#allocation4 + $0xcc] sm:$0xf] %v1578
      %1643 = vst [vmem:[#allocation4 + $0xf0] sm:$0xf] %v1579
      %1644 = vst [vmem:[#allocation4 + $0x114] sm:$0xf] %v1580
      %1645 = vst [vmem:[#allocation4 + $0x138] sm:$0xf] %v1581
      %1646 = vst [vmem:[#allocation4 + $0x15c] sm:$0xf] %v1582
      %1647 = vst [vmem:[#allocation4 + $0x180] sm:$0xf] %v1583
      %1648 = vst [vmem:[#allocation4 + $0x1a4] sm:$0xf] %v1584
      %1649 = vst [vmem:[#allocation4 + $0x1c8] sm:$0xf] %v1585
      %1650 = vst [vmem:[#allocation4 + $0x1ec] sm:$0xf] %v1586
      %1651 = vst [vmem:[#allocation4 + $0x210] sm:$0xf] %v1587
      %1652 = vst [vmem:[#allocation4 + $0x234] sm:$0xf] %v1588
      %1653 = vst [vmem:[#allocation4 + $0x258] sm:$0xf] %v1589
      %1654 = vst [vmem:[#allocation4 + $0x27c] sm:$0xf] %v1590
      %1655 = vst [vmem:[#allocation4 + $0x2a0] sm:$0xf] %v1591
      %1656 = vst [vmem:[#allocation4 + $0x2c4] sm:$0xf] %v1592
      %1657 = vst [vmem:[#allocation4 + $0x2e8] sm:$0xf] %v1593
      %1658 = vst [vmem:[#allocation4 + $0x30c] sm:$0xf] %v1594
      %1659 = vst [vmem:[#allocation4 + $0x330] sm:$0xf] %v1595
      %1660 = vst [vmem:[#allocation4 + $0x354] sm:$0xf] %v1596
      %1661 = vst [vmem:[#allocation4 + $0x378] sm:$0xf] %v1597
      %1662 = vst [vmem:[#allocation4 + $0x39c] sm:$0xf] %v1598
      %1663 = vst [vmem:[#allocation4 + $0x3c0] sm:$0xf] %v1599
      %1664 = vst [vmem:[#allocation4 + $0x3e4] sm:$0xf] %v1600
      %1665 = vst [vmem:[#allocation4 + $0x408] sm:$0xf] %v1601
      %1666 = vst [vmem:[#allocation4 + $0x42c] sm:$0xf] %v1602
      %1667 = vst [vmem:[#allocation4 + $0x450] sm:$0xf] %v1603
      %1668 = vst [vmem:[#allocation4 + $0x474] sm:$0xf] %v1604
      %v1669 = vld [vmem:[%s1476 + $0x1] sm:$0xff]
      %v1670 = vld [vmem:[%s1476 + $0x9] sm:$0xff]
      %v1671 = vld [vmem:[%s1476 + $0x19] sm:$0xff]
      %v1672 = vld [vmem:[%s1476 + $0x21] sm:$0xff]
      %v1673 = vld [vmem:[%s1476 + $0x31] sm:$0xff]
      %v1674 = vld [vmem:[%s1476 + $0x39] sm:$0xff]
      %v1675 = vld [vmem:[%s1476 + $0x49] sm:$0xff]
      %v1676 = vld [vmem:[%s1476 + $0x51] sm:$0xff]
      %v1677 = vld [vmem:[%s1476 + $0x61] sm:$0xff]
      %v1678 = vld [vmem:[%s1476 + $0x69] sm:$0xff]
      %v1679 = vld [vmem:[%s1476 + $0x79] sm:$0xff]
      %v1680 = vld [vmem:[%s1476 + $0x81] sm:$0xff]
      %v1681 = vld [vmem:[%s1476 + $0x91] sm:$0xff]
      %v1682 = vld [vmem:[%s1476 + $0x99] sm:$0xff]
      %v1683 = vld [vmem:[%s1476 + $0xa9] sm:$0xff]
      %v1684 = vld [vmem:[%s1476 + $0xb1] sm:$0xff]
      %v1685 = vld [vmem:[%s1476 + $0xc1] sm:$0xff]
      %v1686 = vld [vmem:[%s1476 + $0xc9] sm:$0xff]
      %v1687 = vld [vmem:[%s1476 + $0xd9] sm:$0xff]
      %v1688 = vld [vmem:[%s1476 + $0xe1] sm:$0xff]
      %v1689 = vld [vmem:[%s1476 + $0xf1] sm:$0xff]
      %v1690 = vld [vmem:[%s1476 + $0xf9] sm:$0xff]
      %v1691 = vld [vmem:[%s1476 + $0x109] sm:$0xff]
      %v1692 = vld [vmem:[%s1476 + $0x111] sm:$0xff]
      %v1693 = vld [vmem:[%s1476 + $0x121] sm:$0xff]
      %v1694 = vld [vmem:[%s1476 + $0x129] sm:$0xff]
      %v1695 = vld [vmem:[%s1476 + $0x139] sm:$0xff]
      %v1696 = vld [vmem:[%s1476 + $0x141] sm:$0xff]
      %v1697 = vld [vmem:[%s1476 + $0x151] sm:$0xff]
      %v1698 = vld [vmem:[%s1476 + $0x159] sm:$0xff]
      %v1699 = vld [vmem:[%s1476 + $0x169] sm:$0xff]
      %v1700 = vld [vmem:[%s1476 + $0x171] sm:$0xff]
      %v1701 = vpack.c.bf16 %v1670, %v1669
      %v1702 = vpack.c.bf16 %v1672, %v1671
      %v1703 = vpack.c.bf16 %v1674, %v1673
      %v1704 = vpack.c.bf16 %v1676, %v1675
      %v1705 = vpack.c.bf16 %v1678, %v1677
      %v1706 = vpack.c.bf16 %v1680, %v1679
      %v1707 = vpack.c.bf16 %v1682, %v1681
      %v1708 = vpack.c.bf16 %v1684, %v1683
      %v1709 = vpack.c.bf16 %v1686, %v1685
      %v1710 = vpack.c.bf16 %v1688, %v1687
      %v1711 = vpack.c.bf16 %v1690, %v1689
      %v1712 = vpack.c.bf16 %v1692, %v1691
      %v1713 = vpack.c.bf16 %v1694, %v1693
      %v1714 = vpack.c.bf16 %v1696, %v1695
      %v1715 = vpack.c.bf16 %v1698, %v1697
      %v1716 = vpack.c.bf16 %v1700, %v1699
      %v1733 = vunpack.c.l.b16 %v1701
      %v1734 = vunpack.c.h.b16 %v1701
      %v1735 = vunpack.c.l.b16 %v1702
      %v1736 = vunpack.c.h.b16 %v1702
      %v1737 = vunpack.c.l.b16 %v1703
      %v1738 = vunpack.c.h.b16 %v1703
      %v1739 = vunpack.c.l.b16 %v1704
      %v1740 = vunpack.c.h.b16 %v1704
      %v1741 = vunpack.c.l.b16 %v1705
      %v1742 = vunpack.c.h.b16 %v1705
      %v1743 = vunpack.c.l.b16 %v1706
      %v1744 = vunpack.c.h.b16 %v1706
      %v1745 = vunpack.c.l.b16 %v1707
      %v1746 = vunpack.c.h.b16 %v1707
      %v1747 = vunpack.c.l.b16 %v1708
      %v1748 = vunpack.c.h.b16 %v1708
      %v1749 = vunpack.c.l.b16 %v1709
      %v1750 = vunpack.c.h.b16 %v1709
      %v1751 = vunpack.c.l.b16 %v1710
      %v1752 = vunpack.c.h.b16 %v1710
      %v1753 = vunpack.c.l.b16 %v1711
      %v1754 = vunpack.c.h.b16 %v1711
      %v1755 = vunpack.c.l.b16 %v1712
      %v1756 = vunpack.c.h.b16 %v1712
      %v1757 = vunpack.c.l.b16 %v1713
      %v1758 = vunpack.c.h.b16 %v1713
      %v1759 = vunpack.c.l.b16 %v1714
      %v1760 = vunpack.c.h.b16 %v1714
      %v1761 = vunpack.c.l.b16 %v1715
      %v1762 = vunpack.c.h.b16 %v1715
      %v1763 = vunpack.c.l.b16 %v1716
      %v1764 = vunpack.c.h.b16 %v1716
      %v1765 = vpack.c.b16 %v1733, %v1733
      %v1766 = vpack.c.b16 %v1734, %v1734
      %v1767 = vpack.c.b16 %v1735, %v1735
      %v1768 = vpack.c.b16 %v1736, %v1736
      %v1769 = vpack.c.b16 %v1737, %v1737
      %v1770 = vpack.c.b16 %v1738, %v1738
      %v1771 = vpack.c.b16 %v1739, %v1739
      %v1772 = vpack.c.b16 %v1740, %v1740
      %v1773 = vpack.c.b16 %v1741, %v1741
      %v1774 = vpack.c.b16 %v1742, %v1742
      %v1775 = vpack.c.b16 %v1743, %v1743
      %v1776 = vpack.c.b16 %v1744, %v1744
      %v1777 = vpack.c.b16 %v1745, %v1745
      %v1778 = vpack.c.b16 %v1746, %v1746
      %v1779 = vpack.c.b16 %v1747, %v1747
      %v1780 = vpack.c.b16 %v1748, %v1748
      %v1781 = vpack.c.b16 %v1749, %v1749
      %v1782 = vpack.c.b16 %v1750, %v1750
      %v1783 = vpack.c.b16 %v1751, %v1751
      %v1784 = vpack.c.b16 %v1752, %v1752
      %v1785 = vpack.c.b16 %v1753, %v1753
      %v1786 = vpack.c.b16 %v1754, %v1754
      %v1787 = vpack.c.b16 %v1755, %v1755
      %v1788 = vpack.c.b16 %v1756, %v1756
      %v1789 = vpack.c.b16 %v1757, %v1757
      %v1790 = vpack.c.b16 %v1758, %v1758
      %v1791 = vpack.c.b16 %v1759, %v1759
      %v1792 = vpack.c.b16 %v1760, %v1760
      %v1793 = vpack.c.b16 %v1761, %v1761
      %v1794 = vpack.c.b16 %v1762, %v1762
      %v1795 = vpack.c.b16 %v1763, %v1763
      %v1796 = vpack.c.b16 %v1764, %v1764
      %1829 = vst [vmem:[#allocation4 + $0x1c] sm:$0xf] %v1765
      %1830 = vst [vmem:[#allocation4 + $0x40] sm:$0xf] %v1766
      %1831 = vst [vmem:[#allocation4 + $0x64] sm:$0xf] %v1767
      %1832 = vst [vmem:[#allocation4 + $0x88] sm:$0xf] %v1768
      %1833 = vst [vmem:[#allocation4 + $0xac] sm:$0xf] %v1769
      %1834 = vst [vmem:[#allocation4 + $0xd0] sm:$0xf] %v1770
      %1835 = vst [vmem:[#allocation4 + $0xf4] sm:$0xf] %v1771
      %1836 = vst [vmem:[#allocation4 + $0x118] sm:$0xf] %v1772
      %1837 = vst [vmem:[#allocation4 + $0x13c] sm:$0xf] %v1773
      %1838 = vst [vmem:[#allocation4 + $0x160] sm:$0xf] %v1774
      %1839 = vst [vmem:[#allocation4 + $0x184] sm:$0xf] %v1775
      %1840 = vst [vmem:[#allocation4 + $0x1a8] sm:$0xf] %v1776
      %1841 = vst [vmem:[#allocation4 + $0x1cc] sm:$0xf] %v1777
      %1842 = vst [vmem:[#allocation4 + $0x1f0] sm:$0xf] %v1778
      %1843 = vst [vmem:[#allocation4 + $0x214] sm:$0xf] %v1779
      %1844 = vst [vmem:[#allocation4 + $0x238] sm:$0xf] %v1780
      %1845 = vst [vmem:[#allocation4 + $0x25c] sm:$0xf] %v1781
      %1846 = vst [vmem:[#allocation4 + $0x280] sm:$0xf] %v1782
      %1847 = vst [vmem:[#allocation4 + $0x2a4] sm:$0xf] %v1783
      %1848 = vst [vmem:[#allocation4 + $0x2c8] sm:$0xf] %v1784
      %1849 = vst [vmem:[#allocation4 + $0x2ec] sm:$0xf] %v1785
      %1850 = vst [vmem:[#allocation4 + $0x310] sm:$0xf] %v1786
      %1851 = vst [vmem:[#allocation4 + $0x334] sm:$0xf] %v1787
      %1852 = vst [vmem:[#allocation4 + $0x358] sm:$0xf] %v1788
      %1853 = vst [vmem:[#allocation4 + $0x37c] sm:$0xf] %v1789
      %1854 = vst [vmem:[#allocation4 + $0x3a0] sm:$0xf] %v1790
      %1855 = vst [vmem:[#allocation4 + $0x3c4] sm:$0xf] %v1791
      %1856 = vst [vmem:[#allocation4 + $0x3e8] sm:$0xf] %v1792
      %1857 = vst [vmem:[#allocation4 + $0x40c] sm:$0xf] %v1793
      %1858 = vst [vmem:[#allocation4 + $0x430] sm:$0xf] %v1794
      %1859 = vst [vmem:[#allocation4 + $0x454] sm:$0xf] %v1795
      %1860 = vst [vmem:[#allocation4 + $0x478] sm:$0xf] %v1796
      %v1861 = vld [vmem:[%s1476 + $0x2] sm:$0xff]
      %v1862 = vld [vmem:[%s1476 + $0xa] sm:$0xff]
      %v1863 = vld [vmem:[%s1476 + $0x1a] sm:$0xff]
      %v1864 = vld [vmem:[%s1476 + $0x22] sm:$0xff]
      %v1865 = vld [vmem:[%s1476 + $0x32] sm:$0xff]
      %v1866 = vld [vmem:[%s1476 + $0x3a] sm:$0xff]
      %v1867 = vld [vmem:[%s1476 + $0x4a] sm:$0xff]
      %v1868 = vld [vmem:[%s1476 + $0x52] sm:$0xff]
      %v1869 = vld [vmem:[%s1476 + $0x62] sm:$0xff]
      %v1870 = vld [vmem:[%s1476 + $0x6a] sm:$0xff]
      %v1871 = vld [vmem:[%s1476 + $0x7a] sm:$0xff]
      %v1872 = vld [vmem:[%s1476 + $0x82] sm:$0xff]
      %v1873 = vld [vmem:[%s1476 + $0x92] sm:$0xff]
      %v1874 = vld [vmem:[%s1476 + $0x9a] sm:$0xff]
      %v1875 = vld [vmem:[%s1476 + $0xaa] sm:$0xff]
      %v1876 = vld [vmem:[%s1476 + $0xb2] sm:$0xff]
      %v1877 = vld [vmem:[%s1476 + $0xc2] sm:$0xff]
      %v1878 = vld [vmem:[%s1476 + $0xca] sm:$0xff]
      %v1879 = vld [vmem:[%s1476 + $0xda] sm:$0xff]
      %v1880 = vld [vmem:[%s1476 + $0xe2] sm:$0xff]
      %v1881 = vld [vmem:[%s1476 + $0xf2] sm:$0xff]
      %v1882 = vld [vmem:[%s1476 + $0xfa] sm:$0xff]
      %v1883 = vld [vmem:[%s1476 + $0x10a] sm:$0xff]
      %v1884 = vld [vmem:[%s1476 + $0x112] sm:$0xff]
      %v1885 = vld [vmem:[%s1476 + $0x122] sm:$0xff]
      %v1886 = vld [vmem:[%s1476 + $0x12a] sm:$0xff]
      %v1887 = vld [vmem:[%s1476 + $0x13a] sm:$0xff]
      %v1888 = vld [vmem:[%s1476 + $0x142] sm:$0xff]
      %v1889 = vld [vmem:[%s1476 + $0x152] sm:$0xff]
      %v1890 = vld [vmem:[%s1476 + $0x15a] sm:$0xff]
      %v1891 = vld [vmem:[%s1476 + $0x16a] sm:$0xff]
      %v1892 = vld [vmem:[%s1476 + $0x172] sm:$0xff]
      %v1893 = vpack.c.bf16 %v1862, %v1861
      %v1894 = vpack.c.bf16 %v1864, %v1863
      %v1895 = vpack.c.bf16 %v1866, %v1865
      %v1896 = vpack.c.bf16 %v1868, %v1867
      %v1897 = vpack.c.bf16 %v1870, %v1869
      %v1898 = vpack.c.bf16 %v1872, %v1871
      %v1899 = vpack.c.bf16 %v1874, %v1873
      %v1900 = vpack.c.bf16 %v1876, %v1875
      %v1901 = vpack.c.bf16 %v1878, %v1877
      %v1902 = vpack.c.bf16 %v1880, %v1879
      %v1903 = vpack.c.bf16 %v1882, %v1881
      %v1904 = vpack.c.bf16 %v1884, %v1883
      %v1905 = vpack.c.bf16 %v1886, %v1885
      %v1906 = vpack.c.bf16 %v1888, %v1887
      %v1907 = vpack.c.bf16 %v1890, %v1889
      %v1908 = vpack.c.bf16 %v1892, %v1891
      %v1925 = vunpack.c.l.b16 %v1893
      %v1926 = vunpack.c.h.b16 %v1893
      %v1927 = vunpack.c.l.b16 %v1894
      %v1928 = vunpack.c.h.b16 %v1894
      %v1929 = vunpack.c.l.b16 %v1895
      %v1930 = vunpack.c.h.b16 %v1895
      %v1931 = vunpack.c.l.b16 %v1896
      %v1932 = vunpack.c.h.b16 %v1896
      %v1933 = vunpack.c.l.b16 %v1897
      %v1934 = vunpack.c.h.b16 %v1897
      %v1935 = vunpack.c.l.b16 %v1898
      %v1936 = vunpack.c.h.b16 %v1898
      %v1937 = vunpack.c.l.b16 %v1899
      %v1938 = vunpack.c.h.b16 %v1899
      %v1939 = vunpack.c.l.b16 %v1900
      %v1940 = vunpack.c.h.b16 %v1900
      %v1941 = vunpack.c.l.b16 %v1901
      %v1942 = vunpack.c.h.b16 %v1901
      %v1943 = vunpack.c.l.b16 %v1902
      %v1944 = vunpack.c.h.b16 %v1902
      %v1945 = vunpack.c.l.b16 %v1903
      %v1946 = vunpack.c.h.b16 %v1903
      %v1947 = vunpack.c.l.b16 %v1904
      %v1948 = vunpack.c.h.b16 %v1904
      %v1949 = vunpack.c.l.b16 %v1905
      %v1950 = vunpack.c.h.b16 %v1905
      %v1951 = vunpack.c.l.b16 %v1906
      %v1952 = vunpack.c.h.b16 %v1906
      %v1953 = vunpack.c.l.b16 %v1907
      %v1954 = vunpack.c.h.b16 %v1907
      %v1955 = vunpack.c.l.b16 %v1908
      %v1956 = vunpack.c.h.b16 %v1908
      %v1957 = vpack.c.b16 %v1925, %v1925
      %v1958 = vpack.c.b16 %v1926, %v1926
      %v1959 = vpack.c.b16 %v1927, %v1927
      %v1960 = vpack.c.b16 %v1928, %v1928
      %v1961 = vpack.c.b16 %v1929, %v1929
      %v1962 = vpack.c.b16 %v1930, %v1930
      %v1963 = vpack.c.b16 %v1931, %v1931
      %v1964 = vpack.c.b16 %v1932, %v1932
      %v1965 = vpack.c.b16 %v1933, %v1933
      %v1966 = vpack.c.b16 %v1934, %v1934
      %v1967 = vpack.c.b16 %v1935, %v1935
      %v1968 = vpack.c.b16 %v1936, %v1936
      %v1969 = vpack.c.b16 %v1937, %v1937
      %v1970 = vpack.c.b16 %v1938, %v1938
      %v1971 = vpack.c.b16 %v1939, %v1939
      %v1972 = vpack.c.b16 %v1940, %v1940
      %v1973 = vpack.c.b16 %v1941, %v1941
      %v1974 = vpack.c.b16 %v1942, %v1942
      %v1975 = vpack.c.b16 %v1943, %v1943
      %v1976 = vpack.c.b16 %v1944, %v1944
      %v1977 = vpack.c.b16 %v1945, %v1945
      %v1978 = vpack.c.b16 %v1946, %v1946
      %v1979 = vpack.c.b16 %v1947, %v1947
      %v1980 = vpack.c.b16 %v1948, %v1948
      %v1981 = vpack.c.b16 %v1949, %v1949
      %v1982 = vpack.c.b16 %v1950, %v1950
      %v1983 = vpack.c.b16 %v1951, %v1951
      %v1984 = vpack.c.b16 %v1952, %v1952
      %v1985 = vpack.c.b16 %v1953, %v1953
      %v1986 = vpack.c.b16 %v1954, %v1954
      %v1987 = vpack.c.b16 %v1955, %v1955
      %v1988 = vpack.c.b16 %v1956, %v1956
      %2021 = vst [vmem:[#allocation4 + $0x20] sm:$0xf] %v1957
      %2022 = vst [vmem:[#allocation4 + $0x44] sm:$0xf] %v1958
      %2023 = vst [vmem:[#allocation4 + $0x68] sm:$0xf] %v1959
      %2024 = vst [vmem:[#allocation4 + $0x8c] sm:$0xf] %v1960
      %2025 = vst [vmem:[#allocation4 + $0xb0] sm:$0xf] %v1961
      %2026 = vst [vmem:[#allocation4 + $0xd4] sm:$0xf] %v1962
      %2027 = vst [vmem:[#allocation4 + $0xf8] sm:$0xf] %v1963
      %2028 = vst [vmem:[#allocation4 + $0x11c] sm:$0xf] %v1964
      %2029 = vst [vmem:[#allocation4 + $0x140] sm:$0xf] %v1965
      %2030 = vst [vmem:[#allocation4 + $0x164] sm:$0xf] %v1966
      %2031 = vst [vmem:[#allocation4 + $0x188] sm:$0xf] %v1967
      %2032 = vst [vmem:[#allocation4 + $0x1ac] sm:$0xf] %v1968
      %2033 = vst [vmem:[#allocation4 + $0x1d0] sm:$0xf] %v1969
      %2034 = vst [vmem:[#allocation4 + $0x1f4] sm:$0xf] %v1970
      %2035 = vst [vmem:[#allocation4 + $0x218] sm:$0xf] %v1971
      %2036 = vst [vmem:[#allocation4 + $0x23c] sm:$0xf] %v1972
      %2037 = vst [vmem:[#allocation4 + $0x260] sm:$0xf] %v1973
      %2038 = vst [vmem:[#allocation4 + $0x284] sm:$0xf] %v1974
      %2039 = vst [vmem:[#allocation4 + $0x2a8] sm:$0xf] %v1975
      %2040 = vst [vmem:[#allocation4 + $0x2cc] sm:$0xf] %v1976
      %2041 = vst [vmem:[#allocation4 + $0x2f0] sm:$0xf] %v1977
      %2042 = vst [vmem:[#allocation4 + $0x314] sm:$0xf] %v1978
      %2043 = vst [vmem:[#allocation4 + $0x338] sm:$0xf] %v1979
      %2044 = vst [vmem:[#allocation4 + $0x35c] sm:$0xf] %v1980
      %2045 = vst [vmem:[#allocation4 + $0x380] sm:$0xf] %v1981
      %2046 = vst [vmem:[#allocation4 + $0x3a4] sm:$0xf] %v1982
      %2047 = vst [vmem:[#allocation4 + $0x3c8] sm:$0xf] %v1983
      %2048 = vst [vmem:[#allocation4 + $0x3ec] sm:$0xf] %v1984
      %2049 = vst [vmem:[#allocation4 + $0x410] sm:$0xf] %v1985
      %2050 = vst [vmem:[#allocation4 + $0x434] sm:$0xf] %v1986
      %2051 = vst [vmem:[#allocation4 + $0x458] sm:$0xf] %v1987
      %2052 = vst [vmem:[#allocation4 + $0x47c] sm:$0xf] %v1988
      %v2053 = vld [vmem:[#allocation4] sm:$0xff]
      %v2054 = vld [vmem:[#allocation4 + $0x8] sm:$0xff]
      %v2055 = vld [vmem:[#allocation4 + $0x10] sm:$0xff]
      %v2056 = vld [vmem:[#allocation4 + $0x18] sm:$0xff]
      %v2057 = vld [vmem:[#allocation4 + $0x20] sm:$0xf]
      %v2058 = vld [vmem:[#allocation4 + $0x24] sm:$0xff]
      %v2059 = vld [vmem:[#allocation4 + $0x2c] sm:$0xff]
      %v2060 = vld [vmem:[#allocation4 + $0x34] sm:$0xff]
      %v2061 = vld [vmem:[#allocation4 + $0x3c] sm:$0xff]
      %v2062 = vld [vmem:[#allocation4 + $0x44] sm:$0xf]
      %v2063 = vld [vmem:[#allocation4 + $0x48] sm:$0xff]
      %v2064 = vld [vmem:[#allocation4 + $0x50] sm:$0xff]
      %v2065 = vld [vmem:[#allocation4 + $0x58] sm:$0xff]
      %v2066 = vld [vmem:[#allocation4 + $0x60] sm:$0xff]
      %v2067 = vld [vmem:[#allocation4 + $0x68] sm:$0xf]
      %v2068 = vld [vmem:[#allocation4 + $0x6c] sm:$0xff]
      %v2069 = vld [vmem:[#allocation4 + $0x74] sm:$0xff]
      %v2070 = vld [vmem:[#allocation4 + $0x7c] sm:$0xff]
      %v2071 = vld [vmem:[#allocation4 + $0x84] sm:$0xff]
      %v2072 = vld [vmem:[#allocation4 + $0x8c] sm:$0xf]
      %v2073 = vld [vmem:[#allocation4 + $0x90] sm:$0xff]
      %v2074 = vld [vmem:[#allocation4 + $0x98] sm:$0xff]
      %v2075 = vld [vmem:[#allocation4 + $0xa0] sm:$0xff]
      %v2076 = vld [vmem:[#allocation4 + $0xa8] sm:$0xff]
      %v2077 = vld [vmem:[#allocation4 + $0xb0] sm:$0xf]
      %v2078 = vld [vmem:[#allocation4 + $0xb4] sm:$0xff]
      %v2079 = vld [vmem:[#allocation4 + $0xbc] sm:$0xff]
      %v2080 = vld [vmem:[#allocation4 + $0xc4] sm:$0xff]
      %v2081 = vld [vmem:[#allocation4 + $0xcc] sm:$0xff]
      %v2082 = vld [vmem:[#allocation4 + $0xd4] sm:$0xf]
      %v2083 = vld [vmem:[#allocation4 + $0xd8] sm:$0xff]
      %v2084 = vld [vmem:[#allocation4 + $0xe0] sm:$0xff]
      %v2085 = vld [vmem:[#allocation4 + $0xe8] sm:$0xff]
      %v2086 = vld [vmem:[#allocation4 + $0xf0] sm:$0xff]
      %v2087 = vld [vmem:[#allocation4 + $0xf8] sm:$0xf]
      %v2088 = vld [vmem:[#allocation4 + $0xfc] sm:$0xff]
      %v2089 = vld [vmem:[#allocation4 + $0x104] sm:$0xff]
      %v2090 = vld [vmem:[#allocation4 + $0x10c] sm:$0xff]
      %v2091 = vld [vmem:[#allocation4 + $0x114] sm:$0xff]
      %v2092 = vld [vmem:[#allocation4 + $0x11c] sm:$0xf]
      %v2093 = vld [vmem:[#allocation4 + $0x120] sm:$0xff]
      %v2094 = vld [vmem:[#allocation4 + $0x128] sm:$0xff]
      %v2095 = vld [vmem:[#allocation4 + $0x130] sm:$0xff]
      %v2096 = vld [vmem:[#allocation4 + $0x138] sm:$0xff]
      %v2097 = vld [vmem:[#allocation4 + $0x140] sm:$0xf]
      %v2098 = vld [vmem:[#allocation4 + $0x144] sm:$0xff]
      %v2099 = vld [vmem:[#allocation4 + $0x14c] sm:$0xff]
      %v2100 = vld [vmem:[#allocation4 + $0x154] sm:$0xff]
      %v2101 = vld [vmem:[#allocation4 + $0x15c] sm:$0xff]
      %v2102 = vld [vmem:[#allocation4 + $0x164] sm:$0xf]
      %v2103 = vld [vmem:[#allocation4 + $0x168] sm:$0xff]
      %v2104 = vld [vmem:[#allocation4 + $0x170] sm:$0xff]
      %v2105 = vld [vmem:[#allocation4 + $0x178] sm:$0xff]
      %v2106 = vld [vmem:[#allocation4 + $0x180] sm:$0xff]
      %v2107 = vld [vmem:[#allocation4 + $0x188] sm:$0xf]
      %v2108 = vld [vmem:[#allocation4 + $0x18c] sm:$0xff]
      %v2109 = vld [vmem:[#allocation4 + $0x194] sm:$0xff]
      %v2110 = vld [vmem:[#allocation4 + $0x19c] sm:$0xff]
      %v2111 = vld [vmem:[#allocation4 + $0x1a4] sm:$0xff]
      %v2112 = vld [vmem:[#allocation4 + $0x1ac] sm:$0xf]
      %v2113 = vld [vmem:[#allocation4 + $0x1b0] sm:$0xff]
      %v2114 = vld [vmem:[#allocation4 + $0x1b8] sm:$0xff]
      %v2115 = vld [vmem:[#allocation4 + $0x1c0] sm:$0xff]
      %v2116 = vld [vmem:[#allocation4 + $0x1c8] sm:$0xff]
      %v2117 = vld [vmem:[#allocation4 + $0x1d0] sm:$0xf]
      %v2118 = vld [vmem:[#allocation4 + $0x1d4] sm:$0xff]
      %v2119 = vld [vmem:[#allocation4 + $0x1dc] sm:$0xff]
      %v2120 = vld [vmem:[#allocation4 + $0x1e4] sm:$0xff]
      %v2121 = vld [vmem:[#allocation4 + $0x1ec] sm:$0xff]
      %v2122 = vld [vmem:[#allocation4 + $0x1f4] sm:$0xf]
      %v2123 = vld [vmem:[#allocation4 + $0x1f8] sm:$0xff]
      %v2124 = vld [vmem:[#allocation4 + $0x200] sm:$0xff]
      %v2125 = vld [vmem:[#allocation4 + $0x208] sm:$0xff]
      %v2126 = vld [vmem:[#allocation4 + $0x210] sm:$0xff]
      %v2127 = vld [vmem:[#allocation4 + $0x218] sm:$0xf]
      %v2128 = vld [vmem:[#allocation4 + $0x21c] sm:$0xff]
      %v2129 = vld [vmem:[#allocation4 + $0x224] sm:$0xff]
      %v2130 = vld [vmem:[#allocation4 + $0x22c] sm:$0xff]
      %v2131 = vld [vmem:[#allocation4 + $0x234] sm:$0xff]
      %v2132 = vld [vmem:[#allocation4 + $0x23c] sm:$0xf]
      %v2133 = vld [vmem:[#allocation4 + $0x240] sm:$0xff]
      %v2134 = vld [vmem:[#allocation4 + $0x248] sm:$0xff]
      %v2135 = vld [vmem:[#allocation4 + $0x250] sm:$0xff]
      %v2136 = vld [vmem:[#allocation4 + $0x258] sm:$0xff]
      %v2137 = vld [vmem:[#allocation4 + $0x260] sm:$0xf]
      %v2138 = vld [vmem:[#allocation4 + $0x264] sm:$0xff]
      %v2139 = vld [vmem:[#allocation4 + $0x26c] sm:$0xff]
      %v2140 = vld [vmem:[#allocation4 + $0x274] sm:$0xff]
      %v2141 = vld [vmem:[#allocation4 + $0x27c] sm:$0xff]
      %v2142 = vld [vmem:[#allocation4 + $0x284] sm:$0xf]
      %v2143 = vld [vmem:[#allocation4 + $0x288] sm:$0xff]
      %v2144 = vld [vmem:[#allocation4 + $0x290] sm:$0xff]
      %v2145 = vld [vmem:[#allocation4 + $0x298] sm:$0xff]
      %v2146 = vld [vmem:[#allocation4 + $0x2a0] sm:$0xff]
      %v2147 = vld [vmem:[#allocation4 + $0x2a8] sm:$0xf]
      %v2148 = vld [vmem:[#allocation4 + $0x2ac] sm:$0xff]
      %v2149 = vld [vmem:[#allocation4 + $0x2b4] sm:$0xff]
      %v2150 = vld [vmem:[#allocation4 + $0x2bc] sm:$0xff]
      %v2151 = vld [vmem:[#allocation4 + $0x2c4] sm:$0xff]
      %v2152 = vld [vmem:[#allocation4 + $0x2cc] sm:$0xf]
      %v2153 = vld [vmem:[#allocation4 + $0x2d0] sm:$0xff]
      %v2154 = vld [vmem:[#allocation4 + $0x2d8] sm:$0xff]
      %v2155 = vld [vmem:[#allocation4 + $0x2e0] sm:$0xff]
      %v2156 = vld [vmem:[#allocation4 + $0x2e8] sm:$0xff]
      %v2157 = vld [vmem:[#allocation4 + $0x2f0] sm:$0xf]
      %v2158 = vld [vmem:[#allocation4 + $0x2f4] sm:$0xff]
      %v2159 = vld [vmem:[#allocation4 + $0x2fc] sm:$0xff]
      %v2160 = vld [vmem:[#allocation4 + $0x304] sm:$0xff]
      %v2161 = vld [vmem:[#allocation4 + $0x30c] sm:$0xff]
      %v2162 = vld [vmem:[#allocation4 + $0x314] sm:$0xf]
      %v2163 = vld [vmem:[#allocation4 + $0x318] sm:$0xff]
      %v2164 = vld [vmem:[#allocation4 + $0x320] sm:$0xff]
      %v2165 = vld [vmem:[#allocation4 + $0x328] sm:$0xff]
      %v2166 = vld [vmem:[#allocation4 + $0x330] sm:$0xff]
      %v2167 = vld [vmem:[#allocation4 + $0x338] sm:$0xf]
      %v2168 = vld [vmem:[#allocation4 + $0x33c] sm:$0xff]
      %v2169 = vld [vmem:[#allocation4 + $0x344] sm:$0xff]
      %v2170 = vld [vmem:[#allocation4 + $0x34c] sm:$0xff]
      %v2171 = vld [vmem:[#allocation4 + $0x354] sm:$0xff]
      %v2172 = vld [vmem:[#allocation4 + $0x35c] sm:$0xf]
      %v2173 = vld [vmem:[#allocation4 + $0x360] sm:$0xff]
      %v2174 = vld [vmem:[#allocation4 + $0x368] sm:$0xff]
      %v2175 = vld [vmem:[#allocation4 + $0x370] sm:$0xff]
      %v2176 = vld [vmem:[#allocation4 + $0x378] sm:$0xff]
      %v2177 = vld [vmem:[#allocation4 + $0x380] sm:$0xf]
      %v2178 = vld [vmem:[#allocation4 + $0x384] sm:$0xff]
      %v2179 = vld [vmem:[#allocation4 + $0x38c] sm:$0xff]
      %v2180 = vld [vmem:[#allocation4 + $0x394] sm:$0xff]
      %v2181 = vld [vmem:[#allocation4 + $0x39c] sm:$0xff]
      %v2182 = vld [vmem:[#allocation4 + $0x3a4] sm:$0xf]
      %v2183 = vld [vmem:[#allocation4 + $0x3a8] sm:$0xff]
      %v2184 = vld [vmem:[#allocation4 + $0x3b0] sm:$0xff]
      %v2185 = vld [vmem:[#allocation4 + $0x3b8] sm:$0xff]
      %v2186 = vld [vmem:[#allocation4 + $0x3c0] sm:$0xff]
      %v2187 = vld [vmem:[#allocation4 + $0x3c8] sm:$0xf]
      %v2188 = vld [vmem:[#allocation4 + $0x3cc] sm:$0xff]
      %v2189 = vld [vmem:[#allocation4 + $0x3d4] sm:$0xff]
      %v2190 = vld [vmem:[#allocation4 + $0x3dc] sm:$0xff]
      %v2191 = vld [vmem:[#allocation4 + $0x3e4] sm:$0xff]
      %v2192 = vld [vmem:[#allocation4 + $0x3ec] sm:$0xf]
      %v2193 = vld [vmem:[#allocation4 + $0x3f0] sm:$0xff]
      %v2194 = vld [vmem:[#allocation4 + $0x3f8] sm:$0xff]
      %v2195 = vld [vmem:[#allocation4 + $0x400] sm:$0xff]
      %v2196 = vld [vmem:[#allocation4 + $0x408] sm:$0xff]
      %v2197 = vld [vmem:[#allocation4 + $0x410] sm:$0xf]
      %v2198 = vld [vmem:[#allocation4 + $0x414] sm:$0xff]
      %v2199 = vld [vmem:[#allocation4 + $0x41c] sm:$0xff]
      %v2200 = vld [vmem:[#allocation4 + $0x424] sm:$0xff]
      %v2201 = vld [vmem:[#allocation4 + $0x42c] sm:$0xff]
      %v2202 = vld [vmem:[#allocation4 + $0x434] sm:$0xf]
      %v2203 = vld [vmem:[#allocation4 + $0x438] sm:$0xff]
      %v2204 = vld [vmem:[#allocation4 + $0x440] sm:$0xff]
      %v2205 = vld [vmem:[#allocation4 + $0x448] sm:$0xff]
      %v2206 = vld [vmem:[#allocation4 + $0x450] sm:$0xff]
      %v2207 = vld [vmem:[#allocation4 + $0x458] sm:$0xf]
      %v2208 = vld [vmem:[#allocation4 + $0x45c] sm:$0xff]
      %v2209 = vld [vmem:[#allocation4 + $0x464] sm:$0xff]
      %v2210 = vld [vmem:[#allocation4 + $0x46c] sm:$0xff]
      %v2211 = vld [vmem:[#allocation4 + $0x474] sm:$0xff]
      %v2212 = vld [vmem:[#allocation4 + $0x47c] sm:$0xf]
      %v2213 = vld [vmem:[%s1] sm:$0xf]
      %v2214 = vld [vmem:[%s1 + $0x4] sm:$0xf]
      %v2215 = vld [vmem:[%s1 + $0x8] sm:$0xf]
      %v2216 = vld [vmem:[%s1 + $0xc] sm:$0xf]
      %v2217 = vld [vmem:[%s1 + $0x10] sm:$0xf]
      %v2218 = vld [vmem:[%s1 + $0x14] sm:$0xf]
      %v2219 = vld [vmem:[%s1 + $0x18] sm:$0xf]
      %v2220 = vld [vmem:[%s1 + $0x1c] sm:$0xf]
      %v2221 = vld [vmem:[%s1 + $0x20] sm:$0xf]
      %v2222 = vld [vmem:[%s1 + $0x24] sm:$0xf]
      %v2223 = vld [vmem:[%s1 + $0x28] sm:$0xf]
      %v2224 = vld [vmem:[%s1 + $0x2c] sm:$0xf]
      %v2225 = vld [vmem:[%s1 + $0x30] sm:$0xf]
      %v2226 = vld [vmem:[%s1 + $0x34] sm:$0xf]
      %v2227 = vld [vmem:[%s1 + $0x38] sm:$0xf]
      %v2228 = vld [vmem:[%s1 + $0x3c] sm:$0xf]
      %v2229 = vld [vmem:[%s1 + $0x40] sm:$0xf]
      %v2230 = vld [vmem:[%s1 + $0x44] sm:$0xf]
      %v2231 = vld [vmem:[%s1 + $0x48] sm:$0xf]
      %v2232 = vld [vmem:[%s1 + $0x4c] sm:$0xf]
      %v2233 = vld [vmem:[%s1 + $0x50] sm:$0xf]
      %v2234 = vld [vmem:[%s1 + $0x54] sm:$0xf]
      %v2235 = vld [vmem:[%s1 + $0x58] sm:$0xf]
      %v2236 = vld [vmem:[%s1 + $0x5c] sm:$0xf]
      %v2237 = vld [vmem:[%s1 + $0x60] sm:$0xf]
      %v2238 = vld [vmem:[%s1 + $0x64] sm:$0xf]
      %v2239 = vld [vmem:[%s1 + $0x68] sm:$0xf]
      %v2240 = vld [vmem:[%s1 + $0x6c] sm:$0xf]
      %v2241 = vld [vmem:[%s1 + $0x70] sm:$0xf]
      %v2242 = vld [vmem:[%s1 + $0x74] sm:$0xf]
      %v2243 = vld [vmem:[%s1 + $0x78] sm:$0xf]
      %v2244 = vld [vmem:[%s1 + $0x7c] sm:$0xf]
      %v2245 = vld [vmem:[%s1 + $0x80] sm:$0xf]
      %v2246 = vld [vmem:[%s1 + $0x84] sm:$0xf]
      %v2247 = vld [vmem:[%s1 + $0x88] sm:$0xf]
      %v2248 = vld [vmem:[%s1 + $0x8c] sm:$0xf]
      %v2249 = vld [vmem:[%s1 + $0x90] sm:$0xf]
      %v2250 = vld [vmem:[%s1 + $0x94] sm:$0xf]
      %v2251 = vld [vmem:[%s1 + $0x98] sm:$0xf]
      %v2252 = vld [vmem:[%s1 + $0x9c] sm:$0xf]
      %v2253 = vld [vmem:[%s1 + $0xa0] sm:$0xf]
      %v2254 = vld [vmem:[%s1 + $0xa4] sm:$0xf]
      %v2255 = vld [vmem:[%s1 + $0xa8] sm:$0xf]
      %v2256 = vld [vmem:[%s1 + $0xac] sm:$0xf]
      %v2257 = vld [vmem:[%s1 + $0xb0] sm:$0xf]
      %v2258 = vld [vmem:[%s1 + $0xb4] sm:$0xf]
      %v2259 = vld [vmem:[%s1 + $0xb8] sm:$0xf]
      %v2260 = vld [vmem:[%s1 + $0xbc] sm:$0xf]
      %v2261 = vld [vmem:[%s1 + $0xc0] sm:$0xf]
      %v2262 = vld [vmem:[%s1 + $0xc4] sm:$0xf]
      %v2263 = vld [vmem:[%s1 + $0xc8] sm:$0xf]
      %v2264 = vld [vmem:[%s1 + $0xcc] sm:$0xf]
      %v2265 = vld [vmem:[%s1 + $0xd0] sm:$0xf]
      %v2266 = vld [vmem:[%s1 + $0xd4] sm:$0xf]
      %v2267 = vld [vmem:[%s1 + $0xd8] sm:$0xf]
      %v2268 = vld [vmem:[%s1 + $0xdc] sm:$0xf]
      %v2269 = vld [vmem:[%s1 + $0xe0] sm:$0xf]
      %v2270 = vld [vmem:[%s1 + $0xe4] sm:$0xf]
      %v2271 = vld [vmem:[%s1 + $0xe8] sm:$0xf]
      %v2272 = vld [vmem:[%s1 + $0xec] sm:$0xf]
      %v2273 = vld [vmem:[%s1 + $0xf0] sm:$0xf]
      %v2274 = vld [vmem:[%s1 + $0xf4] sm:$0xf]
      %v2275 = vld [vmem:[%s1 + $0xf8] sm:$0xf]
      %v2276 = vld [vmem:[%s1 + $0xfc] sm:$0xf]
      %v2277 = vld [vmem:[%s1 + $0x100] sm:$0xf]
      %v2278 = vld [vmem:[%s1 + $0x104] sm:$0xf]
      %v2279 = vld [vmem:[%s1 + $0x108] sm:$0xf]
      %v2280 = vld [vmem:[%s1 + $0x10c] sm:$0xf]
      %v2281 = vld [vmem:[%s1 + $0x110] sm:$0xf]
      %v2282 = vld [vmem:[%s1 + $0x114] sm:$0xf]
      %v2283 = vld [vmem:[%s1 + $0x118] sm:$0xf]
      %v2284 = vld [vmem:[%s1 + $0x11c] sm:$0xf]
      %v2285 = vld [vmem:[%s1 + $0x120] sm:$0xf]
      %v2286 = vld [vmem:[%s1 + $0x124] sm:$0xf]
      %v2287 = vld [vmem:[%s1 + $0x128] sm:$0xf]
      %v2288 = vld [vmem:[%s1 + $0x12c] sm:$0xf]
      %v2289 = vld [vmem:[%s1 + $0x130] sm:$0xf]
      %v2290 = vld [vmem:[%s1 + $0x134] sm:$0xf]
      %v2291 = vld [vmem:[%s1 + $0x138] sm:$0xf]
      %v2292 = vld [vmem:[%s1 + $0x13c] sm:$0xf]
      %v2293 = vld [vmem:[%s1 + $0x140] sm:$0xf]
      %v2294 = vld [vmem:[%s1 + $0x144] sm:$0xf]
      %v2295 = vld [vmem:[%s1 + $0x148] sm:$0xf]
      %v2296 = vld [vmem:[%s1 + $0x14c] sm:$0xf]
      %v2297 = vld [vmem:[%s1 + $0x150] sm:$0xf]
      %v2298 = vld [vmem:[%s1 + $0x154] sm:$0xf]
      %v2299 = vld [vmem:[%s1 + $0x158] sm:$0xf]
      %v2300 = vld [vmem:[%s1 + $0x15c] sm:$0xf]
      %v2301 = vld [vmem:[%s1 + $0x160] sm:$0xf]
      %v2302 = vld [vmem:[%s1 + $0x164] sm:$0xf]
      %v2303 = vld [vmem:[%s1 + $0x168] sm:$0xf]
      %v2304 = vld [vmem:[%s1 + $0x16c] sm:$0xf]
      %v2305 = vld [vmem:[%s1 + $0x170] sm:$0xf]
      %v2306 = vld [vmem:[%s1 + $0x174] sm:$0xf]
      %v2307 = vld [vmem:[%s1 + $0x178] sm:$0xf]
      %v2308 = vld [vmem:[%s1 + $0x17c] sm:$0xf]
      %v2309 = vld [vmem:[%s1 + $0x180] sm:$0xf]
      %v2310 = vld [vmem:[%s1 + $0x184] sm:$0xf]
      %v2311 = vld [vmem:[%s1 + $0x188] sm:$0xf]
      %v2312 = vld [vmem:[%s1 + $0x18c] sm:$0xf]
      %v2313 = vld [vmem:[%s1 + $0x190] sm:$0xf]
      %v2314 = vld [vmem:[%s1 + $0x194] sm:$0xf]
      %v2315 = vld [vmem:[%s1 + $0x198] sm:$0xf]
      %v2316 = vld [vmem:[%s1 + $0x19c] sm:$0xf]
      %v2317 = vld [vmem:[%s1 + $0x1a0] sm:$0xf]
      %v2318 = vld [vmem:[%s1 + $0x1a4] sm:$0xf]
      %v2319 = vld [vmem:[%s1 + $0x1a8] sm:$0xf]
      %v2320 = vld [vmem:[%s1 + $0x1ac] sm:$0xf]
      %v2321 = vld [vmem:[%s1 + $0x1b0] sm:$0xf]
      %v2322 = vld [vmem:[%s1 + $0x1b4] sm:$0xf]
      %v2323 = vld [vmem:[%s1 + $0x1b8] sm:$0xf]
      %v2324 = vld [vmem:[%s1 + $0x1bc] sm:$0xf]
      %v2325 = vld [vmem:[%s1 + $0x1c0] sm:$0xf]
      %v2326 = vld [vmem:[%s1 + $0x1c4] sm:$0xf]
      %v2327 = vld [vmem:[%s1 + $0x1c8] sm:$0xf]
      %v2328 = vld [vmem:[%s1 + $0x1cc] sm:$0xf]
      %v2329 = vld [vmem:[%s1 + $0x1d0] sm:$0xf]
      %v2330 = vld [vmem:[%s1 + $0x1d4] sm:$0xf]
      %v2331 = vld [vmem:[%s1 + $0x1d8] sm:$0xf]
      %v2332 = vld [vmem:[%s1 + $0x1dc] sm:$0xf]
      %v2333 = vld [vmem:[%s1 + $0x1e0] sm:$0xf]
      %v2334 = vld [vmem:[%s1 + $0x1e4] sm:$0xf]
      %v2335 = vld [vmem:[%s1 + $0x1e8] sm:$0xf]
      %v2336 = vld [vmem:[%s1 + $0x1ec] sm:$0xf]
      %v2337 = vld [vmem:[%s1 + $0x1f0] sm:$0xf]
      %v2338 = vld [vmem:[%s1 + $0x1f4] sm:$0xf]
      %v2339 = vld [vmem:[%s1 + $0x1f8] sm:$0xf]
      %v2340 = vld [vmem:[%s1 + $0x1fc] sm:$0xf]
      %v2341 = vld [vmem:[%s1 + $0x200] sm:$0xf]
      %v2342 = vld [vmem:[%s1 + $0x204] sm:$0xf]
      %v2343 = vld [vmem:[%s1 + $0x208] sm:$0xf]
      %v2344 = vld [vmem:[%s1 + $0x20c] sm:$0xf]
      %v2345 = vld [vmem:[%s1 + $0x210] sm:$0xf]
      %v2346 = vld [vmem:[%s1 + $0x214] sm:$0xf]
      %v2347 = vld [vmem:[%s1 + $0x218] sm:$0xf]
      %v2348 = vld [vmem:[%s1 + $0x21c] sm:$0xf]
      %v2349 = vld [vmem:[%s1 + $0x220] sm:$0xf]
      %v2350 = vld [vmem:[%s1 + $0x224] sm:$0xf]
      %v2351 = vld [vmem:[%s1 + $0x228] sm:$0xf]
      %v2352 = vld [vmem:[%s1 + $0x22c] sm:$0xf]
      %v2353 = vld [vmem:[%s1 + $0x230] sm:$0xf]
      %v2354 = vld [vmem:[%s1 + $0x234] sm:$0xf]
      %v2355 = vld [vmem:[%s1 + $0x238] sm:$0xf]
      %v2356 = vld [vmem:[%s1 + $0x23c] sm:$0xf]
      %v2517 = vunpack.c.l.b16 %v2053
      %v2518 = vunpack.c.h.b16 %v2053
      %v2519 = vunpack.c.l.b16 %v2054
      %v2520 = vunpack.c.h.b16 %v2054
      %v2521 = vunpack.c.l.b16 %v2055
      %v2522 = vunpack.c.h.b16 %v2055
      %v2523 = vunpack.c.l.b16 %v2056
      %v2524 = vunpack.c.h.b16 %v2056
      %v2525 = vunpack.c.l.b16 %v2057
      %v2526 = vunpack.c.l.b16 %v2058
      %v2527 = vunpack.c.h.b16 %v2058
      %v2528 = vunpack.c.l.b16 %v2059
      %v2529 = vunpack.c.h.b16 %v2059
      %v2530 = vunpack.c.l.b16 %v2060
      %v2531 = vunpack.c.h.b16 %v2060
      %v2532 = vunpack.c.l.b16 %v2061
      %v2533 = vunpack.c.h.b16 %v2061
      %v2534 = vunpack.c.l.b16 %v2062
      %v2535 = vunpack.c.l.b16 %v2063
      %v2536 = vunpack.c.h.b16 %v2063
      %v2537 = vunpack.c.l.b16 %v2064
      %v2538 = vunpack.c.h.b16 %v2064
      %v2539 = vunpack.c.l.b16 %v2065
      %v2540 = vunpack.c.h.b16 %v2065
      %v2541 = vunpack.c.l.b16 %v2066
      %v2542 = vunpack.c.h.b16 %v2066
      %v2543 = vunpack.c.l.b16 %v2067
      %v2544 = vunpack.c.l.b16 %v2068
      %v2545 = vunpack.c.h.b16 %v2068
      %v2546 = vunpack.c.l.b16 %v2069
      %v2547 = vunpack.c.h.b16 %v2069
      %v2548 = vunpack.c.l.b16 %v2070
      %v2549 = vunpack.c.h.b16 %v2070
      %v2550 = vunpack.c.l.b16 %v2071
      %v2551 = vunpack.c.h.b16 %v2071
      %v2552 = vunpack.c.l.b16 %v2072
      %v2553 = vunpack.c.l.b16 %v2073
      %v2554 = vunpack.c.h.b16 %v2073
      %v2555 = vunpack.c.l.b16 %v2074
      %v2556 = vunpack.c.h.b16 %v2074
      %v2557 = vunpack.c.l.b16 %v2075
      %v2558 = vunpack.c.h.b16 %v2075
      %v2559 = vunpack.c.l.b16 %v2076
      %v2560 = vunpack.c.h.b16 %v2076
      %v2561 = vunpack.c.l.b16 %v2077
      %v2562 = vunpack.c.l.b16 %v2078
      %v2563 = vunpack.c.h.b16 %v2078
      %v2564 = vunpack.c.l.b16 %v2079
      %v2565 = vunpack.c.h.b16 %v2079
      %v2566 = vunpack.c.l.b16 %v2080
      %v2567 = vunpack.c.h.b16 %v2080
      %v2568 = vunpack.c.l.b16 %v2081
      %v2569 = vunpack.c.h.b16 %v2081
      %v2570 = vunpack.c.l.b16 %v2082
      %v2571 = vunpack.c.l.b16 %v2083
      %v2572 = vunpack.c.h.b16 %v2083
      %v2573 = vunpack.c.l.b16 %v2084
      %v2574 = vunpack.c.h.b16 %v2084
      %v2575 = vunpack.c.l.b16 %v2085
      %v2576 = vunpack.c.h.b16 %v2085
      %v2577 = vunpack.c.l.b16 %v2086
      %v2578 = vunpack.c.h.b16 %v2086
      %v2579 = vunpack.c.l.b16 %v2087
      %v2580 = vunpack.c.l.b16 %v2088
      %v2581 = vunpack.c.h.b16 %v2088
      %v2582 = vunpack.c.l.b16 %v2089
      %v2583 = vunpack.c.h.b16 %v2089
      %v2584 = vunpack.c.l.b16 %v2090
      %v2585 = vunpack.c.h.b16 %v2090
      %v2586 = vunpack.c.l.b16 %v2091
      %v2587 = vunpack.c.h.b16 %v2091
      %v2588 = vunpack.c.l.b16 %v2092
      %v2589 = vunpack.c.l.b16 %v2093
      %v2590 = vunpack.c.h.b16 %v2093
      %v2591 = vunpack.c.l.b16 %v2094
      %v2592 = vunpack.c.h.b16 %v2094
      %v2593 = vunpack.c.l.b16 %v2095
      %v2594 = vunpack.c.h.b16 %v2095
      %v2595 = vunpack.c.l.b16 %v2096
      %v2596 = vunpack.c.h.b16 %v2096
      %v2597 = vunpack.c.l.b16 %v2097
      %v2598 = vunpack.c.l.b16 %v2098
      %v2599 = vunpack.c.h.b16 %v2098
      %v2600 = vunpack.c.l.b16 %v2099
      %v2601 = vunpack.c.h.b16 %v2099
      %v2602 = vunpack.c.l.b16 %v2100
      %v2603 = vunpack.c.h.b16 %v2100
      %v2604 = vunpack.c.l.b16 %v2101
      %v2605 = vunpack.c.h.b16 %v2101
      %v2606 = vunpack.c.l.b16 %v2102
      %v2607 = vunpack.c.l.b16 %v2103
      %v2608 = vunpack.c.h.b16 %v2103
      %v2609 = vunpack.c.l.b16 %v2104
      %v2610 = vunpack.c.h.b16 %v2104
      %v2611 = vunpack.c.l.b16 %v2105
      %v2612 = vunpack.c.h.b16 %v2105
      %v2613 = vunpack.c.l.b16 %v2106
      %v2614 = vunpack.c.h.b16 %v2106
      %v2615 = vunpack.c.l.b16 %v2107
      %v2616 = vunpack.c.l.b16 %v2108
      %v2617 = vunpack.c.h.b16 %v2108
      %v2618 = vunpack.c.l.b16 %v2109
      %v2619 = vunpack.c.h.b16 %v2109
      %v2620 = vunpack.c.l.b16 %v2110
      %v2621 = vunpack.c.h.b16 %v2110
      %v2622 = vunpack.c.l.b16 %v2111
      %v2623 = vunpack.c.h.b16 %v2111
      %v2624 = vunpack.c.l.b16 %v2112
      %v2625 = vunpack.c.l.b16 %v2113
      %v2626 = vunpack.c.h.b16 %v2113
      %v2627 = vunpack.c.l.b16 %v2114
      %v2628 = vunpack.c.h.b16 %v2114
      %v2629 = vunpack.c.l.b16 %v2115
      %v2630 = vunpack.c.h.b16 %v2115
      %v2631 = vunpack.c.l.b16 %v2116
      %v2632 = vunpack.c.h.b16 %v2116
      %v2633 = vunpack.c.l.b16 %v2117
      %v2634 = vunpack.c.l.b16 %v2118
      %v2635 = vunpack.c.h.b16 %v2118
      %v2636 = vunpack.c.l.b16 %v2119
      %v2637 = vunpack.c.h.b16 %v2119
      %v2638 = vunpack.c.l.b16 %v2120
      %v2639 = vunpack.c.h.b16 %v2120
      %v2640 = vunpack.c.l.b16 %v2121
      %v2641 = vunpack.c.h.b16 %v2121
      %v2642 = vunpack.c.l.b16 %v2122
      %v2643 = vunpack.c.l.b16 %v2123
      %v2644 = vunpack.c.h.b16 %v2123
      %v2645 = vunpack.c.l.b16 %v2124
      %v2646 = vunpack.c.h.b16 %v2124
      %v2647 = vunpack.c.l.b16 %v2125
      %v2648 = vunpack.c.h.b16 %v2125
      %v2649 = vunpack.c.l.b16 %v2126
      %v2650 = vunpack.c.h.b16 %v2126
      %v2651 = vunpack.c.l.b16 %v2127
      %v2652 = vunpack.c.l.b16 %v2128
      %v2653 = vunpack.c.h.b16 %v2128
      %v2654 = vunpack.c.l.b16 %v2129
      %v2655 = vunpack.c.h.b16 %v2129
      %v2656 = vunpack.c.l.b16 %v2130
      %v2657 = vunpack.c.h.b16 %v2130
      %v2658 = vunpack.c.l.b16 %v2131
      %v2659 = vunpack.c.h.b16 %v2131
      %v2660 = vunpack.c.l.b16 %v2132
      %v2661 = vunpack.c.l.b16 %v2133
      %v2662 = vunpack.c.h.b16 %v2133
      %v2663 = vunpack.c.l.b16 %v2134
      %v2664 = vunpack.c.h.b16 %v2134
      %v2665 = vunpack.c.l.b16 %v2135
      %v2666 = vunpack.c.h.b16 %v2135
      %v2667 = vunpack.c.l.b16 %v2136
      %v2668 = vunpack.c.h.b16 %v2136
      %v2669 = vunpack.c.l.b16 %v2137
      %v2670 = vunpack.c.l.b16 %v2138
      %v2671 = vunpack.c.h.b16 %v2138
      %v2672 = vunpack.c.l.b16 %v2139
      %v2673 = vunpack.c.h.b16 %v2139
      %v2674 = vunpack.c.l.b16 %v2140
      %v2675 = vunpack.c.h.b16 %v2140
      %v2676 = vunpack.c.l.b16 %v2141
      %v2677 = vunpack.c.h.b16 %v2141
      %v2678 = vunpack.c.l.b16 %v2142
      %v2679 = vunpack.c.l.b16 %v2143
      %v2680 = vunpack.c.h.b16 %v2143
      %v2681 = vunpack.c.l.b16 %v2144
      %v2682 = vunpack.c.h.b16 %v2144
      %v2683 = vunpack.c.l.b16 %v2145
      %v2684 = vunpack.c.h.b16 %v2145
      %v2685 = vunpack.c.l.b16 %v2146
      %v2686 = vunpack.c.h.b16 %v2146
      %v2687 = vunpack.c.l.b16 %v2147
      %v2688 = vunpack.c.l.b16 %v2148
      %v2689 = vunpack.c.h.b16 %v2148
      %v2690 = vunpack.c.l.b16 %v2149
      %v2691 = vunpack.c.h.b16 %v2149
      %v2692 = vunpack.c.l.b16 %v2150
      %v2693 = vunpack.c.h.b16 %v2150
      %v2694 = vunpack.c.l.b16 %v2151
      %v2695 = vunpack.c.h.b16 %v2151
      %v2696 = vunpack.c.l.b16 %v2152
      %v2697 = vunpack.c.l.b16 %v2153
      %v2698 = vunpack.c.h.b16 %v2153
      %v2699 = vunpack.c.l.b16 %v2154
      %v2700 = vunpack.c.h.b16 %v2154
      %v2701 = vunpack.c.l.b16 %v2155
      %v2702 = vunpack.c.h.b16 %v2155
      %v2703 = vunpack.c.l.b16 %v2156
      %v2704 = vunpack.c.h.b16 %v2156
      %v2705 = vunpack.c.l.b16 %v2157
      %v2706 = vunpack.c.l.b16 %v2158
      %v2707 = vunpack.c.h.b16 %v2158
      %v2708 = vunpack.c.l.b16 %v2159
      %v2709 = vunpack.c.h.b16 %v2159
      %v2710 = vunpack.c.l.b16 %v2160
      %v2711 = vunpack.c.h.b16 %v2160
      %v2712 = vunpack.c.l.b16 %v2161
      %v2713 = vunpack.c.h.b16 %v2161
      %v2714 = vunpack.c.l.b16 %v2162
      %v2715 = vunpack.c.l.b16 %v2163
      %v2716 = vunpack.c.h.b16 %v2163
      %v2717 = vunpack.c.l.b16 %v2164
      %v2718 = vunpack.c.h.b16 %v2164
      %v2719 = vunpack.c.l.b16 %v2165
      %v2720 = vunpack.c.h.b16 %v2165
      %v2721 = vunpack.c.l.b16 %v2166
      %v2722 = vunpack.c.h.b16 %v2166
      %v2723 = vunpack.c.l.b16 %v2167
      %v2724 = vunpack.c.l.b16 %v2168
      %v2725 = vunpack.c.h.b16 %v2168
      %v2726 = vunpack.c.l.b16 %v2169
      %v2727 = vunpack.c.h.b16 %v2169
      %v2728 = vunpack.c.l.b16 %v2170
      %v2729 = vunpack.c.h.b16 %v2170
      %v2730 = vunpack.c.l.b16 %v2171
      %v2731 = vunpack.c.h.b16 %v2171
      %v2732 = vunpack.c.l.b16 %v2172
      %v2733 = vunpack.c.l.b16 %v2173
      %v2734 = vunpack.c.h.b16 %v2173
      %v2735 = vunpack.c.l.b16 %v2174
      %v2736 = vunpack.c.h.b16 %v2174
      %v2737 = vunpack.c.l.b16 %v2175
      %v2738 = vunpack.c.h.b16 %v2175
      %v2739 = vunpack.c.l.b16 %v2176
      %v2740 = vunpack.c.h.b16 %v2176
      %v2741 = vunpack.c.l.b16 %v2177
      %v2742 = vunpack.c.l.b16 %v2178
      %v2743 = vunpack.c.h.b16 %v2178
      %v2744 = vunpack.c.l.b16 %v2179
      %v2745 = vunpack.c.h.b16 %v2179
      %v2746 = vunpack.c.l.b16 %v2180
      %v2747 = vunpack.c.h.b16 %v2180
      %v2748 = vunpack.c.l.b16 %v2181
      %v2749 = vunpack.c.h.b16 %v2181
      %v2750 = vunpack.c.l.b16 %v2182
      %v2751 = vunpack.c.l.b16 %v2183
      %v2752 = vunpack.c.h.b16 %v2183
      %v2753 = vunpack.c.l.b16 %v2184
      %v2754 = vunpack.c.h.b16 %v2184
      %v2755 = vunpack.c.l.b16 %v2185
      %v2756 = vunpack.c.h.b16 %v2185
      %v2757 = vunpack.c.l.b16 %v2186
      %v2758 = vunpack.c.h.b16 %v2186
      %v2759 = vunpack.c.l.b16 %v2187
      %v2760 = vunpack.c.l.b16 %v2188
      %v2761 = vunpack.c.h.b16 %v2188
      %v2762 = vunpack.c.l.b16 %v2189
      %v2763 = vunpack.c.h.b16 %v2189
      %v2764 = vunpack.c.l.b16 %v2190
      %v2765 = vunpack.c.h.b16 %v2190
      %v2766 = vunpack.c.l.b16 %v2191
      %v2767 = vunpack.c.h.b16 %v2191
      %v2768 = vunpack.c.l.b16 %v2192
      %v2769 = vunpack.c.l.b16 %v2193
      %v2770 = vunpack.c.h.b16 %v2193
      %v2771 = vunpack.c.l.b16 %v2194
      %v2772 = vunpack.c.h.b16 %v2194
      %v2773 = vunpack.c.l.b16 %v2195
      %v2774 = vunpack.c.h.b16 %v2195
      %v2775 = vunpack.c.l.b16 %v2196
      %v2776 = vunpack.c.h.b16 %v2196
      %v2777 = vunpack.c.l.b16 %v2197
      %v2778 = vunpack.c.l.b16 %v2198
      %v2779 = vunpack.c.h.b16 %v2198
      %v2780 = vunpack.c.l.b16 %v2199
      %v2781 = vunpack.c.h.b16 %v2199
      %v2782 = vunpack.c.l.b16 %v2200
      %v2783 = vunpack.c.h.b16 %v2200
      %v2784 = vunpack.c.l.b16 %v2201
      %v2785 = vunpack.c.h.b16 %v2201
      %v2786 = vunpack.c.l.b16 %v2202
      %v2787 = vunpack.c.l.b16 %v2203
      %v2788 = vunpack.c.h.b16 %v2203
      %v2789 = vunpack.c.l.b16 %v2204
      %v2790 = vunpack.c.h.b16 %v2204
      %v2791 = vunpack.c.l.b16 %v2205
      %v2792 = vunpack.c.h.b16 %v2205
      %v2793 = vunpack.c.l.b16 %v2206
      %v2794 = vunpack.c.h.b16 %v2206
      %v2795 = vunpack.c.l.b16 %v2207
      %v2796 = vunpack.c.l.b16 %v2208
      %v2797 = vunpack.c.h.b16 %v2208
      %v2798 = vunpack.c.l.b16 %v2209
      %v2799 = vunpack.c.h.b16 %v2209
      %v2800 = vunpack.c.l.b16 %v2210
      %v2801 = vunpack.c.h.b16 %v2210
      %v2802 = vunpack.c.l.b16 %v2211
      %v2803 = vunpack.c.h.b16 %v2211
      %v2804 = vunpack.c.l.b16 %v2212
      %v2805 = vpack.c.b16 %v2526, %v2517
      %v2806 = vpack.c.b16 %v2527, %v2518
      %v2807 = vpack.c.b16 %v2528, %v2519
      %v2808 = vpack.c.b16 %v2529, %v2520
      %v2809 = vpack.c.b16 %v2530, %v2521
      %v2810 = vpack.c.b16 %v2531, %v2522
      %v2811 = vpack.c.b16 %v2532, %v2523
      %v2812 = vpack.c.b16 %v2533, %v2524
      %v2813 = vpack.c.b16 %v2534, %v2525
      %v2814 = vpack.c.b16 %v2544, %v2535
      %v2815 = vpack.c.b16 %v2545, %v2536
      %v2816 = vpack.c.b16 %v2546, %v2537
      %v2817 = vpack.c.b16 %v2547, %v2538
      %v2818 = vpack.c.b16 %v2548, %v2539
      %v2819 = vpack.c.b16 %v2549, %v2540
      %v2820 = vpack.c.b16 %v2550, %v2541
      %v2821 = vpack.c.b16 %v2551, %v2542
      %v2822 = vpack.c.b16 %v2552, %v2543
      %v2823 = vpack.c.b16 %v2562, %v2553
      %v2824 = vpack.c.b16 %v2563, %v2554
      %v2825 = vpack.c.b16 %v2564, %v2555
      %v2826 = vpack.c.b16 %v2565, %v2556
      %v2827 = vpack.c.b16 %v2566, %v2557
      %v2828 = vpack.c.b16 %v2567, %v2558
      %v2829 = vpack.c.b16 %v2568, %v2559
      %v2830 = vpack.c.b16 %v2569, %v2560
      %v2831 = vpack.c.b16 %v2570, %v2561
      %v2832 = vpack.c.b16 %v2580, %v2571
      %v2833 = vpack.c.b16 %v2581, %v2572
      %v2834 = vpack.c.b16 %v2582, %v2573
      %v2835 = vpack.c.b16 %v2583, %v2574
      %v2836 = vpack.c.b16 %v2584, %v2575
      %v2837 = vpack.c.b16 %v2585, %v2576
      %v2838 = vpack.c.b16 %v2586, %v2577
      %v2839 = vpack.c.b16 %v2587, %v2578
      %v2840 = vpack.c.b16 %v2588, %v2579
      %v2841 = vpack.c.b16 %v2598, %v2589
      %v2842 = vpack.c.b16 %v2599, %v2590
      %v2843 = vpack.c.b16 %v2600, %v2591
      %v2844 = vpack.c.b16 %v2601, %v2592
      %v2845 = vpack.c.b16 %v2602, %v2593
      %v2846 = vpack.c.b16 %v2603, %v2594
      %v2847 = vpack.c.b16 %v2604, %v2595
      %v2848 = vpack.c.b16 %v2605, %v2596
      %v2849 = vpack.c.b16 %v2606, %v2597
      %v2850 = vpack.c.b16 %v2616, %v2607
      %v2851 = vpack.c.b16 %v2617, %v2608
      %v2852 = vpack.c.b16 %v2618, %v2609
      %v2853 = vpack.c.b16 %v2619, %v2610
      %v2854 = vpack.c.b16 %v2620, %v2611
      %v2855 = vpack.c.b16 %v2621, %v2612
      %v2856 = vpack.c.b16 %v2622, %v2613
      %v2857 = vpack.c.b16 %v2623, %v2614
      %v2858 = vpack.c.b16 %v2624, %v2615
      %v2859 = vpack.c.b16 %v2634, %v2625
      %v2860 = vpack.c.b16 %v2635, %v2626
      %v2861 = vpack.c.b16 %v2636, %v2627
      %v2862 = vpack.c.b16 %v2637, %v2628
      %v2863 = vpack.c.b16 %v2638, %v2629
      %v2864 = vpack.c.b16 %v2639, %v2630
      %v2865 = vpack.c.b16 %v2640, %v2631
      %v2866 = vpack.c.b16 %v2641, %v2632
      %v2867 = vpack.c.b16 %v2642, %v2633
      %v2868 = vpack.c.b16 %v2652, %v2643
      %v2869 = vpack.c.b16 %v2653, %v2644
      %v2870 = vpack.c.b16 %v2654, %v2645
      %v2871 = vpack.c.b16 %v2655, %v2646
      %v2872 = vpack.c.b16 %v2656, %v2647
      %v2873 = vpack.c.b16 %v2657, %v2648
      %v2874 = vpack.c.b16 %v2658, %v2649
      %v2875 = vpack.c.b16 %v2659, %v2650
      %v2876 = vpack.c.b16 %v2660, %v2651
      %v2877 = vpack.c.b16 %v2670, %v2661
      %v2878 = vpack.c.b16 %v2671, %v2662
      %v2879 = vpack.c.b16 %v2672, %v2663
      %v2880 = vpack.c.b16 %v2673, %v2664
      %v2881 = vpack.c.b16 %v2674, %v2665
      %v2882 = vpack.c.b16 %v2675, %v2666
      %v2883 = vpack.c.b16 %v2676, %v2667
      %v2884 = vpack.c.b16 %v2677, %v2668
      %v2885 = vpack.c.b16 %v2678, %v2669
      %v2886 = vpack.c.b16 %v2688, %v2679
      %v2887 = vpack.c.b16 %v2689, %v2680
      %v2888 = vpack.c.b16 %v2690, %v2681
      %v2889 = vpack.c.b16 %v2691, %v2682
      %v2890 = vpack.c.b16 %v2692, %v2683
      %v2891 = vpack.c.b16 %v2693, %v2684
      %v2892 = vpack.c.b16 %v2694, %v2685
      %v2893 = vpack.c.b16 %v2695, %v2686
      %v2894 = vpack.c.b16 %v2696, %v2687
      %v2895 = vpack.c.b16 %v2706, %v2697
      %v2896 = vpack.c.b16 %v2707, %v2698
      %v2897 = vpack.c.b16 %v2708, %v2699
      %v2898 = vpack.c.b16 %v2709, %v2700
      %v2899 = vpack.c.b16 %v2710, %v2701
      %v2900 = vpack.c.b16 %v2711, %v2702
      %v2901 = vpack.c.b16 %v2712, %v2703
      %v2902 = vpack.c.b16 %v2713, %v2704
      %v2903 = vpack.c.b16 %v2714, %v2705
      %v2904 = vpack.c.b16 %v2724, %v2715
      %v2905 = vpack.c.b16 %v2725, %v2716
      %v2906 = vpack.c.b16 %v2726, %v2717
      %v2907 = vpack.c.b16 %v2727, %v2718
      %v2908 = vpack.c.b16 %v2728, %v2719
      %v2909 = vpack.c.b16 %v2729, %v2720
      %v2910 = vpack.c.b16 %v2730, %v2721
      %v2911 = vpack.c.b16 %v2731, %v2722
      %v2912 = vpack.c.b16 %v2732, %v2723
      %v2913 = vpack.c.b16 %v2742, %v2733
      %v2914 = vpack.c.b16 %v2743, %v2734
      %v2915 = vpack.c.b16 %v2744, %v2735
      %v2916 = vpack.c.b16 %v2745, %v2736
      %v2917 = vpack.c.b16 %v2746, %v2737
      %v2918 = vpack.c.b16 %v2747, %v2738
      %v2919 = vpack.c.b16 %v2748, %v2739
      %v2920 = vpack.c.b16 %v2749, %v2740
      %v2921 = vpack.c.b16 %v2750, %v2741
      %v2922 = vpack.c.b16 %v2760, %v2751
      %v2923 = vpack.c.b16 %v2761, %v2752
      %v2924 = vpack.c.b16 %v2762, %v2753
      %v2925 = vpack.c.b16 %v2763, %v2754
      %v2926 = vpack.c.b16 %v2764, %v2755
      %v2927 = vpack.c.b16 %v2765, %v2756
      %v2928 = vpack.c.b16 %v2766, %v2757
      %v2929 = vpack.c.b16 %v2767, %v2758
      %v2930 = vpack.c.b16 %v2768, %v2759
      %v2931 = vpack.c.b16 %v2778, %v2769
      %v2932 = vpack.c.b16 %v2779, %v2770
      %v2933 = vpack.c.b16 %v2780, %v2771
      %v2934 = vpack.c.b16 %v2781, %v2772
      %v2935 = vpack.c.b16 %v2782, %v2773
      %v2936 = vpack.c.b16 %v2783, %v2774
      %v2937 = vpack.c.b16 %v2784, %v2775
      %v2938 = vpack.c.b16 %v2785, %v2776
      %v2939 = vpack.c.b16 %v2786, %v2777
      %v2940 = vpack.c.b16 %v2796, %v2787
      %v2941 = vpack.c.b16 %v2797, %v2788
      %v2942 = vpack.c.b16 %v2798, %v2789
      %v2943 = vpack.c.b16 %v2799, %v2790
      %v2944 = vpack.c.b16 %v2800, %v2791
      %v2945 = vpack.c.b16 %v2801, %v2792
      %v2946 = vpack.c.b16 %v2802, %v2793
      %v2947 = vpack.c.b16 %v2803, %v2794
      %v2948 = vpack.c.b16 %v2804, %v2795
      %v3237 = vunpack.c.l.b16 %v2213
      %v3238 = vunpack.c.l.b16 %v2214
      %v3239 = vunpack.c.l.b16 %v2215
      %v3240 = vunpack.c.l.b16 %v2216
      %v3241 = vunpack.c.l.b16 %v2217
      %v3242 = vunpack.c.l.b16 %v2218
      %v3243 = vunpack.c.l.b16 %v2219
      %v3244 = vunpack.c.l.b16 %v2220
      %v3245 = vunpack.c.l.b16 %v2221
      %v3246 = vunpack.c.l.b16 %v2222
      %v3247 = vunpack.c.l.b16 %v2223
      %v3248 = vunpack.c.l.b16 %v2224
      %v3249 = vunpack.c.l.b16 %v2225
      %v3250 = vunpack.c.l.b16 %v2226
      %v3251 = vunpack.c.l.b16 %v2227
      %v3252 = vunpack.c.l.b16 %v2228
      %v3253 = vunpack.c.l.b16 %v2229
      %v3254 = vunpack.c.l.b16 %v2230
      %v3255 = vunpack.c.l.b16 %v2231
      %v3256 = vunpack.c.l.b16 %v2232
      %v3257 = vunpack.c.l.b16 %v2233
      %v3258 = vunpack.c.l.b16 %v2234
      %v3259 = vunpack.c.l.b16 %v2235
      %v3260 = vunpack.c.l.b16 %v2236
      %v3261 = vunpack.c.l.b16 %v2237
      %v3262 = vunpack.c.l.b16 %v2238
      %v3263 = vunpack.c.l.b16 %v2239
      %v3264 = vunpack.c.l.b16 %v2240
      %v3265 = vunpack.c.l.b16 %v2241
      %v3266 = vunpack.c.l.b16 %v2242
      %v3267 = vunpack.c.l.b16 %v2243
      %v3268 = vunpack.c.l.b16 %v2244
      %v3269 = vunpack.c.l.b16 %v2245
      %v3270 = vunpack.c.l.b16 %v2246
      %v3271 = vunpack.c.l.b16 %v2247
      %v3272 = vunpack.c.l.b16 %v2248
      %v3273 = vunpack.c.l.b16 %v2249
      %v3274 = vunpack.c.l.b16 %v2250
      %v3275 = vunpack.c.l.b16 %v2251
      %v3276 = vunpack.c.l.b16 %v2252
      %v3277 = vunpack.c.l.b16 %v2253
      %v3278 = vunpack.c.l.b16 %v2254
      %v3279 = vunpack.c.l.b16 %v2255
      %v3280 = vunpack.c.l.b16 %v2256
      %v3281 = vunpack.c.l.b16 %v2257
      %v3282 = vunpack.c.l.b16 %v2258
      %v3283 = vunpack.c.l.b16 %v2259
      %v3284 = vunpack.c.l.b16 %v2260
      %v3285 = vunpack.c.l.b16 %v2261
      %v3286 = vunpack.c.l.b16 %v2262
      %v3287 = vunpack.c.l.b16 %v2263
      %v3288 = vunpack.c.l.b16 %v2264
      %v3289 = vunpack.c.l.b16 %v2265
      %v3290 = vunpack.c.l.b16 %v2266
      %v3291 = vunpack.c.l.b16 %v2267
      %v3292 = vunpack.c.l.b16 %v2268
      %v3293 = vunpack.c.l.b16 %v2269
      %v3294 = vunpack.c.l.b16 %v2270
      %v3295 = vunpack.c.l.b16 %v2271
      %v3296 = vunpack.c.l.b16 %v2272
      %v3297 = vunpack.c.l.b16 %v2273
      %v3298 = vunpack.c.l.b16 %v2274
      %v3299 = vunpack.c.l.b16 %v2275
      %v3300 = vunpack.c.l.b16 %v2276
      %v3301 = vunpack.c.l.b16 %v2277
      %v3302 = vunpack.c.l.b16 %v2278
      %v3303 = vunpack.c.l.b16 %v2279
      %v3304 = vunpack.c.l.b16 %v2280
      %v3305 = vunpack.c.l.b16 %v2281
      %v3306 = vunpack.c.l.b16 %v2282
      %v3307 = vunpack.c.l.b16 %v2283
      %v3308 = vunpack.c.l.b16 %v2284
      %v3309 = vunpack.c.l.b16 %v2285
      %v3310 = vunpack.c.l.b16 %v2286
      %v3311 = vunpack.c.l.b16 %v2287
      %v3312 = vunpack.c.l.b16 %v2288
      %v3313 = vunpack.c.l.b16 %v2289
      %v3314 = vunpack.c.l.b16 %v2290
      %v3315 = vunpack.c.l.b16 %v2291
      %v3316 = vunpack.c.l.b16 %v2292
      %v3317 = vunpack.c.l.b16 %v2293
      %v3318 = vunpack.c.l.b16 %v2294
      %v3319 = vunpack.c.l.b16 %v2295
      %v3320 = vunpack.c.l.b16 %v2296
      %v3321 = vunpack.c.l.b16 %v2297
      %v3322 = vunpack.c.l.b16 %v2298
      %v3323 = vunpack.c.l.b16 %v2299
      %v3324 = vunpack.c.l.b16 %v2300
      %v3325 = vunpack.c.l.b16 %v2301
      %v3326 = vunpack.c.l.b16 %v2302
      %v3327 = vunpack.c.l.b16 %v2303
      %v3328 = vunpack.c.l.b16 %v2304
      %v3329 = vunpack.c.l.b16 %v2305
      %v3330 = vunpack.c.l.b16 %v2306
      %v3331 = vunpack.c.l.b16 %v2307
      %v3332 = vunpack.c.l.b16 %v2308
      %v3333 = vunpack.c.l.b16 %v2309
      %v3334 = vunpack.c.l.b16 %v2310
      %v3335 = vunpack.c.l.b16 %v2311
      %v3336 = vunpack.c.l.b16 %v2312
      %v3337 = vunpack.c.l.b16 %v2313
      %v3338 = vunpack.c.l.b16 %v2314
      %v3339 = vunpack.c.l.b16 %v2315
      %v3340 = vunpack.c.l.b16 %v2316
      %v3341 = vunpack.c.l.b16 %v2317
      %v3342 = vunpack.c.l.b16 %v2318
      %v3343 = vunpack.c.l.b16 %v2319
      %v3344 = vunpack.c.l.b16 %v2320
      %v3345 = vunpack.c.l.b16 %v2321
      %v3346 = vunpack.c.l.b16 %v2322
      %v3347 = vunpack.c.l.b16 %v2323
      %v3348 = vunpack.c.l.b16 %v2324
      %v3349 = vunpack.c.l.b16 %v2325
      %v3350 = vunpack.c.l.b16 %v2326
      %v3351 = vunpack.c.l.b16 %v2327
      %v3352 = vunpack.c.l.b16 %v2328
      %v3353 = vunpack.c.l.b16 %v2329
      %v3354 = vunpack.c.l.b16 %v2330
      %v3355 = vunpack.c.l.b16 %v2331
      %v3356 = vunpack.c.l.b16 %v2332
      %v3357 = vunpack.c.l.b16 %v2333
      %v3358 = vunpack.c.l.b16 %v2334
      %v3359 = vunpack.c.l.b16 %v2335
      %v3360 = vunpack.c.l.b16 %v2336
      %v3361 = vunpack.c.l.b16 %v2337
      %v3362 = vunpack.c.l.b16 %v2338
      %v3363 = vunpack.c.l.b16 %v2339
      %v3364 = vunpack.c.l.b16 %v2340
      %v3365 = vunpack.c.l.b16 %v2341
      %v3366 = vunpack.c.l.b16 %v2342
      %v3367 = vunpack.c.l.b16 %v2343
      %v3368 = vunpack.c.l.b16 %v2344
      %v3369 = vunpack.c.l.b16 %v2345
      %v3370 = vunpack.c.l.b16 %v2346
      %v3371 = vunpack.c.l.b16 %v2347
      %v3372 = vunpack.c.l.b16 %v2348
      %v3373 = vunpack.c.l.b16 %v2349
      %v3374 = vunpack.c.l.b16 %v2350
      %v3375 = vunpack.c.l.b16 %v2351
      %v3376 = vunpack.c.l.b16 %v2352
      %v3377 = vunpack.c.l.b16 %v2353
      %v3378 = vunpack.c.l.b16 %v2354
      %v3379 = vunpack.c.l.b16 %v2355
      %v3380 = vunpack.c.l.b16 %v2356
      %v3381 = vpack.c.b16 %v3238, %v3237
      %v3382 = vpack.c.b16 %v3240, %v3239
      %v3383 = vpack.c.b16 %v3242, %v3241
      %v3384 = vpack.c.b16 %v3244, %v3243
      %v3385 = vpack.c.b16 %v3246, %v3245
      %v3386 = vpack.c.b16 %v3248, %v3247
      %v3387 = vpack.c.b16 %v3250, %v3249
      %v3388 = vpack.c.b16 %v3252, %v3251
      %v3389 = vpack.c.b16 %v3254, %v3253
      %v3390 = vpack.c.b16 %v3256, %v3255
      %v3391 = vpack.c.b16 %v3258, %v3257
      %v3392 = vpack.c.b16 %v3260, %v3259
      %v3393 = vpack.c.b16 %v3262, %v3261
      %v3394 = vpack.c.b16 %v3264, %v3263
      %v3395 = vpack.c.b16 %v3266, %v3265
      %v3396 = vpack.c.b16 %v3268, %v3267
      %v3397 = vpack.c.b16 %v3270, %v3269
      %v3398 = vpack.c.b16 %v3272, %v3271
      %v3399 = vpack.c.b16 %v3274, %v3273
      %v3400 = vpack.c.b16 %v3276, %v3275
      %v3401 = vpack.c.b16 %v3278, %v3277
      %v3402 = vpack.c.b16 %v3280, %v3279
      %v3403 = vpack.c.b16 %v3282, %v3281
      %v3404 = vpack.c.b16 %v3284, %v3283
      %v3405 = vpack.c.b16 %v3286, %v3285
      %v3406 = vpack.c.b16 %v3288, %v3287
      %v3407 = vpack.c.b16 %v3290, %v3289
      %v3408 = vpack.c.b16 %v3292, %v3291
      %v3409 = vpack.c.b16 %v3294, %v3293
      %v3410 = vpack.c.b16 %v3296, %v3295
      %v3411 = vpack.c.b16 %v3298, %v3297
      %v3412 = vpack.c.b16 %v3300, %v3299
      %v3413 = vpack.c.b16 %v3302, %v3301
      %v3414 = vpack.c.b16 %v3304, %v3303
      %v3415 = vpack.c.b16 %v3306, %v3305
      %v3416 = vpack.c.b16 %v3308, %v3307
      %v3417 = vpack.c.b16 %v3310, %v3309
      %v3418 = vpack.c.b16 %v3312, %v3311
      %v3419 = vpack.c.b16 %v3314, %v3313
      %v3420 = vpack.c.b16 %v3316, %v3315
      %v3421 = vpack.c.b16 %v3318, %v3317
      %v3422 = vpack.c.b16 %v3320, %v3319
      %v3423 = vpack.c.b16 %v3322, %v3321
      %v3424 = vpack.c.b16 %v3324, %v3323
      %v3425 = vpack.c.b16 %v3326, %v3325
      %v3426 = vpack.c.b16 %v3328, %v3327
      %v3427 = vpack.c.b16 %v3330, %v3329
      %v3428 = vpack.c.b16 %v3332, %v3331
      %v3429 = vpack.c.b16 %v3334, %v3333
      %v3430 = vpack.c.b16 %v3336, %v3335
      %v3431 = vpack.c.b16 %v3338, %v3337
      %v3432 = vpack.c.b16 %v3340, %v3339
      %v3433 = vpack.c.b16 %v3342, %v3341
      %v3434 = vpack.c.b16 %v3344, %v3343
      %v3435 = vpack.c.b16 %v3346, %v3345
      %v3436 = vpack.c.b16 %v3348, %v3347
      %v3437 = vpack.c.b16 %v3350, %v3349
      %v3438 = vpack.c.b16 %v3352, %v3351
      %v3439 = vpack.c.b16 %v3354, %v3353
      %v3440 = vpack.c.b16 %v3356, %v3355
      %v3441 = vpack.c.b16 %v3358, %v3357
      %v3442 = vpack.c.b16 %v3360, %v3359
      %v3443 = vpack.c.b16 %v3362, %v3361
      %v3444 = vpack.c.b16 %v3364, %v3363
      %v3445 = vpack.c.b16 %v3366, %v3365
      %v3446 = vpack.c.b16 %v3368, %v3367
      %v3447 = vpack.c.b16 %v3370, %v3369
      %v3448 = vpack.c.b16 %v3372, %v3371
      %v3449 = vpack.c.b16 %v3374, %v3373
      %v3450 = vpack.c.b16 %v3376, %v3375
      %v3451 = vpack.c.b16 %v3378, %v3377
      %v3452 = vpack.c.b16 %v3380, %v3379
      %3525 = vmatprep.subr.bf16.mxu0 0
      %3526 = vmatpush1.bf16.msra.mxu0 %v3388
      %3527 = vmatprep.subr.bf16.mxu0 0
      %3528 = vmatpush1.bf16.msra.mxu0 %v3387
      %3529 = vmatprep.subr.bf16.mxu0 0
      %3530 = vmatpush1.bf16.msra.mxu0 %v3386
      %3531 = vmatprep.subr.bf16.mxu0 0
      %3532 = vmatpush1.bf16.msra.mxu0 %v3385
      %3533 = vmatprep.subr.bf16.mxu0 0
      %3534 = vmatpush1.bf16.msra.mxu0 %v3384
      %3535 = vmatprep.subr.bf16.mxu0 0
      %3536 = vmatpush1.bf16.msra.mxu0 %v3383
      %3537 = vmatprep.subr.bf16.mxu0 0
      %3538 = vmatpush1.bf16.msra.mxu0 %v3382
      %3539 = vmatprep.subr.bf16.mxu0 0
      %3540 = vmatpush1.bf16.msra.mxu0 %v3381
      %3541 = vmatprep.subr.bf16.mxu0 0
      %3542 = vmatpush2.bf16.msra.mxu0 %v3396
      %3543 = vmatprep.subr.bf16.mxu0 0
      %3544 = vmatpush2.bf16.msra.mxu0 %v3395
      %3545 = vmatprep.subr.bf16.mxu0 0
      %3546 = vmatpush2.bf16.msra.mxu0 %v3394
      %3547 = vmatprep.subr.bf16.mxu0 0
      %3548 = vmatpush2.bf16.msra.mxu0 %v3393
      %3549 = vmatprep.subr.bf16.mxu0 0
      %3550 = vmatpush2.bf16.msra.mxu0 %v3392
      %3551 = vmatprep.subr.bf16.mxu0 0
      %3552 = vmatpush2.bf16.msra.mxu0 %v3391
      %3553 = vmatprep.subr.bf16.mxu0 0
      %3554 = vmatpush2.bf16.msra.mxu0 %v3390
      %3555 = vmatprep.subr.bf16.mxu0 0
      %3556 = vmatpush2.bf16.msra.mxu0 %v3389
      %3557 = vmatprep.mubr.bf16.mxu0 %v2806
      %3558 = vmatmul.mubr.bf16.gmra.mxu0 %v2805
      %v3559 = vpop.f32.mrf.mxu0
      %v3560 = vadd.f32 0.0, %v3559
      %v3561 = vpop.f32.mrf.mxu0
      %v3562 = vpop.f32.mrf.mxu0
      %v3563 = vadd.f32 0.0, %v3562
      %v3564 = vpop.f32.mrf.mxu0
      %3565 = vmatprep.mubr.bf16.mxu0 %v2815
      %3566 = vmatmul.mubr.bf16.gmra.mxu0 %v2814
      %v3567 = vpop.f32.mrf.mxu0
      %v3568 = vadd.f32 0.0, %v3567
      %v3569 = vpop.f32.mrf.mxu0
      %v3570 = vpop.f32.mrf.mxu0
      %v3571 = vadd.f32 0.0, %v3570
      %v3572 = vpop.f32.mrf.mxu0
      %3573 = vmatprep.mubr.bf16.mxu0 %v2824
      %3574 = vmatmul.mubr.bf16.gmra.mxu0 %v2823
      %v3575 = vpop.f32.mrf.mxu0
      %v3576 = vadd.f32 0.0, %v3575
      %v3577 = vpop.f32.mrf.mxu0
      %v3578 = vpop.f32.mrf.mxu0
      %v3579 = vadd.f32 0.0, %v3578
      %v3580 = vpop.f32.mrf.mxu0
      %3581 = vmatprep.mubr.bf16.mxu0 %v2833
      %3582 = vmatmul.mubr.bf16.gmra.mxu0 %v2832
      %v3583 = vpop.f32.mrf.mxu0
      %v3584 = vadd.f32 0.0, %v3583
      %v3585 = vpop.f32.mrf.mxu0
      %v3586 = vpop.f32.mrf.mxu0
      %v3587 = vadd.f32 0.0, %v3586
      %v3588 = vpop.f32.mrf.mxu0
      %3589 = vmatprep.mubr.bf16.mxu0 %v2842
      %3590 = vmatmul.mubr.bf16.gmra.mxu0 %v2841
      %v3591 = vpop.f32.mrf.mxu0
      %v3592 = vadd.f32 0.0, %v3591
      %v3593 = vpop.f32.mrf.mxu0
      %v3594 = vpop.f32.mrf.mxu0
      %v3595 = vadd.f32 0.0, %v3594
      %v3596 = vpop.f32.mrf.mxu0
      %3597 = vmatprep.mubr.bf16.mxu0 %v2851
      %3598 = vmatmul.mubr.bf16.gmra.mxu0 %v2850
      %v3599 = vpop.f32.mrf.mxu0
      %v3600 = vadd.f32 0.0, %v3599
      %v3601 = vpop.f32.mrf.mxu0
      %v3602 = vpop.f32.mrf.mxu0
      %v3603 = vadd.f32 0.0, %v3602
      %v3604 = vpop.f32.mrf.mxu0
      %3605 = vmatprep.mubr.bf16.mxu0 %v2860
      %3606 = vmatmul.mubr.bf16.gmra.mxu0 %v2859
      %v3607 = vpop.f32.mrf.mxu0
      %v3608 = vadd.f32 0.0, %v3607
      %v3609 = vpop.f32.mrf.mxu0
      %v3610 = vpop.f32.mrf.mxu0
      %v3611 = vadd.f32 0.0, %v3610
      %v3612 = vpop.f32.mrf.mxu0
      %3613 = vmatprep.mubr.bf16.mxu0 %v2869
      %3614 = vmatmul.mubr.bf16.gmra.mxu0 %v2868
      %v3615 = vpop.f32.mrf.mxu0
      %v3616 = vadd.f32 0.0, %v3615
      %v3617 = vpop.f32.mrf.mxu0
      %v3618 = vpop.f32.mrf.mxu0
      %v3619 = vadd.f32 0.0, %v3618
      %v3620 = vpop.f32.mrf.mxu0
      %3621 = vmatprep.mubr.bf16.mxu0 %v2878
      %3622 = vmatmul.mubr.bf16.gmra.mxu0 %v2877
      %v3623 = vpop.f32.mrf.mxu0
      %v3624 = vadd.f32 0.0, %v3623
      %v3625 = vpop.f32.mrf.mxu0
      %v3626 = vpop.f32.mrf.mxu0
      %v3627 = vadd.f32 0.0, %v3626
      %v3628 = vpop.f32.mrf.mxu0
      %3629 = vmatprep.mubr.bf16.mxu0 %v2887
      %3630 = vmatmul.mubr.bf16.gmra.mxu0 %v2886
      %v3631 = vpop.f32.mrf.mxu0
      %v3632 = vadd.f32 0.0, %v3631
      %v3633 = vpop.f32.mrf.mxu0
      %v3634 = vpop.f32.mrf.mxu0
      %v3635 = vadd.f32 0.0, %v3634
      %v3636 = vpop.f32.mrf.mxu0
      %3637 = vmatprep.mubr.bf16.mxu0 %v2896
      %3638 = vmatmul.mubr.bf16.gmra.mxu0 %v2895
      %v3639 = vpop.f32.mrf.mxu0
      %v3640 = vadd.f32 0.0, %v3639
      %v3641 = vpop.f32.mrf.mxu0
      %v3642 = vpop.f32.mrf.mxu0
      %v3643 = vadd.f32 0.0, %v3642
      %v3644 = vpop.f32.mrf.mxu0
      %3645 = vmatprep.mubr.bf16.mxu0 %v2905
      %3646 = vmatmul.mubr.bf16.gmra.mxu0 %v2904
      %v3647 = vpop.f32.mrf.mxu0
      %v3648 = vadd.f32 0.0, %v3647
      %v3649 = vpop.f32.mrf.mxu0
      %v3650 = vpop.f32.mrf.mxu0
      %v3651 = vadd.f32 0.0, %v3650
      %v3652 = vpop.f32.mrf.mxu0
      %3653 = vmatprep.mubr.bf16.mxu0 %v2914
      %3654 = vmatmul.mubr.bf16.gmra.mxu0 %v2913
      %v3655 = vpop.f32.mrf.mxu0
      %v3656 = vadd.f32 0.0, %v3655
      %v3657 = vpop.f32.mrf.mxu0
      %v3658 = vpop.f32.mrf.mxu0
      %v3659 = vadd.f32 0.0, %v3658
      %v3660 = vpop.f32.mrf.mxu0
      %3661 = vmatprep.mubr.bf16.mxu0 %v2923
      %3662 = vmatmul.mubr.bf16.gmra.mxu0 %v2922
      %v3663 = vpop.f32.mrf.mxu0
      %v3664 = vadd.f32 0.0, %v3663
      %v3665 = vpop.f32.mrf.mxu0
      %v3666 = vpop.f32.mrf.mxu0
      %v3667 = vadd.f32 0.0, %v3666
      %v3668 = vpop.f32.mrf.mxu0
      %3669 = vmatprep.mubr.bf16.mxu0 %v2932
      %3670 = vmatmul.mubr.bf16.gmra.mxu0 %v2931
      %v3671 = vpop.f32.mrf.mxu0
      %v3672 = vadd.f32 0.0, %v3671
      %v3673 = vpop.f32.mrf.mxu0
      %v3674 = vpop.f32.mrf.mxu0
      %v3675 = vadd.f32 0.0, %v3674
      %v3676 = vpop.f32.mrf.mxu0
      %3677 = vmatprep.mubr.bf16.mxu0 %v2941
      %3678 = vmatmul.mubr.bf16.gmra.mxu0 %v2940
      %v3679 = vpop.f32.mrf.mxu0
      %v3680 = vadd.f32 0.0, %v3679
      %v3681 = vpop.f32.mrf.mxu0
      %v3682 = vpop.f32.mrf.mxu0
      %v3683 = vadd.f32 0.0, %v3682
      %v3684 = vpop.f32.mrf.mxu0
      %3685 = vdwg.mxu0
      %3686 = vmatprep.subr.bf16.mxu0 0
      %3687 = vmatpush1.bf16.msra.mxu0 %v3404
      %3688 = vmatprep.subr.bf16.mxu0 0
      %3689 = vmatpush1.bf16.msra.mxu0 %v3403
      %3690 = vmatprep.subr.bf16.mxu0 0
      %3691 = vmatpush1.bf16.msra.mxu0 %v3402
      %3692 = vmatprep.subr.bf16.mxu0 0
      %3693 = vmatpush1.bf16.msra.mxu0 %v3401
      %3694 = vmatprep.subr.bf16.mxu0 0
      %3695 = vmatpush1.bf16.msra.mxu0 %v3400
      %3696 = vmatprep.subr.bf16.mxu0 0
      %3697 = vmatpush1.bf16.msra.mxu0 %v3399
      %3698 = vmatprep.subr.bf16.mxu0 0
      %3699 = vmatpush1.bf16.msra.mxu0 %v3398
      %3700 = vmatprep.subr.bf16.mxu0 0
      %3701 = vmatpush1.bf16.msra.mxu0 %v3397
      %3702 = vmatprep.subr.bf16.mxu0 0
      %3703 = vmatpush2.bf16.msra.mxu0 %v3412
      %3704 = vmatprep.subr.bf16.mxu0 0
      %3705 = vmatpush2.bf16.msra.mxu0 %v3411
      %3706 = vmatprep.subr.bf16.mxu0 0
      %3707 = vmatpush2.bf16.msra.mxu0 %v3410
      %3708 = vmatprep.subr.bf16.mxu0 0
      %3709 = vmatpush2.bf16.msra.mxu0 %v3409
      %3710 = vmatprep.subr.bf16.mxu0 0
      %3711 = vmatpush2.bf16.msra.mxu0 %v3408
      %3712 = vmatprep.subr.bf16.mxu0 0
      %3713 = vmatpush2.bf16.msra.mxu0 %v3407
      %3714 = vmatprep.subr.bf16.mxu0 0
      %3715 = vmatpush2.bf16.msra.mxu0 %v3406
      %3716 = vmatprep.subr.bf16.mxu0 0
      %3717 = vmatpush2.bf16.msra.mxu0 %v3405
      %3718 = vmatprep.mubr.bf16.mxu0 %v2808
      %3719 = vmatmul.mubr.bf16.gmra.mxu0 %v2807
      %v3720 = vpop.f32.mrf.mxu0
      %v3721 = vadd.f32 %v3560, %v3720
      %v3722 = vpop.f32.mrf.mxu0
      %v3723 = vpop.f32.mrf.mxu0
      %v3724 = vadd.f32 %v3563, %v3723
      %v3725 = vpop.f32.mrf.mxu0
      %3726 = vmatprep.mubr.bf16.mxu0 %v2817
      %3727 = vmatmul.mubr.bf16.gmra.mxu0 %v2816
      %v3728 = vpop.f32.mrf.mxu0
      %v3729 = vadd.f32 %v3568, %v3728
      %v3730 = vpop.f32.mrf.mxu0
      %v3731 = vpop.f32.mrf.mxu0
      %v3732 = vadd.f32 %v3571, %v3731
      %v3733 = vpop.f32.mrf.mxu0
      %3734 = vmatprep.mubr.bf16.mxu0 %v2826
      %3735 = vmatmul.mubr.bf16.gmra.mxu0 %v2825
      %v3736 = vpop.f32.mrf.mxu0
      %v3737 = vadd.f32 %v3576, %v3736
      %v3738 = vpop.f32.mrf.mxu0
      %v3739 = vpop.f32.mrf.mxu0
      %v3740 = vadd.f32 %v3579, %v3739
      %v3741 = vpop.f32.mrf.mxu0
      %3742 = vmatprep.mubr.bf16.mxu0 %v2835
      %3743 = vmatmul.mubr.bf16.gmra.mxu0 %v2834
      %v3744 = vpop.f32.mrf.mxu0
      %v3745 = vadd.f32 %v3584, %v3744
      %v3746 = vpop.f32.mrf.mxu0
      %v3747 = vpop.f32.mrf.mxu0
      %v3748 = vadd.f32 %v3587, %v3747
      %v3749 = vpop.f32.mrf.mxu0
      %3750 = vmatprep.mubr.bf16.mxu0 %v2844
      %3751 = vmatmul.mubr.bf16.gmra.mxu0 %v2843
      %v3752 = vpop.f32.mrf.mxu0
      %v3753 = vadd.f32 %v3592, %v3752
      %v3754 = vpop.f32.mrf.mxu0
      %v3755 = vpop.f32.mrf.mxu0
      %v3756 = vadd.f32 %v3595, %v3755
      %v3757 = vpop.f32.mrf.mxu0
      %3758 = vmatprep.mubr.bf16.mxu0 %v2853
      %3759 = vmatmul.mubr.bf16.gmra.mxu0 %v2852
      %v3760 = vpop.f32.mrf.mxu0
      %v3761 = vadd.f32 %v3600, %v3760
      %v3762 = vpop.f32.mrf.mxu0
      %v3763 = vpop.f32.mrf.mxu0
      %v3764 = vadd.f32 %v3603, %v3763
      %v3765 = vpop.f32.mrf.mxu0
      %3766 = vmatprep.mubr.bf16.mxu0 %v2862
      %3767 = vmatmul.mubr.bf16.gmra.mxu0 %v2861
      %v3768 = vpop.f32.mrf.mxu0
      %v3769 = vadd.f32 %v3608, %v3768
      %v3770 = vpop.f32.mrf.mxu0
      %v3771 = vpop.f32.mrf.mxu0
      %v3772 = vadd.f32 %v3611, %v3771
      %v3773 = vpop.f32.mrf.mxu0
      %3774 = vmatprep.mubr.bf16.mxu0 %v2871
      %3775 = vmatmul.mubr.bf16.gmra.mxu0 %v2870
      %v3776 = vpop.f32.mrf.mxu0
      %v3777 = vadd.f32 %v3616, %v3776
      %v3778 = vpop.f32.mrf.mxu0
      %v3779 = vpop.f32.mrf.mxu0
      %v3780 = vadd.f32 %v3619, %v3779
      %v3781 = vpop.f32.mrf.mxu0
      %3782 = vmatprep.mubr.bf16.mxu0 %v2880
      %3783 = vmatmul.mubr.bf16.gmra.mxu0 %v2879
      %v3784 = vpop.f32.mrf.mxu0
      %v3785 = vadd.f32 %v3624, %v3784
      %v3786 = vpop.f32.mrf.mxu0
      %v3787 = vpop.f32.mrf.mxu0
      %v3788 = vadd.f32 %v3627, %v3787
      %v3789 = vpop.f32.mrf.mxu0
      %3790 = vmatprep.mubr.bf16.mxu0 %v2889
      %3791 = vmatmul.mubr.bf16.gmra.mxu0 %v2888
      %v3792 = vpop.f32.mrf.mxu0
      %v3793 = vadd.f32 %v3632, %v3792
      %v3794 = vpop.f32.mrf.mxu0
      %v3795 = vpop.f32.mrf.mxu0
      %v3796 = vadd.f32 %v3635, %v3795
      %v3797 = vpop.f32.mrf.mxu0
      %3798 = vmatprep.mubr.bf16.mxu0 %v2898
      %3799 = vmatmul.mubr.bf16.gmra.mxu0 %v2897
      %v3800 = vpop.f32.mrf.mxu0
      %v3801 = vadd.f32 %v3640, %v3800
      %v3802 = vpop.f32.mrf.mxu0
      %v3803 = vpop.f32.mrf.mxu0
      %v3804 = vadd.f32 %v3643, %v3803
      %v3805 = vpop.f32.mrf.mxu0
      %3806 = vmatprep.mubr.bf16.mxu0 %v2907
      %3807 = vmatmul.mubr.bf16.gmra.mxu0 %v2906
      %v3808 = vpop.f32.mrf.mxu0
      %v3809 = vadd.f32 %v3648, %v3808
      %v3810 = vpop.f32.mrf.mxu0
      %v3811 = vpop.f32.mrf.mxu0
      %v3812 = vadd.f32 %v3651, %v3811
      %v3813 = vpop.f32.mrf.mxu0
      %3814 = vmatprep.mubr.bf16.mxu0 %v2916
      %3815 = vmatmul.mubr.bf16.gmra.mxu0 %v2915
      %v3816 = vpop.f32.mrf.mxu0
      %v3817 = vadd.f32 %v3656, %v3816
      %v3818 = vpop.f32.mrf.mxu0
      %v3819 = vpop.f32.mrf.mxu0
      %v3820 = vadd.f32 %v3659, %v3819
      %v3821 = vpop.f32.mrf.mxu0
      %3822 = vmatprep.mubr.bf16.mxu0 %v2925
      %3823 = vmatmul.mubr.bf16.gmra.mxu0 %v2924
      %v3824 = vpop.f32.mrf.mxu0
      %v3825 = vadd.f32 %v3664, %v3824
      %v3826 = vpop.f32.mrf.mxu0
      %v3827 = vpop.f32.mrf.mxu0
      %v3828 = vadd.f32 %v3667, %v3827
      %v3829 = vpop.f32.mrf.mxu0
      %3830 = vmatprep.mubr.bf16.mxu0 %v2934
      %3831 = vmatmul.mubr.bf16.gmra.mxu0 %v2933
      %v3832 = vpop.f32.mrf.mxu0
      %v3833 = vadd.f32 %v3672, %v3832
      %v3834 = vpop.f32.mrf.mxu0
      %v3835 = vpop.f32.mrf.mxu0
      %v3836 = vadd.f32 %v3675, %v3835
      %v3837 = vpop.f32.mrf.mxu0
      %3838 = vmatprep.mubr.bf16.mxu0 %v2943
      %3839 = vmatmul.mubr.bf16.gmra.mxu0 %v2942
      %v3840 = vpop.f32.mrf.mxu0
      %v3841 = vadd.f32 %v3680, %v3840
      %v3842 = vpop.f32.mrf.mxu0
      %v3843 = vpop.f32.mrf.mxu0
      %v3844 = vadd.f32 %v3683, %v3843
      %v3845 = vpop.f32.mrf.mxu0
      %3846 = vdwg.mxu0
      %3847 = vmatprep.subr.bf16.mxu0 0
      %3848 = vmatpush1.bf16.msra.mxu0 %v3420
      %3849 = vmatprep.subr.bf16.mxu0 0
      %3850 = vmatpush1.bf16.msra.mxu0 %v3419
      %3851 = vmatprep.subr.bf16.mxu0 0
      %3852 = vmatpush1.bf16.msra.mxu0 %v3418
      %3853 = vmatprep.subr.bf16.mxu0 0
      %3854 = vmatpush1.bf16.msra.mxu0 %v3417
      %3855 = vmatprep.subr.bf16.mxu0 0
      %3856 = vmatpush1.bf16.msra.mxu0 %v3416
      %3857 = vmatprep.subr.bf16.mxu0 0
      %3858 = vmatpush1.bf16.msra.mxu0 %v3415
      %3859 = vmatprep.subr.bf16.mxu0 0
      %3860 = vmatpush1.bf16.msra.mxu0 %v3414
      %3861 = vmatprep.subr.bf16.mxu0 0
      %3862 = vmatpush1.bf16.msra.mxu0 %v3413
      %3863 = vmatprep.subr.bf16.mxu0 0
      %3864 = vmatpush2.bf16.msra.mxu0 %v3428
      %3865 = vmatprep.subr.bf16.mxu0 0
      %3866 = vmatpush2.bf16.msra.mxu0 %v3427
      %3867 = vmatprep.subr.bf16.mxu0 0
      %3868 = vmatpush2.bf16.msra.mxu0 %v3426
      %3869 = vmatprep.subr.bf16.mxu0 0
      %3870 = vmatpush2.bf16.msra.mxu0 %v3425
      %3871 = vmatprep.subr.bf16.mxu0 0
      %3872 = vmatpush2.bf16.msra.mxu0 %v3424
      %3873 = vmatprep.subr.bf16.mxu0 0
      %3874 = vmatpush2.bf16.msra.mxu0 %v3423
      %3875 = vmatprep.subr.bf16.mxu0 0
      %3876 = vmatpush2.bf16.msra.mxu0 %v3422
      %3877 = vmatprep.subr.bf16.mxu0 0
      %3878 = vmatpush2.bf16.msra.mxu0 %v3421
      %3879 = vmatprep.mubr.bf16.mxu0 %v2810
      %3880 = vmatmul.mubr.bf16.gmra.mxu0 %v2809
      %v3881 = vpop.f32.mrf.mxu0
      %v3882 = vadd.f32 %v3721, %v3881
      %v3883 = vpop.f32.mrf.mxu0
      %v3884 = vpop.f32.mrf.mxu0
      %v3885 = vadd.f32 %v3724, %v3884
      %v3886 = vpop.f32.mrf.mxu0
      %3887 = vmatprep.mubr.bf16.mxu0 %v2819
      %3888 = vmatmul.mubr.bf16.gmra.mxu0 %v2818
      %v3889 = vpop.f32.mrf.mxu0
      %v3890 = vadd.f32 %v3729, %v3889
      %v3891 = vpop.f32.mrf.mxu0
      %v3892 = vpop.f32.mrf.mxu0
      %v3893 = vadd.f32 %v3732, %v3892
      %v3894 = vpop.f32.mrf.mxu0
      %3895 = vmatprep.mubr.bf16.mxu0 %v2828
      %3896 = vmatmul.mubr.bf16.gmra.mxu0 %v2827
      %v3897 = vpop.f32.mrf.mxu0
      %v3898 = vadd.f32 %v3737, %v3897
      %v3899 = vpop.f32.mrf.mxu0
      %v3900 = vpop.f32.mrf.mxu0
      %v3901 = vadd.f32 %v3740, %v3900
      %v3902 = vpop.f32.mrf.mxu0
      %3903 = vmatprep.mubr.bf16.mxu0 %v2837
      %3904 = vmatmul.mubr.bf16.gmra.mxu0 %v2836
      %v3905 = vpop.f32.mrf.mxu0
      %v3906 = vadd.f32 %v3745, %v3905
      %v3907 = vpop.f32.mrf.mxu0
      %v3908 = vpop.f32.mrf.mxu0
      %v3909 = vadd.f32 %v3748, %v3908
      %v3910 = vpop.f32.mrf.mxu0
      %3911 = vmatprep.mubr.bf16.mxu0 %v2846
      %3912 = vmatmul.mubr.bf16.gmra.mxu0 %v2845
      %v3913 = vpop.f32.mrf.mxu0
      %v3914 = vadd.f32 %v3753, %v3913
      %v3915 = vpop.f32.mrf.mxu0
      %v3916 = vpop.f32.mrf.mxu0
      %v3917 = vadd.f32 %v3756, %v3916
      %v3918 = vpop.f32.mrf.mxu0
      %3919 = vmatprep.mubr.bf16.mxu0 %v2855
      %3920 = vmatmul.mubr.bf16.gmra.mxu0 %v2854
      %v3921 = vpop.f32.mrf.mxu0
      %v3922 = vadd.f32 %v3761, %v3921
      %v3923 = vpop.f32.mrf.mxu0
      %v3924 = vpop.f32.mrf.mxu0
      %v3925 = vadd.f32 %v3764, %v3924
      %v3926 = vpop.f32.mrf.mxu0
      %3927 = vmatprep.mubr.bf16.mxu0 %v2864
      %3928 = vmatmul.mubr.bf16.gmra.mxu0 %v2863
      %v3929 = vpop.f32.mrf.mxu0
      %v3930 = vadd.f32 %v3769, %v3929
      %v3931 = vpop.f32.mrf.mxu0
      %v3932 = vpop.f32.mrf.mxu0
      %v3933 = vadd.f32 %v3772, %v3932
      %v3934 = vpop.f32.mrf.mxu0
      %3935 = vmatprep.mubr.bf16.mxu0 %v2873
      %3936 = vmatmul.mubr.bf16.gmra.mxu0 %v2872
      %v3937 = vpop.f32.mrf.mxu0
      %v3938 = vadd.f32 %v3777, %v3937
      %v3939 = vpop.f32.mrf.mxu0
      %v3940 = vpop.f32.mrf.mxu0
      %v3941 = vadd.f32 %v3780, %v3940
      %v3942 = vpop.f32.mrf.mxu0
      %3943 = vmatprep.mubr.bf16.mxu0 %v2882
      %3944 = vmatmul.mubr.bf16.gmra.mxu0 %v2881
      %v3945 = vpop.f32.mrf.mxu0
      %v3946 = vadd.f32 %v3785, %v3945
      %v3947 = vpop.f32.mrf.mxu0
      %v3948 = vpop.f32.mrf.mxu0
      %v3949 = vadd.f32 %v3788, %v3948
      %v3950 = vpop.f32.mrf.mxu0
      %3951 = vmatprep.mubr.bf16.mxu0 %v2891
      %3952 = vmatmul.mubr.bf16.gmra.mxu0 %v2890
      %v3953 = vpop.f32.mrf.mxu0
      %v3954 = vadd.f32 %v3793, %v3953
      %v3955 = vpop.f32.mrf.mxu0
      %v3956 = vpop.f32.mrf.mxu0
      %v3957 = vadd.f32 %v3796, %v3956
      %v3958 = vpop.f32.mrf.mxu0
      %3959 = vmatprep.mubr.bf16.mxu0 %v2900
      %3960 = vmatmul.mubr.bf16.gmra.mxu0 %v2899
      %v3961 = vpop.f32.mrf.mxu0
      %v3962 = vadd.f32 %v3801, %v3961
      %v3963 = vpop.f32.mrf.mxu0
      %v3964 = vpop.f32.mrf.mxu0
      %v3965 = vadd.f32 %v3804, %v3964
      %v3966 = vpop.f32.mrf.mxu0
      %3967 = vmatprep.mubr.bf16.mxu0 %v2909
      %3968 = vmatmul.mubr.bf16.gmra.mxu0 %v2908
      %v3969 = vpop.f32.mrf.mxu0
      %v3970 = vadd.f32 %v3809, %v3969
      %v3971 = vpop.f32.mrf.mxu0
      %v3972 = vpop.f32.mrf.mxu0
      %v3973 = vadd.f32 %v3812, %v3972
      %v3974 = vpop.f32.mrf.mxu0
      %3975 = vmatprep.mubr.bf16.mxu0 %v2918
      %3976 = vmatmul.mubr.bf16.gmra.mxu0 %v2917
      %v3977 = vpop.f32.mrf.mxu0
      %v3978 = vadd.f32 %v3817, %v3977
      %v3979 = vpop.f32.mrf.mxu0
      %v3980 = vpop.f32.mrf.mxu0
      %v3981 = vadd.f32 %v3820, %v3980
      %v3982 = vpop.f32.mrf.mxu0
      %3983 = vmatprep.mubr.bf16.mxu0 %v2927
      %3984 = vmatmul.mubr.bf16.gmra.mxu0 %v2926
      %v3985 = vpop.f32.mrf.mxu0
      %v3986 = vadd.f32 %v3825, %v3985
      %v3987 = vpop.f32.mrf.mxu0
      %v3988 = vpop.f32.mrf.mxu0
      %v3989 = vadd.f32 %v3828, %v3988
      %v3990 = vpop.f32.mrf.mxu0
      %3991 = vmatprep.mubr.bf16.mxu0 %v2936
      %3992 = vmatmul.mubr.bf16.gmra.mxu0 %v2935
      %v3993 = vpop.f32.mrf.mxu0
      %v3994 = vadd.f32 %v3833, %v3993
      %v3995 = vpop.f32.mrf.mxu0
      %v3996 = vpop.f32.mrf.mxu0
      %v3997 = vadd.f32 %v3836, %v3996
      %v3998 = vpop.f32.mrf.mxu0
      %3999 = vmatprep.mubr.bf16.mxu0 %v2945
      %4000 = vmatmul.mubr.bf16.gmra.mxu0 %v2944
      %v4001 = vpop.f32.mrf.mxu0
      %v4002 = vadd.f32 %v3841, %v4001
      %v4003 = vpop.f32.mrf.mxu0
      %v4004 = vpop.f32.mrf.mxu0
      %v4005 = vadd.f32 %v3844, %v4004
      %v4006 = vpop.f32.mrf.mxu0
      %4007 = vdwg.mxu0
      %4008 = vmatprep.subr.bf16.mxu0 0
      %4009 = vmatpush1.bf16.msra.mxu0 %v3436
      %4010 = vmatprep.subr.bf16.mxu0 0
      %4011 = vmatpush1.bf16.msra.mxu0 %v3435
      %4012 = vmatprep.subr.bf16.mxu0 0
      %4013 = vmatpush1.bf16.msra.mxu0 %v3434
      %4014 = vmatprep.subr.bf16.mxu0 0
      %4015 = vmatpush1.bf16.msra.mxu0 %v3433
      %4016 = vmatprep.subr.bf16.mxu0 0
      %4017 = vmatpush1.bf16.msra.mxu0 %v3432
      %4018 = vmatprep.subr.bf16.mxu0 0
      %4019 = vmatpush1.bf16.msra.mxu0 %v3431
      %4020 = vmatprep.subr.bf16.mxu0 0
      %4021 = vmatpush1.bf16.msra.mxu0 %v3430
      %4022 = vmatprep.subr.bf16.mxu0 0
      %4023 = vmatpush1.bf16.msra.mxu0 %v3429
      %4024 = vmatprep.subr.bf16.mxu0 0
      %4025 = vmatpush2.bf16.msra.mxu0 %v3444
      %4026 = vmatprep.subr.bf16.mxu0 0
      %4027 = vmatpush2.bf16.msra.mxu0 %v3443
      %4028 = vmatprep.subr.bf16.mxu0 0
      %4029 = vmatpush2.bf16.msra.mxu0 %v3442
      %4030 = vmatprep.subr.bf16.mxu0 0
      %4031 = vmatpush2.bf16.msra.mxu0 %v3441
      %4032 = vmatprep.subr.bf16.mxu0 0
      %4033 = vmatpush2.bf16.msra.mxu0 %v3440
      %4034 = vmatprep.subr.bf16.mxu0 0
      %4035 = vmatpush2.bf16.msra.mxu0 %v3439
      %4036 = vmatprep.subr.bf16.mxu0 0
      %4037 = vmatpush2.bf16.msra.mxu0 %v3438
      %4038 = vmatprep.subr.bf16.mxu0 0
      %4039 = vmatpush2.bf16.msra.mxu0 %v3437
      %4040 = vmatprep.mubr.bf16.mxu0 %v2812
      %4041 = vmatmul.mubr.bf16.gmra.mxu0 %v2811
      %v4042 = vpop.f32.mrf.mxu0
      %v4043 = vadd.f32 %v3882, %v4042
      %v4044 = vpop.f32.mrf.mxu0
      %v4045 = vpop.f32.mrf.mxu0
      %v4046 = vadd.f32 %v3885, %v4045
      %v4047 = vpop.f32.mrf.mxu0
      %4048 = vmatprep.mubr.bf16.mxu0 %v2821
      %4049 = vmatmul.mubr.bf16.gmra.mxu0 %v2820
      %v4050 = vpop.f32.mrf.mxu0
      %v4051 = vadd.f32 %v3890, %v4050
      %v4052 = vpop.f32.mrf.mxu0
      %v4053 = vpop.f32.mrf.mxu0
      %v4054 = vadd.f32 %v3893, %v4053
      %v4055 = vpop.f32.mrf.mxu0
      %4056 = vmatprep.mubr.bf16.mxu0 %v2830
      %4057 = vmatmul.mubr.bf16.gmra.mxu0 %v2829
      %v4058 = vpop.f32.mrf.mxu0
      %v4059 = vadd.f32 %v3898, %v4058
      %v4060 = vpop.f32.mrf.mxu0
      %v4061 = vpop.f32.mrf.mxu0
      %v4062 = vadd.f32 %v3901, %v4061
      %v4063 = vpop.f32.mrf.mxu0
      %4064 = vmatprep.mubr.bf16.mxu0 %v2839
      %4065 = vmatmul.mubr.bf16.gmra.mxu0 %v2838
      %v4066 = vpop.f32.mrf.mxu0
      %v4067 = vadd.f32 %v3906, %v4066
      %v4068 = vpop.f32.mrf.mxu0
      %v4069 = vpop.f32.mrf.mxu0
      %v4070 = vadd.f32 %v3909, %v4069
      %v4071 = vpop.f32.mrf.mxu0
      %4072 = vmatprep.mubr.bf16.mxu0 %v2848
      %4073 = vmatmul.mubr.bf16.gmra.mxu0 %v2847
      %v4074 = vpop.f32.mrf.mxu0
      %v4075 = vadd.f32 %v3914, %v4074
      %v4076 = vpop.f32.mrf.mxu0
      %v4077 = vpop.f32.mrf.mxu0
      %v4078 = vadd.f32 %v3917, %v4077
      %v4079 = vpop.f32.mrf.mxu0
      %4080 = vmatprep.mubr.bf16.mxu0 %v2857
      %4081 = vmatmul.mubr.bf16.gmra.mxu0 %v2856
      %v4082 = vpop.f32.mrf.mxu0
      %v4083 = vadd.f32 %v3922, %v4082
      %v4084 = vpop.f32.mrf.mxu0
      %v4085 = vpop.f32.mrf.mxu0
      %v4086 = vadd.f32 %v3925, %v4085
      %v4087 = vpop.f32.mrf.mxu0
      %4088 = vmatprep.mubr.bf16.mxu0 %v2866
      %4089 = vmatmul.mubr.bf16.gmra.mxu0 %v2865
      %v4090 = vpop.f32.mrf.mxu0
      %v4091 = vadd.f32 %v3930, %v4090
      %v4092 = vpop.f32.mrf.mxu0
      %v4093 = vpop.f32.mrf.mxu0
      %v4094 = vadd.f32 %v3933, %v4093
      %v4095 = vpop.f32.mrf.mxu0
      %4096 = vmatprep.mubr.bf16.mxu0 %v2875
      %4097 = vmatmul.mubr.bf16.gmra.mxu0 %v2874
      %v4098 = vpop.f32.mrf.mxu0
      %v4099 = vadd.f32 %v3938, %v4098
      %v4100 = vpop.f32.mrf.mxu0
      %v4101 = vpop.f32.mrf.mxu0
      %v4102 = vadd.f32 %v3941, %v4101
      %v4103 = vpop.f32.mrf.mxu0
      %4104 = vmatprep.mubr.bf16.mxu0 %v2884
      %4105 = vmatmul.mubr.bf16.gmra.mxu0 %v2883
      %v4106 = vpop.f32.mrf.mxu0
      %v4107 = vadd.f32 %v3946, %v4106
      %v4108 = vpop.f32.mrf.mxu0
      %v4109 = vpop.f32.mrf.mxu0
      %v4110 = vadd.f32 %v3949, %v4109
      %v4111 = vpop.f32.mrf.mxu0
      %4112 = vmatprep.mubr.bf16.mxu0 %v2893
      %4113 = vmatmul.mubr.bf16.gmra.mxu0 %v2892
      %v4114 = vpop.f32.mrf.mxu0
      %v4115 = vadd.f32 %v3954, %v4114
      %v4116 = vpop.f32.mrf.mxu0
      %v4117 = vpop.f32.mrf.mxu0
      %v4118 = vadd.f32 %v3957, %v4117
      %v4119 = vpop.f32.mrf.mxu0
      %4120 = vmatprep.mubr.bf16.mxu0 %v2902
      %4121 = vmatmul.mubr.bf16.gmra.mxu0 %v2901
      %v4122 = vpop.f32.mrf.mxu0
      %v4123 = vadd.f32 %v3962, %v4122
      %v4124 = vpop.f32.mrf.mxu0
      %v4125 = vpop.f32.mrf.mxu0
      %v4126 = vadd.f32 %v3965, %v4125
      %v4127 = vpop.f32.mrf.mxu0
      %4128 = vmatprep.mubr.bf16.mxu0 %v2911
      %4129 = vmatmul.mubr.bf16.gmra.mxu0 %v2910
      %v4130 = vpop.f32.mrf.mxu0
      %v4131 = vadd.f32 %v3970, %v4130
      %v4132 = vpop.f32.mrf.mxu0
      %v4133 = vpop.f32.mrf.mxu0
      %v4134 = vadd.f32 %v3973, %v4133
      %v4135 = vpop.f32.mrf.mxu0
      %4136 = vmatprep.mubr.bf16.mxu0 %v2920
      %4137 = vmatmul.mubr.bf16.gmra.mxu0 %v2919
      %v4138 = vpop.f32.mrf.mxu0
      %v4139 = vadd.f32 %v3978, %v4138
      %v4140 = vpop.f32.mrf.mxu0
      %v4141 = vpop.f32.mrf.mxu0
      %v4142 = vadd.f32 %v3981, %v4141
      %v4143 = vpop.f32.mrf.mxu0
      %4144 = vmatprep.mubr.bf16.mxu0 %v2929
      %4145 = vmatmul.mubr.bf16.gmra.mxu0 %v2928
      %v4146 = vpop.f32.mrf.mxu0
      %v4147 = vadd.f32 %v3986, %v4146
      %v4148 = vpop.f32.mrf.mxu0
      %v4149 = vpop.f32.mrf.mxu0
      %v4150 = vadd.f32 %v3989, %v4149
      %v4151 = vpop.f32.mrf.mxu0
      %4152 = vmatprep.mubr.bf16.mxu0 %v2938
      %4153 = vmatmul.mubr.bf16.gmra.mxu0 %v2937
      %v4154 = vpop.f32.mrf.mxu0
      %v4155 = vadd.f32 %v3994, %v4154
      %v4156 = vpop.f32.mrf.mxu0
      %v4157 = vpop.f32.mrf.mxu0
      %v4158 = vadd.f32 %v3997, %v4157
      %v4159 = vpop.f32.mrf.mxu0
      %4160 = vmatprep.mubr.bf16.mxu0 %v2947
      %4161 = vmatmul.mubr.bf16.gmra.mxu0 %v2946
      %v4162 = vpop.f32.mrf.mxu0
      %v4163 = vadd.f32 %v4002, %v4162
      %v4164 = vpop.f32.mrf.mxu0
      %v4165 = vpop.f32.mrf.mxu0
      %v4166 = vadd.f32 %v4005, %v4165
      %v4167 = vpop.f32.mrf.mxu0
      %4168 = vdwg.mxu0
      %4169 = vmatprep.subr.bf16.mxu0 0
      %4170 = vmatpush1.bf16.msra.mxu0 %v3452
      %4171 = vmatprep.subr.bf16.mxu0 0
      %4172 = vmatpush1.bf16.msra.mxu0 %v3451
      %4173 = vmatprep.subr.bf16.mxu0 0
      %4174 = vmatpush1.bf16.msra.mxu0 %v3450
      %4175 = vmatprep.subr.bf16.mxu0 0
      %4176 = vmatpush1.bf16.msra.mxu0 %v3449
      %4177 = vmatprep.subr.bf16.mxu0 0
      %4178 = vmatpush1.bf16.msra.mxu0 %v3448
      %4179 = vmatprep.subr.bf16.mxu0 0
      %4180 = vmatpush1.bf16.msra.mxu0 %v3447
      %4181 = vmatprep.subr.bf16.mxu0 0
      %4182 = vmatpush1.bf16.msra.mxu0 %v3446
      %4183 = vmatprep.subr.bf16.mxu0 0
      %4184 = vmatpush1.bf16.msra.mxu0 %v3445
      %4185 = vmatprep.subr.bf16.mxu0 0
      %4186 = vmatpush2.bf16.msra.mxu0 0
      %4187 = vmatprep.subr.bf16.mxu0 0
      %4188 = vmatpush2.bf16.msra.mxu0 0
      %4189 = vmatprep.subr.bf16.mxu0 0
      %4190 = vmatpush2.bf16.msra.mxu0 0
      %4191 = vmatprep.subr.bf16.mxu0 0
      %4192 = vmatpush2.bf16.msra.mxu0 0
      %4193 = vmatprep.subr.bf16.mxu0 0
      %4194 = vmatpush2.bf16.msra.mxu0 0
      %4195 = vmatprep.subr.bf16.mxu0 0
      %4196 = vmatpush2.bf16.msra.mxu0 0
      %4197 = vmatprep.subr.bf16.mxu0 0
      %4198 = vmatpush2.bf16.msra.mxu0 0
      %4199 = vmatprep.subr.bf16.mxu0 0
      %4200 = vmatpush2.bf16.msra.mxu0 0
      %4201 = vmatprep.mubr.bf16.mxu0 0
      %4202 = vmatmul.mubr.bf16.gmra.mxu0 %v2813
      %v4203 = vpop.f32.mrf.mxu0
      %v4204 = vadd.f32 %v4043, %v4203
      %v4205 = vpop.f32.mrf.mxu0
      %v4206 = vpop.f32.mrf.mxu0
      %v4207 = vadd.f32 %v4046, %v4206
      %v4208 = vpop.f32.mrf.mxu0
      %4209 = vmatprep.mubr.bf16.mxu0 0
      %4210 = vmatmul.mubr.bf16.gmra.mxu0 %v2822
      %v4211 = vpop.f32.mrf.mxu0
      %v4212 = vadd.f32 %v4051, %v4211
      %v4213 = vpop.f32.mrf.mxu0
      %v4214 = vpop.f32.mrf.mxu0
      %v4215 = vadd.f32 %v4054, %v4214
      %v4216 = vpop.f32.mrf.mxu0
      %4217 = vmatprep.mubr.bf16.mxu0 0
      %4218 = vmatmul.mubr.bf16.gmra.mxu0 %v2831
      %v4219 = vpop.f32.mrf.mxu0
      %v4220 = vadd.f32 %v4059, %v4219
      %v4221 = vpop.f32.mrf.mxu0
      %v4222 = vpop.f32.mrf.mxu0
      %v4223 = vadd.f32 %v4062, %v4222
      %v4224 = vpop.f32.mrf.mxu0
      %4225 = vmatprep.mubr.bf16.mxu0 0
      %4226 = vmatmul.mubr.bf16.gmra.mxu0 %v2840
      %v4227 = vpop.f32.mrf.mxu0
      %v4228 = vadd.f32 %v4067, %v4227
      %v4229 = vpop.f32.mrf.mxu0
      %v4230 = vpop.f32.mrf.mxu0
      %v4231 = vadd.f32 %v4070, %v4230
      %v4232 = vpop.f32.mrf.mxu0
      %4233 = vmatprep.mubr.bf16.mxu0 0
      %4234 = vmatmul.mubr.bf16.gmra.mxu0 %v2849
      %v4235 = vpop.f32.mrf.mxu0
      %v4236 = vadd.f32 %v4075, %v4235
      %v4237 = vpop.f32.mrf.mxu0
      %v4238 = vpop.f32.mrf.mxu0
      %v4239 = vadd.f32 %v4078, %v4238
      %v4240 = vpop.f32.mrf.mxu0
      %4241 = vmatprep.mubr.bf16.mxu0 0
      %4242 = vmatmul.mubr.bf16.gmra.mxu0 %v2858
      %v4243 = vpop.f32.mrf.mxu0
      %v4244 = vadd.f32 %v4083, %v4243
      %v4245 = vpop.f32.mrf.mxu0
      %v4246 = vpop.f32.mrf.mxu0
      %v4247 = vadd.f32 %v4086, %v4246
      %v4248 = vpop.f32.mrf.mxu0
      %4249 = vmatprep.mubr.bf16.mxu0 0
      %4250 = vmatmul.mubr.bf16.gmra.mxu0 %v2867
      %v4251 = vpop.f32.mrf.mxu0
      %v4252 = vadd.f32 %v4091, %v4251
      %v4253 = vpop.f32.mrf.mxu0
      %v4254 = vpop.f32.mrf.mxu0
      %v4255 = vadd.f32 %v4094, %v4254
      %v4256 = vpop.f32.mrf.mxu0
      %4257 = vmatprep.mubr.bf16.mxu0 0
      %4258 = vmatmul.mubr.bf16.gmra.mxu0 %v2876
      %v4259 = vpop.f32.mrf.mxu0
      %v4260 = vadd.f32 %v4099, %v4259
      %v4261 = vpop.f32.mrf.mxu0
      %v4262 = vpop.f32.mrf.mxu0
      %v4263 = vadd.f32 %v4102, %v4262
      %v4264 = vpop.f32.mrf.mxu0
      %4265 = vmatprep.mubr.bf16.mxu0 0
      %4266 = vmatmul.mubr.bf16.gmra.mxu0 %v2885
      %v4267 = vpop.f32.mrf.mxu0
      %v4268 = vadd.f32 %v4107, %v4267
      %v4269 = vpop.f32.mrf.mxu0
      %v4270 = vpop.f32.mrf.mxu0
      %v4271 = vadd.f32 %v4110, %v4270
      %v4272 = vpop.f32.mrf.mxu0
      %4273 = vmatprep.mubr.bf16.mxu0 0
      %4274 = vmatmul.mubr.bf16.gmra.mxu0 %v2894
      %v4275 = vpop.f32.mrf.mxu0
      %v4276 = vadd.f32 %v4115, %v4275
      %v4277 = vpop.f32.mrf.mxu0
      %v4278 = vpop.f32.mrf.mxu0
      %v4279 = vadd.f32 %v4118, %v4278
      %v4280 = vpop.f32.mrf.mxu0
      %4281 = vmatprep.mubr.bf16.mxu0 0
      %4282 = vmatmul.mubr.bf16.gmra.mxu0 %v2903
      %v4283 = vpop.f32.mrf.mxu0
      %v4284 = vadd.f32 %v4123, %v4283
      %v4285 = vpop.f32.mrf.mxu0
      %v4286 = vpop.f32.mrf.mxu0
      %v4287 = vadd.f32 %v4126, %v4286
      %v4288 = vpop.f32.mrf.mxu0
      %4289 = vmatprep.mubr.bf16.mxu0 0
      %4290 = vmatmul.mubr.bf16.gmra.mxu0 %v2912
      %v4291 = vpop.f32.mrf.mxu0
      %v4292 = vadd.f32 %v4131, %v4291
      %v4293 = vpop.f32.mrf.mxu0
      %v4294 = vpop.f32.mrf.mxu0
      %v4295 = vadd.f32 %v4134, %v4294
      %v4296 = vpop.f32.mrf.mxu0
      %4297 = vmatprep.mubr.bf16.mxu0 0
      %4298 = vmatmul.mubr.bf16.gmra.mxu0 %v2921
      %v4299 = vpop.f32.mrf.mxu0
      %v4300 = vadd.f32 %v4139, %v4299
      %v4301 = vpop.f32.mrf.mxu0
      %v4302 = vpop.f32.mrf.mxu0
      %v4303 = vadd.f32 %v4142, %v4302
      %v4304 = vpop.f32.mrf.mxu0
      %4305 = vmatprep.mubr.bf16.mxu0 0
      %4306 = vmatmul.mubr.bf16.gmra.mxu0 %v2930
      %v4307 = vpop.f32.mrf.mxu0
      %v4308 = vadd.f32 %v4147, %v4307
      %v4309 = vpop.f32.mrf.mxu0
      %v4310 = vpop.f32.mrf.mxu0
      %v4311 = vadd.f32 %v4150, %v4310
      %v4312 = vpop.f32.mrf.mxu0
      %4313 = vmatprep.mubr.bf16.mxu0 0
      %4314 = vmatmul.mubr.bf16.gmra.mxu0 %v2939
      %v4315 = vpop.f32.mrf.mxu0
      %v4316 = vadd.f32 %v4155, %v4315
      %v4317 = vpop.f32.mrf.mxu0
      %v4318 = vpop.f32.mrf.mxu0
      %v4319 = vadd.f32 %v4158, %v4318
      %v4320 = vpop.f32.mrf.mxu0
      %4321 = vmatprep.mubr.bf16.mxu0 0
      %4322 = vmatmul.mubr.bf16.gmra.mxu0 %v2948
      %v4323 = vpop.f32.mrf.mxu0
      %v4324 = vadd.f32 %v4163, %v4323
      %v4325 = vpop.f32.mrf.mxu0
      %v4326 = vpop.f32.mrf.mxu0
      %v4327 = vadd.f32 %v4166, %v4326
      %v4328 = vpop.f32.mrf.mxu0
      %4329 = vdwg.mxu0
      %v4330 = vmax.f32 %v4204, 0.0
      %v4331 = vmax.f32 %v4207, 0.0
      %v4332 = vmax.f32 %v4212, 0.0
      %v4333 = vmax.f32 %v4215, 0.0
      %v4334 = vmax.f32 %v4220, 0.0
      %v4335 = vmax.f32 %v4223, 0.0
      %v4336 = vmax.f32 %v4228, 0.0
      %v4337 = vmax.f32 %v4231, 0.0
      %v4338 = vmax.f32 %v4236, 0.0
      %v4339 = vmax.f32 %v4239, 0.0
      %v4340 = vmax.f32 %v4244, 0.0
      %v4341 = vmax.f32 %v4247, 0.0
      %v4342 = vmax.f32 %v4252, 0.0
      %v4343 = vmax.f32 %v4255, 0.0
      %v4344 = vmax.f32 %v4260, 0.0
      %v4345 = vmax.f32 %v4263, 0.0
      %v4346 = vmax.f32 %v4268, 0.0
      %v4347 = vmax.f32 %v4271, 0.0
      %v4348 = vmax.f32 %v4276, 0.0
      %v4349 = vmax.f32 %v4279, 0.0
      %v4350 = vmax.f32 %v4284, 0.0
      %v4351 = vmax.f32 %v4287, 0.0
      %v4352 = vmax.f32 %v4292, 0.0
      %v4353 = vmax.f32 %v4295, 0.0
      %v4354 = vmax.f32 %v4300, 0.0
      %v4355 = vmax.f32 %v4303, 0.0
      %v4356 = vmax.f32 %v4308, 0.0
      %v4357 = vmax.f32 %v4311, 0.0
      %v4358 = vmax.f32 %v4316, 0.0
      %v4359 = vmax.f32 %v4319, 0.0
      %v4360 = vmax.f32 %v4324, 0.0
      %v4361 = vmax.f32 %v4327, 0.0
      %4362 = vst [vmem:[#allocation3] sm:$0xff] 0.0
      %4363 = vst [vmem:[#allocation3 + $0x8] sm:$0xff] 0.0
      %4364 = vst [vmem:[#allocation3 + $0x10] sm:$0x3] 0.0
      %4365 = vst [vmem:[#allocation3 + $0x18] sm:$0xff] 0.0
      %4366 = vst [vmem:[#allocation3 + $0x20] sm:$0xff] 0.0
      %4367 = vst [vmem:[#allocation3 + $0x28] sm:$0x3] 0.0
      %4368 = vst [vmem:[#allocation3 + $0x30] sm:$0xff] 0.0
      %4369 = vst [vmem:[#allocation3 + $0x38] sm:$0xff] 0.0
      %4370 = vst [vmem:[#allocation3 + $0x40] sm:$0x3] 0.0
      %4371 = vst [vmem:[#allocation3 + $0x48] sm:$0xff] 0.0
      %4372 = vst [vmem:[#allocation3 + $0x50] sm:$0xff] 0.0
      %4373 = vst [vmem:[#allocation3 + $0x58] sm:$0x3] 0.0
      %4374 = vst [vmem:[#allocation3 + $0x60] sm:$0xff] 0.0
      %4375 = vst [vmem:[#allocation3 + $0x68] sm:$0xff] 0.0
      %4376 = vst [vmem:[#allocation3 + $0x70] sm:$0x3] 0.0
      %4377 = vst [vmem:[#allocation3 + $0x78] sm:$0xff] 0.0
      %4378 = vst [vmem:[#allocation3 + $0x80] sm:$0xff] 0.0
      %4379 = vst [vmem:[#allocation3 + $0x88] sm:$0x3] 0.0
      %4380 = vst [vmem:[#allocation3 + $0x90] sm:$0xff] 0.0
      %4381 = vst [vmem:[#allocation3 + $0x98] sm:$0xff] 0.0
      %4382 = vst [vmem:[#allocation3 + $0xa0] sm:$0x3] 0.0
      %4383 = vst [vmem:[#allocation3 + $0xa8] sm:$0xff] 0.0
      %4384 = vst [vmem:[#allocation3 + $0xb0] sm:$0xff] 0.0
      %4385 = vst [vmem:[#allocation3 + $0xb8] sm:$0x3] 0.0
      %4386 = vst [vmem:[#allocation3 + $0xc0] sm:$0xff] 0.0
      %4387 = vst [vmem:[#allocation3 + $0xc8] sm:$0xff] 0.0
      %4388 = vst [vmem:[#allocation3 + $0xd0] sm:$0x3] 0.0
      %4389 = vst [vmem:[#allocation3 + $0xd8] sm:$0xff] 0.0
      %4390 = vst [vmem:[#allocation3 + $0xe0] sm:$0xff] 0.0
      %4391 = vst [vmem:[#allocation3 + $0xe8] sm:$0x3] 0.0
      %4392 = vst [vmem:[#allocation3 + $0xf0] sm:$0xff] 0.0
      %4393 = vst [vmem:[#allocation3 + $0xf8] sm:$0xff] 0.0
      %4394 = vst [vmem:[#allocation3 + $0x100] sm:$0x3] 0.0
      %4395 = vst [vmem:[#allocation3 + $0x108] sm:$0xff] 0.0
      %4396 = vst [vmem:[#allocation3 + $0x110] sm:$0xff] 0.0
      %4397 = vst [vmem:[#allocation3 + $0x118] sm:$0x3] 0.0
      %4398 = vst [vmem:[#allocation3 + $0x120] sm:$0xff] 0.0
      %4399 = vst [vmem:[#allocation3 + $0x128] sm:$0xff] 0.0
      %4400 = vst [vmem:[#allocation3 + $0x130] sm:$0x3] 0.0
      %4401 = vst [vmem:[#allocation3 + $0x138] sm:$0xff] 0.0
      %4402 = vst [vmem:[#allocation3 + $0x140] sm:$0xff] 0.0
      %4403 = vst [vmem:[#allocation3 + $0x148] sm:$0x3] 0.0
      %4404 = vst [vmem:[#allocation3 + $0x150] sm:$0xff] 0.0
      %4405 = vst [vmem:[#allocation3 + $0x158] sm:$0xff] 0.0
      %4406 = vst [vmem:[#allocation3 + $0x160] sm:$0x3] 0.0
      %4407 = vst [vmem:[#allocation3 + $0x168] sm:$0xff] 0.0
      %4408 = vst [vmem:[#allocation3 + $0x170] sm:$0xff] 0.0
      %4409 = vst [vmem:[#allocation3 + $0x178] sm:$0x3] 0.0
      %4410 = vst [vmem:[#allocation3 + $0x180] sm:$0xff] 0.0
      %4411 = vst [vmem:[#allocation3 + $0x188] sm:$0xff] 0.0
      %4412 = vst [vmem:[#allocation3 + $0x190] sm:$0x3] 0.0
      %4413 = vst [vmem:[#allocation3 + $0x198] sm:$0xff] 0.0
      %4414 = vst [vmem:[#allocation3 + $0x1a0] sm:$0xff] 0.0
      %4415 = vst [vmem:[#allocation3 + $0x1a8] sm:$0x3] 0.0
      %s4416 = scalar_lea.vmem [#allocation3], 24
      %4417 = vst.msk [vmem:[%s4416 + $0x1] sm:$0xff] %vm291, %v4330
      %4418 = vst.msk [vmem:[%s4416 + $0x9] sm:$0xff] %vm291, %v4331
      %4419 = vst.msk [vmem:[%s4416 + $0x19] sm:$0xff] %vm291, %v4332
      %4420 = vst.msk [vmem:[%s4416 + $0x21] sm:$0xff] %vm291, %v4333
      %4421 = vst.msk [vmem:[%s4416 + $0x31] sm:$0xff] %vm291, %v4334
      %4422 = vst.msk [vmem:[%s4416 + $0x39] sm:$0xff] %vm291, %v4335
      %4423 = vst.msk [vmem:[%s4416 + $0x49] sm:$0xff] %vm291, %v4336
      %4424 = vst.msk [vmem:[%s4416 + $0x51] sm:$0xff] %vm291, %v4337
      %4425 = vst.msk [vmem:[%s4416 + $0x61] sm:$0xff] %vm291, %v4338
      %4426 = vst.msk [vmem:[%s4416 + $0x69] sm:$0xff] %vm291, %v4339
      %4427 = vst.msk [vmem:[%s4416 + $0x79] sm:$0xff] %vm291, %v4340
      %4428 = vst.msk [vmem:[%s4416 + $0x81] sm:$0xff] %vm291, %v4341
      %4429 = vst.msk [vmem:[%s4416 + $0x91] sm:$0xff] %vm291, %v4342
      %4430 = vst.msk [vmem:[%s4416 + $0x99] sm:$0xff] %vm291, %v4343
      %4431 = vst.msk [vmem:[%s4416 + $0xa9] sm:$0xff] %vm291, %v4344
      %4432 = vst.msk [vmem:[%s4416 + $0xb1] sm:$0xff] %vm291, %v4345
      %4433 = vst.msk [vmem:[%s4416 + $0xc1] sm:$0xff] %vm291, %v4346
      %4434 = vst.msk [vmem:[%s4416 + $0xc9] sm:$0xff] %vm291, %v4347
      %4435 = vst.msk [vmem:[%s4416 + $0xd9] sm:$0xff] %vm291, %v4348
      %4436 = vst.msk [vmem:[%s4416 + $0xe1] sm:$0xff] %vm291, %v4349
      %4437 = vst.msk [vmem:[%s4416 + $0xf1] sm:$0xff] %vm291, %v4350
      %4438 = vst.msk [vmem:[%s4416 + $0xf9] sm:$0xff] %vm291, %v4351
      %4439 = vst.msk [vmem:[%s4416 + $0x109] sm:$0xff] %vm291, %v4352
      %4440 = vst.msk [vmem:[%s4416 + $0x111] sm:$0xff] %vm291, %v4353
      %4441 = vst.msk [vmem:[%s4416 + $0x121] sm:$0xff] %vm291, %v4354
      %4442 = vst.msk [vmem:[%s4416 + $0x129] sm:$0xff] %vm291, %v4355
      %4443 = vst.msk [vmem:[%s4416 + $0x139] sm:$0xff] %vm291, %v4356
      %4444 = vst.msk [vmem:[%s4416 + $0x141] sm:$0xff] %vm291, %v4357
      %4445 = vst.msk [vmem:[%s4416 + $0x151] sm:$0xff] %vm291, %v4358
      %4446 = vst.msk [vmem:[%s4416 + $0x159] sm:$0xff] %vm291, %v4359
      %4447 = vst.msk [vmem:[%s4416 + $0x169] sm:$0xff] %vm291, %v4360
      %4448 = vst.msk [vmem:[%s4416 + $0x171] sm:$0xff] %vm291, %v4361
      %v4449 = vld [vmem:[#allocation3] sm:$0xff]
      %v4450 = vld [vmem:[#allocation3 + $0x8] sm:$0xff]
      %v4451 = vld [vmem:[#allocation3 + $0x18] sm:$0xff]
      %v4452 = vld [vmem:[#allocation3 + $0x20] sm:$0xff]
      %v4453 = vld [vmem:[#allocation3 + $0x30] sm:$0xff]
      %v4454 = vld [vmem:[#allocation3 + $0x38] sm:$0xff]
      %v4455 = vld [vmem:[#allocation3 + $0x48] sm:$0xff]
      %v4456 = vld [vmem:[#allocation3 + $0x50] sm:$0xff]
      %v4457 = vld [vmem:[#allocation3 + $0x60] sm:$0xff]
      %v4458 = vld [vmem:[#allocation3 + $0x68] sm:$0xff]
      %v4459 = vld [vmem:[#allocation3 + $0x78] sm:$0xff]
      %v4460 = vld [vmem:[#allocation3 + $0x80] sm:$0xff]
      %v4461 = vld [vmem:[#allocation3 + $0x90] sm:$0xff]
      %v4462 = vld [vmem:[#allocation3 + $0x98] sm:$0xff]
      %v4463 = vld [vmem:[#allocation3 + $0xa8] sm:$0xff]
      %v4464 = vld [vmem:[#allocation3 + $0xb0] sm:$0xff]
      %v4465 = vld [vmem:[#allocation3 + $0xc0] sm:$0xff]
      %v4466 = vld [vmem:[#allocation3 + $0xc8] sm:$0xff]
      %v4467 = vld [vmem:[#allocation3 + $0xd8] sm:$0xff]
      %v4468 = vld [vmem:[#allocation3 + $0xe0] sm:$0xff]
      %v4469 = vld [vmem:[#allocation3 + $0xf0] sm:$0xff]
      %v4470 = vld [vmem:[#allocation3 + $0xf8] sm:$0xff]
      %v4471 = vld [vmem:[#allocation3 + $0x108] sm:$0xff]
      %v4472 = vld [vmem:[#allocation3 + $0x110] sm:$0xff]
      %v4473 = vld [vmem:[#allocation3 + $0x120] sm:$0xff]
      %v4474 = vld [vmem:[#allocation3 + $0x128] sm:$0xff]
      %v4475 = vld [vmem:[#allocation3 + $0x138] sm:$0xff]
      %v4476 = vld [vmem:[#allocation3 + $0x140] sm:$0xff]
      %v4477 = vld [vmem:[#allocation3 + $0x150] sm:$0xff]
      %v4478 = vld [vmem:[#allocation3 + $0x158] sm:$0xff]
      %v4479 = vld [vmem:[#allocation3 + $0x168] sm:$0xff]
      %v4480 = vld [vmem:[#allocation3 + $0x170] sm:$0xff]
      %v4481 = vpack.c.bf16 %v4450, %v4449
      %v4482 = vpack.c.bf16 %v4452, %v4451
      %v4483 = vpack.c.bf16 %v4454, %v4453
      %v4484 = vpack.c.bf16 %v4456, %v4455
      %v4485 = vpack.c.bf16 %v4458, %v4457
      %v4486 = vpack.c.bf16 %v4460, %v4459
      %v4487 = vpack.c.bf16 %v4462, %v4461
      %v4488 = vpack.c.bf16 %v4464, %v4463
      %v4489 = vpack.c.bf16 %v4466, %v4465
      %v4490 = vpack.c.bf16 %v4468, %v4467
      %v4491 = vpack.c.bf16 %v4470, %v4469
      %v4492 = vpack.c.bf16 %v4472, %v4471
      %v4493 = vpack.c.bf16 %v4474, %v4473
      %v4494 = vpack.c.bf16 %v4476, %v4475
      %v4495 = vpack.c.bf16 %v4478, %v4477
      %v4496 = vpack.c.bf16 %v4480, %v4479
      %v4513 = vunpack.c.l.b16 %v4481
      %v4514 = vunpack.c.h.b16 %v4481
      %v4515 = vunpack.c.l.b16 %v4482
      %v4516 = vunpack.c.h.b16 %v4482
      %v4517 = vunpack.c.l.b16 %v4483
      %v4518 = vunpack.c.h.b16 %v4483
      %v4519 = vunpack.c.l.b16 %v4484
      %v4520 = vunpack.c.h.b16 %v4484
      %v4521 = vunpack.c.l.b16 %v4485
      %v4522 = vunpack.c.h.b16 %v4485
      %v4523 = vunpack.c.l.b16 %v4486
      %v4524 = vunpack.c.h.b16 %v4486
      %v4525 = vunpack.c.l.b16 %v4487
      %v4526 = vunpack.c.h.b16 %v4487
      %v4527 = vunpack.c.l.b16 %v4488
      %v4528 = vunpack.c.h.b16 %v4488
      %v4529 = vunpack.c.l.b16 %v4489
      %v4530 = vunpack.c.h.b16 %v4489
      %v4531 = vunpack.c.l.b16 %v4490
      %v4532 = vunpack.c.h.b16 %v4490
      %v4533 = vunpack.c.l.b16 %v4491
      %v4534 = vunpack.c.h.b16 %v4491
      %v4535 = vunpack.c.l.b16 %v4492
      %v4536 = vunpack.c.h.b16 %v4492
      %v4537 = vunpack.c.l.b16 %v4493
      %v4538 = vunpack.c.h.b16 %v4493
      %v4539 = vunpack.c.l.b16 %v4494
      %v4540 = vunpack.c.h.b16 %v4494
      %v4541 = vunpack.c.l.b16 %v4495
      %v4542 = vunpack.c.h.b16 %v4495
      %v4543 = vunpack.c.l.b16 %v4496
      %v4544 = vunpack.c.h.b16 %v4496
      %v4545 = vpack.c.b16 %v4513, %v4513
      %v4546 = vpack.c.b16 %v4514, %v4514
      %v4547 = vpack.c.b16 %v4515, %v4515
      %v4548 = vpack.c.b16 %v4516, %v4516
      %v4549 = vpack.c.b16 %v4517, %v4517
      %v4550 = vpack.c.b16 %v4518, %v4518
      %v4551 = vpack.c.b16 %v4519, %v4519
      %v4552 = vpack.c.b16 %v4520, %v4520
      %v4553 = vpack.c.b16 %v4521, %v4521
      %v4554 = vpack.c.b16 %v4522, %v4522
      %v4555 = vpack.c.b16 %v4523, %v4523
      %v4556 = vpack.c.b16 %v4524, %v4524
      %v4557 = vpack.c.b16 %v4525, %v4525
      %v4558 = vpack.c.b16 %v4526, %v4526
      %v4559 = vpack.c.b16 %v4527, %v4527
      %v4560 = vpack.c.b16 %v4528, %v4528
      %v4561 = vpack.c.b16 %v4529, %v4529
      %v4562 = vpack.c.b16 %v4530, %v4530
      %v4563 = vpack.c.b16 %v4531, %v4531
      %v4564 = vpack.c.b16 %v4532, %v4532
      %v4565 = vpack.c.b16 %v4533, %v4533
      %v4566 = vpack.c.b16 %v4534, %v4534
      %v4567 = vpack.c.b16 %v4535, %v4535
      %v4568 = vpack.c.b16 %v4536, %v4536
      %v4569 = vpack.c.b16 %v4537, %v4537
      %v4570 = vpack.c.b16 %v4538, %v4538
      %v4571 = vpack.c.b16 %v4539, %v4539
      %v4572 = vpack.c.b16 %v4540, %v4540
      %v4573 = vpack.c.b16 %v4541, %v4541
      %v4574 = vpack.c.b16 %v4542, %v4542
      %v4575 = vpack.c.b16 %v4543, %v4543
      %v4576 = vpack.c.b16 %v4544, %v4544
      %4609 = vst [vmem:[#allocation4] sm:$0xf] %v4545
      %4610 = vst [vmem:[#allocation4 + $0x24] sm:$0xf] %v4546
      %4611 = vst [vmem:[#allocation4 + $0x48] sm:$0xf] %v4547
      %4612 = vst [vmem:[#allocation4 + $0x6c] sm:$0xf] %v4548
      %4613 = vst [vmem:[#allocation4 + $0x90] sm:$0xf] %v4549
      %4614 = vst [vmem:[#allocation4 + $0xb4] sm:$0xf] %v4550
      %4615 = vst [vmem:[#allocation4 + $0xd8] sm:$0xf] %v4551
      %4616 = vst [vmem:[#allocation4 + $0xfc] sm:$0xf] %v4552
      %4617 = vst [vmem:[#allocation4 + $0x120] sm:$0xf] %v4553
      %4618 = vst [vmem:[#allocation4 + $0x144] sm:$0xf] %v4554
      %4619 = vst [vmem:[#allocation4 + $0x168] sm:$0xf] %v4555
      %4620 = vst [vmem:[#allocation4 + $0x18c] sm:$0xf] %v4556
      %4621 = vst [vmem:[#allocation4 + $0x1b0] sm:$0xf] %v4557
      %4622 = vst [vmem:[#allocation4 + $0x1d4] sm:$0xf] %v4558
      %4623 = vst [vmem:[#allocation4 + $0x1f8] sm:$0xf] %v4559
      %4624 = vst [vmem:[#allocation4 + $0x21c] sm:$0xf] %v4560
      %4625 = vst [vmem:[#allocation4 + $0x240] sm:$0xf] %v4561
      %4626 = vst [vmem:[#allocation4 + $0x264] sm:$0xf] %v4562
      %4627 = vst [vmem:[#allocation4 + $0x288] sm:$0xf] %v4563
      %4628 = vst [vmem:[#allocation4 + $0x2ac] sm:$0xf] %v4564
      %4629 = vst [vmem:[#allocation4 + $0x2d0] sm:$0xf] %v4565
      %4630 = vst [vmem:[#allocation4 + $0x2f4] sm:$0xf] %v4566
      %4631 = vst [vmem:[#allocation4 + $0x318] sm:$0xf] %v4567
      %4632 = vst [vmem:[#allocation4 + $0x33c] sm:$0xf] %v4568
      %4633 = vst [vmem:[#allocation4 + $0x360] sm:$0xf] %v4569
      %4634 = vst [vmem:[#allocation4 + $0x384] sm:$0xf] %v4570
      %4635 = vst [vmem:[#allocation4 + $0x3a8] sm:$0xf] %v4571
      %4636 = vst [vmem:[#allocation4 + $0x3cc] sm:$0xf] %v4572
      %4637 = vst [vmem:[#allocation4 + $0x3f0] sm:$0xf] %v4573
      %4638 = vst [vmem:[#allocation4 + $0x414] sm:$0xf] %v4574
      %4639 = vst [vmem:[#allocation4 + $0x438] sm:$0xf] %v4575
      %4640 = vst [vmem:[#allocation4 + $0x45c] sm:$0xf] %v4576
      %v4641 = vld [vmem:[#allocation3 + $0x1] sm:$0xff]
      %v4642 = vld [vmem:[#allocation3 + $0x9] sm:$0xff]
      %v4643 = vld [vmem:[#allocation3 + $0x19] sm:$0xff]
      %v4644 = vld [vmem:[#allocation3 + $0x21] sm:$0xff]
      %v4645 = vld [vmem:[#allocation3 + $0x31] sm:$0xff]
      %v4646 = vld [vmem:[#allocation3 + $0x39] sm:$0xff]
      %v4647 = vld [vmem:[#allocation3 + $0x49] sm:$0xff]
      %v4648 = vld [vmem:[#allocation3 + $0x51] sm:$0xff]
      %v4649 = vld [vmem:[#allocation3 + $0x61] sm:$0xff]
      %v4650 = vld [vmem:[#allocation3 + $0x69] sm:$0xff]
      %v4651 = vld [vmem:[#allocation3 + $0x79] sm:$0xff]
      %v4652 = vld [vmem:[#allocation3 + $0x81] sm:$0xff]
      %v4653 = vld [vmem:[#allocation3 + $0x91] sm:$0xff]
      %v4654 = vld [vmem:[#allocation3 + $0x99] sm:$0xff]
      %v4655 = vld [vmem:[#allocation3 + $0xa9] sm:$0xff]
      %v4656 = vld [vmem:[#allocation3 + $0xb1] sm:$0xff]
      %v4657 = vld [vmem:[#allocation3 + $0xc1] sm:$0xff]
      %v4658 = vld [vmem:[#allocation3 + $0xc9] sm:$0xff]
      %v4659 = vld [vmem:[#allocation3 + $0xd9] sm:$0xff]
      %v4660 = vld [vmem:[#allocation3 + $0xe1] sm:$0xff]
      %v4661 = vld [vmem:[#allocation3 + $0xf1] sm:$0xff]
      %v4662 = vld [vmem:[#allocation3 + $0xf9] sm:$0xff]
      %v4663 = vld [vmem:[#allocation3 + $0x109] sm:$0xff]
      %v4664 = vld [vmem:[#allocation3 + $0x111] sm:$0xff]
      %v4665 = vld [vmem:[#allocation3 + $0x121] sm:$0xff]
      %v4666 = vld [vmem:[#allocation3 + $0x129] sm:$0xff]
      %v4667 = vld [vmem:[#allocation3 + $0x139] sm:$0xff]
      %v4668 = vld [vmem:[#allocation3 + $0x141] sm:$0xff]
      %v4669 = vld [vmem:[#allocation3 + $0x151] sm:$0xff]
      %v4670 = vld [vmem:[#allocation3 + $0x159] sm:$0xff]
      %v4671 = vld [vmem:[#allocation3 + $0x169] sm:$0xff]
      %v4672 = vld [vmem:[#allocation3 + $0x171] sm:$0xff]
      %v4673 = vpack.c.bf16 %v4642, %v4641
      %v4674 = vpack.c.bf16 %v4644, %v4643
      %v4675 = vpack.c.bf16 %v4646, %v4645
      %v4676 = vpack.c.bf16 %v4648, %v4647
      %v4677 = vpack.c.bf16 %v4650, %v4649
      %v4678 = vpack.c.bf16 %v4652, %v4651
      %v4679 = vpack.c.bf16 %v4654, %v4653
      %v4680 = vpack.c.bf16 %v4656, %v4655
      %v4681 = vpack.c.bf16 %v4658, %v4657
      %v4682 = vpack.c.bf16 %v4660, %v4659
      %v4683 = vpack.c.bf16 %v4662, %v4661
      %v4684 = vpack.c.bf16 %v4664, %v4663
      %v4685 = vpack.c.bf16 %v4666, %v4665
      %v4686 = vpack.c.bf16 %v4668, %v4667
      %v4687 = vpack.c.bf16 %v4670, %v4669
      %v4688 = vpack.c.bf16 %v4672, %v4671
      %v4705 = vunpack.c.l.b16 %v4673
      %v4706 = vunpack.c.h.b16 %v4673
      %v4707 = vunpack.c.l.b16 %v4674
      %v4708 = vunpack.c.h.b16 %v4674
      %v4709 = vunpack.c.l.b16 %v4675
      %v4710 = vunpack.c.h.b16 %v4675
      %v4711 = vunpack.c.l.b16 %v4676
      %v4712 = vunpack.c.h.b16 %v4676
      %v4713 = vunpack.c.l.b16 %v4677
      %v4714 = vunpack.c.h.b16 %v4677
      %v4715 = vunpack.c.l.b16 %v4678
      %v4716 = vunpack.c.h.b16 %v4678
      %v4717 = vunpack.c.l.b16 %v4679
      %v4718 = vunpack.c.h.b16 %v4679
      %v4719 = vunpack.c.l.b16 %v4680
      %v4720 = vunpack.c.h.b16 %v4680
      %v4721 = vunpack.c.l.b16 %v4681
      %v4722 = vunpack.c.h.b16 %v4681
      %v4723 = vunpack.c.l.b16 %v4682
      %v4724 = vunpack.c.h.b16 %v4682
      %v4725 = vunpack.c.l.b16 %v4683
      %v4726 = vunpack.c.h.b16 %v4683
      %v4727 = vunpack.c.l.b16 %v4684
      %v4728 = vunpack.c.h.b16 %v4684
      %v4729 = vunpack.c.l.b16 %v4685
      %v4730 = vunpack.c.h.b16 %v4685
      %v4731 = vunpack.c.l.b16 %v4686
      %v4732 = vunpack.c.h.b16 %v4686
      %v4733 = vunpack.c.l.b16 %v4687
      %v4734 = vunpack.c.h.b16 %v4687
      %v4735 = vunpack.c.l.b16 %v4688
      %v4736 = vunpack.c.h.b16 %v4688
      %v4737 = vpack.c.b16 %v4705, %v4705
      %v4738 = vpack.c.b16 %v4706, %v4706
      %v4739 = vpack.c.b16 %v4707, %v4707
      %v4740 = vpack.c.b16 %v4708, %v4708
      %v4741 = vpack.c.b16 %v4709, %v4709
      %v4742 = vpack.c.b16 %v4710, %v4710
      %v4743 = vpack.c.b16 %v4711, %v4711
      %v4744 = vpack.c.b16 %v4712, %v4712
      %v4745 = vpack.c.b16 %v4713, %v4713
      %v4746 = vpack.c.b16 %v4714, %v4714
      %v4747 = vpack.c.b16 %v4715, %v4715
      %v4748 = vpack.c.b16 %v4716, %v4716
      %v4749 = vpack.c.b16 %v4717, %v4717
      %v4750 = vpack.c.b16 %v4718, %v4718
      %v4751 = vpack.c.b16 %v4719, %v4719
      %v4752 = vpack.c.b16 %v4720, %v4720
      %v4753 = vpack.c.b16 %v4721, %v4721
      %v4754 = vpack.c.b16 %v4722, %v4722
      %v4755 = vpack.c.b16 %v4723, %v4723
      %v4756 = vpack.c.b16 %v4724, %v4724
      %v4757 = vpack.c.b16 %v4725, %v4725
      %v4758 = vpack.c.b16 %v4726, %v4726
      %v4759 = vpack.c.b16 %v4727, %v4727
      %v4760 = vpack.c.b16 %v4728, %v4728
      %v4761 = vpack.c.b16 %v4729, %v4729
      %v4762 = vpack.c.b16 %v4730, %v4730
      %v4763 = vpack.c.b16 %v4731, %v4731
      %v4764 = vpack.c.b16 %v4732, %v4732
      %v4765 = vpack.c.b16 %v4733, %v4733
      %v4766 = vpack.c.b16 %v4734, %v4734
      %v4767 = vpack.c.b16 %v4735, %v4735
      %v4768 = vpack.c.b16 %v4736, %v4736
      %4801 = vst [vmem:[#allocation4 + $0x4] sm:$0xf] %v4737
      %4802 = vst [vmem:[#allocation4 + $0x28] sm:$0xf] %v4738
      %4803 = vst [vmem:[#allocation4 + $0x4c] sm:$0xf] %v4739
      %4804 = vst [vmem:[#allocation4 + $0x70] sm:$0xf] %v4740
      %4805 = vst [vmem:[#allocation4 + $0x94] sm:$0xf] %v4741
      %4806 = vst [vmem:[#allocation4 + $0xb8] sm:$0xf] %v4742
      %4807 = vst [vmem:[#allocation4 + $0xdc] sm:$0xf] %v4743
      %4808 = vst [vmem:[#allocation4 + $0x100] sm:$0xf] %v4744
      %4809 = vst [vmem:[#allocation4 + $0x124] sm:$0xf] %v4745
      %4810 = vst [vmem:[#allocation4 + $0x148] sm:$0xf] %v4746
      %4811 = vst [vmem:[#allocation4 + $0x16c] sm:$0xf] %v4747
      %4812 = vst [vmem:[#allocation4 + $0x190] sm:$0xf] %v4748
      %4813 = vst [vmem:[#allocation4 + $0x1b4] sm:$0xf] %v4749
      %4814 = vst [vmem:[#allocation4 + $0x1d8] sm:$0xf] %v4750
      %4815 = vst [vmem:[#allocation4 + $0x1fc] sm:$0xf] %v4751
      %4816 = vst [vmem:[#allocation4 + $0x220] sm:$0xf] %v4752
      %4817 = vst [vmem:[#allocation4 + $0x244] sm:$0xf] %v4753
      %4818 = vst [vmem:[#allocation4 + $0x268] sm:$0xf] %v4754
      %4819 = vst [vmem:[#allocation4 + $0x28c] sm:$0xf] %v4755
      %4820 = vst [vmem:[#allocation4 + $0x2b0] sm:$0xf] %v4756
      %4821 = vst [vmem:[#allocation4 + $0x2d4] sm:$0xf] %v4757
      %4822 = vst [vmem:[#allocation4 + $0x2f8] sm:$0xf] %v4758
      %4823 = vst [vmem:[#allocation4 + $0x31c] sm:$0xf] %v4759
      %4824 = vst [vmem:[#allocation4 + $0x340] sm:$0xf] %v4760
      %4825 = vst [vmem:[#allocation4 + $0x364] sm:$0xf] %v4761
      %4826 = vst [vmem:[#allocation4 + $0x388] sm:$0xf] %v4762
      %4827 = vst [vmem:[#allocation4 + $0x3ac] sm:$0xf] %v4763
      %4828 = vst [vmem:[#allocation4 + $0x3d0] sm:$0xf] %v4764
      %4829 = vst [vmem:[#allocation4 + $0x3f4] sm:$0xf] %v4765
      %4830 = vst [vmem:[#allocation4 + $0x418] sm:$0xf] %v4766
      %4831 = vst [vmem:[#allocation4 + $0x43c] sm:$0xf] %v4767
      %4832 = vst [vmem:[#allocation4 + $0x460] sm:$0xf] %v4768
      %v4833 = vld [vmem:[#allocation3 + $0x2] sm:$0xff]
      %v4834 = vld [vmem:[#allocation3 + $0xa] sm:$0xff]
      %v4835 = vld [vmem:[#allocation3 + $0x1a] sm:$0xff]
      %v4836 = vld [vmem:[#allocation3 + $0x22] sm:$0xff]
      %v4837 = vld [vmem:[#allocation3 + $0x32] sm:$0xff]
      %v4838 = vld [vmem:[#allocation3 + $0x3a] sm:$0xff]
      %v4839 = vld [vmem:[#allocation3 + $0x4a] sm:$0xff]
      %v4840 = vld [vmem:[#allocation3 + $0x52] sm:$0xff]
      %v4841 = vld [vmem:[#allocation3 + $0x62] sm:$0xff]
      %v4842 = vld [vmem:[#allocation3 + $0x6a] sm:$0xff]
      %v4843 = vld [vmem:[#allocation3 + $0x7a] sm:$0xff]
      %v4844 = vld [vmem:[#allocation3 + $0x82] sm:$0xff]
      %v4845 = vld [vmem:[#allocation3 + $0x92] sm:$0xff]
      %v4846 = vld [vmem:[#allocation3 + $0x9a] sm:$0xff]
      %v4847 = vld [vmem:[#allocation3 + $0xaa] sm:$0xff]
      %v4848 = vld [vmem:[#allocation3 + $0xb2] sm:$0xff]
      %v4849 = vld [vmem:[#allocation3 + $0xc2] sm:$0xff]
      %v4850 = vld [vmem:[#allocation3 + $0xca] sm:$0xff]
      %v4851 = vld [vmem:[#allocation3 + $0xda] sm:$0xff]
      %v4852 = vld [vmem:[#allocation3 + $0xe2] sm:$0xff]
      %v4853 = vld [vmem:[#allocation3 + $0xf2] sm:$0xff]
      %v4854 = vld [vmem:[#allocation3 + $0xfa] sm:$0xff]
      %v4855 = vld [vmem:[#allocation3 + $0x10a] sm:$0xff]
      %v4856 = vld [vmem:[#allocation3 + $0x112] sm:$0xff]
      %v4857 = vld [vmem:[#allocation3 + $0x122] sm:$0xff]
      %v4858 = vld [vmem:[#allocation3 + $0x12a] sm:$0xff]
      %v4859 = vld [vmem:[#allocation3 + $0x13a] sm:$0xff]
      %v4860 = vld [vmem:[#allocation3 + $0x142] sm:$0xff]
      %v4861 = vld [vmem:[#allocation3 + $0x152] sm:$0xff]
      %v4862 = vld [vmem:[#allocation3 + $0x15a] sm:$0xff]
      %v4863 = vld [vmem:[#allocation3 + $0x16a] sm:$0xff]
      %v4864 = vld [vmem:[#allocation3 + $0x172] sm:$0xff]
      %v4865 = vpack.c.bf16 %v4834, %v4833
      %v4866 = vpack.c.bf16 %v4836, %v4835
      %v4867 = vpack.c.bf16 %v4838, %v4837
      %v4868 = vpack.c.bf16 %v4840, %v4839
      %v4869 = vpack.c.bf16 %v4842, %v4841
      %v4870 = vpack.c.bf16 %v4844, %v4843
      %v4871 = vpack.c.bf16 %v4846, %v4845
      %v4872 = vpack.c.bf16 %v4848, %v4847
      %v4873 = vpack.c.bf16 %v4850, %v4849
      %v4874 = vpack.c.bf16 %v4852, %v4851
      %v4875 = vpack.c.bf16 %v4854, %v4853
      %v4876 = vpack.c.bf16 %v4856, %v4855
      %v4877 = vpack.c.bf16 %v4858, %v4857
      %v4878 = vpack.c.bf16 %v4860, %v4859
      %v4879 = vpack.c.bf16 %v4862, %v4861
      %v4880 = vpack.c.bf16 %v4864, %v4863
      %v4897 = vunpack.c.l.b16 %v4865
      %v4898 = vunpack.c.h.b16 %v4865
      %v4899 = vunpack.c.l.b16 %v4866
      %v4900 = vunpack.c.h.b16 %v4866
      %v4901 = vunpack.c.l.b16 %v4867
      %v4902 = vunpack.c.h.b16 %v4867
      %v4903 = vunpack.c.l.b16 %v4868
      %v4904 = vunpack.c.h.b16 %v4868
      %v4905 = vunpack.c.l.b16 %v4869
      %v4906 = vunpack.c.h.b16 %v4869
      %v4907 = vunpack.c.l.b16 %v4870
      %v4908 = vunpack.c.h.b16 %v4870
      %v4909 = vunpack.c.l.b16 %v4871
      %v4910 = vunpack.c.h.b16 %v4871
      %v4911 = vunpack.c.l.b16 %v4872
      %v4912 = vunpack.c.h.b16 %v4872
      %v4913 = vunpack.c.l.b16 %v4873
      %v4914 = vunpack.c.h.b16 %v4873
      %v4915 = vunpack.c.l.b16 %v4874
      %v4916 = vunpack.c.h.b16 %v4874
      %v4917 = vunpack.c.l.b16 %v4875
      %v4918 = vunpack.c.h.b16 %v4875
      %v4919 = vunpack.c.l.b16 %v4876
      %v4920 = vunpack.c.h.b16 %v4876
      %v4921 = vunpack.c.l.b16 %v4877
      %v4922 = vunpack.c.h.b16 %v4877
      %v4923 = vunpack.c.l.b16 %v4878
      %v4924 = vunpack.c.h.b16 %v4878
      %v4925 = vunpack.c.l.b16 %v4879
      %v4926 = vunpack.c.h.b16 %v4879
      %v4927 = vunpack.c.l.b16 %v4880
      %v4928 = vunpack.c.h.b16 %v4880
      %v4929 = vpack.c.b16 %v4897, %v4897
      %v4930 = vpack.c.b16 %v4898, %v4898
      %v4931 = vpack.c.b16 %v4899, %v4899
      %v4932 = vpack.c.b16 %v4900, %v4900
      %v4933 = vpack.c.b16 %v4901, %v4901
      %v4934 = vpack.c.b16 %v4902, %v4902
      %v4935 = vpack.c.b16 %v4903, %v4903
      %v4936 = vpack.c.b16 %v4904, %v4904
      %v4937 = vpack.c.b16 %v4905, %v4905
      %v4938 = vpack.c.b16 %v4906, %v4906
      %v4939 = vpack.c.b16 %v4907, %v4907
      %v4940 = vpack.c.b16 %v4908, %v4908
      %v4941 = vpack.c.b16 %v4909, %v4909
      %v4942 = vpack.c.b16 %v4910, %v4910
      %v4943 = vpack.c.b16 %v4911, %v4911
      %v4944 = vpack.c.b16 %v4912, %v4912
      %v4945 = vpack.c.b16 %v4913, %v4913
      %v4946 = vpack.c.b16 %v4914, %v4914
      %v4947 = vpack.c.b16 %v4915, %v4915
      %v4948 = vpack.c.b16 %v4916, %v4916
      %v4949 = vpack.c.b16 %v4917, %v4917
      %v4950 = vpack.c.b16 %v4918, %v4918
      %v4951 = vpack.c.b16 %v4919, %v4919
      %v4952 = vpack.c.b16 %v4920, %v4920
      %v4953 = vpack.c.b16 %v4921, %v4921
      %v4954 = vpack.c.b16 %v4922, %v4922
      %v4955 = vpack.c.b16 %v4923, %v4923
      %v4956 = vpack.c.b16 %v4924, %v4924
      %v4957 = vpack.c.b16 %v4925, %v4925
      %v4958 = vpack.c.b16 %v4926, %v4926
      %v4959 = vpack.c.b16 %v4927, %v4927
      %v4960 = vpack.c.b16 %v4928, %v4928
      %4993 = vst [vmem:[#allocation4 + $0x8] sm:$0xf] %v4929
      %4994 = vst [vmem:[#allocation4 + $0x2c] sm:$0xf] %v4930
      %4995 = vst [vmem:[#allocation4 + $0x50] sm:$0xf] %v4931
      %4996 = vst [vmem:[#allocation4 + $0x74] sm:$0xf] %v4932
      %4997 = vst [vmem:[#allocation4 + $0x98] sm:$0xf] %v4933
      %4998 = vst [vmem:[#allocation4 + $0xbc] sm:$0xf] %v4934
      %4999 = vst [vmem:[#allocation4 + $0xe0] sm:$0xf] %v4935
      %5000 = vst [vmem:[#allocation4 + $0x104] sm:$0xf] %v4936
      %5001 = vst [vmem:[#allocation4 + $0x128] sm:$0xf] %v4937
      %5002 = vst [vmem:[#allocation4 + $0x14c] sm:$0xf] %v4938
      %5003 = vst [vmem:[#allocation4 + $0x170] sm:$0xf] %v4939
      %5004 = vst [vmem:[#allocation4 + $0x194] sm:$0xf] %v4940
      %5005 = vst [vmem:[#allocation4 + $0x1b8] sm:$0xf] %v4941
      %5006 = vst [vmem:[#allocation4 + $0x1dc] sm:$0xf] %v4942
      %5007 = vst [vmem:[#allocation4 + $0x200] sm:$0xf] %v4943
      %5008 = vst [vmem:[#allocation4 + $0x224] sm:$0xf] %v4944
      %5009 = vst [vmem:[#allocation4 + $0x248] sm:$0xf] %v4945
      %5010 = vst [vmem:[#allocation4 + $0x26c] sm:$0xf] %v4946
      %5011 = vst [vmem:[#allocation4 + $0x290] sm:$0xf] %v4947
      %5012 = vst [vmem:[#allocation4 + $0x2b4] sm:$0xf] %v4948
      %5013 = vst [vmem:[#allocation4 + $0x2d8] sm:$0xf] %v4949
      %5014 = vst [vmem:[#allocation4 + $0x2fc] sm:$0xf] %v4950
      %5015 = vst [vmem:[#allocation4 + $0x320] sm:$0xf] %v4951
      %5016 = vst [vmem:[#allocation4 + $0x344] sm:$0xf] %v4952
      %5017 = vst [vmem:[#allocation4 + $0x368] sm:$0xf] %v4953
      %5018 = vst [vmem:[#allocation4 + $0x38c] sm:$0xf] %v4954
      %5019 = vst [vmem:[#allocation4 + $0x3b0] sm:$0xf] %v4955
      %5020 = vst [vmem:[#allocation4 + $0x3d4] sm:$0xf] %v4956
      %5021 = vst [vmem:[#allocation4 + $0x3f8] sm:$0xf] %v4957
      %5022 = vst [vmem:[#allocation4 + $0x41c] sm:$0xf] %v4958
      %5023 = vst [vmem:[#allocation4 + $0x440] sm:$0xf] %v4959
      %5024 = vst [vmem:[#allocation4 + $0x464] sm:$0xf] %v4960
      %v5025 = vld [vmem:[%s4416] sm:$0xff]
      %v5026 = vld [vmem:[%s4416 + $0x8] sm:$0xff]
      %v5027 = vld [vmem:[%s4416 + $0x18] sm:$0xff]
      %v5028 = vld [vmem:[%s4416 + $0x20] sm:$0xff]
      %v5029 = vld [vmem:[%s4416 + $0x30] sm:$0xff]
      %v5030 = vld [vmem:[%s4416 + $0x38] sm:$0xff]
      %v5031 = vld [vmem:[%s4416 + $0x48] sm:$0xff]
      %v5032 = vld [vmem:[%s4416 + $0x50] sm:$0xff]
      %v5033 = vld [vmem:[%s4416 + $0x60] sm:$0xff]
      %v5034 = vld [vmem:[%s4416 + $0x68] sm:$0xff]
      %v5035 = vld [vmem:[%s4416 + $0x78] sm:$0xff]
      %v5036 = vld [vmem:[%s4416 + $0x80] sm:$0xff]
      %v5037 = vld [vmem:[%s4416 + $0x90] sm:$0xff]
      %v5038 = vld [vmem:[%s4416 + $0x98] sm:$0xff]
      %v5039 = vld [vmem:[%s4416 + $0xa8] sm:$0xff]
      %v5040 = vld [vmem:[%s4416 + $0xb0] sm:$0xff]
      %v5041 = vld [vmem:[%s4416 + $0xc0] sm:$0xff]
      %v5042 = vld [vmem:[%s4416 + $0xc8] sm:$0xff]
      %v5043 = vld [vmem:[%s4416 + $0xd8] sm:$0xff]
      %v5044 = vld [vmem:[%s4416 + $0xe0] sm:$0xff]
      %v5045 = vld [vmem:[%s4416 + $0xf0] sm:$0xff]
      %v5046 = vld [vmem:[%s4416 + $0xf8] sm:$0xff]
      %v5047 = vld [vmem:[%s4416 + $0x108] sm:$0xff]
      %v5048 = vld [vmem:[%s4416 + $0x110] sm:$0xff]
      %v5049 = vld [vmem:[%s4416 + $0x120] sm:$0xff]
      %v5050 = vld [vmem:[%s4416 + $0x128] sm:$0xff]
      %v5051 = vld [vmem:[%s4416 + $0x138] sm:$0xff]
      %v5052 = vld [vmem:[%s4416 + $0x140] sm:$0xff]
      %v5053 = vld [vmem:[%s4416 + $0x150] sm:$0xff]
      %v5054 = vld [vmem:[%s4416 + $0x158] sm:$0xff]
      %v5055 = vld [vmem:[%s4416 + $0x168] sm:$0xff]
      %v5056 = vld [vmem:[%s4416 + $0x170] sm:$0xff]
      %v5057 = vpack.c.bf16 %v5026, %v5025
      %v5058 = vpack.c.bf16 %v5028, %v5027
      %v5059 = vpack.c.bf16 %v5030, %v5029
      %v5060 = vpack.c.bf16 %v5032, %v5031
      %v5061 = vpack.c.bf16 %v5034, %v5033
      %v5062 = vpack.c.bf16 %v5036, %v5035
      %v5063 = vpack.c.bf16 %v5038, %v5037
      %v5064 = vpack.c.bf16 %v5040, %v5039
      %v5065 = vpack.c.bf16 %v5042, %v5041
      %v5066 = vpack.c.bf16 %v5044, %v5043
      %v5067 = vpack.c.bf16 %v5046, %v5045
      %v5068 = vpack.c.bf16 %v5048, %v5047
      %v5069 = vpack.c.bf16 %v5050, %v5049
      %v5070 = vpack.c.bf16 %v5052, %v5051
      %v5071 = vpack.c.bf16 %v5054, %v5053
      %v5072 = vpack.c.bf16 %v5056, %v5055
      %v5089 = vunpack.c.l.b16 %v5057
      %v5090 = vunpack.c.h.b16 %v5057
      %v5091 = vunpack.c.l.b16 %v5058
      %v5092 = vunpack.c.h.b16 %v5058
      %v5093 = vunpack.c.l.b16 %v5059
      %v5094 = vunpack.c.h.b16 %v5059
      %v5095 = vunpack.c.l.b16 %v5060
      %v5096 = vunpack.c.h.b16 %v5060
      %v5097 = vunpack.c.l.b16 %v5061
      %v5098 = vunpack.c.h.b16 %v5061
      %v5099 = vunpack.c.l.b16 %v5062
      %v5100 = vunpack.c.h.b16 %v5062
      %v5101 = vunpack.c.l.b16 %v5063
      %v5102 = vunpack.c.h.b16 %v5063
      %v5103 = vunpack.c.l.b16 %v5064
      %v5104 = vunpack.c.h.b16 %v5064
      %v5105 = vunpack.c.l.b16 %v5065
      %v5106 = vunpack.c.h.b16 %v5065
      %v5107 = vunpack.c.l.b16 %v5066
      %v5108 = vunpack.c.h.b16 %v5066
      %v5109 = vunpack.c.l.b16 %v5067
      %v5110 = vunpack.c.h.b16 %v5067
      %v5111 = vunpack.c.l.b16 %v5068
      %v5112 = vunpack.c.h.b16 %v5068
      %v5113 = vunpack.c.l.b16 %v5069
      %v5114 = vunpack.c.h.b16 %v5069
      %v5115 = vunpack.c.l.b16 %v5070
      %v5116 = vunpack.c.h.b16 %v5070
      %v5117 = vunpack.c.l.b16 %v5071
      %v5118 = vunpack.c.h.b16 %v5071
      %v5119 = vunpack.c.l.b16 %v5072
      %v5120 = vunpack.c.h.b16 %v5072
      %v5121 = vpack.c.b16 %v5089, %v5089
      %v5122 = vpack.c.b16 %v5090, %v5090
      %v5123 = vpack.c.b16 %v5091, %v5091
      %v5124 = vpack.c.b16 %v5092, %v5092
      %v5125 = vpack.c.b16 %v5093, %v5093
      %v5126 = vpack.c.b16 %v5094, %v5094
      %v5127 = vpack.c.b16 %v5095, %v5095
      %v5128 = vpack.c.b16 %v5096, %v5096
      %v5129 = vpack.c.b16 %v5097, %v5097
      %v5130 = vpack.c.b16 %v5098, %v5098
      %v5131 = vpack.c.b16 %v5099, %v5099
      %v5132 = vpack.c.b16 %v5100, %v5100
      %v5133 = vpack.c.b16 %v5101, %v5101
      %v5134 = vpack.c.b16 %v5102, %v5102
      %v5135 = vpack.c.b16 %v5103, %v5103
      %v5136 = vpack.c.b16 %v5104, %v5104
      %v5137 = vpack.c.b16 %v5105, %v5105
      %v5138 = vpack.c.b16 %v5106, %v5106
      %v5139 = vpack.c.b16 %v5107, %v5107
      %v5140 = vpack.c.b16 %v5108, %v5108
      %v5141 = vpack.c.b16 %v5109, %v5109
      %v5142 = vpack.c.b16 %v5110, %v5110
      %v5143 = vpack.c.b16 %v5111, %v5111
      %v5144 = vpack.c.b16 %v5112, %v5112
      %v5145 = vpack.c.b16 %v5113, %v5113
      %v5146 = vpack.c.b16 %v5114, %v5114
      %v5147 = vpack.c.b16 %v5115, %v5115
      %v5148 = vpack.c.b16 %v5116, %v5116
      %v5149 = vpack.c.b16 %v5117, %v5117
      %v5150 = vpack.c.b16 %v5118, %v5118
      %v5151 = vpack.c.b16 %v5119, %v5119
      %v5152 = vpack.c.b16 %v5120, %v5120
      %5185 = vst [vmem:[#allocation4 + $0xc] sm:$0xf] %v5121
      %5186 = vst [vmem:[#allocation4 + $0x30] sm:$0xf] %v5122
      %5187 = vst [vmem:[#allocation4 + $0x54] sm:$0xf] %v5123
      %5188 = vst [vmem:[#allocation4 + $0x78] sm:$0xf] %v5124
      %5189 = vst [vmem:[#allocation4 + $0x9c] sm:$0xf] %v5125
      %5190 = vst [vmem:[#allocation4 + $0xc0] sm:$0xf] %v5126
      %5191 = vst [vmem:[#allocation4 + $0xe4] sm:$0xf] %v5127
      %5192 = vst [vmem:[#allocation4 + $0x108] sm:$0xf] %v5128
      %5193 = vst [vmem:[#allocation4 + $0x12c] sm:$0xf] %v5129
      %5194 = vst [vmem:[#allocation4 + $0x150] sm:$0xf] %v5130
      %5195 = vst [vmem:[#allocation4 + $0x174] sm:$0xf] %v5131
      %5196 = vst [vmem:[#allocation4 + $0x198] sm:$0xf] %v5132
      %5197 = vst [vmem:[#allocation4 + $0x1bc] sm:$0xf] %v5133
      %5198 = vst [vmem:[#allocation4 + $0x1e0] sm:$0xf] %v5134
      %5199 = vst [vmem:[#allocation4 + $0x204] sm:$0xf] %v5135
      %5200 = vst [vmem:[#allocation4 + $0x228] sm:$0xf] %v5136
      %5201 = vst [vmem:[#allocation4 + $0x24c] sm:$0xf] %v5137
      %5202 = vst [vmem:[#allocation4 + $0x270] sm:$0xf] %v5138
      %5203 = vst [vmem:[#allocation4 + $0x294] sm:$0xf] %v5139
      %5204 = vst [vmem:[#allocation4 + $0x2b8] sm:$0xf] %v5140
      %5205 = vst [vmem:[#allocation4 + $0x2dc] sm:$0xf] %v5141
      %5206 = vst [vmem:[#allocation4 + $0x300] sm:$0xf] %v5142
      %5207 = vst [vmem:[#allocation4 + $0x324] sm:$0xf] %v5143
      %5208 = vst [vmem:[#allocation4 + $0x348] sm:$0xf] %v5144
      %5209 = vst [vmem:[#allocation4 + $0x36c] sm:$0xf] %v5145
      %5210 = vst [vmem:[#allocation4 + $0x390] sm:$0xf] %v5146
      %5211 = vst [vmem:[#allocation4 + $0x3b4] sm:$0xf] %v5147
      %5212 = vst [vmem:[#allocation4 + $0x3d8] sm:$0xf] %v5148
      %5213 = vst [vmem:[#allocation4 + $0x3fc] sm:$0xf] %v5149
      %5214 = vst [vmem:[#allocation4 + $0x420] sm:$0xf] %v5150
      %5215 = vst [vmem:[#allocation4 + $0x444] sm:$0xf] %v5151
      %5216 = vst [vmem:[#allocation4 + $0x468] sm:$0xf] %v5152
      %v5217 = vld [vmem:[%s4416 + $0x1] sm:$0xff]
      %v5218 = vld [vmem:[%s4416 + $0x9] sm:$0xff]
      %v5219 = vld [vmem:[%s4416 + $0x19] sm:$0xff]
      %v5220 = vld [vmem:[%s4416 + $0x21] sm:$0xff]
      %v5221 = vld [vmem:[%s4416 + $0x31] sm:$0xff]
      %v5222 = vld [vmem:[%s4416 + $0x39] sm:$0xff]
      %v5223 = vld [vmem:[%s4416 + $0x49] sm:$0xff]
      %v5224 = vld [vmem:[%s4416 + $0x51] sm:$0xff]
      %v5225 = vld [vmem:[%s4416 + $0x61] sm:$0xff]
      %v5226 = vld [vmem:[%s4416 + $0x69] sm:$0xff]
      %v5227 = vld [vmem:[%s4416 + $0x79] sm:$0xff]
      %v5228 = vld [vmem:[%s4416 + $0x81] sm:$0xff]
      %v5229 = vld [vmem:[%s4416 + $0x91] sm:$0xff]
      %v5230 = vld [vmem:[%s4416 + $0x99] sm:$0xff]
      %v5231 = vld [vmem:[%s4416 + $0xa9] sm:$0xff]
      %v5232 = vld [vmem:[%s4416 + $0xb1] sm:$0xff]
      %v5233 = vld [vmem:[%s4416 + $0xc1] sm:$0xff]
      %v5234 = vld [vmem:[%s4416 + $0xc9] sm:$0xff]
      %v5235 = vld [vmem:[%s4416 + $0xd9] sm:$0xff]
      %v5236 = vld [vmem:[%s4416 + $0xe1] sm:$0xff]
      %v5237 = vld [vmem:[%s4416 + $0xf1] sm:$0xff]
      %v5238 = vld [vmem:[%s4416 + $0xf9] sm:$0xff]
      %v5239 = vld [vmem:[%s4416 + $0x109] sm:$0xff]
      %v5240 = vld [vmem:[%s4416 + $0x111] sm:$0xff]
      %v5241 = vld [vmem:[%s4416 + $0x121] sm:$0xff]
      %v5242 = vld [vmem:[%s4416 + $0x129] sm:$0xff]
      %v5243 = vld [vmem:[%s4416 + $0x139] sm:$0xff]
      %v5244 = vld [vmem:[%s4416 + $0x141] sm:$0xff]
      %v5245 = vld [vmem:[%s4416 + $0x151] sm:$0xff]
      %v5246 = vld [vmem:[%s4416 + $0x159] sm:$0xff]
      %v5247 = vld [vmem:[%s4416 + $0x169] sm:$0xff]
      %v5248 = vld [vmem:[%s4416 + $0x171] sm:$0xff]
      %v5249 = vpack.c.bf16 %v5218, %v5217
      %v5250 = vpack.c.bf16 %v5220, %v5219
      %v5251 = vpack.c.bf16 %v5222, %v5221
      %v5252 = vpack.c.bf16 %v5224, %v5223
      %v5253 = vpack.c.bf16 %v5226, %v5225
      %v5254 = vpack.c.bf16 %v5228, %v5227
      %v5255 = vpack.c.bf16 %v5230, %v5229
      %v5256 = vpack.c.bf16 %v5232, %v5231
      %v5257 = vpack.c.bf16 %v5234, %v5233
      %v5258 = vpack.c.bf16 %v5236, %v5235
      %v5259 = vpack.c.bf16 %v5238, %v5237
      %v5260 = vpack.c.bf16 %v5240, %v5239
      %v5261 = vpack.c.bf16 %v5242, %v5241
      %v5262 = vpack.c.bf16 %v5244, %v5243
      %v5263 = vpack.c.bf16 %v5246, %v5245
      %v5264 = vpack.c.bf16 %v5248, %v5247
      %v5281 = vunpack.c.l.b16 %v5249
      %v5282 = vunpack.c.h.b16 %v5249
      %v5283 = vunpack.c.l.b16 %v5250
      %v5284 = vunpack.c.h.b16 %v5250
      %v5285 = vunpack.c.l.b16 %v5251
      %v5286 = vunpack.c.h.b16 %v5251
      %v5287 = vunpack.c.l.b16 %v5252
      %v5288 = vunpack.c.h.b16 %v5252
      %v5289 = vunpack.c.l.b16 %v5253
      %v5290 = vunpack.c.h.b16 %v5253
      %v5291 = vunpack.c.l.b16 %v5254
      %v5292 = vunpack.c.h.b16 %v5254
      %v5293 = vunpack.c.l.b16 %v5255
      %v5294 = vunpack.c.h.b16 %v5255
      %v5295 = vunpack.c.l.b16 %v5256
      %v5296 = vunpack.c.h.b16 %v5256
      %v5297 = vunpack.c.l.b16 %v5257
      %v5298 = vunpack.c.h.b16 %v5257
      %v5299 = vunpack.c.l.b16 %v5258
      %v5300 = vunpack.c.h.b16 %v5258
      %v5301 = vunpack.c.l.b16 %v5259
      %v5302 = vunpack.c.h.b16 %v5259
      %v5303 = vunpack.c.l.b16 %v5260
      %v5304 = vunpack.c.h.b16 %v5260
      %v5305 = vunpack.c.l.b16 %v5261
      %v5306 = vunpack.c.h.b16 %v5261
      %v5307 = vunpack.c.l.b16 %v5262
      %v5308 = vunpack.c.h.b16 %v5262
      %v5309 = vunpack.c.l.b16 %v5263
      %v5310 = vunpack.c.h.b16 %v5263
      %v5311 = vunpack.c.l.b16 %v5264
      %v5312 = vunpack.c.h.b16 %v5264
      %v5313 = vpack.c.b16 %v5281, %v5281
      %v5314 = vpack.c.b16 %v5282, %v5282
      %v5315 = vpack.c.b16 %v5283, %v5283
      %v5316 = vpack.c.b16 %v5284, %v5284
      %v5317 = vpack.c.b16 %v5285, %v5285
      %v5318 = vpack.c.b16 %v5286, %v5286
      %v5319 = vpack.c.b16 %v5287, %v5287
      %v5320 = vpack.c.b16 %v5288, %v5288
      %v5321 = vpack.c.b16 %v5289, %v5289
      %v5322 = vpack.c.b16 %v5290, %v5290
      %v5323 = vpack.c.b16 %v5291, %v5291
      %v5324 = vpack.c.b16 %v5292, %v5292
      %v5325 = vpack.c.b16 %v5293, %v5293
      %v5326 = vpack.c.b16 %v5294, %v5294
      %v5327 = vpack.c.b16 %v5295, %v5295
      %v5328 = vpack.c.b16 %v5296, %v5296
      %v5329 = vpack.c.b16 %v5297, %v5297
      %v5330 = vpack.c.b16 %v5298, %v5298
      %v5331 = vpack.c.b16 %v5299, %v5299
      %v5332 = vpack.c.b16 %v5300, %v5300
      %v5333 = vpack.c.b16 %v5301, %v5301
      %v5334 = vpack.c.b16 %v5302, %v5302
      %v5335 = vpack.c.b16 %v5303, %v5303
      %v5336 = vpack.c.b16 %v5304, %v5304
      %v5337 = vpack.c.b16 %v5305, %v5305
      %v5338 = vpack.c.b16 %v5306, %v5306
      %v5339 = vpack.c.b16 %v5307, %v5307
      %v5340 = vpack.c.b16 %v5308, %v5308
      %v5341 = vpack.c.b16 %v5309, %v5309
      %v5342 = vpack.c.b16 %v5310, %v5310
      %v5343 = vpack.c.b16 %v5311, %v5311
      %v5344 = vpack.c.b16 %v5312, %v5312
      %5377 = vst [vmem:[#allocation4 + $0x10] sm:$0xf] %v5313
      %5378 = vst [vmem:[#allocation4 + $0x34] sm:$0xf] %v5314
      %5379 = vst [vmem:[#allocation4 + $0x58] sm:$0xf] %v5315
      %5380 = vst [vmem:[#allocation4 + $0x7c] sm:$0xf] %v5316
      %5381 = vst [vmem:[#allocation4 + $0xa0] sm:$0xf] %v5317
      %5382 = vst [vmem:[#allocation4 + $0xc4] sm:$0xf] %v5318
      %5383 = vst [vmem:[#allocation4 + $0xe8] sm:$0xf] %v5319
      %5384 = vst [vmem:[#allocation4 + $0x10c] sm:$0xf] %v5320
      %5385 = vst [vmem:[#allocation4 + $0x130] sm:$0xf] %v5321
      %5386 = vst [vmem:[#allocation4 + $0x154] sm:$0xf] %v5322
      %5387 = vst [vmem:[#allocation4 + $0x178] sm:$0xf] %v5323
      %5388 = vst [vmem:[#allocation4 + $0x19c] sm:$0xf] %v5324
      %5389 = vst [vmem:[#allocation4 + $0x1c0] sm:$0xf] %v5325
      %5390 = vst [vmem:[#allocation4 + $0x1e4] sm:$0xf] %v5326
      %5391 = vst [vmem:[#allocation4 + $0x208] sm:$0xf] %v5327
      %5392 = vst [vmem:[#allocation4 + $0x22c] sm:$0xf] %v5328
      %5393 = vst [vmem:[#allocation4 + $0x250] sm:$0xf] %v5329
      %5394 = vst [vmem:[#allocation4 + $0x274] sm:$0xf] %v5330
      %5395 = vst [vmem:[#allocation4 + $0x298] sm:$0xf] %v5331
      %5396 = vst [vmem:[#allocation4 + $0x2bc] sm:$0xf] %v5332
      %5397 = vst [vmem:[#allocation4 + $0x2e0] sm:$0xf] %v5333
      %5398 = vst [vmem:[#allocation4 + $0x304] sm:$0xf] %v5334
      %5399 = vst [vmem:[#allocation4 + $0x328] sm:$0xf] %v5335
      %5400 = vst [vmem:[#allocation4 + $0x34c] sm:$0xf] %v5336
      %5401 = vst [vmem:[#allocation4 + $0x370] sm:$0xf] %v5337
      %5402 = vst [vmem:[#allocation4 + $0x394] sm:$0xf] %v5338
      %5403 = vst [vmem:[#allocation4 + $0x3b8] sm:$0xf] %v5339
      %5404 = vst [vmem:[#allocation4 + $0x3dc] sm:$0xf] %v5340
      %5405 = vst [vmem:[#allocation4 + $0x400] sm:$0xf] %v5341
      %5406 = vst [vmem:[#allocation4 + $0x424] sm:$0xf] %v5342
      %5407 = vst [vmem:[#allocation4 + $0x448] sm:$0xf] %v5343
      %5408 = vst [vmem:[#allocation4 + $0x46c] sm:$0xf] %v5344
      %v5409 = vld [vmem:[%s4416 + $0x2] sm:$0xff]
      %v5410 = vld [vmem:[%s4416 + $0xa] sm:$0xff]
      %v5411 = vld [vmem:[%s4416 + $0x1a] sm:$0xff]
      %v5412 = vld [vmem:[%s4416 + $0x22] sm:$0xff]
      %v5413 = vld [vmem:[%s4416 + $0x32] sm:$0xff]
      %v5414 = vld [vmem:[%s4416 + $0x3a] sm:$0xff]
      %v5415 = vld [vmem:[%s4416 + $0x4a] sm:$0xff]
      %v5416 = vld [vmem:[%s4416 + $0x52] sm:$0xff]
      %v5417 = vld [vmem:[%s4416 + $0x62] sm:$0xff]
      %v5418 = vld [vmem:[%s4416 + $0x6a] sm:$0xff]
      %v5419 = vld [vmem:[%s4416 + $0x7a] sm:$0xff]
      %v5420 = vld [vmem:[%s4416 + $0x82] sm:$0xff]
      %v5421 = vld [vmem:[%s4416 + $0x92] sm:$0xff]
      %v5422 = vld [vmem:[%s4416 + $0x9a] sm:$0xff]
      %v5423 = vld [vmem:[%s4416 + $0xaa] sm:$0xff]
      %v5424 = vld [vmem:[%s4416 + $0xb2] sm:$0xff]
      %v5425 = vld [vmem:[%s4416 + $0xc2] sm:$0xff]
      %v5426 = vld [vmem:[%s4416 + $0xca] sm:$0xff]
      %v5427 = vld [vmem:[%s4416 + $0xda] sm:$0xff]
      %v5428 = vld [vmem:[%s4416 + $0xe2] sm:$0xff]
      %v5429 = vld [vmem:[%s4416 + $0xf2] sm:$0xff]
      %v5430 = vld [vmem:[%s4416 + $0xfa] sm:$0xff]
      %v5431 = vld [vmem:[%s4416 + $0x10a] sm:$0xff]
      %v5432 = vld [vmem:[%s4416 + $0x112] sm:$0xff]
      %v5433 = vld [vmem:[%s4416 + $0x122] sm:$0xff]
      %v5434 = vld [vmem:[%s4416 + $0x12a] sm:$0xff]
      %v5435 = vld [vmem:[%s4416 + $0x13a] sm:$0xff]
      %v5436 = vld [vmem:[%s4416 + $0x142] sm:$0xff]
      %v5437 = vld [vmem:[%s4416 + $0x152] sm:$0xff]
      %v5438 = vld [vmem:[%s4416 + $0x15a] sm:$0xff]
      %v5439 = vld [vmem:[%s4416 + $0x16a] sm:$0xff]
      %v5440 = vld [vmem:[%s4416 + $0x172] sm:$0xff]
      %v5441 = vpack.c.bf16 %v5410, %v5409
      %v5442 = vpack.c.bf16 %v5412, %v5411
      %v5443 = vpack.c.bf16 %v5414, %v5413
      %v5444 = vpack.c.bf16 %v5416, %v5415
      %v5445 = vpack.c.bf16 %v5418, %v5417
      %v5446 = vpack.c.bf16 %v5420, %v5419
      %v5447 = vpack.c.bf16 %v5422, %v5421
      %v5448 = vpack.c.bf16 %v5424, %v5423
      %v5449 = vpack.c.bf16 %v5426, %v5425
      %v5450 = vpack.c.bf16 %v5428, %v5427
      %v5451 = vpack.c.bf16 %v5430, %v5429
      %v5452 = vpack.c.bf16 %v5432, %v5431
      %v5453 = vpack.c.bf16 %v5434, %v5433
      %v5454 = vpack.c.bf16 %v5436, %v5435
      %v5455 = vpack.c.bf16 %v5438, %v5437
      %v5456 = vpack.c.bf16 %v5440, %v5439
      %v5473 = vunpack.c.l.b16 %v5441
      %v5474 = vunpack.c.h.b16 %v5441
      %v5475 = vunpack.c.l.b16 %v5442
      %v5476 = vunpack.c.h.b16 %v5442
      %v5477 = vunpack.c.l.b16 %v5443
      %v5478 = vunpack.c.h.b16 %v5443
      %v5479 = vunpack.c.l.b16 %v5444
      %v5480 = vunpack.c.h.b16 %v5444
      %v5481 = vunpack.c.l.b16 %v5445
      %v5482 = vunpack.c.h.b16 %v5445
      %v5483 = vunpack.c.l.b16 %v5446
      %v5484 = vunpack.c.h.b16 %v5446
      %v5485 = vunpack.c.l.b16 %v5447
      %v5486 = vunpack.c.h.b16 %v5447
      %v5487 = vunpack.c.l.b16 %v5448
      %v5488 = vunpack.c.h.b16 %v5448
      %v5489 = vunpack.c.l.b16 %v5449
      %v5490 = vunpack.c.h.b16 %v5449
      %v5491 = vunpack.c.l.b16 %v5450
      %v5492 = vunpack.c.h.b16 %v5450
      %v5493 = vunpack.c.l.b16 %v5451
      %v5494 = vunpack.c.h.b16 %v5451
      %v5495 = vunpack.c.l.b16 %v5452
      %v5496 = vunpack.c.h.b16 %v5452
      %v5497 = vunpack.c.l.b16 %v5453
      %v5498 = vunpack.c.h.b16 %v5453
      %v5499 = vunpack.c.l.b16 %v5454
      %v5500 = vunpack.c.h.b16 %v5454
      %v5501 = vunpack.c.l.b16 %v5455
      %v5502 = vunpack.c.h.b16 %v5455
      %v5503 = vunpack.c.l.b16 %v5456
      %v5504 = vunpack.c.h.b16 %v5456
      %v5505 = vpack.c.b16 %v5473, %v5473
      %v5506 = vpack.c.b16 %v5474, %v5474
      %v5507 = vpack.c.b16 %v5475, %v5475
      %v5508 = vpack.c.b16 %v5476, %v5476
      %v5509 = vpack.c.b16 %v5477, %v5477
      %v5510 = vpack.c.b16 %v5478, %v5478
      %v5511 = vpack.c.b16 %v5479, %v5479
      %v5512 = vpack.c.b16 %v5480, %v5480
      %v5513 = vpack.c.b16 %v5481, %v5481
      %v5514 = vpack.c.b16 %v5482, %v5482
      %v5515 = vpack.c.b16 %v5483, %v5483
      %v5516 = vpack.c.b16 %v5484, %v5484
      %v5517 = vpack.c.b16 %v5485, %v5485
      %v5518 = vpack.c.b16 %v5486, %v5486
      %v5519 = vpack.c.b16 %v5487, %v5487
      %v5520 = vpack.c.b16 %v5488, %v5488
      %v5521 = vpack.c.b16 %v5489, %v5489
      %v5522 = vpack.c.b16 %v5490, %v5490
      %v5523 = vpack.c.b16 %v5491, %v5491
      %v5524 = vpack.c.b16 %v5492, %v5492
      %v5525 = vpack.c.b16 %v5493, %v5493
      %v5526 = vpack.c.b16 %v5494, %v5494
      %v5527 = vpack.c.b16 %v5495, %v5495
      %v5528 = vpack.c.b16 %v5496, %v5496
      %v5529 = vpack.c.b16 %v5497, %v5497
      %v5530 = vpack.c.b16 %v5498, %v5498
      %v5531 = vpack.c.b16 %v5499, %v5499
      %v5532 = vpack.c.b16 %v5500, %v5500
      %v5533 = vpack.c.b16 %v5501, %v5501
      %v5534 = vpack.c.b16 %v5502, %v5502
      %v5535 = vpack.c.b16 %v5503, %v5503
      %v5536 = vpack.c.b16 %v5504, %v5504
      %5569 = vst [vmem:[#allocation4 + $0x14] sm:$0xf] %v5505
      %5570 = vst [vmem:[#allocation4 + $0x38] sm:$0xf] %v5506
      %5571 = vst [vmem:[#allocation4 + $0x5c] sm:$0xf] %v5507
      %5572 = vst [vmem:[#allocation4 + $0x80] sm:$0xf] %v5508
      %5573 = vst [vmem:[#allocation4 + $0xa4] sm:$0xf] %v5509
      %5574 = vst [vmem:[#allocation4 + $0xc8] sm:$0xf] %v5510
      %5575 = vst [vmem:[#allocation4 + $0xec] sm:$0xf] %v5511
      %5576 = vst [vmem:[#allocation4 + $0x110] sm:$0xf] %v5512
      %5577 = vst [vmem:[#allocation4 + $0x134] sm:$0xf] %v5513
      %5578 = vst [vmem:[#allocation4 + $0x158] sm:$0xf] %v5514
      %5579 = vst [vmem:[#allocation4 + $0x17c] sm:$0xf] %v5515
      %5580 = vst [vmem:[#allocation4 + $0x1a0] sm:$0xf] %v5516
      %5581 = vst [vmem:[#allocation4 + $0x1c4] sm:$0xf] %v5517
      %5582 = vst [vmem:[#allocation4 + $0x1e8] sm:$0xf] %v5518
      %5583 = vst [vmem:[#allocation4 + $0x20c] sm:$0xf] %v5519
      %5584 = vst [vmem:[#allocation4 + $0x230] sm:$0xf] %v5520
      %5585 = vst [vmem:[#allocation4 + $0x254] sm:$0xf] %v5521
      %5586 = vst [vmem:[#allocation4 + $0x278] sm:$0xf] %v5522
      %5587 = vst [vmem:[#allocation4 + $0x29c] sm:$0xf] %v5523
      %5588 = vst [vmem:[#allocation4 + $0x2c0] sm:$0xf] %v5524
      %5589 = vst [vmem:[#allocation4 + $0x2e4] sm:$0xf] %v5525
      %5590 = vst [vmem:[#allocation4 + $0x308] sm:$0xf] %v5526
      %5591 = vst [vmem:[#allocation4 + $0x32c] sm:$0xf] %v5527
      %5592 = vst [vmem:[#allocation4 + $0x350] sm:$0xf] %v5528
      %5593 = vst [vmem:[#allocation4 + $0x374] sm:$0xf] %v5529
      %5594 = vst [vmem:[#allocation4 + $0x398] sm:$0xf] %v5530
      %5595 = vst [vmem:[#allocation4 + $0x3bc] sm:$0xf] %v5531
      %5596 = vst [vmem:[#allocation4 + $0x3e0] sm:$0xf] %v5532
      %5597 = vst [vmem:[#allocation4 + $0x404] sm:$0xf] %v5533
      %5598 = vst [vmem:[#allocation4 + $0x428] sm:$0xf] %v5534
      %5599 = vst [vmem:[#allocation4 + $0x44c] sm:$0xf] %v5535
      %5600 = vst [vmem:[#allocation4 + $0x470] sm:$0xf] %v5536
      %s5601 = scalar_lea.vmem [#allocation3], 48
      %v5602 = vld [vmem:[%s5601] sm:$0xff]
      %v5603 = vld [vmem:[%s5601 + $0x8] sm:$0xff]
      %v5604 = vld [vmem:[%s5601 + $0x18] sm:$0xff]
      %v5605 = vld [vmem:[%s5601 + $0x20] sm:$0xff]
      %v5606 = vld [vmem:[%s5601 + $0x30] sm:$0xff]
      %v5607 = vld [vmem:[%s5601 + $0x38] sm:$0xff]
      %v5608 = vld [vmem:[%s5601 + $0x48] sm:$0xff]
      %v5609 = vld [vmem:[%s5601 + $0x50] sm:$0xff]
      %v5610 = vld [vmem:[%s5601 + $0x60] sm:$0xff]
      %v5611 = vld [vmem:[%s5601 + $0x68] sm:$0xff]
      %v5612 = vld [vmem:[%s5601 + $0x78] sm:$0xff]
      %v5613 = vld [vmem:[%s5601 + $0x80] sm:$0xff]
      %v5614 = vld [vmem:[%s5601 + $0x90] sm:$0xff]
      %v5615 = vld [vmem:[%s5601 + $0x98] sm:$0xff]
      %v5616 = vld [vmem:[%s5601 + $0xa8] sm:$0xff]
      %v5617 = vld [vmem:[%s5601 + $0xb0] sm:$0xff]
      %v5618 = vld [vmem:[%s5601 + $0xc0] sm:$0xff]
      %v5619 = vld [vmem:[%s5601 + $0xc8] sm:$0xff]
      %v5620 = vld [vmem:[%s5601 + $0xd8] sm:$0xff]
      %v5621 = vld [vmem:[%s5601 + $0xe0] sm:$0xff]
      %v5622 = vld [vmem:[%s5601 + $0xf0] sm:$0xff]
      %v5623 = vld [vmem:[%s5601 + $0xf8] sm:$0xff]
      %v5624 = vld [vmem:[%s5601 + $0x108] sm:$0xff]
      %v5625 = vld [vmem:[%s5601 + $0x110] sm:$0xff]
      %v5626 = vld [vmem:[%s5601 + $0x120] sm:$0xff]
      %v5627 = vld [vmem:[%s5601 + $0x128] sm:$0xff]
      %v5628 = vld [vmem:[%s5601 + $0x138] sm:$0xff]
      %v5629 = vld [vmem:[%s5601 + $0x140] sm:$0xff]
      %v5630 = vld [vmem:[%s5601 + $0x150] sm:$0xff]
      %v5631 = vld [vmem:[%s5601 + $0x158] sm:$0xff]
      %v5632 = vld [vmem:[%s5601 + $0x168] sm:$0xff]
      %v5633 = vld [vmem:[%s5601 + $0x170] sm:$0xff]
      %v5634 = vpack.c.bf16 %v5603, %v5602
      %v5635 = vpack.c.bf16 %v5605, %v5604
      %v5636 = vpack.c.bf16 %v5607, %v5606
      %v5637 = vpack.c.bf16 %v5609, %v5608
      %v5638 = vpack.c.bf16 %v5611, %v5610
      %v5639 = vpack.c.bf16 %v5613, %v5612
      %v5640 = vpack.c.bf16 %v5615, %v5614
      %v5641 = vpack.c.bf16 %v5617, %v5616
      %v5642 = vpack.c.bf16 %v5619, %v5618
      %v5643 = vpack.c.bf16 %v5621, %v5620
      %v5644 = vpack.c.bf16 %v5623, %v5622
      %v5645 = vpack.c.bf16 %v5625, %v5624
      %v5646 = vpack.c.bf16 %v5627, %v5626
      %v5647 = vpack.c.bf16 %v5629, %v5628
      %v5648 = vpack.c.bf16 %v5631, %v5630
      %v5649 = vpack.c.bf16 %v5633, %v5632
      %v5666 = vunpack.c.l.b16 %v5634
      %v5667 = vunpack.c.h.b16 %v5634
      %v5668 = vunpack.c.l.b16 %v5635
      %v5669 = vunpack.c.h.b16 %v5635
      %v5670 = vunpack.c.l.b16 %v5636
      %v5671 = vunpack.c.h.b16 %v5636
      %v5672 = vunpack.c.l.b16 %v5637
      %v5673 = vunpack.c.h.b16 %v5637
      %v5674 = vunpack.c.l.b16 %v5638
      %v5675 = vunpack.c.h.b16 %v5638
      %v5676 = vunpack.c.l.b16 %v5639
      %v5677 = vunpack.c.h.b16 %v5639
      %v5678 = vunpack.c.l.b16 %v5640
      %v5679 = vunpack.c.h.b16 %v5640
      %v5680 = vunpack.c.l.b16 %v5641
      %v5681 = vunpack.c.h.b16 %v5641
      %v5682 = vunpack.c.l.b16 %v5642
      %v5683 = vunpack.c.h.b16 %v5642
      %v5684 = vunpack.c.l.b16 %v5643
      %v5685 = vunpack.c.h.b16 %v5643
      %v5686 = vunpack.c.l.b16 %v5644
      %v5687 = vunpack.c.h.b16 %v5644
      %v5688 = vunpack.c.l.b16 %v5645
      %v5689 = vunpack.c.h.b16 %v5645
      %v5690 = vunpack.c.l.b16 %v5646
      %v5691 = vunpack.c.h.b16 %v5646
      %v5692 = vunpack.c.l.b16 %v5647
      %v5693 = vunpack.c.h.b16 %v5647
      %v5694 = vunpack.c.l.b16 %v5648
      %v5695 = vunpack.c.h.b16 %v5648
      %v5696 = vunpack.c.l.b16 %v5649
      %v5697 = vunpack.c.h.b16 %v5649
      %v5698 = vpack.c.b16 %v5666, %v5666
      %v5699 = vpack.c.b16 %v5667, %v5667
      %v5700 = vpack.c.b16 %v5668, %v5668
      %v5701 = vpack.c.b16 %v5669, %v5669
      %v5702 = vpack.c.b16 %v5670, %v5670
      %v5703 = vpack.c.b16 %v5671, %v5671
      %v5704 = vpack.c.b16 %v5672, %v5672
      %v5705 = vpack.c.b16 %v5673, %v5673
      %v5706 = vpack.c.b16 %v5674, %v5674
      %v5707 = vpack.c.b16 %v5675, %v5675
      %v5708 = vpack.c.b16 %v5676, %v5676
      %v5709 = vpack.c.b16 %v5677, %v5677
      %v5710 = vpack.c.b16 %v5678, %v5678
      %v5711 = vpack.c.b16 %v5679, %v5679
      %v5712 = vpack.c.b16 %v5680, %v5680
      %v5713 = vpack.c.b16 %v5681, %v5681
      %v5714 = vpack.c.b16 %v5682, %v5682
      %v5715 = vpack.c.b16 %v5683, %v5683
      %v5716 = vpack.c.b16 %v5684, %v5684
      %v5717 = vpack.c.b16 %v5685, %v5685
      %v5718 = vpack.c.b16 %v5686, %v5686
      %v5719 = vpack.c.b16 %v5687, %v5687
      %v5720 = vpack.c.b16 %v5688, %v5688
      %v5721 = vpack.c.b16 %v5689, %v5689
      %v5722 = vpack.c.b16 %v5690, %v5690
      %v5723 = vpack.c.b16 %v5691, %v5691
      %v5724 = vpack.c.b16 %v5692, %v5692
      %v5725 = vpack.c.b16 %v5693, %v5693
      %v5726 = vpack.c.b16 %v5694, %v5694
      %v5727 = vpack.c.b16 %v5695, %v5695
      %v5728 = vpack.c.b16 %v5696, %v5696
      %v5729 = vpack.c.b16 %v5697, %v5697
      %5762 = vst [vmem:[#allocation4 + $0x18] sm:$0xf] %v5698
      %5763 = vst [vmem:[#allocation4 + $0x3c] sm:$0xf] %v5699
      %5764 = vst [vmem:[#allocation4 + $0x60] sm:$0xf] %v5700
      %5765 = vst [vmem:[#allocation4 + $0x84] sm:$0xf] %v5701
      %5766 = vst [vmem:[#allocation4 + $0xa8] sm:$0xf] %v5702
      %5767 = vst [vmem:[#allocation4 + $0xcc] sm:$0xf] %v5703
      %5768 = vst [vmem:[#allocation4 + $0xf0] sm:$0xf] %v5704
      %5769 = vst [vmem:[#allocation4 + $0x114] sm:$0xf] %v5705
      %5770 = vst [vmem:[#allocation4 + $0x138] sm:$0xf] %v5706
      %5771 = vst [vmem:[#allocation4 + $0x15c] sm:$0xf] %v5707
      %5772 = vst [vmem:[#allocation4 + $0x180] sm:$0xf] %v5708
      %5773 = vst [vmem:[#allocation4 + $0x1a4] sm:$0xf] %v5709
      %5774 = vst [vmem:[#allocation4 + $0x1c8] sm:$0xf] %v5710
      %5775 = vst [vmem:[#allocation4 + $0x1ec] sm:$0xf] %v5711
      %5776 = vst [vmem:[#allocation4 + $0x210] sm:$0xf] %v5712
      %5777 = vst [vmem:[#allocation4 + $0x234] sm:$0xf] %v5713
      %5778 = vst [vmem:[#allocation4 + $0x258] sm:$0xf] %v5714
      %5779 = vst [vmem:[#allocation4 + $0x27c] sm:$0xf] %v5715
      %5780 = vst [vmem:[#allocation4 + $0x2a0] sm:$0xf] %v5716
      %5781 = vst [vmem:[#allocation4 + $0x2c4] sm:$0xf] %v5717
      %5782 = vst [vmem:[#allocation4 + $0x2e8] sm:$0xf] %v5718
      %5783 = vst [vmem:[#allocation4 + $0x30c] sm:$0xf] %v5719
      %5784 = vst [vmem:[#allocation4 + $0x330] sm:$0xf] %v5720
      %5785 = vst [vmem:[#allocation4 + $0x354] sm:$0xf] %v5721
      %5786 = vst [vmem:[#allocation4 + $0x378] sm:$0xf] %v5722
      %5787 = vst [vmem:[#allocation4 + $0x39c] sm:$0xf] %v5723
      %5788 = vst [vmem:[#allocation4 + $0x3c0] sm:$0xf] %v5724
      %5789 = vst [vmem:[#allocation4 + $0x3e4] sm:$0xf] %v5725
      %5790 = vst [vmem:[#allocation4 + $0x408] sm:$0xf] %v5726
      %5791 = vst [vmem:[#allocation4 + $0x42c] sm:$0xf] %v5727
      %5792 = vst [vmem:[#allocation4 + $0x450] sm:$0xf] %v5728
      %5793 = vst [vmem:[#allocation4 + $0x474] sm:$0xf] %v5729
      %v5794 = vld [vmem:[%s5601 + $0x1] sm:$0xff]
      %v5795 = vld [vmem:[%s5601 + $0x9] sm:$0xff]
      %v5796 = vld [vmem:[%s5601 + $0x19] sm:$0xff]
      %v5797 = vld [vmem:[%s5601 + $0x21] sm:$0xff]
      %v5798 = vld [vmem:[%s5601 + $0x31] sm:$0xff]
      %v5799 = vld [vmem:[%s5601 + $0x39] sm:$0xff]
      %v5800 = vld [vmem:[%s5601 + $0x49] sm:$0xff]
      %v5801 = vld [vmem:[%s5601 + $0x51] sm:$0xff]
      %v5802 = vld [vmem:[%s5601 + $0x61] sm:$0xff]
      %v5803 = vld [vmem:[%s5601 + $0x69] sm:$0xff]
      %v5804 = vld [vmem:[%s5601 + $0x79] sm:$0xff]
      %v5805 = vld [vmem:[%s5601 + $0x81] sm:$0xff]
      %v5806 = vld [vmem:[%s5601 + $0x91] sm:$0xff]
      %v5807 = vld [vmem:[%s5601 + $0x99] sm:$0xff]
      %v5808 = vld [vmem:[%s5601 + $0xa9] sm:$0xff]
      %v5809 = vld [vmem:[%s5601 + $0xb1] sm:$0xff]
      %v5810 = vld [vmem:[%s5601 + $0xc1] sm:$0xff]
      %v5811 = vld [vmem:[%s5601 + $0xc9] sm:$0xff]
      %v5812 = vld [vmem:[%s5601 + $0xd9] sm:$0xff]
      %v5813 = vld [vmem:[%s5601 + $0xe1] sm:$0xff]
      %v5814 = vld [vmem:[%s5601 + $0xf1] sm:$0xff]
      %v5815 = vld [vmem:[%s5601 + $0xf9] sm:$0xff]
      %v5816 = vld [vmem:[%s5601 + $0x109] sm:$0xff]
      %v5817 = vld [vmem:[%s5601 + $0x111] sm:$0xff]
      %v5818 = vld [vmem:[%s5601 + $0x121] sm:$0xff]
      %v5819 = vld [vmem:[%s5601 + $0x129] sm:$0xff]
      %v5820 = vld [vmem:[%s5601 + $0x139] sm:$0xff]
      %v5821 = vld [vmem:[%s5601 + $0x141] sm:$0xff]
      %v5822 = vld [vmem:[%s5601 + $0x151] sm:$0xff]
      %v5823 = vld [vmem:[%s5601 + $0x159] sm:$0xff]
      %v5824 = vld [vmem:[%s5601 + $0x169] sm:$0xff]
      %v5825 = vld [vmem:[%s5601 + $0x171] sm:$0xff]
      %v5826 = vpack.c.bf16 %v5795, %v5794
      %v5827 = vpack.c.bf16 %v5797, %v5796
      %v5828 = vpack.c.bf16 %v5799, %v5798
      %v5829 = vpack.c.bf16 %v5801, %v5800
      %v5830 = vpack.c.bf16 %v5803, %v5802
      %v5831 = vpack.c.bf16 %v5805, %v5804
      %v5832 = vpack.c.bf16 %v5807, %v5806
      %v5833 = vpack.c.bf16 %v5809, %v5808
      %v5834 = vpack.c.bf16 %v5811, %v5810
      %v5835 = vpack.c.bf16 %v5813, %v5812
      %v5836 = vpack.c.bf16 %v5815, %v5814
      %v5837 = vpack.c.bf16 %v5817, %v5816
      %v5838 = vpack.c.bf16 %v5819, %v5818
      %v5839 = vpack.c.bf16 %v5821, %v5820
      %v5840 = vpack.c.bf16 %v5823, %v5822
      %v5841 = vpack.c.bf16 %v5825, %v5824
      %v5858 = vunpack.c.l.b16 %v5826
      %v5859 = vunpack.c.h.b16 %v5826
      %v5860 = vunpack.c.l.b16 %v5827
      %v5861 = vunpack.c.h.b16 %v5827
      %v5862 = vunpack.c.l.b16 %v5828
      %v5863 = vunpack.c.h.b16 %v5828
      %v5864 = vunpack.c.l.b16 %v5829
      %v5865 = vunpack.c.h.b16 %v5829
      %v5866 = vunpack.c.l.b16 %v5830
      %v5867 = vunpack.c.h.b16 %v5830
      %v5868 = vunpack.c.l.b16 %v5831
      %v5869 = vunpack.c.h.b16 %v5831
      %v5870 = vunpack.c.l.b16 %v5832
      %v5871 = vunpack.c.h.b16 %v5832
      %v5872 = vunpack.c.l.b16 %v5833
      %v5873 = vunpack.c.h.b16 %v5833
      %v5874 = vunpack.c.l.b16 %v5834
      %v5875 = vunpack.c.h.b16 %v5834
      %v5876 = vunpack.c.l.b16 %v5835
      %v5877 = vunpack.c.h.b16 %v5835
      %v5878 = vunpack.c.l.b16 %v5836
      %v5879 = vunpack.c.h.b16 %v5836
      %v5880 = vunpack.c.l.b16 %v5837
      %v5881 = vunpack.c.h.b16 %v5837
      %v5882 = vunpack.c.l.b16 %v5838
      %v5883 = vunpack.c.h.b16 %v5838
      %v5884 = vunpack.c.l.b16 %v5839
      %v5885 = vunpack.c.h.b16 %v5839
      %v5886 = vunpack.c.l.b16 %v5840
      %v5887 = vunpack.c.h.b16 %v5840
      %v5888 = vunpack.c.l.b16 %v5841
      %v5889 = vunpack.c.h.b16 %v5841
      %v5890 = vpack.c.b16 %v5858, %v5858
      %v5891 = vpack.c.b16 %v5859, %v5859
      %v5892 = vpack.c.b16 %v5860, %v5860
      %v5893 = vpack.c.b16 %v5861, %v5861
      %v5894 = vpack.c.b16 %v5862, %v5862
      %v5895 = vpack.c.b16 %v5863, %v5863
      %v5896 = vpack.c.b16 %v5864, %v5864
      %v5897 = vpack.c.b16 %v5865, %v5865
      %v5898 = vpack.c.b16 %v5866, %v5866
      %v5899 = vpack.c.b16 %v5867, %v5867
      %v5900 = vpack.c.b16 %v5868, %v5868
      %v5901 = vpack.c.b16 %v5869, %v5869
      %v5902 = vpack.c.b16 %v5870, %v5870
      %v5903 = vpack.c.b16 %v5871, %v5871
      %v5904 = vpack.c.b16 %v5872, %v5872
      %v5905 = vpack.c.b16 %v5873, %v5873
      %v5906 = vpack.c.b16 %v5874, %v5874
      %v5907 = vpack.c.b16 %v5875, %v5875
      %v5908 = vpack.c.b16 %v5876, %v5876
      %v5909 = vpack.c.b16 %v5877, %v5877
      %v5910 = vpack.c.b16 %v5878, %v5878
      %v5911 = vpack.c.b16 %v5879, %v5879
      %v5912 = vpack.c.b16 %v5880, %v5880
      %v5913 = vpack.c.b16 %v5881, %v5881
      %v5914 = vpack.c.b16 %v5882, %v5882
      %v5915 = vpack.c.b16 %v5883, %v5883
      %v5916 = vpack.c.b16 %v5884, %v5884
      %v5917 = vpack.c.b16 %v5885, %v5885
      %v5918 = vpack.c.b16 %v5886, %v5886
      %v5919 = vpack.c.b16 %v5887, %v5887
      %v5920 = vpack.c.b16 %v5888, %v5888
      %v5921 = vpack.c.b16 %v5889, %v5889
      %5954 = vst [vmem:[#allocation4 + $0x1c] sm:$0xf] %v5890
      %5955 = vst [vmem:[#allocation4 + $0x40] sm:$0xf] %v5891
      %5956 = vst [vmem:[#allocation4 + $0x64] sm:$0xf] %v5892
      %5957 = vst [vmem:[#allocation4 + $0x88] sm:$0xf] %v5893
      %5958 = vst [vmem:[#allocation4 + $0xac] sm:$0xf] %v5894
      %5959 = vst [vmem:[#allocation4 + $0xd0] sm:$0xf] %v5895
      %5960 = vst [vmem:[#allocation4 + $0xf4] sm:$0xf] %v5896
      %5961 = vst [vmem:[#allocation4 + $0x118] sm:$0xf] %v5897
      %5962 = vst [vmem:[#allocation4 + $0x13c] sm:$0xf] %v5898
      %5963 = vst [vmem:[#allocation4 + $0x160] sm:$0xf] %v5899
      %5964 = vst [vmem:[#allocation4 + $0x184] sm:$0xf] %v5900
      %5965 = vst [vmem:[#allocation4 + $0x1a8] sm:$0xf] %v5901
      %5966 = vst [vmem:[#allocation4 + $0x1cc] sm:$0xf] %v5902
      %5967 = vst [vmem:[#allocation4 + $0x1f0] sm:$0xf] %v5903
      %5968 = vst [vmem:[#allocation4 + $0x214] sm:$0xf] %v5904
      %5969 = vst [vmem:[#allocation4 + $0x238] sm:$0xf] %v5905
      %5970 = vst [vmem:[#allocation4 + $0x25c] sm:$0xf] %v5906
      %5971 = vst [vmem:[#allocation4 + $0x280] sm:$0xf] %v5907
      %5972 = vst [vmem:[#allocation4 + $0x2a4] sm:$0xf] %v5908
      %5973 = vst [vmem:[#allocation4 + $0x2c8] sm:$0xf] %v5909
      %5974 = vst [vmem:[#allocation4 + $0x2ec] sm:$0xf] %v5910
      %5975 = vst [vmem:[#allocation4 + $0x310] sm:$0xf] %v5911
      %5976 = vst [vmem:[#allocation4 + $0x334] sm:$0xf] %v5912
      %5977 = vst [vmem:[#allocation4 + $0x358] sm:$0xf] %v5913
      %5978 = vst [vmem:[#allocation4 + $0x37c] sm:$0xf] %v5914
      %5979 = vst [vmem:[#allocation4 + $0x3a0] sm:$0xf] %v5915
      %5980 = vst [vmem:[#allocation4 + $0x3c4] sm:$0xf] %v5916
      %5981 = vst [vmem:[#allocation4 + $0x3e8] sm:$0xf] %v5917
      %5982 = vst [vmem:[#allocation4 + $0x40c] sm:$0xf] %v5918
      %5983 = vst [vmem:[#allocation4 + $0x430] sm:$0xf] %v5919
      %5984 = vst [vmem:[#allocation4 + $0x454] sm:$0xf] %v5920
      %5985 = vst [vmem:[#allocation4 + $0x478] sm:$0xf] %v5921
      %v5986 = vld [vmem:[%s5601 + $0x2] sm:$0xff]
      %v5987 = vld [vmem:[%s5601 + $0xa] sm:$0xff]
      %v5988 = vld [vmem:[%s5601 + $0x1a] sm:$0xff]
      %v5989 = vld [vmem:[%s5601 + $0x22] sm:$0xff]
      %v5990 = vld [vmem:[%s5601 + $0x32] sm:$0xff]
      %v5991 = vld [vmem:[%s5601 + $0x3a] sm:$0xff]
      %v5992 = vld [vmem:[%s5601 + $0x4a] sm:$0xff]
      %v5993 = vld [vmem:[%s5601 + $0x52] sm:$0xff]
      %v5994 = vld [vmem:[%s5601 + $0x62] sm:$0xff]
      %v5995 = vld [vmem:[%s5601 + $0x6a] sm:$0xff]
      %v5996 = vld [vmem:[%s5601 + $0x7a] sm:$0xff]
      %v5997 = vld [vmem:[%s5601 + $0x82] sm:$0xff]
      %v5998 = vld [vmem:[%s5601 + $0x92] sm:$0xff]
      %v5999 = vld [vmem:[%s5601 + $0x9a] sm:$0xff]
      %v6000 = vld [vmem:[%s5601 + $0xaa] sm:$0xff]
      %v6001 = vld [vmem:[%s5601 + $0xb2] sm:$0xff]
      %v6002 = vld [vmem:[%s5601 + $0xc2] sm:$0xff]
      %v6003 = vld [vmem:[%s5601 + $0xca] sm:$0xff]
      %v6004 = vld [vmem:[%s5601 + $0xda] sm:$0xff]
      %v6005 = vld [vmem:[%s5601 + $0xe2] sm:$0xff]
      %v6006 = vld [vmem:[%s5601 + $0xf2] sm:$0xff]
      %v6007 = vld [vmem:[%s5601 + $0xfa] sm:$0xff]
      %v6008 = vld [vmem:[%s5601 + $0x10a] sm:$0xff]
      %v6009 = vld [vmem:[%s5601 + $0x112] sm:$0xff]
      %v6010 = vld [vmem:[%s5601 + $0x122] sm:$0xff]
      %v6011 = vld [vmem:[%s5601 + $0x12a] sm:$0xff]
      %v6012 = vld [vmem:[%s5601 + $0x13a] sm:$0xff]
      %v6013 = vld [vmem:[%s5601 + $0x142] sm:$0xff]
      %v6014 = vld [vmem:[%s5601 + $0x152] sm:$0xff]
      %v6015 = vld [vmem:[%s5601 + $0x15a] sm:$0xff]
      %v6016 = vld [vmem:[%s5601 + $0x16a] sm:$0xff]
      %v6017 = vld [vmem:[%s5601 + $0x172] sm:$0xff]
      %v6018 = vpack.c.bf16 %v5987, %v5986
      %v6019 = vpack.c.bf16 %v5989, %v5988
      %v6020 = vpack.c.bf16 %v5991, %v5990
      %v6021 = vpack.c.bf16 %v5993, %v5992
      %v6022 = vpack.c.bf16 %v5995, %v5994
      %v6023 = vpack.c.bf16 %v5997, %v5996
      %v6024 = vpack.c.bf16 %v5999, %v5998
      %v6025 = vpack.c.bf16 %v6001, %v6000
      %v6026 = vpack.c.bf16 %v6003, %v6002
      %v6027 = vpack.c.bf16 %v6005, %v6004
      %v6028 = vpack.c.bf16 %v6007, %v6006
      %v6029 = vpack.c.bf16 %v6009, %v6008
      %v6030 = vpack.c.bf16 %v6011, %v6010
      %v6031 = vpack.c.bf16 %v6013, %v6012
      %v6032 = vpack.c.bf16 %v6015, %v6014
      %v6033 = vpack.c.bf16 %v6017, %v6016
      %v6050 = vunpack.c.l.b16 %v6018
      %v6051 = vunpack.c.h.b16 %v6018
      %v6052 = vunpack.c.l.b16 %v6019
      %v6053 = vunpack.c.h.b16 %v6019
      %v6054 = vunpack.c.l.b16 %v6020
      %v6055 = vunpack.c.h.b16 %v6020
      %v6056 = vunpack.c.l.b16 %v6021
      %v6057 = vunpack.c.h.b16 %v6021
      %v6058 = vunpack.c.l.b16 %v6022
      %v6059 = vunpack.c.h.b16 %v6022
      %v6060 = vunpack.c.l.b16 %v6023
      %v6061 = vunpack.c.h.b16 %v6023
      %v6062 = vunpack.c.l.b16 %v6024
      %v6063 = vunpack.c.h.b16 %v6024
      %v6064 = vunpack.c.l.b16 %v6025
      %v6065 = vunpack.c.h.b16 %v6025
      %v6066 = vunpack.c.l.b16 %v6026
      %v6067 = vunpack.c.h.b16 %v6026
      %v6068 = vunpack.c.l.b16 %v6027
      %v6069 = vunpack.c.h.b16 %v6027
      %v6070 = vunpack.c.l.b16 %v6028
      %v6071 = vunpack.c.h.b16 %v6028
      %v6072 = vunpack.c.l.b16 %v6029
      %v6073 = vunpack.c.h.b16 %v6029
      %v6074 = vunpack.c.l.b16 %v6030
      %v6075 = vunpack.c.h.b16 %v6030
      %v6076 = vunpack.c.l.b16 %v6031
      %v6077 = vunpack.c.h.b16 %v6031
      %v6078 = vunpack.c.l.b16 %v6032
      %v6079 = vunpack.c.h.b16 %v6032
      %v6080 = vunpack.c.l.b16 %v6033
      %v6081 = vunpack.c.h.b16 %v6033
      %v6082 = vpack.c.b16 %v6050, %v6050
      %v6083 = vpack.c.b16 %v6051, %v6051
      %v6084 = vpack.c.b16 %v6052, %v6052
      %v6085 = vpack.c.b16 %v6053, %v6053
      %v6086 = vpack.c.b16 %v6054, %v6054
      %v6087 = vpack.c.b16 %v6055, %v6055
      %v6088 = vpack.c.b16 %v6056, %v6056
      %v6089 = vpack.c.b16 %v6057, %v6057
      %v6090 = vpack.c.b16 %v6058, %v6058
      %v6091 = vpack.c.b16 %v6059, %v6059
      %v6092 = vpack.c.b16 %v6060, %v6060
      %v6093 = vpack.c.b16 %v6061, %v6061
      %v6094 = vpack.c.b16 %v6062, %v6062
      %v6095 = vpack.c.b16 %v6063, %v6063
      %v6096 = vpack.c.b16 %v6064, %v6064
      %v6097 = vpack.c.b16 %v6065, %v6065
      %v6098 = vpack.c.b16 %v6066, %v6066
      %v6099 = vpack.c.b16 %v6067, %v6067
      %v6100 = vpack.c.b16 %v6068, %v6068
      %v6101 = vpack.c.b16 %v6069, %v6069
      %v6102 = vpack.c.b16 %v6070, %v6070
      %v6103 = vpack.c.b16 %v6071, %v6071
      %v6104 = vpack.c.b16 %v6072, %v6072
      %v6105 = vpack.c.b16 %v6073, %v6073
      %v6106 = vpack.c.b16 %v6074, %v6074
      %v6107 = vpack.c.b16 %v6075, %v6075
      %v6108 = vpack.c.b16 %v6076, %v6076
      %v6109 = vpack.c.b16 %v6077, %v6077
      %v6110 = vpack.c.b16 %v6078, %v6078
      %v6111 = vpack.c.b16 %v6079, %v6079
      %v6112 = vpack.c.b16 %v6080, %v6080
      %v6113 = vpack.c.b16 %v6081, %v6081
      %6146 = vst [vmem:[#allocation4 + $0x20] sm:$0xf] %v6082
      %6147 = vst [vmem:[#allocation4 + $0x44] sm:$0xf] %v6083
      %6148 = vst [vmem:[#allocation4 + $0x68] sm:$0xf] %v6084
      %6149 = vst [vmem:[#allocation4 + $0x8c] sm:$0xf] %v6085
      %6150 = vst [vmem:[#allocation4 + $0xb0] sm:$0xf] %v6086
      %6151 = vst [vmem:[#allocation4 + $0xd4] sm:$0xf] %v6087
      %6152 = vst [vmem:[#allocation4 + $0xf8] sm:$0xf] %v6088
      %6153 = vst [vmem:[#allocation4 + $0x11c] sm:$0xf] %v6089
      %6154 = vst [vmem:[#allocation4 + $0x140] sm:$0xf] %v6090
      %6155 = vst [vmem:[#allocation4 + $0x164] sm:$0xf] %v6091
      %6156 = vst [vmem:[#allocation4 + $0x188] sm:$0xf] %v6092
      %6157 = vst [vmem:[#allocation4 + $0x1ac] sm:$0xf] %v6093
      %6158 = vst [vmem:[#allocation4 + $0x1d0] sm:$0xf] %v6094
      %6159 = vst [vmem:[#allocation4 + $0x1f4] sm:$0xf] %v6095
      %6160 = vst [vmem:[#allocation4 + $0x218] sm:$0xf] %v6096
      %6161 = vst [vmem:[#allocation4 + $0x23c] sm:$0xf] %v6097
      %6162 = vst [vmem:[#allocation4 + $0x260] sm:$0xf] %v6098
      %6163 = vst [vmem:[#allocation4 + $0x284] sm:$0xf] %v6099
      %6164 = vst [vmem:[#allocation4 + $0x2a8] sm:$0xf] %v6100
      %6165 = vst [vmem:[#allocation4 + $0x2cc] sm:$0xf] %v6101
      %6166 = vst [vmem:[#allocation4 + $0x2f0] sm:$0xf] %v6102
      %6167 = vst [vmem:[#allocation4 + $0x314] sm:$0xf] %v6103
      %6168 = vst [vmem:[#allocation4 + $0x338] sm:$0xf] %v6104
      %6169 = vst [vmem:[#allocation4 + $0x35c] sm:$0xf] %v6105
      %6170 = vst [vmem:[#allocation4 + $0x380] sm:$0xf] %v6106
      %6171 = vst [vmem:[#allocation4 + $0x3a4] sm:$0xf] %v6107
      %6172 = vst [vmem:[#allocation4 + $0x3c8] sm:$0xf] %v6108
      %6173 = vst [vmem:[#allocation4 + $0x3ec] sm:$0xf] %v6109
      %6174 = vst [vmem:[#allocation4 + $0x410] sm:$0xf] %v6110
      %6175 = vst [vmem:[#allocation4 + $0x434] sm:$0xf] %v6111
      %6176 = vst [vmem:[#allocation4 + $0x458] sm:$0xf] %v6112
      %6177 = vst [vmem:[#allocation4 + $0x47c] sm:$0xf] %v6113
      %v6178 = vld [vmem:[#allocation4] sm:$0xff]
      %v6179 = vld [vmem:[#allocation4 + $0x8] sm:$0xff]
      %v6180 = vld [vmem:[#allocation4 + $0x10] sm:$0xff]
      %v6181 = vld [vmem:[#allocation4 + $0x18] sm:$0xff]
      %v6182 = vld [vmem:[#allocation4 + $0x20] sm:$0xf]
      %v6183 = vld [vmem:[#allocation4 + $0x24] sm:$0xff]
      %v6184 = vld [vmem:[#allocation4 + $0x2c] sm:$0xff]
      %v6185 = vld [vmem:[#allocation4 + $0x34] sm:$0xff]
      %v6186 = vld [vmem:[#allocation4 + $0x3c] sm:$0xff]
      %v6187 = vld [vmem:[#allocation4 + $0x44] sm:$0xf]
      %v6188 = vld [vmem:[#allocation4 + $0x48] sm:$0xff]
      %v6189 = vld [vmem:[#allocation4 + $0x50] sm:$0xff]
      %v6190 = vld [vmem:[#allocation4 + $0x58] sm:$0xff]
      %v6191 = vld [vmem:[#allocation4 + $0x60] sm:$0xff]
      %v6192 = vld [vmem:[#allocation4 + $0x68] sm:$0xf]
      %v6193 = vld [vmem:[#allocation4 + $0x6c] sm:$0xff]
      %v6194 = vld [vmem:[#allocation4 + $0x74] sm:$0xff]
      %v6195 = vld [vmem:[#allocation4 + $0x7c] sm:$0xff]
      %v6196 = vld [vmem:[#allocation4 + $0x84] sm:$0xff]
      %v6197 = vld [vmem:[#allocation4 + $0x8c] sm:$0xf]
      %v6198 = vld [vmem:[#allocation4 + $0x90] sm:$0xff]
      %v6199 = vld [vmem:[#allocation4 + $0x98] sm:$0xff]
      %v6200 = vld [vmem:[#allocation4 + $0xa0] sm:$0xff]
      %v6201 = vld [vmem:[#allocation4 + $0xa8] sm:$0xff]
      %v6202 = vld [vmem:[#allocation4 + $0xb0] sm:$0xf]
      %v6203 = vld [vmem:[#allocation4 + $0xb4] sm:$0xff]
      %v6204 = vld [vmem:[#allocation4 + $0xbc] sm:$0xff]
      %v6205 = vld [vmem:[#allocation4 + $0xc4] sm:$0xff]
      %v6206 = vld [vmem:[#allocation4 + $0xcc] sm:$0xff]
      %v6207 = vld [vmem:[#allocation4 + $0xd4] sm:$0xf]
      %v6208 = vld [vmem:[#allocation4 + $0xd8] sm:$0xff]
      %v6209 = vld [vmem:[#allocation4 + $0xe0] sm:$0xff]
      %v6210 = vld [vmem:[#allocation4 + $0xe8] sm:$0xff]
      %v6211 = vld [vmem:[#allocation4 + $0xf0] sm:$0xff]
      %v6212 = vld [vmem:[#allocation4 + $0xf8] sm:$0xf]
      %v6213 = vld [vmem:[#allocation4 + $0xfc] sm:$0xff]
      %v6214 = vld [vmem:[#allocation4 + $0x104] sm:$0xff]
      %v6215 = vld [vmem:[#allocation4 + $0x10c] sm:$0xff]
      %v6216 = vld [vmem:[#allocation4 + $0x114] sm:$0xff]
      %v6217 = vld [vmem:[#allocation4 + $0x11c] sm:$0xf]
      %v6218 = vld [vmem:[#allocation4 + $0x120] sm:$0xff]
      %v6219 = vld [vmem:[#allocation4 + $0x128] sm:$0xff]
      %v6220 = vld [vmem:[#allocation4 + $0x130] sm:$0xff]
      %v6221 = vld [vmem:[#allocation4 + $0x138] sm:$0xff]
      %v6222 = vld [vmem:[#allocation4 + $0x140] sm:$0xf]
      %v6223 = vld [vmem:[#allocation4 + $0x144] sm:$0xff]
      %v6224 = vld [vmem:[#allocation4 + $0x14c] sm:$0xff]
      %v6225 = vld [vmem:[#allocation4 + $0x154] sm:$0xff]
      %v6226 = vld [vmem:[#allocation4 + $0x15c] sm:$0xff]
      %v6227 = vld [vmem:[#allocation4 + $0x164] sm:$0xf]
      %v6228 = vld [vmem:[#allocation4 + $0x168] sm:$0xff]
      %v6229 = vld [vmem:[#allocation4 + $0x170] sm:$0xff]
      %v6230 = vld [vmem:[#allocation4 + $0x178] sm:$0xff]
      %v6231 = vld [vmem:[#allocation4 + $0x180] sm:$0xff]
      %v6232 = vld [vmem:[#allocation4 + $0x188] sm:$0xf]
      %v6233 = vld [vmem:[#allocation4 + $0x18c] sm:$0xff]
      %v6234 = vld [vmem:[#allocation4 + $0x194] sm:$0xff]
      %v6235 = vld [vmem:[#allocation4 + $0x19c] sm:$0xff]
      %v6236 = vld [vmem:[#allocation4 + $0x1a4] sm:$0xff]
      %v6237 = vld [vmem:[#allocation4 + $0x1ac] sm:$0xf]
      %v6238 = vld [vmem:[#allocation4 + $0x1b0] sm:$0xff]
      %v6239 = vld [vmem:[#allocation4 + $0x1b8] sm:$0xff]
      %v6240 = vld [vmem:[#allocation4 + $0x1c0] sm:$0xff]
      %v6241 = vld [vmem:[#allocation4 + $0x1c8] sm:$0xff]
      %v6242 = vld [vmem:[#allocation4 + $0x1d0] sm:$0xf]
      %v6243 = vld [vmem:[#allocation4 + $0x1d4] sm:$0xff]
      %v6244 = vld [vmem:[#allocation4 + $0x1dc] sm:$0xff]
      %v6245 = vld [vmem:[#allocation4 + $0x1e4] sm:$0xff]
      %v6246 = vld [vmem:[#allocation4 + $0x1ec] sm:$0xff]
      %v6247 = vld [vmem:[#allocation4 + $0x1f4] sm:$0xf]
      %v6248 = vld [vmem:[#allocation4 + $0x1f8] sm:$0xff]
      %v6249 = vld [vmem:[#allocation4 + $0x200] sm:$0xff]
      %v6250 = vld [vmem:[#allocation4 + $0x208] sm:$0xff]
      %v6251 = vld [vmem:[#allocation4 + $0x210] sm:$0xff]
      %v6252 = vld [vmem:[#allocation4 + $0x218] sm:$0xf]
      %v6253 = vld [vmem:[#allocation4 + $0x21c] sm:$0xff]
      %v6254 = vld [vmem:[#allocation4 + $0x224] sm:$0xff]
      %v6255 = vld [vmem:[#allocation4 + $0x22c] sm:$0xff]
      %v6256 = vld [vmem:[#allocation4 + $0x234] sm:$0xff]
      %v6257 = vld [vmem:[#allocation4 + $0x23c] sm:$0xf]
      %v6258 = vld [vmem:[#allocation4 + $0x240] sm:$0xff]
      %v6259 = vld [vmem:[#allocation4 + $0x248] sm:$0xff]
      %v6260 = vld [vmem:[#allocation4 + $0x250] sm:$0xff]
      %v6261 = vld [vmem:[#allocation4 + $0x258] sm:$0xff]
      %v6262 = vld [vmem:[#allocation4 + $0x260] sm:$0xf]
      %v6263 = vld [vmem:[#allocation4 + $0x264] sm:$0xff]
      %v6264 = vld [vmem:[#allocation4 + $0x26c] sm:$0xff]
      %v6265 = vld [vmem:[#allocation4 + $0x274] sm:$0xff]
      %v6266 = vld [vmem:[#allocation4 + $0x27c] sm:$0xff]
      %v6267 = vld [vmem:[#allocation4 + $0x284] sm:$0xf]
      %v6268 = vld [vmem:[#allocation4 + $0x288] sm:$0xff]
      %v6269 = vld [vmem:[#allocation4 + $0x290] sm:$0xff]
      %v6270 = vld [vmem:[#allocation4 + $0x298] sm:$0xff]
      %v6271 = vld [vmem:[#allocation4 + $0x2a0] sm:$0xff]
      %v6272 = vld [vmem:[#allocation4 + $0x2a8] sm:$0xf]
      %v6273 = vld [vmem:[#allocation4 + $0x2ac] sm:$0xff]
      %v6274 = vld [vmem:[#allocation4 + $0x2b4] sm:$0xff]
      %v6275 = vld [vmem:[#allocation4 + $0x2bc] sm:$0xff]
      %v6276 = vld [vmem:[#allocation4 + $0x2c4] sm:$0xff]
      %v6277 = vld [vmem:[#allocation4 + $0x2cc] sm:$0xf]
      %v6278 = vld [vmem:[#allocation4 + $0x2d0] sm:$0xff]
      %v6279 = vld [vmem:[#allocation4 + $0x2d8] sm:$0xff]
      %v6280 = vld [vmem:[#allocation4 + $0x2e0] sm:$0xff]
      %v6281 = vld [vmem:[#allocation4 + $0x2e8] sm:$0xff]
      %v6282 = vld [vmem:[#allocation4 + $0x2f0] sm:$0xf]
      %v6283 = vld [vmem:[#allocation4 + $0x2f4] sm:$0xff]
      %v6284 = vld [vmem:[#allocation4 + $0x2fc] sm:$0xff]
      %v6285 = vld [vmem:[#allocation4 + $0x304] sm:$0xff]
      %v6286 = vld [vmem:[#allocation4 + $0x30c] sm:$0xff]
      %v6287 = vld [vmem:[#allocation4 + $0x314] sm:$0xf]
      %v6288 = vld [vmem:[#allocation4 + $0x318] sm:$0xff]
      %v6289 = vld [vmem:[#allocation4 + $0x320] sm:$0xff]
      %v6290 = vld [vmem:[#allocation4 + $0x328] sm:$0xff]
      %v6291 = vld [vmem:[#allocation4 + $0x330] sm:$0xff]
      %v6292 = vld [vmem:[#allocation4 + $0x338] sm:$0xf]
      %v6293 = vld [vmem:[#allocation4 + $0x33c] sm:$0xff]
      %v6294 = vld [vmem:[#allocation4 + $0x344] sm:$0xff]
      %v6295 = vld [vmem:[#allocation4 + $0x34c] sm:$0xff]
      %v6296 = vld [vmem:[#allocation4 + $0x354] sm:$0xff]
      %v6297 = vld [vmem:[#allocation4 + $0x35c] sm:$0xf]
      %v6298 = vld [vmem:[#allocation4 + $0x360] sm:$0xff]
      %v6299 = vld [vmem:[#allocation4 + $0x368] sm:$0xff]
      %v6300 = vld [vmem:[#allocation4 + $0x370] sm:$0xff]
      %v6301 = vld [vmem:[#allocation4 + $0x378] sm:$0xff]
      %v6302 = vld [vmem:[#allocation4 + $0x380] sm:$0xf]
      %v6303 = vld [vmem:[#allocation4 + $0x384] sm:$0xff]
      %v6304 = vld [vmem:[#allocation4 + $0x38c] sm:$0xff]
      %v6305 = vld [vmem:[#allocation4 + $0x394] sm:$0xff]
      %v6306 = vld [vmem:[#allocation4 + $0x39c] sm:$0xff]
      %v6307 = vld [vmem:[#allocation4 + $0x3a4] sm:$0xf]
      %v6308 = vld [vmem:[#allocation4 + $0x3a8] sm:$0xff]
      %v6309 = vld [vmem:[#allocation4 + $0x3b0] sm:$0xff]
      %v6310 = vld [vmem:[#allocation4 + $0x3b8] sm:$0xff]
      %v6311 = vld [vmem:[#allocation4 + $0x3c0] sm:$0xff]
      %v6312 = vld [vmem:[#allocation4 + $0x3c8] sm:$0xf]
      %v6313 = vld [vmem:[#allocation4 + $0x3cc] sm:$0xff]
      %v6314 = vld [vmem:[#allocation4 + $0x3d4] sm:$0xff]
      %v6315 = vld [vmem:[#allocation4 + $0x3dc] sm:$0xff]
      %v6316 = vld [vmem:[#allocation4 + $0x3e4] sm:$0xff]
      %v6317 = vld [vmem:[#allocation4 + $0x3ec] sm:$0xf]
      %v6318 = vld [vmem:[#allocation4 + $0x3f0] sm:$0xff]
      %v6319 = vld [vmem:[#allocation4 + $0x3f8] sm:$0xff]
      %v6320 = vld [vmem:[#allocation4 + $0x400] sm:$0xff]
      %v6321 = vld [vmem:[#allocation4 + $0x408] sm:$0xff]
      %v6322 = vld [vmem:[#allocation4 + $0x410] sm:$0xf]
      %v6323 = vld [vmem:[#allocation4 + $0x414] sm:$0xff]
      %v6324 = vld [vmem:[#allocation4 + $0x41c] sm:$0xff]
      %v6325 = vld [vmem:[#allocation4 + $0x424] sm:$0xff]
      %v6326 = vld [vmem:[#allocation4 + $0x42c] sm:$0xff]
      %v6327 = vld [vmem:[#allocation4 + $0x434] sm:$0xf]
      %v6328 = vld [vmem:[#allocation4 + $0x438] sm:$0xff]
      %v6329 = vld [vmem:[#allocation4 + $0x440] sm:$0xff]
      %v6330 = vld [vmem:[#allocation4 + $0x448] sm:$0xff]
      %v6331 = vld [vmem:[#allocation4 + $0x450] sm:$0xff]
      %v6332 = vld [vmem:[#allocation4 + $0x458] sm:$0xf]
      %v6333 = vld [vmem:[#allocation4 + $0x45c] sm:$0xff]
      %v6334 = vld [vmem:[#allocation4 + $0x464] sm:$0xff]
      %v6335 = vld [vmem:[#allocation4 + $0x46c] sm:$0xff]
      %v6336 = vld [vmem:[#allocation4 + $0x474] sm:$0xff]
      %v6337 = vld [vmem:[#allocation4 + $0x47c] sm:$0xf]
      %v6338 = vld [vmem:[%s2] sm:$0xf]
      %v6339 = vld [vmem:[%s2 + $0x4] sm:$0xf]
      %v6340 = vld [vmem:[%s2 + $0x8] sm:$0xf]
      %v6341 = vld [vmem:[%s2 + $0xc] sm:$0xf]
      %v6342 = vld [vmem:[%s2 + $0x10] sm:$0xf]
      %v6343 = vld [vmem:[%s2 + $0x14] sm:$0xf]
      %v6344 = vld [vmem:[%s2 + $0x18] sm:$0xf]
      %v6345 = vld [vmem:[%s2 + $0x1c] sm:$0xf]
      %v6346 = vld [vmem:[%s2 + $0x20] sm:$0xf]
      %v6347 = vld [vmem:[%s2 + $0x24] sm:$0xf]
      %v6348 = vld [vmem:[%s2 + $0x28] sm:$0xf]
      %v6349 = vld [vmem:[%s2 + $0x2c] sm:$0xf]
      %v6350 = vld [vmem:[%s2 + $0x30] sm:$0xf]
      %v6351 = vld [vmem:[%s2 + $0x34] sm:$0xf]
      %v6352 = vld [vmem:[%s2 + $0x38] sm:$0xf]
      %v6353 = vld [vmem:[%s2 + $0x3c] sm:$0xf]
      %v6354 = vld [vmem:[%s2 + $0x40] sm:$0xf]
      %v6355 = vld [vmem:[%s2 + $0x44] sm:$0xf]
      %v6356 = vld [vmem:[%s2 + $0x48] sm:$0xf]
      %v6357 = vld [vmem:[%s2 + $0x4c] sm:$0xf]
      %v6358 = vld [vmem:[%s2 + $0x50] sm:$0xf]
      %v6359 = vld [vmem:[%s2 + $0x54] sm:$0xf]
      %v6360 = vld [vmem:[%s2 + $0x58] sm:$0xf]
      %v6361 = vld [vmem:[%s2 + $0x5c] sm:$0xf]
      %v6362 = vld [vmem:[%s2 + $0x60] sm:$0xf]
      %v6363 = vld [vmem:[%s2 + $0x64] sm:$0xf]
      %v6364 = vld [vmem:[%s2 + $0x68] sm:$0xf]
      %v6365 = vld [vmem:[%s2 + $0x6c] sm:$0xf]
      %v6366 = vld [vmem:[%s2 + $0x70] sm:$0xf]
      %v6367 = vld [vmem:[%s2 + $0x74] sm:$0xf]
      %v6368 = vld [vmem:[%s2 + $0x78] sm:$0xf]
      %v6369 = vld [vmem:[%s2 + $0x7c] sm:$0xf]
      %v6370 = vld [vmem:[%s2 + $0x80] sm:$0xf]
      %v6371 = vld [vmem:[%s2 + $0x84] sm:$0xf]
      %v6372 = vld [vmem:[%s2 + $0x88] sm:$0xf]
      %v6373 = vld [vmem:[%s2 + $0x8c] sm:$0xf]
      %v6374 = vld [vmem:[%s2 + $0x90] sm:$0xf]
      %v6375 = vld [vmem:[%s2 + $0x94] sm:$0xf]
      %v6376 = vld [vmem:[%s2 + $0x98] sm:$0xf]
      %v6377 = vld [vmem:[%s2 + $0x9c] sm:$0xf]
      %v6378 = vld [vmem:[%s2 + $0xa0] sm:$0xf]
      %v6379 = vld [vmem:[%s2 + $0xa4] sm:$0xf]
      %v6380 = vld [vmem:[%s2 + $0xa8] sm:$0xf]
      %v6381 = vld [vmem:[%s2 + $0xac] sm:$0xf]
      %v6382 = vld [vmem:[%s2 + $0xb0] sm:$0xf]
      %v6383 = vld [vmem:[%s2 + $0xb4] sm:$0xf]
      %v6384 = vld [vmem:[%s2 + $0xb8] sm:$0xf]
      %v6385 = vld [vmem:[%s2 + $0xbc] sm:$0xf]
      %v6386 = vld [vmem:[%s2 + $0xc0] sm:$0xf]
      %v6387 = vld [vmem:[%s2 + $0xc4] sm:$0xf]
      %v6388 = vld [vmem:[%s2 + $0xc8] sm:$0xf]
      %v6389 = vld [vmem:[%s2 + $0xcc] sm:$0xf]
      %v6390 = vld [vmem:[%s2 + $0xd0] sm:$0xf]
      %v6391 = vld [vmem:[%s2 + $0xd4] sm:$0xf]
      %v6392 = vld [vmem:[%s2 + $0xd8] sm:$0xf]
      %v6393 = vld [vmem:[%s2 + $0xdc] sm:$0xf]
      %v6394 = vld [vmem:[%s2 + $0xe0] sm:$0xf]
      %v6395 = vld [vmem:[%s2 + $0xe4] sm:$0xf]
      %v6396 = vld [vmem:[%s2 + $0xe8] sm:$0xf]
      %v6397 = vld [vmem:[%s2 + $0xec] sm:$0xf]
      %v6398 = vld [vmem:[%s2 + $0xf0] sm:$0xf]
      %v6399 = vld [vmem:[%s2 + $0xf4] sm:$0xf]
      %v6400 = vld [vmem:[%s2 + $0xf8] sm:$0xf]
      %v6401 = vld [vmem:[%s2 + $0xfc] sm:$0xf]
      %v6402 = vld [vmem:[%s2 + $0x100] sm:$0xf]
      %v6403 = vld [vmem:[%s2 + $0x104] sm:$0xf]
      %v6404 = vld [vmem:[%s2 + $0x108] sm:$0xf]
      %v6405 = vld [vmem:[%s2 + $0x10c] sm:$0xf]
      %v6406 = vld [vmem:[%s2 + $0x110] sm:$0xf]
      %v6407 = vld [vmem:[%s2 + $0x114] sm:$0xf]
      %v6408 = vld [vmem:[%s2 + $0x118] sm:$0xf]
      %v6409 = vld [vmem:[%s2 + $0x11c] sm:$0xf]
      %v6410 = vld [vmem:[%s2 + $0x120] sm:$0xf]
      %v6411 = vld [vmem:[%s2 + $0x124] sm:$0xf]
      %v6412 = vld [vmem:[%s2 + $0x128] sm:$0xf]
      %v6413 = vld [vmem:[%s2 + $0x12c] sm:$0xf]
      %v6414 = vld [vmem:[%s2 + $0x130] sm:$0xf]
      %v6415 = vld [vmem:[%s2 + $0x134] sm:$0xf]
      %v6416 = vld [vmem:[%s2 + $0x138] sm:$0xf]
      %v6417 = vld [vmem:[%s2 + $0x13c] sm:$0xf]
      %v6418 = vld [vmem:[%s2 + $0x140] sm:$0xf]
      %v6419 = vld [vmem:[%s2 + $0x144] sm:$0xf]
      %v6420 = vld [vmem:[%s2 + $0x148] sm:$0xf]
      %v6421 = vld [vmem:[%s2 + $0x14c] sm:$0xf]
      %v6422 = vld [vmem:[%s2 + $0x150] sm:$0xf]
      %v6423 = vld [vmem:[%s2 + $0x154] sm:$0xf]
      %v6424 = vld [vmem:[%s2 + $0x158] sm:$0xf]
      %v6425 = vld [vmem:[%s2 + $0x15c] sm:$0xf]
      %v6426 = vld [vmem:[%s2 + $0x160] sm:$0xf]
      %v6427 = vld [vmem:[%s2 + $0x164] sm:$0xf]
      %v6428 = vld [vmem:[%s2 + $0x168] sm:$0xf]
      %v6429 = vld [vmem:[%s2 + $0x16c] sm:$0xf]
      %v6430 = vld [vmem:[%s2 + $0x170] sm:$0xf]
      %v6431 = vld [vmem:[%s2 + $0x174] sm:$0xf]
      %v6432 = vld [vmem:[%s2 + $0x178] sm:$0xf]
      %v6433 = vld [vmem:[%s2 + $0x17c] sm:$0xf]
      %v6434 = vld [vmem:[%s2 + $0x180] sm:$0xf]
      %v6435 = vld [vmem:[%s2 + $0x184] sm:$0xf]
      %v6436 = vld [vmem:[%s2 + $0x188] sm:$0xf]
      %v6437 = vld [vmem:[%s2 + $0x18c] sm:$0xf]
      %v6438 = vld [vmem:[%s2 + $0x190] sm:$0xf]
      %v6439 = vld [vmem:[%s2 + $0x194] sm:$0xf]
      %v6440 = vld [vmem:[%s2 + $0x198] sm:$0xf]
      %v6441 = vld [vmem:[%s2 + $0x19c] sm:$0xf]
      %v6442 = vld [vmem:[%s2 + $0x1a0] sm:$0xf]
      %v6443 = vld [vmem:[%s2 + $0x1a4] sm:$0xf]
      %v6444 = vld [vmem:[%s2 + $0x1a8] sm:$0xf]
      %v6445 = vld [vmem:[%s2 + $0x1ac] sm:$0xf]
      %v6446 = vld [vmem:[%s2 + $0x1b0] sm:$0xf]
      %v6447 = vld [vmem:[%s2 + $0x1b4] sm:$0xf]
      %v6448 = vld [vmem:[%s2 + $0x1b8] sm:$0xf]
      %v6449 = vld [vmem:[%s2 + $0x1bc] sm:$0xf]
      %v6450 = vld [vmem:[%s2 + $0x1c0] sm:$0xf]
      %v6451 = vld [vmem:[%s2 + $0x1c4] sm:$0xf]
      %v6452 = vld [vmem:[%s2 + $0x1c8] sm:$0xf]
      %v6453 = vld [vmem:[%s2 + $0x1cc] sm:$0xf]
      %v6454 = vld [vmem:[%s2 + $0x1d0] sm:$0xf]
      %v6455 = vld [vmem:[%s2 + $0x1d4] sm:$0xf]
      %v6456 = vld [vmem:[%s2 + $0x1d8] sm:$0xf]
      %v6457 = vld [vmem:[%s2 + $0x1dc] sm:$0xf]
      %v6458 = vld [vmem:[%s2 + $0x1e0] sm:$0xf]
      %v6459 = vld [vmem:[%s2 + $0x1e4] sm:$0xf]
      %v6460 = vld [vmem:[%s2 + $0x1e8] sm:$0xf]
      %v6461 = vld [vmem:[%s2 + $0x1ec] sm:$0xf]
      %v6462 = vld [vmem:[%s2 + $0x1f0] sm:$0xf]
      %v6463 = vld [vmem:[%s2 + $0x1f4] sm:$0xf]
      %v6464 = vld [vmem:[%s2 + $0x1f8] sm:$0xf]
      %v6465 = vld [vmem:[%s2 + $0x1fc] sm:$0xf]
      %v6466 = vld [vmem:[%s2 + $0x200] sm:$0xf]
      %v6467 = vld [vmem:[%s2 + $0x204] sm:$0xf]
      %v6468 = vld [vmem:[%s2 + $0x208] sm:$0xf]
      %v6469 = vld [vmem:[%s2 + $0x20c] sm:$0xf]
      %v6470 = vld [vmem:[%s2 + $0x210] sm:$0xf]
      %v6471 = vld [vmem:[%s2 + $0x214] sm:$0xf]
      %v6472 = vld [vmem:[%s2 + $0x218] sm:$0xf]
      %v6473 = vld [vmem:[%s2 + $0x21c] sm:$0xf]
      %v6474 = vld [vmem:[%s2 + $0x220] sm:$0xf]
      %v6475 = vld [vmem:[%s2 + $0x224] sm:$0xf]
      %v6476 = vld [vmem:[%s2 + $0x228] sm:$0xf]
      %v6477 = vld [vmem:[%s2 + $0x22c] sm:$0xf]
      %v6478 = vld [vmem:[%s2 + $0x230] sm:$0xf]
      %v6479 = vld [vmem:[%s2 + $0x234] sm:$0xf]
      %v6480 = vld [vmem:[%s2 + $0x238] sm:$0xf]
      %v6481 = vld [vmem:[%s2 + $0x23c] sm:$0xf]
      %v6482 = vld [vmem:[%s290 + $0x1] sm:$0xff]
      %v6483 = vld [vmem:[%s290 + $0x9] sm:$0xff]
      %v6484 = vld [vmem:[%s290 + $0x19] sm:$0xff]
      %v6485 = vld [vmem:[%s290 + $0x21] sm:$0xff]
      %v6486 = vld [vmem:[%s290 + $0x31] sm:$0xff]
      %v6487 = vld [vmem:[%s290 + $0x39] sm:$0xff]
      %v6488 = vld [vmem:[%s290 + $0x49] sm:$0xff]
      %v6489 = vld [vmem:[%s290 + $0x51] sm:$0xff]
      %v6490 = vld [vmem:[%s290 + $0x61] sm:$0xff]
      %v6491 = vld [vmem:[%s290 + $0x69] sm:$0xff]
      %v6492 = vld [vmem:[%s290 + $0x79] sm:$0xff]
      %v6493 = vld [vmem:[%s290 + $0x81] sm:$0xff]
      %v6494 = vld [vmem:[%s290 + $0x91] sm:$0xff]
      %v6495 = vld [vmem:[%s290 + $0x99] sm:$0xff]
      %v6496 = vld [vmem:[%s290 + $0xa9] sm:$0xff]
      %v6497 = vld [vmem:[%s290 + $0xb1] sm:$0xff]
      %v6498 = vld [vmem:[%s290 + $0xc1] sm:$0xff]
      %v6499 = vld [vmem:[%s290 + $0xc9] sm:$0xff]
      %v6500 = vld [vmem:[%s290 + $0xd9] sm:$0xff]
      %v6501 = vld [vmem:[%s290 + $0xe1] sm:$0xff]
      %v6502 = vld [vmem:[%s290 + $0xf1] sm:$0xff]
      %v6503 = vld [vmem:[%s290 + $0xf9] sm:$0xff]
      %v6504 = vld [vmem:[%s290 + $0x109] sm:$0xff]
      %v6505 = vld [vmem:[%s290 + $0x111] sm:$0xff]
      %v6506 = vld [vmem:[%s290 + $0x121] sm:$0xff]
      %v6507 = vld [vmem:[%s290 + $0x129] sm:$0xff]
      %v6508 = vld [vmem:[%s290 + $0x139] sm:$0xff]
      %v6509 = vld [vmem:[%s290 + $0x141] sm:$0xff]
      %v6510 = vld [vmem:[%s290 + $0x151] sm:$0xff]
      %v6511 = vld [vmem:[%s290 + $0x159] sm:$0xff]
      %v6512 = vld [vmem:[%s290 + $0x169] sm:$0xff]
      %v6513 = vld [vmem:[%s290 + $0x171] sm:$0xff]
      %v6674 = vunpack.c.l.b16 %v6178
      %v6675 = vunpack.c.h.b16 %v6178
      %v6676 = vunpack.c.l.b16 %v6179
      %v6677 = vunpack.c.h.b16 %v6179
      %v6678 = vunpack.c.l.b16 %v6180
      %v6679 = vunpack.c.h.b16 %v6180
      %v6680 = vunpack.c.l.b16 %v6181
      %v6681 = vunpack.c.h.b16 %v6181
      %v6682 = vunpack.c.l.b16 %v6182
      %v6683 = vunpack.c.l.b16 %v6183
      %v6684 = vunpack.c.h.b16 %v6183
      %v6685 = vunpack.c.l.b16 %v6184
      %v6686 = vunpack.c.h.b16 %v6184
      %v6687 = vunpack.c.l.b16 %v6185
      %v6688 = vunpack.c.h.b16 %v6185
      %v6689 = vunpack.c.l.b16 %v6186
      %v6690 = vunpack.c.h.b16 %v6186
      %v6691 = vunpack.c.l.b16 %v6187
      %v6692 = vunpack.c.l.b16 %v6188
      %v6693 = vunpack.c.h.b16 %v6188
      %v6694 = vunpack.c.l.b16 %v6189
      %v6695 = vunpack.c.h.b16 %v6189
      %v6696 = vunpack.c.l.b16 %v6190
      %v6697 = vunpack.c.h.b16 %v6190
      %v6698 = vunpack.c.l.b16 %v6191
      %v6699 = vunpack.c.h.b16 %v6191
      %v6700 = vunpack.c.l.b16 %v6192
      %v6701 = vunpack.c.l.b16 %v6193
      %v6702 = vunpack.c.h.b16 %v6193
      %v6703 = vunpack.c.l.b16 %v6194
      %v6704 = vunpack.c.h.b16 %v6194
      %v6705 = vunpack.c.l.b16 %v6195
      %v6706 = vunpack.c.h.b16 %v6195
      %v6707 = vunpack.c.l.b16 %v6196
      %v6708 = vunpack.c.h.b16 %v6196
      %v6709 = vunpack.c.l.b16 %v6197
      %v6710 = vunpack.c.l.b16 %v6198
      %v6711 = vunpack.c.h.b16 %v6198
      %v6712 = vunpack.c.l.b16 %v6199
      %v6713 = vunpack.c.h.b16 %v6199
      %v6714 = vunpack.c.l.b16 %v6200
      %v6715 = vunpack.c.h.b16 %v6200
      %v6716 = vunpack.c.l.b16 %v6201
      %v6717 = vunpack.c.h.b16 %v6201
      %v6718 = vunpack.c.l.b16 %v6202
      %v6719 = vunpack.c.l.b16 %v6203
      %v6720 = vunpack.c.h.b16 %v6203
      %v6721 = vunpack.c.l.b16 %v6204
      %v6722 = vunpack.c.h.b16 %v6204
      %v6723 = vunpack.c.l.b16 %v6205
      %v6724 = vunpack.c.h.b16 %v6205
      %v6725 = vunpack.c.l.b16 %v6206
      %v6726 = vunpack.c.h.b16 %v6206
      %v6727 = vunpack.c.l.b16 %v6207
      %v6728 = vunpack.c.l.b16 %v6208
      %v6729 = vunpack.c.h.b16 %v6208
      %v6730 = vunpack.c.l.b16 %v6209
      %v6731 = vunpack.c.h.b16 %v6209
      %v6732 = vunpack.c.l.b16 %v6210
      %v6733 = vunpack.c.h.b16 %v6210
      %v6734 = vunpack.c.l.b16 %v6211
      %v6735 = vunpack.c.h.b16 %v6211
      %v6736 = vunpack.c.l.b16 %v6212
      %v6737 = vunpack.c.l.b16 %v6213
      %v6738 = vunpack.c.h.b16 %v6213
      %v6739 = vunpack.c.l.b16 %v6214
      %v6740 = vunpack.c.h.b16 %v6214
      %v6741 = vunpack.c.l.b16 %v6215
      %v6742 = vunpack.c.h.b16 %v6215
      %v6743 = vunpack.c.l.b16 %v6216
      %v6744 = vunpack.c.h.b16 %v6216
      %v6745 = vunpack.c.l.b16 %v6217
      %v6746 = vunpack.c.l.b16 %v6218
      %v6747 = vunpack.c.h.b16 %v6218
      %v6748 = vunpack.c.l.b16 %v6219
      %v6749 = vunpack.c.h.b16 %v6219
      %v6750 = vunpack.c.l.b16 %v6220
      %v6751 = vunpack.c.h.b16 %v6220
      %v6752 = vunpack.c.l.b16 %v6221
      %v6753 = vunpack.c.h.b16 %v6221
      %v6754 = vunpack.c.l.b16 %v6222
      %v6755 = vunpack.c.l.b16 %v6223
      %v6756 = vunpack.c.h.b16 %v6223
      %v6757 = vunpack.c.l.b16 %v6224
      %v6758 = vunpack.c.h.b16 %v6224
      %v6759 = vunpack.c.l.b16 %v6225
      %v6760 = vunpack.c.h.b16 %v6225
      %v6761 = vunpack.c.l.b16 %v6226
      %v6762 = vunpack.c.h.b16 %v6226
      %v6763 = vunpack.c.l.b16 %v6227
      %v6764 = vunpack.c.l.b16 %v6228
      %v6765 = vunpack.c.h.b16 %v6228
      %v6766 = vunpack.c.l.b16 %v6229
      %v6767 = vunpack.c.h.b16 %v6229
      %v6768 = vunpack.c.l.b16 %v6230
      %v6769 = vunpack.c.h.b16 %v6230
      %v6770 = vunpack.c.l.b16 %v6231
      %v6771 = vunpack.c.h.b16 %v6231
      %v6772 = vunpack.c.l.b16 %v6232
      %v6773 = vunpack.c.l.b16 %v6233
      %v6774 = vunpack.c.h.b16 %v6233
      %v6775 = vunpack.c.l.b16 %v6234
      %v6776 = vunpack.c.h.b16 %v6234
      %v6777 = vunpack.c.l.b16 %v6235
      %v6778 = vunpack.c.h.b16 %v6235
      %v6779 = vunpack.c.l.b16 %v6236
      %v6780 = vunpack.c.h.b16 %v6236
      %v6781 = vunpack.c.l.b16 %v6237
      %v6782 = vunpack.c.l.b16 %v6238
      %v6783 = vunpack.c.h.b16 %v6238
      %v6784 = vunpack.c.l.b16 %v6239
      %v6785 = vunpack.c.h.b16 %v6239
      %v6786 = vunpack.c.l.b16 %v6240
      %v6787 = vunpack.c.h.b16 %v6240
      %v6788 = vunpack.c.l.b16 %v6241
      %v6789 = vunpack.c.h.b16 %v6241
      %v6790 = vunpack.c.l.b16 %v6242
      %v6791 = vunpack.c.l.b16 %v6243
      %v6792 = vunpack.c.h.b16 %v6243
      %v6793 = vunpack.c.l.b16 %v6244
      %v6794 = vunpack.c.h.b16 %v6244
      %v6795 = vunpack.c.l.b16 %v6245
      %v6796 = vunpack.c.h.b16 %v6245
      %v6797 = vunpack.c.l.b16 %v6246
      %v6798 = vunpack.c.h.b16 %v6246
      %v6799 = vunpack.c.l.b16 %v6247
      %v6800 = vunpack.c.l.b16 %v6248
      %v6801 = vunpack.c.h.b16 %v6248
      %v6802 = vunpack.c.l.b16 %v6249
      %v6803 = vunpack.c.h.b16 %v6249
      %v6804 = vunpack.c.l.b16 %v6250
      %v6805 = vunpack.c.h.b16 %v6250
      %v6806 = vunpack.c.l.b16 %v6251
      %v6807 = vunpack.c.h.b16 %v6251
      %v6808 = vunpack.c.l.b16 %v6252
      %v6809 = vunpack.c.l.b16 %v6253
      %v6810 = vunpack.c.h.b16 %v6253
      %v6811 = vunpack.c.l.b16 %v6254
      %v6812 = vunpack.c.h.b16 %v6254
      %v6813 = vunpack.c.l.b16 %v6255
      %v6814 = vunpack.c.h.b16 %v6255
      %v6815 = vunpack.c.l.b16 %v6256
      %v6816 = vunpack.c.h.b16 %v6256
      %v6817 = vunpack.c.l.b16 %v6257
      %v6818 = vunpack.c.l.b16 %v6258
      %v6819 = vunpack.c.h.b16 %v6258
      %v6820 = vunpack.c.l.b16 %v6259
      %v6821 = vunpack.c.h.b16 %v6259
      %v6822 = vunpack.c.l.b16 %v6260
      %v6823 = vunpack.c.h.b16 %v6260
      %v6824 = vunpack.c.l.b16 %v6261
      %v6825 = vunpack.c.h.b16 %v6261
      %v6826 = vunpack.c.l.b16 %v6262
      %v6827 = vunpack.c.l.b16 %v6263
      %v6828 = vunpack.c.h.b16 %v6263
      %v6829 = vunpack.c.l.b16 %v6264
      %v6830 = vunpack.c.h.b16 %v6264
      %v6831 = vunpack.c.l.b16 %v6265
      %v6832 = vunpack.c.h.b16 %v6265
      %v6833 = vunpack.c.l.b16 %v6266
      %v6834 = vunpack.c.h.b16 %v6266
      %v6835 = vunpack.c.l.b16 %v6267
      %v6836 = vunpack.c.l.b16 %v6268
      %v6837 = vunpack.c.h.b16 %v6268
      %v6838 = vunpack.c.l.b16 %v6269
      %v6839 = vunpack.c.h.b16 %v6269
      %v6840 = vunpack.c.l.b16 %v6270
      %v6841 = vunpack.c.h.b16 %v6270
      %v6842 = vunpack.c.l.b16 %v6271
      %v6843 = vunpack.c.h.b16 %v6271
      %v6844 = vunpack.c.l.b16 %v6272
      %v6845 = vunpack.c.l.b16 %v6273
      %v6846 = vunpack.c.h.b16 %v6273
      %v6847 = vunpack.c.l.b16 %v6274
      %v6848 = vunpack.c.h.b16 %v6274
      %v6849 = vunpack.c.l.b16 %v6275
      %v6850 = vunpack.c.h.b16 %v6275
      %v6851 = vunpack.c.l.b16 %v6276
      %v6852 = vunpack.c.h.b16 %v6276
      %v6853 = vunpack.c.l.b16 %v6277
      %v6854 = vunpack.c.l.b16 %v6278
      %v6855 = vunpack.c.h.b16 %v6278
      %v6856 = vunpack.c.l.b16 %v6279
      %v6857 = vunpack.c.h.b16 %v6279
      %v6858 = vunpack.c.l.b16 %v6280
      %v6859 = vunpack.c.h.b16 %v6280
      %v6860 = vunpack.c.l.b16 %v6281
      %v6861 = vunpack.c.h.b16 %v6281
      %v6862 = vunpack.c.l.b16 %v6282
      %v6863 = vunpack.c.l.b16 %v6283
      %v6864 = vunpack.c.h.b16 %v6283
      %v6865 = vunpack.c.l.b16 %v6284
      %v6866 = vunpack.c.h.b16 %v6284
      %v6867 = vunpack.c.l.b16 %v6285
      %v6868 = vunpack.c.h.b16 %v6285
      %v6869 = vunpack.c.l.b16 %v6286
      %v6870 = vunpack.c.h.b16 %v6286
      %v6871 = vunpack.c.l.b16 %v6287
      %v6872 = vunpack.c.l.b16 %v6288
      %v6873 = vunpack.c.h.b16 %v6288
      %v6874 = vunpack.c.l.b16 %v6289
      %v6875 = vunpack.c.h.b16 %v6289
      %v6876 = vunpack.c.l.b16 %v6290
      %v6877 = vunpack.c.h.b16 %v6290
      %v6878 = vunpack.c.l.b16 %v6291
      %v6879 = vunpack.c.h.b16 %v6291
      %v6880 = vunpack.c.l.b16 %v6292
      %v6881 = vunpack.c.l.b16 %v6293
      %v6882 = vunpack.c.h.b16 %v6293
      %v6883 = vunpack.c.l.b16 %v6294
      %v6884 = vunpack.c.h.b16 %v6294
      %v6885 = vunpack.c.l.b16 %v6295
      %v6886 = vunpack.c.h.b16 %v6295
      %v6887 = vunpack.c.l.b16 %v6296
      %v6888 = vunpack.c.h.b16 %v6296
      %v6889 = vunpack.c.l.b16 %v6297
      %v6890 = vunpack.c.l.b16 %v6298
      %v6891 = vunpack.c.h.b16 %v6298
      %v6892 = vunpack.c.l.b16 %v6299
      %v6893 = vunpack.c.h.b16 %v6299
      %v6894 = vunpack.c.l.b16 %v6300
      %v6895 = vunpack.c.h.b16 %v6300
      %v6896 = vunpack.c.l.b16 %v6301
      %v6897 = vunpack.c.h.b16 %v6301
      %v6898 = vunpack.c.l.b16 %v6302
      %v6899 = vunpack.c.l.b16 %v6303
      %v6900 = vunpack.c.h.b16 %v6303
      %v6901 = vunpack.c.l.b16 %v6304
      %v6902 = vunpack.c.h.b16 %v6304
      %v6903 = vunpack.c.l.b16 %v6305
      %v6904 = vunpack.c.h.b16 %v6305
      %v6905 = vunpack.c.l.b16 %v6306
      %v6906 = vunpack.c.h.b16 %v6306
      %v6907 = vunpack.c.l.b16 %v6307
      %v6908 = vunpack.c.l.b16 %v6308
      %v6909 = vunpack.c.h.b16 %v6308
      %v6910 = vunpack.c.l.b16 %v6309
      %v6911 = vunpack.c.h.b16 %v6309
      %v6912 = vunpack.c.l.b16 %v6310
      %v6913 = vunpack.c.h.b16 %v6310
      %v6914 = vunpack.c.l.b16 %v6311
      %v6915 = vunpack.c.h.b16 %v6311
      %v6916 = vunpack.c.l.b16 %v6312
      %v6917 = vunpack.c.l.b16 %v6313
      %v6918 = vunpack.c.h.b16 %v6313
      %v6919 = vunpack.c.l.b16 %v6314
      %v6920 = vunpack.c.h.b16 %v6314
      %v6921 = vunpack.c.l.b16 %v6315
      %v6922 = vunpack.c.h.b16 %v6315
      %v6923 = vunpack.c.l.b16 %v6316
      %v6924 = vunpack.c.h.b16 %v6316
      %v6925 = vunpack.c.l.b16 %v6317
      %v6926 = vunpack.c.l.b16 %v6318
      %v6927 = vunpack.c.h.b16 %v6318
      %v6928 = vunpack.c.l.b16 %v6319
      %v6929 = vunpack.c.h.b16 %v6319
      %v6930 = vunpack.c.l.b16 %v6320
      %v6931 = vunpack.c.h.b16 %v6320
      %v6932 = vunpack.c.l.b16 %v6321
      %v6933 = vunpack.c.h.b16 %v6321
      %v6934 = vunpack.c.l.b16 %v6322
      %v6935 = vunpack.c.l.b16 %v6323
      %v6936 = vunpack.c.h.b16 %v6323
      %v6937 = vunpack.c.l.b16 %v6324
      %v6938 = vunpack.c.h.b16 %v6324
      %v6939 = vunpack.c.l.b16 %v6325
      %v6940 = vunpack.c.h.b16 %v6325
      %v6941 = vunpack.c.l.b16 %v6326
      %v6942 = vunpack.c.h.b16 %v6326
      %v6943 = vunpack.c.l.b16 %v6327
      %v6944 = vunpack.c.l.b16 %v6328
      %v6945 = vunpack.c.h.b16 %v6328
      %v6946 = vunpack.c.l.b16 %v6329
      %v6947 = vunpack.c.h.b16 %v6329
      %v6948 = vunpack.c.l.b16 %v6330
      %v6949 = vunpack.c.h.b16 %v6330
      %v6950 = vunpack.c.l.b16 %v6331
      %v6951 = vunpack.c.h.b16 %v6331
      %v6952 = vunpack.c.l.b16 %v6332
      %v6953 = vunpack.c.l.b16 %v6333
      %v6954 = vunpack.c.h.b16 %v6333
      %v6955 = vunpack.c.l.b16 %v6334
      %v6956 = vunpack.c.h.b16 %v6334
      %v6957 = vunpack.c.l.b16 %v6335
      %v6958 = vunpack.c.h.b16 %v6335
      %v6959 = vunpack.c.l.b16 %v6336
      %v6960 = vunpack.c.h.b16 %v6336
      %v6961 = vunpack.c.l.b16 %v6337
      %v6962 = vpack.c.b16 %v6683, %v6674
      %v6963 = vpack.c.b16 %v6684, %v6675
      %v6964 = vpack.c.b16 %v6685, %v6676
      %v6965 = vpack.c.b16 %v6686, %v6677
      %v6966 = vpack.c.b16 %v6687, %v6678
      %v6967 = vpack.c.b16 %v6688, %v6679
      %v6968 = vpack.c.b16 %v6689, %v6680
      %v6969 = vpack.c.b16 %v6690, %v6681
      %v6970 = vpack.c.b16 %v6691, %v6682
      %v6971 = vpack.c.b16 %v6701, %v6692
      %v6972 = vpack.c.b16 %v6702, %v6693
      %v6973 = vpack.c.b16 %v6703, %v6694
      %v6974 = vpack.c.b16 %v6704, %v6695
      %v6975 = vpack.c.b16 %v6705, %v6696
      %v6976 = vpack.c.b16 %v6706, %v6697
      %v6977 = vpack.c.b16 %v6707, %v6698
      %v6978 = vpack.c.b16 %v6708, %v6699
      %v6979 = vpack.c.b16 %v6709, %v6700
      %v6980 = vpack.c.b16 %v6719, %v6710
      %v6981 = vpack.c.b16 %v6720, %v6711
      %v6982 = vpack.c.b16 %v6721, %v6712
      %v6983 = vpack.c.b16 %v6722, %v6713
      %v6984 = vpack.c.b16 %v6723, %v6714
      %v6985 = vpack.c.b16 %v6724, %v6715
      %v6986 = vpack.c.b16 %v6725, %v6716
      %v6987 = vpack.c.b16 %v6726, %v6717
      %v6988 = vpack.c.b16 %v6727, %v6718
      %v6989 = vpack.c.b16 %v6737, %v6728
      %v6990 = vpack.c.b16 %v6738, %v6729
      %v6991 = vpack.c.b16 %v6739, %v6730
      %v6992 = vpack.c.b16 %v6740, %v6731
      %v6993 = vpack.c.b16 %v6741, %v6732
      %v6994 = vpack.c.b16 %v6742, %v6733
      %v6995 = vpack.c.b16 %v6743, %v6734
      %v6996 = vpack.c.b16 %v6744, %v6735
      %v6997 = vpack.c.b16 %v6745, %v6736
      %v6998 = vpack.c.b16 %v6755, %v6746
      %v6999 = vpack.c.b16 %v6756, %v6747
      %v7000 = vpack.c.b16 %v6757, %v6748
      %v7001 = vpack.c.b16 %v6758, %v6749
      %v7002 = vpack.c.b16 %v6759, %v6750
      %v7003 = vpack.c.b16 %v6760, %v6751
      %v7004 = vpack.c.b16 %v6761, %v6752
      %v7005 = vpack.c.b16 %v6762, %v6753
      %v7006 = vpack.c.b16 %v6763, %v6754
      %v7007 = vpack.c.b16 %v6773, %v6764
      %v7008 = vpack.c.b16 %v6774, %v6765
      %v7009 = vpack.c.b16 %v6775, %v6766
      %v7010 = vpack.c.b16 %v6776, %v6767
      %v7011 = vpack.c.b16 %v6777, %v6768
      %v7012 = vpack.c.b16 %v6778, %v6769
      %v7013 = vpack.c.b16 %v6779, %v6770
      %v7014 = vpack.c.b16 %v6780, %v6771
      %v7015 = vpack.c.b16 %v6781, %v6772
      %v7016 = vpack.c.b16 %v6791, %v6782
      %v7017 = vpack.c.b16 %v6792, %v6783
      %v7018 = vpack.c.b16 %v6793, %v6784
      %v7019 = vpack.c.b16 %v6794, %v6785
      %v7020 = vpack.c.b16 %v6795, %v6786
      %v7021 = vpack.c.b16 %v6796, %v6787
      %v7022 = vpack.c.b16 %v6797, %v6788
      %v7023 = vpack.c.b16 %v6798, %v6789
      %v7024 = vpack.c.b16 %v6799, %v6790
      %v7025 = vpack.c.b16 %v6809, %v6800
      %v7026 = vpack.c.b16 %v6810, %v6801
      %v7027 = vpack.c.b16 %v6811, %v6802
      %v7028 = vpack.c.b16 %v6812, %v6803
      %v7029 = vpack.c.b16 %v6813, %v6804
      %v7030 = vpack.c.b16 %v6814, %v6805
      %v7031 = vpack.c.b16 %v6815, %v6806
      %v7032 = vpack.c.b16 %v6816, %v6807
      %v7033 = vpack.c.b16 %v6817, %v6808
      %v7034 = vpack.c.b16 %v6827, %v6818
      %v7035 = vpack.c.b16 %v6828, %v6819
      %v7036 = vpack.c.b16 %v6829, %v6820
      %v7037 = vpack.c.b16 %v6830, %v6821
      %v7038 = vpack.c.b16 %v6831, %v6822
      %v7039 = vpack.c.b16 %v6832, %v6823
      %v7040 = vpack.c.b16 %v6833, %v6824
      %v7041 = vpack.c.b16 %v6834, %v6825
      %v7042 = vpack.c.b16 %v6835, %v6826
      %v7043 = vpack.c.b16 %v6845, %v6836
      %v7044 = vpack.c.b16 %v6846, %v6837
      %v7045 = vpack.c.b16 %v6847, %v6838
      %v7046 = vpack.c.b16 %v6848, %v6839
      %v7047 = vpack.c.b16 %v6849, %v6840
      %v7048 = vpack.c.b16 %v6850, %v6841
      %v7049 = vpack.c.b16 %v6851, %v6842
      %v7050 = vpack.c.b16 %v6852, %v6843
      %v7051 = vpack.c.b16 %v6853, %v6844
      %v7052 = vpack.c.b16 %v6863, %v6854
      %v7053 = vpack.c.b16 %v6864, %v6855
      %v7054 = vpack.c.b16 %v6865, %v6856
      %v7055 = vpack.c.b16 %v6866, %v6857
      %v7056 = vpack.c.b16 %v6867, %v6858
      %v7057 = vpack.c.b16 %v6868, %v6859
      %v7058 = vpack.c.b16 %v6869, %v6860
      %v7059 = vpack.c.b16 %v6870, %v6861
      %v7060 = vpack.c.b16 %v6871, %v6862
      %v7061 = vpack.c.b16 %v6881, %v6872
      %v7062 = vpack.c.b16 %v6882, %v6873
      %v7063 = vpack.c.b16 %v6883, %v6874
      %v7064 = vpack.c.b16 %v6884, %v6875
      %v7065 = vpack.c.b16 %v6885, %v6876
      %v7066 = vpack.c.b16 %v6886, %v6877
      %v7067 = vpack.c.b16 %v6887, %v6878
      %v7068 = vpack.c.b16 %v6888, %v6879
      %v7069 = vpack.c.b16 %v6889, %v6880
      %v7070 = vpack.c.b16 %v6899, %v6890
      %v7071 = vpack.c.b16 %v6900, %v6891
      %v7072 = vpack.c.b16 %v6901, %v6892
      %v7073 = vpack.c.b16 %v6902, %v6893
      %v7074 = vpack.c.b16 %v6903, %v6894
      %v7075 = vpack.c.b16 %v6904, %v6895
      %v7076 = vpack.c.b16 %v6905, %v6896
      %v7077 = vpack.c.b16 %v6906, %v6897
      %v7078 = vpack.c.b16 %v6907, %v6898
      %v7079 = vpack.c.b16 %v6917, %v6908
      %v7080 = vpack.c.b16 %v6918, %v6909
      %v7081 = vpack.c.b16 %v6919, %v6910
      %v7082 = vpack.c.b16 %v6920, %v6911
      %v7083 = vpack.c.b16 %v6921, %v6912
      %v7084 = vpack.c.b16 %v6922, %v6913
      %v7085 = vpack.c.b16 %v6923, %v6914
      %v7086 = vpack.c.b16 %v6924, %v6915
      %v7087 = vpack.c.b16 %v6925, %v6916
      %v7088 = vpack.c.b16 %v6935, %v6926
      %v7089 = vpack.c.b16 %v6936, %v6927
      %v7090 = vpack.c.b16 %v6937, %v6928
      %v7091 = vpack.c.b16 %v6938, %v6929
      %v7092 = vpack.c.b16 %v6939, %v6930
      %v7093 = vpack.c.b16 %v6940, %v6931
      %v7094 = vpack.c.b16 %v6941, %v6932
      %v7095 = vpack.c.b16 %v6942, %v6933
      %v7096 = vpack.c.b16 %v6943, %v6934
      %v7097 = vpack.c.b16 %v6953, %v6944
      %v7098 = vpack.c.b16 %v6954, %v6945
      %v7099 = vpack.c.b16 %v6955, %v6946
      %v7100 = vpack.c.b16 %v6956, %v6947
      %v7101 = vpack.c.b16 %v6957, %v6948
      %v7102 = vpack.c.b16 %v6958, %v6949
      %v7103 = vpack.c.b16 %v6959, %v6950
      %v7104 = vpack.c.b16 %v6960, %v6951
      %v7105 = vpack.c.b16 %v6961, %v6952
      %v7394 = vunpack.c.l.b16 %v6338
      %v7395 = vunpack.c.l.b16 %v6339
      %v7396 = vunpack.c.l.b16 %v6340
      %v7397 = vunpack.c.l.b16 %v6341
      %v7398 = vunpack.c.l.b16 %v6342
      %v7399 = vunpack.c.l.b16 %v6343
      %v7400 = vunpack.c.l.b16 %v6344
      %v7401 = vunpack.c.l.b16 %v6345
      %v7402 = vunpack.c.l.b16 %v6346
      %v7403 = vunpack.c.l.b16 %v6347
      %v7404 = vunpack.c.l.b16 %v6348
      %v7405 = vunpack.c.l.b16 %v6349
      %v7406 = vunpack.c.l.b16 %v6350
      %v7407 = vunpack.c.l.b16 %v6351
      %v7408 = vunpack.c.l.b16 %v6352
      %v7409 = vunpack.c.l.b16 %v6353
      %v7410 = vunpack.c.l.b16 %v6354
      %v7411 = vunpack.c.l.b16 %v6355
      %v7412 = vunpack.c.l.b16 %v6356
      %v7413 = vunpack.c.l.b16 %v6357
      %v7414 = vunpack.c.l.b16 %v6358
      %v7415 = vunpack.c.l.b16 %v6359
      %v7416 = vunpack.c.l.b16 %v6360
      %v7417 = vunpack.c.l.b16 %v6361
      %v7418 = vunpack.c.l.b16 %v6362
      %v7419 = vunpack.c.l.b16 %v6363
      %v7420 = vunpack.c.l.b16 %v6364
      %v7421 = vunpack.c.l.b16 %v6365
      %v7422 = vunpack.c.l.b16 %v6366
      %v7423 = vunpack.c.l.b16 %v6367
      %v7424 = vunpack.c.l.b16 %v6368
      %v7425 = vunpack.c.l.b16 %v6369
      %v7426 = vunpack.c.l.b16 %v6370
      %v7427 = vunpack.c.l.b16 %v6371
      %v7428 = vunpack.c.l.b16 %v6372
      %v7429 = vunpack.c.l.b16 %v6373
      %v7430 = vunpack.c.l.b16 %v6374
      %v7431 = vunpack.c.l.b16 %v6375
      %v7432 = vunpack.c.l.b16 %v6376
      %v7433 = vunpack.c.l.b16 %v6377
      %v7434 = vunpack.c.l.b16 %v6378
      %v7435 = vunpack.c.l.b16 %v6379
      %v7436 = vunpack.c.l.b16 %v6380
      %v7437 = vunpack.c.l.b16 %v6381
      %v7438 = vunpack.c.l.b16 %v6382
      %v7439 = vunpack.c.l.b16 %v6383
      %v7440 = vunpack.c.l.b16 %v6384
      %v7441 = vunpack.c.l.b16 %v6385
      %v7442 = vunpack.c.l.b16 %v6386
      %v7443 = vunpack.c.l.b16 %v6387
      %v7444 = vunpack.c.l.b16 %v6388
      %v7445 = vunpack.c.l.b16 %v6389
      %v7446 = vunpack.c.l.b16 %v6390
      %v7447 = vunpack.c.l.b16 %v6391
      %v7448 = vunpack.c.l.b16 %v6392
      %v7449 = vunpack.c.l.b16 %v6393
      %v7450 = vunpack.c.l.b16 %v6394
      %v7451 = vunpack.c.l.b16 %v6395
      %v7452 = vunpack.c.l.b16 %v6396
      %v7453 = vunpack.c.l.b16 %v6397
      %v7454 = vunpack.c.l.b16 %v6398
      %v7455 = vunpack.c.l.b16 %v6399
      %v7456 = vunpack.c.l.b16 %v6400
      %v7457 = vunpack.c.l.b16 %v6401
      %v7458 = vunpack.c.l.b16 %v6402
      %v7459 = vunpack.c.l.b16 %v6403
      %v7460 = vunpack.c.l.b16 %v6404
      %v7461 = vunpack.c.l.b16 %v6405
      %v7462 = vunpack.c.l.b16 %v6406
      %v7463 = vunpack.c.l.b16 %v6407
      %v7464 = vunpack.c.l.b16 %v6408
      %v7465 = vunpack.c.l.b16 %v6409
      %v7466 = vunpack.c.l.b16 %v6410
      %v7467 = vunpack.c.l.b16 %v6411
      %v7468 = vunpack.c.l.b16 %v6412
      %v7469 = vunpack.c.l.b16 %v6413
      %v7470 = vunpack.c.l.b16 %v6414
      %v7471 = vunpack.c.l.b16 %v6415
      %v7472 = vunpack.c.l.b16 %v6416
      %v7473 = vunpack.c.l.b16 %v6417
      %v7474 = vunpack.c.l.b16 %v6418
      %v7475 = vunpack.c.l.b16 %v6419
      %v7476 = vunpack.c.l.b16 %v6420
      %v7477 = vunpack.c.l.b16 %v6421
      %v7478 = vunpack.c.l.b16 %v6422
      %v7479 = vunpack.c.l.b16 %v6423
      %v7480 = vunpack.c.l.b16 %v6424
      %v7481 = vunpack.c.l.b16 %v6425
      %v7482 = vunpack.c.l.b16 %v6426
      %v7483 = vunpack.c.l.b16 %v6427
      %v7484 = vunpack.c.l.b16 %v6428
      %v7485 = vunpack.c.l.b16 %v6429
      %v7486 = vunpack.c.l.b16 %v6430
      %v7487 = vunpack.c.l.b16 %v6431
      %v7488 = vunpack.c.l.b16 %v6432
      %v7489 = vunpack.c.l.b16 %v6433
      %v7490 = vunpack.c.l.b16 %v6434
      %v7491 = vunpack.c.l.b16 %v6435
      %v7492 = vunpack.c.l.b16 %v6436
      %v7493 = vunpack.c.l.b16 %v6437
      %v7494 = vunpack.c.l.b16 %v6438
      %v7495 = vunpack.c.l.b16 %v6439
      %v7496 = vunpack.c.l.b16 %v6440
      %v7497 = vunpack.c.l.b16 %v6441
      %v7498 = vunpack.c.l.b16 %v6442
      %v7499 = vunpack.c.l.b16 %v6443
      %v7500 = vunpack.c.l.b16 %v6444
      %v7501 = vunpack.c.l.b16 %v6445
      %v7502 = vunpack.c.l.b16 %v6446
      %v7503 = vunpack.c.l.b16 %v6447
      %v7504 = vunpack.c.l.b16 %v6448
      %v7505 = vunpack.c.l.b16 %v6449
      %v7506 = vunpack.c.l.b16 %v6450
      %v7507 = vunpack.c.l.b16 %v6451
      %v7508 = vunpack.c.l.b16 %v6452
      %v7509 = vunpack.c.l.b16 %v6453
      %v7510 = vunpack.c.l.b16 %v6454
      %v7511 = vunpack.c.l.b16 %v6455
      %v7512 = vunpack.c.l.b16 %v6456
      %v7513 = vunpack.c.l.b16 %v6457
      %v7514 = vunpack.c.l.b16 %v6458
      %v7515 = vunpack.c.l.b16 %v6459
      %v7516 = vunpack.c.l.b16 %v6460
      %v7517 = vunpack.c.l.b16 %v6461
      %v7518 = vunpack.c.l.b16 %v6462
      %v7519 = vunpack.c.l.b16 %v6463
      %v7520 = vunpack.c.l.b16 %v6464
      %v7521 = vunpack.c.l.b16 %v6465
      %v7522 = vunpack.c.l.b16 %v6466
      %v7523 = vunpack.c.l.b16 %v6467
      %v7524 = vunpack.c.l.b16 %v6468
      %v7525 = vunpack.c.l.b16 %v6469
      %v7526 = vunpack.c.l.b16 %v6470
      %v7527 = vunpack.c.l.b16 %v6471
      %v7528 = vunpack.c.l.b16 %v6472
      %v7529 = vunpack.c.l.b16 %v6473
      %v7530 = vunpack.c.l.b16 %v6474
      %v7531 = vunpack.c.l.b16 %v6475
      %v7532 = vunpack.c.l.b16 %v6476
      %v7533 = vunpack.c.l.b16 %v6477
      %v7534 = vunpack.c.l.b16 %v6478
      %v7535 = vunpack.c.l.b16 %v6479
      %v7536 = vunpack.c.l.b16 %v6480
      %v7537 = vunpack.c.l.b16 %v6481
      %v7538 = vpack.c.b16 %v7395, %v7394
      %v7539 = vpack.c.b16 %v7397, %v7396
      %v7540 = vpack.c.b16 %v7399, %v7398
      %v7541 = vpack.c.b16 %v7401, %v7400
      %v7542 = vpack.c.b16 %v7403, %v7402
      %v7543 = vpack.c.b16 %v7405, %v7404
      %v7544 = vpack.c.b16 %v7407, %v7406
      %v7545 = vpack.c.b16 %v7409, %v7408
      %v7546 = vpack.c.b16 %v7411, %v7410
      %v7547 = vpack.c.b16 %v7413, %v7412
      %v7548 = vpack.c.b16 %v7415, %v7414
      %v7549 = vpack.c.b16 %v7417, %v7416
      %v7550 = vpack.c.b16 %v7419, %v7418
      %v7551 = vpack.c.b16 %v7421, %v7420
      %v7552 = vpack.c.b16 %v7423, %v7422
      %v7553 = vpack.c.b16 %v7425, %v7424
      %v7554 = vpack.c.b16 %v7427, %v7426
      %v7555 = vpack.c.b16 %v7429, %v7428
      %v7556 = vpack.c.b16 %v7431, %v7430
      %v7557 = vpack.c.b16 %v7433, %v7432
      %v7558 = vpack.c.b16 %v7435, %v7434
      %v7559 = vpack.c.b16 %v7437, %v7436
      %v7560 = vpack.c.b16 %v7439, %v7438
      %v7561 = vpack.c.b16 %v7441, %v7440
      %v7562 = vpack.c.b16 %v7443, %v7442
      %v7563 = vpack.c.b16 %v7445, %v7444
      %v7564 = vpack.c.b16 %v7447, %v7446
      %v7565 = vpack.c.b16 %v7449, %v7448
      %v7566 = vpack.c.b16 %v7451, %v7450
      %v7567 = vpack.c.b16 %v7453, %v7452
      %v7568 = vpack.c.b16 %v7455, %v7454
      %v7569 = vpack.c.b16 %v7457, %v7456
      %v7570 = vpack.c.b16 %v7459, %v7458
      %v7571 = vpack.c.b16 %v7461, %v7460
      %v7572 = vpack.c.b16 %v7463, %v7462
      %v7573 = vpack.c.b16 %v7465, %v7464
      %v7574 = vpack.c.b16 %v7467, %v7466
      %v7575 = vpack.c.b16 %v7469, %v7468
      %v7576 = vpack.c.b16 %v7471, %v7470
      %v7577 = vpack.c.b16 %v7473, %v7472
      %v7578 = vpack.c.b16 %v7475, %v7474
      %v7579 = vpack.c.b16 %v7477, %v7476
      %v7580 = vpack.c.b16 %v7479, %v7478
      %v7581 = vpack.c.b16 %v7481, %v7480
      %v7582 = vpack.c.b16 %v7483, %v7482
      %v7583 = vpack.c.b16 %v7485, %v7484
      %v7584 = vpack.c.b16 %v7487, %v7486
      %v7585 = vpack.c.b16 %v7489, %v7488
      %v7586 = vpack.c.b16 %v7491, %v7490
      %v7587 = vpack.c.b16 %v7493, %v7492
      %v7588 = vpack.c.b16 %v7495, %v7494
      %v7589 = vpack.c.b16 %v7497, %v7496
      %v7590 = vpack.c.b16 %v7499, %v7498
      %v7591 = vpack.c.b16 %v7501, %v7500
      %v7592 = vpack.c.b16 %v7503, %v7502
      %v7593 = vpack.c.b16 %v7505, %v7504
      %v7594 = vpack.c.b16 %v7507, %v7506
      %v7595 = vpack.c.b16 %v7509, %v7508
      %v7596 = vpack.c.b16 %v7511, %v7510
      %v7597 = vpack.c.b16 %v7513, %v7512
      %v7598 = vpack.c.b16 %v7515, %v7514
      %v7599 = vpack.c.b16 %v7517, %v7516
      %v7600 = vpack.c.b16 %v7519, %v7518
      %v7601 = vpack.c.b16 %v7521, %v7520
      %v7602 = vpack.c.b16 %v7523, %v7522
      %v7603 = vpack.c.b16 %v7525, %v7524
      %v7604 = vpack.c.b16 %v7527, %v7526
      %v7605 = vpack.c.b16 %v7529, %v7528
      %v7606 = vpack.c.b16 %v7531, %v7530
      %v7607 = vpack.c.b16 %v7533, %v7532
      %v7608 = vpack.c.b16 %v7535, %v7534
      %v7609 = vpack.c.b16 %v7537, %v7536
      %7682 = vmatprep.subr.bf16.mxu0 0
      %7683 = vmatpush1.bf16.msra.mxu0 %v7545
      %7684 = vmatprep.subr.bf16.mxu0 0
      %7685 = vmatpush1.bf16.msra.mxu0 %v7544
      %7686 = vmatprep.subr.bf16.mxu0 0
      %7687 = vmatpush1.bf16.msra.mxu0 %v7543
      %7688 = vmatprep.subr.bf16.mxu0 0
      %7689 = vmatpush1.bf16.msra.mxu0 %v7542
      %7690 = vmatprep.subr.bf16.mxu0 0
      %7691 = vmatpush1.bf16.msra.mxu0 %v7541
      %7692 = vmatprep.subr.bf16.mxu0 0
      %7693 = vmatpush1.bf16.msra.mxu0 %v7540
      %7694 = vmatprep.subr.bf16.mxu0 0
      %7695 = vmatpush1.bf16.msra.mxu0 %v7539
      %7696 = vmatprep.subr.bf16.mxu0 0
      %7697 = vmatpush1.bf16.msra.mxu0 %v7538
      %7698 = vmatprep.subr.bf16.mxu0 0
      %7699 = vmatpush2.bf16.msra.mxu0 %v7553
      %7700 = vmatprep.subr.bf16.mxu0 0
      %7701 = vmatpush2.bf16.msra.mxu0 %v7552
      %7702 = vmatprep.subr.bf16.mxu0 0
      %7703 = vmatpush2.bf16.msra.mxu0 %v7551
      %7704 = vmatprep.subr.bf16.mxu0 0
      %7705 = vmatpush2.bf16.msra.mxu0 %v7550
      %7706 = vmatprep.subr.bf16.mxu0 0
      %7707 = vmatpush2.bf16.msra.mxu0 %v7549
      %7708 = vmatprep.subr.bf16.mxu0 0
      %7709 = vmatpush2.bf16.msra.mxu0 %v7548
      %7710 = vmatprep.subr.bf16.mxu0 0
      %7711 = vmatpush2.bf16.msra.mxu0 %v7547
      %7712 = vmatprep.subr.bf16.mxu0 0
      %7713 = vmatpush2.bf16.msra.mxu0 %v7546
      %7714 = vmatprep.mubr.bf16.mxu0 %v6963
      %7715 = vmatmul.mubr.bf16.gmra.mxu0 %v6962
      %v7716 = vpop.f32.mrf.mxu0
      %v7717 = vadd.f32 %v6482, %v7716
      %v7718 = vpop.f32.mrf.mxu0
      %v7719 = vpop.f32.mrf.mxu0
      %v7720 = vadd.f32 %v6483, %v7719
      %v7721 = vpop.f32.mrf.mxu0
      %7722 = vmatprep.mubr.bf16.mxu0 %v6972
      %7723 = vmatmul.mubr.bf16.gmra.mxu0 %v6971
      %v7724 = vpop.f32.mrf.mxu0
      %v7725 = vadd.f32 %v6484, %v7724
      %v7726 = vpop.f32.mrf.mxu0
      %v7727 = vpop.f32.mrf.mxu0
      %v7728 = vadd.f32 %v6485, %v7727
      %v7729 = vpop.f32.mrf.mxu0
      %7730 = vmatprep.mubr.bf16.mxu0 %v6981
      %7731 = vmatmul.mubr.bf16.gmra.mxu0 %v6980
      %v7732 = vpop.f32.mrf.mxu0
      %v7733 = vadd.f32 %v6486, %v7732
      %v7734 = vpop.f32.mrf.mxu0
      %v7735 = vpop.f32.mrf.mxu0
      %v7736 = vadd.f32 %v6487, %v7735
      %v7737 = vpop.f32.mrf.mxu0
      %7738 = vmatprep.mubr.bf16.mxu0 %v6990
      %7739 = vmatmul.mubr.bf16.gmra.mxu0 %v6989
      %v7740 = vpop.f32.mrf.mxu0
      %v7741 = vadd.f32 %v6488, %v7740
      %v7742 = vpop.f32.mrf.mxu0
      %v7743 = vpop.f32.mrf.mxu0
      %v7744 = vadd.f32 %v6489, %v7743
      %v7745 = vpop.f32.mrf.mxu0
      %7746 = vmatprep.mubr.bf16.mxu0 %v6999
      %7747 = vmatmul.mubr.bf16.gmra.mxu0 %v6998
      %v7748 = vpop.f32.mrf.mxu0
      %v7749 = vadd.f32 %v6490, %v7748
      %v7750 = vpop.f32.mrf.mxu0
      %v7751 = vpop.f32.mrf.mxu0
      %v7752 = vadd.f32 %v6491, %v7751
      %v7753 = vpop.f32.mrf.mxu0
      %7754 = vmatprep.mubr.bf16.mxu0 %v7008
      %7755 = vmatmul.mubr.bf16.gmra.mxu0 %v7007
      %v7756 = vpop.f32.mrf.mxu0
      %v7757 = vadd.f32 %v6492, %v7756
      %v7758 = vpop.f32.mrf.mxu0
      %v7759 = vpop.f32.mrf.mxu0
      %v7760 = vadd.f32 %v6493, %v7759
      %v7761 = vpop.f32.mrf.mxu0
      %7762 = vmatprep.mubr.bf16.mxu0 %v7017
      %7763 = vmatmul.mubr.bf16.gmra.mxu0 %v7016
      %v7764 = vpop.f32.mrf.mxu0
      %v7765 = vadd.f32 %v6494, %v7764
      %v7766 = vpop.f32.mrf.mxu0
      %v7767 = vpop.f32.mrf.mxu0
      %v7768 = vadd.f32 %v6495, %v7767
      %v7769 = vpop.f32.mrf.mxu0
      %7770 = vmatprep.mubr.bf16.mxu0 %v7026
      %7771 = vmatmul.mubr.bf16.gmra.mxu0 %v7025
      %v7772 = vpop.f32.mrf.mxu0
      %v7773 = vadd.f32 %v6496, %v7772
      %v7774 = vpop.f32.mrf.mxu0
      %v7775 = vpop.f32.mrf.mxu0
      %v7776 = vadd.f32 %v6497, %v7775
      %v7777 = vpop.f32.mrf.mxu0
      %7778 = vmatprep.mubr.bf16.mxu0 %v7035
      %7779 = vmatmul.mubr.bf16.gmra.mxu0 %v7034
      %v7780 = vpop.f32.mrf.mxu0
      %v7781 = vadd.f32 %v6498, %v7780
      %v7782 = vpop.f32.mrf.mxu0
      %v7783 = vpop.f32.mrf.mxu0
      %v7784 = vadd.f32 %v6499, %v7783
      %v7785 = vpop.f32.mrf.mxu0
      %7786 = vmatprep.mubr.bf16.mxu0 %v7044
      %7787 = vmatmul.mubr.bf16.gmra.mxu0 %v7043
      %v7788 = vpop.f32.mrf.mxu0
      %v7789 = vadd.f32 %v6500, %v7788
      %v7790 = vpop.f32.mrf.mxu0
      %v7791 = vpop.f32.mrf.mxu0
      %v7792 = vadd.f32 %v6501, %v7791
      %v7793 = vpop.f32.mrf.mxu0
      %7794 = vmatprep.mubr.bf16.mxu0 %v7053
      %7795 = vmatmul.mubr.bf16.gmra.mxu0 %v7052
      %v7796 = vpop.f32.mrf.mxu0
      %v7797 = vadd.f32 %v6502, %v7796
      %v7798 = vpop.f32.mrf.mxu0
      %v7799 = vpop.f32.mrf.mxu0
      %v7800 = vadd.f32 %v6503, %v7799
      %v7801 = vpop.f32.mrf.mxu0
      %7802 = vmatprep.mubr.bf16.mxu0 %v7062
      %7803 = vmatmul.mubr.bf16.gmra.mxu0 %v7061
      %v7804 = vpop.f32.mrf.mxu0
      %v7805 = vadd.f32 %v6504, %v7804
      %v7806 = vpop.f32.mrf.mxu0
      %v7807 = vpop.f32.mrf.mxu0
      %v7808 = vadd.f32 %v6505, %v7807
      %v7809 = vpop.f32.mrf.mxu0
      %7810 = vmatprep.mubr.bf16.mxu0 %v7071
      %7811 = vmatmul.mubr.bf16.gmra.mxu0 %v7070
      %v7812 = vpop.f32.mrf.mxu0
      %v7813 = vadd.f32 %v6506, %v7812
      %v7814 = vpop.f32.mrf.mxu0
      %v7815 = vpop.f32.mrf.mxu0
      %v7816 = vadd.f32 %v6507, %v7815
      %v7817 = vpop.f32.mrf.mxu0
      %7818 = vmatprep.mubr.bf16.mxu0 %v7080
      %7819 = vmatmul.mubr.bf16.gmra.mxu0 %v7079
      %v7820 = vpop.f32.mrf.mxu0
      %v7821 = vadd.f32 %v6508, %v7820
      %v7822 = vpop.f32.mrf.mxu0
      %v7823 = vpop.f32.mrf.mxu0
      %v7824 = vadd.f32 %v6509, %v7823
      %v7825 = vpop.f32.mrf.mxu0
      %7826 = vmatprep.mubr.bf16.mxu0 %v7089
      %7827 = vmatmul.mubr.bf16.gmra.mxu0 %v7088
      %v7828 = vpop.f32.mrf.mxu0
      %v7829 = vadd.f32 %v6510, %v7828
      %v7830 = vpop.f32.mrf.mxu0
      %v7831 = vpop.f32.mrf.mxu0
      %v7832 = vadd.f32 %v6511, %v7831
      %v7833 = vpop.f32.mrf.mxu0
      %7834 = vmatprep.mubr.bf16.mxu0 %v7098
      %7835 = vmatmul.mubr.bf16.gmra.mxu0 %v7097
      %v7836 = vpop.f32.mrf.mxu0
      %v7837 = vadd.f32 %v6512, %v7836
      %v7838 = vpop.f32.mrf.mxu0
      %v7839 = vpop.f32.mrf.mxu0
      %v7840 = vadd.f32 %v6513, %v7839
      %v7841 = vpop.f32.mrf.mxu0
      %7842 = vdwg.mxu0
      %7843 = vmatprep.subr.bf16.mxu0 0
      %7844 = vmatpush1.bf16.msra.mxu0 %v7561
      %7845 = vmatprep.subr.bf16.mxu0 0
      %7846 = vmatpush1.bf16.msra.mxu0 %v7560
      %7847 = vmatprep.subr.bf16.mxu0 0
      %7848 = vmatpush1.bf16.msra.mxu0 %v7559
      %7849 = vmatprep.subr.bf16.mxu0 0
      %7850 = vmatpush1.bf16.msra.mxu0 %v7558
      %7851 = vmatprep.subr.bf16.mxu0 0
      %7852 = vmatpush1.bf16.msra.mxu0 %v7557
      %7853 = vmatprep.subr.bf16.mxu0 0
      %7854 = vmatpush1.bf16.msra.mxu0 %v7556
      %7855 = vmatprep.subr.bf16.mxu0 0
      %7856 = vmatpush1.bf16.msra.mxu0 %v7555
      %7857 = vmatprep.subr.bf16.mxu0 0
      %7858 = vmatpush1.bf16.msra.mxu0 %v7554
      %7859 = vmatprep.subr.bf16.mxu0 0
      %7860 = vmatpush2.bf16.msra.mxu0 %v7569
      %7861 = vmatprep.subr.bf16.mxu0 0
      %7862 = vmatpush2.bf16.msra.mxu0 %v7568
      %7863 = vmatprep.subr.bf16.mxu0 0
      %7864 = vmatpush2.bf16.msra.mxu0 %v7567
      %7865 = vmatprep.subr.bf16.mxu0 0
      %7866 = vmatpush2.bf16.msra.mxu0 %v7566
      %7867 = vmatprep.subr.bf16.mxu0 0
      %7868 = vmatpush2.bf16.msra.mxu0 %v7565
      %7869 = vmatprep.subr.bf16.mxu0 0
      %7870 = vmatpush2.bf16.msra.mxu0 %v7564
      %7871 = vmatprep.subr.bf16.mxu0 0
      %7872 = vmatpush2.bf16.msra.mxu0 %v7563
      %7873 = vmatprep.subr.bf16.mxu0 0
      %7874 = vmatpush2.bf16.msra.mxu0 %v7562
      %7875 = vmatprep.mubr.bf16.mxu0 %v6965
      %7876 = vmatmul.mubr.bf16.gmra.mxu0 %v6964
      %v7877 = vpop.f32.mrf.mxu0
      %v7878 = vadd.f32 %v7717, %v7877
      %v7879 = vpop.f32.mrf.mxu0
      %v7880 = vpop.f32.mrf.mxu0
      %v7881 = vadd.f32 %v7720, %v7880
      %v7882 = vpop.f32.mrf.mxu0
      %7883 = vmatprep.mubr.bf16.mxu0 %v6974
      %7884 = vmatmul.mubr.bf16.gmra.mxu0 %v6973
      %v7885 = vpop.f32.mrf.mxu0
      %v7886 = vadd.f32 %v7725, %v7885
      %v7887 = vpop.f32.mrf.mxu0
      %v7888 = vpop.f32.mrf.mxu0
      %v7889 = vadd.f32 %v7728, %v7888
      %v7890 = vpop.f32.mrf.mxu0
      %7891 = vmatprep.mubr.bf16.mxu0 %v6983
      %7892 = vmatmul.mubr.bf16.gmra.mxu0 %v6982
      %v7893 = vpop.f32.mrf.mxu0
      %v7894 = vadd.f32 %v7733, %v7893
      %v7895 = vpop.f32.mrf.mxu0
      %v7896 = vpop.f32.mrf.mxu0
      %v7897 = vadd.f32 %v7736, %v7896
      %v7898 = vpop.f32.mrf.mxu0
      %7899 = vmatprep.mubr.bf16.mxu0 %v6992
      %7900 = vmatmul.mubr.bf16.gmra.mxu0 %v6991
      %v7901 = vpop.f32.mrf.mxu0
      %v7902 = vadd.f32 %v7741, %v7901
      %v7903 = vpop.f32.mrf.mxu0
      %v7904 = vpop.f32.mrf.mxu0
      %v7905 = vadd.f32 %v7744, %v7904
      %v7906 = vpop.f32.mrf.mxu0
      %7907 = vmatprep.mubr.bf16.mxu0 %v7001
      %7908 = vmatmul.mubr.bf16.gmra.mxu0 %v7000
      %v7909 = vpop.f32.mrf.mxu0
      %v7910 = vadd.f32 %v7749, %v7909
      %v7911 = vpop.f32.mrf.mxu0
      %v7912 = vpop.f32.mrf.mxu0
      %v7913 = vadd.f32 %v7752, %v7912
      %v7914 = vpop.f32.mrf.mxu0
      %7915 = vmatprep.mubr.bf16.mxu0 %v7010
      %7916 = vmatmul.mubr.bf16.gmra.mxu0 %v7009
      %v7917 = vpop.f32.mrf.mxu0
      %v7918 = vadd.f32 %v7757, %v7917
      %v7919 = vpop.f32.mrf.mxu0
      %v7920 = vpop.f32.mrf.mxu0
      %v7921 = vadd.f32 %v7760, %v7920
      %v7922 = vpop.f32.mrf.mxu0
      %7923 = vmatprep.mubr.bf16.mxu0 %v7019
      %7924 = vmatmul.mubr.bf16.gmra.mxu0 %v7018
      %v7925 = vpop.f32.mrf.mxu0
      %v7926 = vadd.f32 %v7765, %v7925
      %v7927 = vpop.f32.mrf.mxu0
      %v7928 = vpop.f32.mrf.mxu0
      %v7929 = vadd.f32 %v7768, %v7928
      %v7930 = vpop.f32.mrf.mxu0
      %7931 = vmatprep.mubr.bf16.mxu0 %v7028
      %7932 = vmatmul.mubr.bf16.gmra.mxu0 %v7027
      %v7933 = vpop.f32.mrf.mxu0
      %v7934 = vadd.f32 %v7773, %v7933
      %v7935 = vpop.f32.mrf.mxu0
      %v7936 = vpop.f32.mrf.mxu0
      %v7937 = vadd.f32 %v7776, %v7936
      %v7938 = vpop.f32.mrf.mxu0
      %7939 = vmatprep.mubr.bf16.mxu0 %v7037
      %7940 = vmatmul.mubr.bf16.gmra.mxu0 %v7036
      %v7941 = vpop.f32.mrf.mxu0
      %v7942 = vadd.f32 %v7781, %v7941
      %v7943 = vpop.f32.mrf.mxu0
      %v7944 = vpop.f32.mrf.mxu0
      %v7945 = vadd.f32 %v7784, %v7944
      %v7946 = vpop.f32.mrf.mxu0
      %7947 = vmatprep.mubr.bf16.mxu0 %v7046
      %7948 = vmatmul.mubr.bf16.gmra.mxu0 %v7045
      %v7949 = vpop.f32.mrf.mxu0
      %v7950 = vadd.f32 %v7789, %v7949
      %v7951 = vpop.f32.mrf.mxu0
      %v7952 = vpop.f32.mrf.mxu0
      %v7953 = vadd.f32 %v7792, %v7952
      %v7954 = vpop.f32.mrf.mxu0
      %7955 = vmatprep.mubr.bf16.mxu0 %v7055
      %7956 = vmatmul.mubr.bf16.gmra.mxu0 %v7054
      %v7957 = vpop.f32.mrf.mxu0
      %v7958 = vadd.f32 %v7797, %v7957
      %v7959 = vpop.f32.mrf.mxu0
      %v7960 = vpop.f32.mrf.mxu0
      %v7961 = vadd.f32 %v7800, %v7960
      %v7962 = vpop.f32.mrf.mxu0
      %7963 = vmatprep.mubr.bf16.mxu0 %v7064
      %7964 = vmatmul.mubr.bf16.gmra.mxu0 %v7063
      %v7965 = vpop.f32.mrf.mxu0
      %v7966 = vadd.f32 %v7805, %v7965
      %v7967 = vpop.f32.mrf.mxu0
      %v7968 = vpop.f32.mrf.mxu0
      %v7969 = vadd.f32 %v7808, %v7968
      %v7970 = vpop.f32.mrf.mxu0
      %7971 = vmatprep.mubr.bf16.mxu0 %v7073
      %7972 = vmatmul.mubr.bf16.gmra.mxu0 %v7072
      %v7973 = vpop.f32.mrf.mxu0
      %v7974 = vadd.f32 %v7813, %v7973
      %v7975 = vpop.f32.mrf.mxu0
      %v7976 = vpop.f32.mrf.mxu0
      %v7977 = vadd.f32 %v7816, %v7976
      %v7978 = vpop.f32.mrf.mxu0
      %7979 = vmatprep.mubr.bf16.mxu0 %v7082
      %7980 = vmatmul.mubr.bf16.gmra.mxu0 %v7081
      %v7981 = vpop.f32.mrf.mxu0
      %v7982 = vadd.f32 %v7821, %v7981
      %v7983 = vpop.f32.mrf.mxu0
      %v7984 = vpop.f32.mrf.mxu0
      %v7985 = vadd.f32 %v7824, %v7984
      %v7986 = vpop.f32.mrf.mxu0
      %7987 = vmatprep.mubr.bf16.mxu0 %v7091
      %7988 = vmatmul.mubr.bf16.gmra.mxu0 %v7090
      %v7989 = vpop.f32.mrf.mxu0
      %v7990 = vadd.f32 %v7829, %v7989
      %v7991 = vpop.f32.mrf.mxu0
      %v7992 = vpop.f32.mrf.mxu0
      %v7993 = vadd.f32 %v7832, %v7992
      %v7994 = vpop.f32.mrf.mxu0
      %7995 = vmatprep.mubr.bf16.mxu0 %v7100
      %7996 = vmatmul.mubr.bf16.gmra.mxu0 %v7099
      %v7997 = vpop.f32.mrf.mxu0
      %v7998 = vadd.f32 %v7837, %v7997
      %v7999 = vpop.f32.mrf.mxu0
      %v8000 = vpop.f32.mrf.mxu0
      %v8001 = vadd.f32 %v7840, %v8000
      %v8002 = vpop.f32.mrf.mxu0
      %8003 = vdwg.mxu0
      %8004 = vmatprep.subr.bf16.mxu0 0
      %8005 = vmatpush1.bf16.msra.mxu0 %v7577
      %8006 = vmatprep.subr.bf16.mxu0 0
      %8007 = vmatpush1.bf16.msra.mxu0 %v7576
      %8008 = vmatprep.subr.bf16.mxu0 0
      %8009 = vmatpush1.bf16.msra.mxu0 %v7575
      %8010 = vmatprep.subr.bf16.mxu0 0
      %8011 = vmatpush1.bf16.msra.mxu0 %v7574
      %8012 = vmatprep.subr.bf16.mxu0 0
      %8013 = vmatpush1.bf16.msra.mxu0 %v7573
      %8014 = vmatprep.subr.bf16.mxu0 0
      %8015 = vmatpush1.bf16.msra.mxu0 %v7572
      %8016 = vmatprep.subr.bf16.mxu0 0
      %8017 = vmatpush1.bf16.msra.mxu0 %v7571
      %8018 = vmatprep.subr.bf16.mxu0 0
      %8019 = vmatpush1.bf16.msra.mxu0 %v7570
      %8020 = vmatprep.subr.bf16.mxu0 0
      %8021 = vmatpush2.bf16.msra.mxu0 %v7585
      %8022 = vmatprep.subr.bf16.mxu0 0
      %8023 = vmatpush2.bf16.msra.mxu0 %v7584
      %8024 = vmatprep.subr.bf16.mxu0 0
      %8025 = vmatpush2.bf16.msra.mxu0 %v7583
      %8026 = vmatprep.subr.bf16.mxu0 0
      %8027 = vmatpush2.bf16.msra.mxu0 %v7582
      %8028 = vmatprep.subr.bf16.mxu0 0
      %8029 = vmatpush2.bf16.msra.mxu0 %v7581
      %8030 = vmatprep.subr.bf16.mxu0 0
      %8031 = vmatpush2.bf16.msra.mxu0 %v7580
      %8032 = vmatprep.subr.bf16.mxu0 0
      %8033 = vmatpush2.bf16.msra.mxu0 %v7579
      %8034 = vmatprep.subr.bf16.mxu0 0
      %8035 = vmatpush2.bf16.msra.mxu0 %v7578
      %8036 = vmatprep.mubr.bf16.mxu0 %v6967
      %8037 = vmatmul.mubr.bf16.gmra.mxu0 %v6966
      %v8038 = vpop.f32.mrf.mxu0
      %v8039 = vadd.f32 %v7878, %v8038
      %v8040 = vpop.f32.mrf.mxu0
      %v8041 = vpop.f32.mrf.mxu0
      %v8042 = vadd.f32 %v7881, %v8041
      %v8043 = vpop.f32.mrf.mxu0
      %8044 = vmatprep.mubr.bf16.mxu0 %v6976
      %8045 = vmatmul.mubr.bf16.gmra.mxu0 %v6975
      %v8046 = vpop.f32.mrf.mxu0
      %v8047 = vadd.f32 %v7886, %v8046
      %v8048 = vpop.f32.mrf.mxu0
      %v8049 = vpop.f32.mrf.mxu0
      %v8050 = vadd.f32 %v7889, %v8049
      %v8051 = vpop.f32.mrf.mxu0
      %8052 = vmatprep.mubr.bf16.mxu0 %v6985
      %8053 = vmatmul.mubr.bf16.gmra.mxu0 %v6984
      %v8054 = vpop.f32.mrf.mxu0
      %v8055 = vadd.f32 %v7894, %v8054
      %v8056 = vpop.f32.mrf.mxu0
      %v8057 = vpop.f32.mrf.mxu0
      %v8058 = vadd.f32 %v7897, %v8057
      %v8059 = vpop.f32.mrf.mxu0
      %8060 = vmatprep.mubr.bf16.mxu0 %v6994
      %8061 = vmatmul.mubr.bf16.gmra.mxu0 %v6993
      %v8062 = vpop.f32.mrf.mxu0
      %v8063 = vadd.f32 %v7902, %v8062
      %v8064 = vpop.f32.mrf.mxu0
      %v8065 = vpop.f32.mrf.mxu0
      %v8066 = vadd.f32 %v7905, %v8065
      %v8067 = vpop.f32.mrf.mxu0
      %8068 = vmatprep.mubr.bf16.mxu0 %v7003
      %8069 = vmatmul.mubr.bf16.gmra.mxu0 %v7002
      %v8070 = vpop.f32.mrf.mxu0
      %v8071 = vadd.f32 %v7910, %v8070
      %v8072 = vpop.f32.mrf.mxu0
      %v8073 = vpop.f32.mrf.mxu0
      %v8074 = vadd.f32 %v7913, %v8073
      %v8075 = vpop.f32.mrf.mxu0
      %8076 = vmatprep.mubr.bf16.mxu0 %v7012
      %8077 = vmatmul.mubr.bf16.gmra.mxu0 %v7011
      %v8078 = vpop.f32.mrf.mxu0
      %v8079 = vadd.f32 %v7918, %v8078
      %v8080 = vpop.f32.mrf.mxu0
      %v8081 = vpop.f32.mrf.mxu0
      %v8082 = vadd.f32 %v7921, %v8081
      %v8083 = vpop.f32.mrf.mxu0
      %8084 = vmatprep.mubr.bf16.mxu0 %v7021
      %8085 = vmatmul.mubr.bf16.gmra.mxu0 %v7020
      %v8086 = vpop.f32.mrf.mxu0
      %v8087 = vadd.f32 %v7926, %v8086
      %v8088 = vpop.f32.mrf.mxu0
      %v8089 = vpop.f32.mrf.mxu0
      %v8090 = vadd.f32 %v7929, %v8089
      %v8091 = vpop.f32.mrf.mxu0
      %8092 = vmatprep.mubr.bf16.mxu0 %v7030
      %8093 = vmatmul.mubr.bf16.gmra.mxu0 %v7029
      %v8094 = vpop.f32.mrf.mxu0
      %v8095 = vadd.f32 %v7934, %v8094
      %v8096 = vpop.f32.mrf.mxu0
      %v8097 = vpop.f32.mrf.mxu0
      %v8098 = vadd.f32 %v7937, %v8097
      %v8099 = vpop.f32.mrf.mxu0
      %8100 = vmatprep.mubr.bf16.mxu0 %v7039
      %8101 = vmatmul.mubr.bf16.gmra.mxu0 %v7038
      %v8102 = vpop.f32.mrf.mxu0
      %v8103 = vadd.f32 %v7942, %v8102
      %v8104 = vpop.f32.mrf.mxu0
      %v8105 = vpop.f32.mrf.mxu0
      %v8106 = vadd.f32 %v7945, %v8105
      %v8107 = vpop.f32.mrf.mxu0
      %8108 = vmatprep.mubr.bf16.mxu0 %v7048
      %8109 = vmatmul.mubr.bf16.gmra.mxu0 %v7047
      %v8110 = vpop.f32.mrf.mxu0
      %v8111 = vadd.f32 %v7950, %v8110
      %v8112 = vpop.f32.mrf.mxu0
      %v8113 = vpop.f32.mrf.mxu0
      %v8114 = vadd.f32 %v7953, %v8113
      %v8115 = vpop.f32.mrf.mxu0
      %8116 = vmatprep.mubr.bf16.mxu0 %v7057
      %8117 = vmatmul.mubr.bf16.gmra.mxu0 %v7056
      %v8118 = vpop.f32.mrf.mxu0
      %v8119 = vadd.f32 %v7958, %v8118
      %v8120 = vpop.f32.mrf.mxu0
      %v8121 = vpop.f32.mrf.mxu0
      %v8122 = vadd.f32 %v7961, %v8121
      %v8123 = vpop.f32.mrf.mxu0
      %8124 = vmatprep.mubr.bf16.mxu0 %v7066
      %8125 = vmatmul.mubr.bf16.gmra.mxu0 %v7065
      %v8126 = vpop.f32.mrf.mxu0
      %v8127 = vadd.f32 %v7966, %v8126
      %v8128 = vpop.f32.mrf.mxu0
      %v8129 = vpop.f32.mrf.mxu0
      %v8130 = vadd.f32 %v7969, %v8129
      %v8131 = vpop.f32.mrf.mxu0
      %8132 = vmatprep.mubr.bf16.mxu0 %v7075
      %8133 = vmatmul.mubr.bf16.gmra.mxu0 %v7074
      %v8134 = vpop.f32.mrf.mxu0
      %v8135 = vadd.f32 %v7974, %v8134
      %v8136 = vpop.f32.mrf.mxu0
      %v8137 = vpop.f32.mrf.mxu0
      %v8138 = vadd.f32 %v7977, %v8137
      %v8139 = vpop.f32.mrf.mxu0
      %8140 = vmatprep.mubr.bf16.mxu0 %v7084
      %8141 = vmatmul.mubr.bf16.gmra.mxu0 %v7083
      %v8142 = vpop.f32.mrf.mxu0
      %v8143 = vadd.f32 %v7982, %v8142
      %v8144 = vpop.f32.mrf.mxu0
      %v8145 = vpop.f32.mrf.mxu0
      %v8146 = vadd.f32 %v7985, %v8145
      %v8147 = vpop.f32.mrf.mxu0
      %8148 = vmatprep.mubr.bf16.mxu0 %v7093
      %8149 = vmatmul.mubr.bf16.gmra.mxu0 %v7092
      %v8150 = vpop.f32.mrf.mxu0
      %v8151 = vadd.f32 %v7990, %v8150
      %v8152 = vpop.f32.mrf.mxu0
      %v8153 = vpop.f32.mrf.mxu0
      %v8154 = vadd.f32 %v7993, %v8153
      %v8155 = vpop.f32.mrf.mxu0
      %8156 = vmatprep.mubr.bf16.mxu0 %v7102
      %8157 = vmatmul.mubr.bf16.gmra.mxu0 %v7101
      %v8158 = vpop.f32.mrf.mxu0
      %v8159 = vadd.f32 %v7998, %v8158
      %v8160 = vpop.f32.mrf.mxu0
      %v8161 = vpop.f32.mrf.mxu0
      %v8162 = vadd.f32 %v8001, %v8161
      %v8163 = vpop.f32.mrf.mxu0
      %8164 = vdwg.mxu0
      %8165 = vmatprep.subr.bf16.mxu0 0
      %8166 = vmatpush1.bf16.msra.mxu0 %v7593
      %8167 = vmatprep.subr.bf16.mxu0 0
      %8168 = vmatpush1.bf16.msra.mxu0 %v7592
      %8169 = vmatprep.subr.bf16.mxu0 0
      %8170 = vmatpush1.bf16.msra.mxu0 %v7591
      %8171 = vmatprep.subr.bf16.mxu0 0
      %8172 = vmatpush1.bf16.msra.mxu0 %v7590
      %8173 = vmatprep.subr.bf16.mxu0 0
      %8174 = vmatpush1.bf16.msra.mxu0 %v7589
      %8175 = vmatprep.subr.bf16.mxu0 0
      %8176 = vmatpush1.bf16.msra.mxu0 %v7588
      %8177 = vmatprep.subr.bf16.mxu0 0
      %8178 = vmatpush1.bf16.msra.mxu0 %v7587
      %8179 = vmatprep.subr.bf16.mxu0 0
      %8180 = vmatpush1.bf16.msra.mxu0 %v7586
      %8181 = vmatprep.subr.bf16.mxu0 0
      %8182 = vmatpush2.bf16.msra.mxu0 %v7601
      %8183 = vmatprep.subr.bf16.mxu0 0
      %8184 = vmatpush2.bf16.msra.mxu0 %v7600
      %8185 = vmatprep.subr.bf16.mxu0 0
      %8186 = vmatpush2.bf16.msra.mxu0 %v7599
      %8187 = vmatprep.subr.bf16.mxu0 0
      %8188 = vmatpush2.bf16.msra.mxu0 %v7598
      %8189 = vmatprep.subr.bf16.mxu0 0
      %8190 = vmatpush2.bf16.msra.mxu0 %v7597
      %8191 = vmatprep.subr.bf16.mxu0 0
      %8192 = vmatpush2.bf16.msra.mxu0 %v7596
      %8193 = vmatprep.subr.bf16.mxu0 0
      %8194 = vmatpush2.bf16.msra.mxu0 %v7595
      %8195 = vmatprep.subr.bf16.mxu0 0
      %8196 = vmatpush2.bf16.msra.mxu0 %v7594
      %8197 = vmatprep.mubr.bf16.mxu0 %v6969
      %8198 = vmatmul.mubr.bf16.gmra.mxu0 %v6968
      %v8199 = vpop.f32.mrf.mxu0
      %v8200 = vadd.f32 %v8039, %v8199
      %v8201 = vpop.f32.mrf.mxu0
      %v8202 = vpop.f32.mrf.mxu0
      %v8203 = vadd.f32 %v8042, %v8202
      %v8204 = vpop.f32.mrf.mxu0
      %8205 = vmatprep.mubr.bf16.mxu0 %v6978
      %8206 = vmatmul.mubr.bf16.gmra.mxu0 %v6977
      %v8207 = vpop.f32.mrf.mxu0
      %v8208 = vadd.f32 %v8047, %v8207
      %v8209 = vpop.f32.mrf.mxu0
      %v8210 = vpop.f32.mrf.mxu0
      %v8211 = vadd.f32 %v8050, %v8210
      %v8212 = vpop.f32.mrf.mxu0
      %8213 = vmatprep.mubr.bf16.mxu0 %v6987
      %8214 = vmatmul.mubr.bf16.gmra.mxu0 %v6986
      %v8215 = vpop.f32.mrf.mxu0
      %v8216 = vadd.f32 %v8055, %v8215
      %v8217 = vpop.f32.mrf.mxu0
      %v8218 = vpop.f32.mrf.mxu0
      %v8219 = vadd.f32 %v8058, %v8218
      %v8220 = vpop.f32.mrf.mxu0
      %8221 = vmatprep.mubr.bf16.mxu0 %v6996
      %8222 = vmatmul.mubr.bf16.gmra.mxu0 %v6995
      %v8223 = vpop.f32.mrf.mxu0
      %v8224 = vadd.f32 %v8063, %v8223
      %v8225 = vpop.f32.mrf.mxu0
      %v8226 = vpop.f32.mrf.mxu0
      %v8227 = vadd.f32 %v8066, %v8226
      %v8228 = vpop.f32.mrf.mxu0
      %8229 = vmatprep.mubr.bf16.mxu0 %v7005
      %8230 = vmatmul.mubr.bf16.gmra.mxu0 %v7004
      %v8231 = vpop.f32.mrf.mxu0
      %v8232 = vadd.f32 %v8071, %v8231
      %v8233 = vpop.f32.mrf.mxu0
      %v8234 = vpop.f32.mrf.mxu0
      %v8235 = vadd.f32 %v8074, %v8234
      %v8236 = vpop.f32.mrf.mxu0
      %8237 = vmatprep.mubr.bf16.mxu0 %v7014
      %8238 = vmatmul.mubr.bf16.gmra.mxu0 %v7013
      %v8239 = vpop.f32.mrf.mxu0
      %v8240 = vadd.f32 %v8079, %v8239
      %v8241 = vpop.f32.mrf.mxu0
      %v8242 = vpop.f32.mrf.mxu0
      %v8243 = vadd.f32 %v8082, %v8242
      %v8244 = vpop.f32.mrf.mxu0
      %8245 = vmatprep.mubr.bf16.mxu0 %v7023
      %8246 = vmatmul.mubr.bf16.gmra.mxu0 %v7022
      %v8247 = vpop.f32.mrf.mxu0
      %v8248 = vadd.f32 %v8087, %v8247
      %v8249 = vpop.f32.mrf.mxu0
      %v8250 = vpop.f32.mrf.mxu0
      %v8251 = vadd.f32 %v8090, %v8250
      %v8252 = vpop.f32.mrf.mxu0
      %8253 = vmatprep.mubr.bf16.mxu0 %v7032
      %8254 = vmatmul.mubr.bf16.gmra.mxu0 %v7031
      %v8255 = vpop.f32.mrf.mxu0
      %v8256 = vadd.f32 %v8095, %v8255
      %v8257 = vpop.f32.mrf.mxu0
      %v8258 = vpop.f32.mrf.mxu0
      %v8259 = vadd.f32 %v8098, %v8258
      %v8260 = vpop.f32.mrf.mxu0
      %8261 = vmatprep.mubr.bf16.mxu0 %v7041
      %8262 = vmatmul.mubr.bf16.gmra.mxu0 %v7040
      %v8263 = vpop.f32.mrf.mxu0
      %v8264 = vadd.f32 %v8103, %v8263
      %v8265 = vpop.f32.mrf.mxu0
      %v8266 = vpop.f32.mrf.mxu0
      %v8267 = vadd.f32 %v8106, %v8266
      %v8268 = vpop.f32.mrf.mxu0
      %8269 = vmatprep.mubr.bf16.mxu0 %v7050
      %8270 = vmatmul.mubr.bf16.gmra.mxu0 %v7049
      %v8271 = vpop.f32.mrf.mxu0
      %v8272 = vadd.f32 %v8111, %v8271
      %v8273 = vpop.f32.mrf.mxu0
      %v8274 = vpop.f32.mrf.mxu0
      %v8275 = vadd.f32 %v8114, %v8274
      %v8276 = vpop.f32.mrf.mxu0
      %8277 = vmatprep.mubr.bf16.mxu0 %v7059
      %8278 = vmatmul.mubr.bf16.gmra.mxu0 %v7058
      %v8279 = vpop.f32.mrf.mxu0
      %v8280 = vadd.f32 %v8119, %v8279
      %v8281 = vpop.f32.mrf.mxu0
      %v8282 = vpop.f32.mrf.mxu0
      %v8283 = vadd.f32 %v8122, %v8282
      %v8284 = vpop.f32.mrf.mxu0
      %8285 = vmatprep.mubr.bf16.mxu0 %v7068
      %8286 = vmatmul.mubr.bf16.gmra.mxu0 %v7067
      %v8287 = vpop.f32.mrf.mxu0
      %v8288 = vadd.f32 %v8127, %v8287
      %v8289 = vpop.f32.mrf.mxu0
      %v8290 = vpop.f32.mrf.mxu0
      %v8291 = vadd.f32 %v8130, %v8290
      %v8292 = vpop.f32.mrf.mxu0
      %8293 = vmatprep.mubr.bf16.mxu0 %v7077
      %8294 = vmatmul.mubr.bf16.gmra.mxu0 %v7076
      %v8295 = vpop.f32.mrf.mxu0
      %v8296 = vadd.f32 %v8135, %v8295
      %v8297 = vpop.f32.mrf.mxu0
      %v8298 = vpop.f32.mrf.mxu0
      %v8299 = vadd.f32 %v8138, %v8298
      %v8300 = vpop.f32.mrf.mxu0
      %8301 = vmatprep.mubr.bf16.mxu0 %v7086
      %8302 = vmatmul.mubr.bf16.gmra.mxu0 %v7085
      %v8303 = vpop.f32.mrf.mxu0
      %v8304 = vadd.f32 %v8143, %v8303
      %v8305 = vpop.f32.mrf.mxu0
      %v8306 = vpop.f32.mrf.mxu0
      %v8307 = vadd.f32 %v8146, %v8306
      %v8308 = vpop.f32.mrf.mxu0
      %8309 = vmatprep.mubr.bf16.mxu0 %v7095
      %8310 = vmatmul.mubr.bf16.gmra.mxu0 %v7094
      %v8311 = vpop.f32.mrf.mxu0
      %v8312 = vadd.f32 %v8151, %v8311
      %v8313 = vpop.f32.mrf.mxu0
      %v8314 = vpop.f32.mrf.mxu0
      %v8315 = vadd.f32 %v8154, %v8314
      %v8316 = vpop.f32.mrf.mxu0
      %8317 = vmatprep.mubr.bf16.mxu0 %v7104
      %8318 = vmatmul.mubr.bf16.gmra.mxu0 %v7103
      %v8319 = vpop.f32.mrf.mxu0
      %v8320 = vadd.f32 %v8159, %v8319
      %v8321 = vpop.f32.mrf.mxu0
      %v8322 = vpop.f32.mrf.mxu0
      %v8323 = vadd.f32 %v8162, %v8322
      %v8324 = vpop.f32.mrf.mxu0
      %8325 = vdwg.mxu0
      %8326 = vmatprep.subr.bf16.mxu0 0
      %8327 = vmatpush1.bf16.msra.mxu0 %v7609
      %8328 = vmatprep.subr.bf16.mxu0 0
      %8329 = vmatpush1.bf16.msra.mxu0 %v7608
      %8330 = vmatprep.subr.bf16.mxu0 0
      %8331 = vmatpush1.bf16.msra.mxu0 %v7607
      %8332 = vmatprep.subr.bf16.mxu0 0
      %8333 = vmatpush1.bf16.msra.mxu0 %v7606
      %8334 = vmatprep.subr.bf16.mxu0 0
      %8335 = vmatpush1.bf16.msra.mxu0 %v7605
      %8336 = vmatprep.subr.bf16.mxu0 0
      %8337 = vmatpush1.bf16.msra.mxu0 %v7604
      %8338 = vmatprep.subr.bf16.mxu0 0
      %8339 = vmatpush1.bf16.msra.mxu0 %v7603
      %8340 = vmatprep.subr.bf16.mxu0 0
      %8341 = vmatpush1.bf16.msra.mxu0 %v7602
      %8342 = vmatprep.subr.bf16.mxu0 0
      %8343 = vmatpush2.bf16.msra.mxu0 0
      %8344 = vmatprep.subr.bf16.mxu0 0
      %8345 = vmatpush2.bf16.msra.mxu0 0
      %8346 = vmatprep.subr.bf16.mxu0 0
      %8347 = vmatpush2.bf16.msra.mxu0 0
      %8348 = vmatprep.subr.bf16.mxu0 0
      %8349 = vmatpush2.bf16.msra.mxu0 0
      %8350 = vmatprep.subr.bf16.mxu0 0
      %8351 = vmatpush2.bf16.msra.mxu0 0
      %8352 = vmatprep.subr.bf16.mxu0 0
      %8353 = vmatpush2.bf16.msra.mxu0 0
      %8354 = vmatprep.subr.bf16.mxu0 0
      %8355 = vmatpush2.bf16.msra.mxu0 0
      %8356 = vmatprep.subr.bf16.mxu0 0
      %8357 = vmatpush2.bf16.msra.mxu0 0
      %8358 = vmatprep.mubr.bf16.mxu0 0
      %8359 = vmatmul.mubr.bf16.gmra.mxu0 %v6970
      %v8360 = vpop.f32.mrf.mxu0
      %v8361 = vadd.f32 %v8200, %v8360
      %v8362 = vpop.f32.mrf.mxu0
      %v8363 = vpop.f32.mrf.mxu0
      %v8364 = vadd.f32 %v8203, %v8363
      %v8365 = vpop.f32.mrf.mxu0
      %8366 = vmatprep.mubr.bf16.mxu0 0
      %8367 = vmatmul.mubr.bf16.gmra.mxu0 %v6979
      %v8368 = vpop.f32.mrf.mxu0
      %v8369 = vadd.f32 %v8208, %v8368
      %v8370 = vpop.f32.mrf.mxu0
      %v8371 = vpop.f32.mrf.mxu0
      %v8372 = vadd.f32 %v8211, %v8371
      %v8373 = vpop.f32.mrf.mxu0
      %8374 = vmatprep.mubr.bf16.mxu0 0
      %8375 = vmatmul.mubr.bf16.gmra.mxu0 %v6988
      %v8376 = vpop.f32.mrf.mxu0
      %v8377 = vadd.f32 %v8216, %v8376
      %v8378 = vpop.f32.mrf.mxu0
      %v8379 = vpop.f32.mrf.mxu0
      %v8380 = vadd.f32 %v8219, %v8379
      %v8381 = vpop.f32.mrf.mxu0
      %8382 = vmatprep.mubr.bf16.mxu0 0
      %8383 = vmatmul.mubr.bf16.gmra.mxu0 %v6997
      %v8384 = vpop.f32.mrf.mxu0
      %v8385 = vadd.f32 %v8224, %v8384
      %v8386 = vpop.f32.mrf.mxu0
      %v8387 = vpop.f32.mrf.mxu0
      %v8388 = vadd.f32 %v8227, %v8387
      %v8389 = vpop.f32.mrf.mxu0
      %8390 = vmatprep.mubr.bf16.mxu0 0
      %8391 = vmatmul.mubr.bf16.gmra.mxu0 %v7006
      %v8392 = vpop.f32.mrf.mxu0
      %v8393 = vadd.f32 %v8232, %v8392
      %v8394 = vpop.f32.mrf.mxu0
      %v8395 = vpop.f32.mrf.mxu0
      %v8396 = vadd.f32 %v8235, %v8395
      %v8397 = vpop.f32.mrf.mxu0
      %8398 = vmatprep.mubr.bf16.mxu0 0
      %8399 = vmatmul.mubr.bf16.gmra.mxu0 %v7015
      %v8400 = vpop.f32.mrf.mxu0
      %v8401 = vadd.f32 %v8240, %v8400
      %v8402 = vpop.f32.mrf.mxu0
      %v8403 = vpop.f32.mrf.mxu0
      %v8404 = vadd.f32 %v8243, %v8403
      %v8405 = vpop.f32.mrf.mxu0
      %8406 = vmatprep.mubr.bf16.mxu0 0
      %8407 = vmatmul.mubr.bf16.gmra.mxu0 %v7024
      %v8408 = vpop.f32.mrf.mxu0
      %v8409 = vadd.f32 %v8248, %v8408
      %v8410 = vpop.f32.mrf.mxu0
      %v8411 = vpop.f32.mrf.mxu0
      %v8412 = vadd.f32 %v8251, %v8411
      %v8413 = vpop.f32.mrf.mxu0
      %8414 = vmatprep.mubr.bf16.mxu0 0
      %8415 = vmatmul.mubr.bf16.gmra.mxu0 %v7033
      %v8416 = vpop.f32.mrf.mxu0
      %v8417 = vadd.f32 %v8256, %v8416
      %v8418 = vpop.f32.mrf.mxu0
      %v8419 = vpop.f32.mrf.mxu0
      %v8420 = vadd.f32 %v8259, %v8419
      %v8421 = vpop.f32.mrf.mxu0
      %8422 = vmatprep.mubr.bf16.mxu0 0
      %8423 = vmatmul.mubr.bf16.gmra.mxu0 %v7042
      %v8424 = vpop.f32.mrf.mxu0
      %v8425 = vadd.f32 %v8264, %v8424
      %v8426 = vpop.f32.mrf.mxu0
      %v8427 = vpop.f32.mrf.mxu0
      %v8428 = vadd.f32 %v8267, %v8427
      %v8429 = vpop.f32.mrf.mxu0
      %8430 = vmatprep.mubr.bf16.mxu0 0
      %8431 = vmatmul.mubr.bf16.gmra.mxu0 %v7051
      %v8432 = vpop.f32.mrf.mxu0
      %v8433 = vadd.f32 %v8272, %v8432
      %v8434 = vpop.f32.mrf.mxu0
      %v8435 = vpop.f32.mrf.mxu0
      %v8436 = vadd.f32 %v8275, %v8435
      %v8437 = vpop.f32.mrf.mxu0
      %8438 = vmatprep.mubr.bf16.mxu0 0
      %8439 = vmatmul.mubr.bf16.gmra.mxu0 %v7060
      %v8440 = vpop.f32.mrf.mxu0
      %v8441 = vadd.f32 %v8280, %v8440
      %v8442 = vpop.f32.mrf.mxu0
      %v8443 = vpop.f32.mrf.mxu0
      %v8444 = vadd.f32 %v8283, %v8443
      %v8445 = vpop.f32.mrf.mxu0
      %8446 = vmatprep.mubr.bf16.mxu0 0
      %8447 = vmatmul.mubr.bf16.gmra.mxu0 %v7069
      %v8448 = vpop.f32.mrf.mxu0
      %v8449 = vadd.f32 %v8288, %v8448
      %v8450 = vpop.f32.mrf.mxu0
      %v8451 = vpop.f32.mrf.mxu0
      %v8452 = vadd.f32 %v8291, %v8451
      %v8453 = vpop.f32.mrf.mxu0
      %8454 = vmatprep.mubr.bf16.mxu0 0
      %8455 = vmatmul.mubr.bf16.gmra.mxu0 %v7078
      %v8456 = vpop.f32.mrf.mxu0
      %v8457 = vadd.f32 %v8296, %v8456
      %v8458 = vpop.f32.mrf.mxu0
      %v8459 = vpop.f32.mrf.mxu0
      %v8460 = vadd.f32 %v8299, %v8459
      %v8461 = vpop.f32.mrf.mxu0
      %8462 = vmatprep.mubr.bf16.mxu0 0
      %8463 = vmatmul.mubr.bf16.gmra.mxu0 %v7087
      %v8464 = vpop.f32.mrf.mxu0
      %v8465 = vadd.f32 %v8304, %v8464
      %v8466 = vpop.f32.mrf.mxu0
      %v8467 = vpop.f32.mrf.mxu0
      %v8468 = vadd.f32 %v8307, %v8467
      %v8469 = vpop.f32.mrf.mxu0
      %8470 = vmatprep.mubr.bf16.mxu0 0
      %8471 = vmatmul.mubr.bf16.gmra.mxu0 %v7096
      %v8472 = vpop.f32.mrf.mxu0
      %v8473 = vadd.f32 %v8312, %v8472
      %v8474 = vpop.f32.mrf.mxu0
      %v8475 = vpop.f32.mrf.mxu0
      %v8476 = vadd.f32 %v8315, %v8475
      %v8477 = vpop.f32.mrf.mxu0
      %8478 = vmatprep.mubr.bf16.mxu0 0
      %8479 = vmatmul.mubr.bf16.gmra.mxu0 %v7105
      %v8480 = vpop.f32.mrf.mxu0
      %v8481 = vadd.f32 %v8320, %v8480
      %v8482 = vpop.f32.mrf.mxu0
      %v8483 = vpop.f32.mrf.mxu0
      %v8484 = vadd.f32 %v8323, %v8483
      %v8485 = vpop.f32.mrf.mxu0
      %8486 = vdwg.mxu0
      %v8487 = vmax.f32 %v8361, 0.0
      %v8488 = vmax.f32 %v8364, 0.0
      %v8489 = vmax.f32 %v8369, 0.0
      %v8490 = vmax.f32 %v8372, 0.0
      %v8491 = vmax.f32 %v8377, 0.0
      %v8492 = vmax.f32 %v8380, 0.0
      %v8493 = vmax.f32 %v8385, 0.0
      %v8494 = vmax.f32 %v8388, 0.0
      %v8495 = vmax.f32 %v8393, 0.0
      %v8496 = vmax.f32 %v8396, 0.0
      %v8497 = vmax.f32 %v8401, 0.0
      %v8498 = vmax.f32 %v8404, 0.0
      %v8499 = vmax.f32 %v8409, 0.0
      %v8500 = vmax.f32 %v8412, 0.0
      %v8501 = vmax.f32 %v8417, 0.0
      %v8502 = vmax.f32 %v8420, 0.0
      %v8503 = vmax.f32 %v8425, 0.0
      %v8504 = vmax.f32 %v8428, 0.0
      %v8505 = vmax.f32 %v8433, 0.0
      %v8506 = vmax.f32 %v8436, 0.0
      %v8507 = vmax.f32 %v8441, 0.0
      %v8508 = vmax.f32 %v8444, 0.0
      %v8509 = vmax.f32 %v8449, 0.0
      %v8510 = vmax.f32 %v8452, 0.0
      %v8511 = vmax.f32 %v8457, 0.0
      %v8512 = vmax.f32 %v8460, 0.0
      %v8513 = vmax.f32 %v8465, 0.0
      %v8514 = vmax.f32 %v8468, 0.0
      %v8515 = vmax.f32 %v8473, 0.0
      %v8516 = vmax.f32 %v8476, 0.0
      %v8517 = vmax.f32 %v8481, 0.0
      %v8518 = vmax.f32 %v8484, 0.0
      %v8519 = vpack.c.bf16 %v8488, %v8487
      %v8520 = vpack.c.bf16 %v8490, %v8489
      %v8521 = vpack.c.bf16 %v8492, %v8491
      %v8522 = vpack.c.bf16 %v8494, %v8493
      %v8523 = vpack.c.bf16 %v8496, %v8495
      %v8524 = vpack.c.bf16 %v8498, %v8497
      %v8525 = vpack.c.bf16 %v8500, %v8499
      %v8526 = vpack.c.bf16 %v8502, %v8501
      %v8527 = vpack.c.bf16 %v8504, %v8503
      %v8528 = vpack.c.bf16 %v8506, %v8505
      %v8529 = vpack.c.bf16 %v8508, %v8507
      %v8530 = vpack.c.bf16 %v8510, %v8509
      %v8531 = vpack.c.bf16 %v8512, %v8511
      %v8532 = vpack.c.bf16 %v8514, %v8513
      %v8533 = vpack.c.bf16 %v8516, %v8515
      %v8534 = vpack.c.bf16 %v8518, %v8517
      %v8551 = vunpack.c.l.b16 %v8519
      %v8552 = vunpack.c.h.b16 %v8519
      %v8553 = vunpack.c.l.b16 %v8520
      %v8554 = vunpack.c.h.b16 %v8520
      %v8555 = vunpack.c.l.b16 %v8521
      %v8556 = vunpack.c.h.b16 %v8521
      %v8557 = vunpack.c.l.b16 %v8522
      %v8558 = vunpack.c.h.b16 %v8522
      %v8559 = vunpack.c.l.b16 %v8523
      %v8560 = vunpack.c.h.b16 %v8523
      %v8561 = vunpack.c.l.b16 %v8524
      %v8562 = vunpack.c.h.b16 %v8524
      %v8563 = vunpack.c.l.b16 %v8525
      %v8564 = vunpack.c.h.b16 %v8525
      %v8565 = vunpack.c.l.b16 %v8526
      %v8566 = vunpack.c.h.b16 %v8526
      %v8567 = vunpack.c.l.b16 %v8527
      %v8568 = vunpack.c.h.b16 %v8527
      %v8569 = vunpack.c.l.b16 %v8528
      %v8570 = vunpack.c.h.b16 %v8528
      %v8571 = vunpack.c.l.b16 %v8529
      %v8572 = vunpack.c.h.b16 %v8529
      %v8573 = vunpack.c.l.b16 %v8530
      %v8574 = vunpack.c.h.b16 %v8530
      %v8575 = vunpack.c.l.b16 %v8531
      %v8576 = vunpack.c.h.b16 %v8531
      %v8577 = vunpack.c.l.b16 %v8532
      %v8578 = vunpack.c.h.b16 %v8532
      %v8579 = vunpack.c.l.b16 %v8533
      %v8580 = vunpack.c.h.b16 %v8533
      %v8581 = vunpack.c.l.b16 %v8534
      %v8582 = vunpack.c.h.b16 %v8534
      %v8583 = vpack.c.b16 %v8551, %v8551
      %v8584 = vpack.c.b16 %v8552, %v8552
      %v8585 = vpack.c.b16 %v8553, %v8553
      %v8586 = vpack.c.b16 %v8554, %v8554
      %v8587 = vpack.c.b16 %v8555, %v8555
      %v8588 = vpack.c.b16 %v8556, %v8556
      %v8589 = vpack.c.b16 %v8557, %v8557
      %v8590 = vpack.c.b16 %v8558, %v8558
      %v8591 = vpack.c.b16 %v8559, %v8559
      %v8592 = vpack.c.b16 %v8560, %v8560
      %v8593 = vpack.c.b16 %v8561, %v8561
      %v8594 = vpack.c.b16 %v8562, %v8562
      %v8595 = vpack.c.b16 %v8563, %v8563
      %v8596 = vpack.c.b16 %v8564, %v8564
      %v8597 = vpack.c.b16 %v8565, %v8565
      %v8598 = vpack.c.b16 %v8566, %v8566
      %v8599 = vpack.c.b16 %v8567, %v8567
      %v8600 = vpack.c.b16 %v8568, %v8568
      %v8601 = vpack.c.b16 %v8569, %v8569
      %v8602 = vpack.c.b16 %v8570, %v8570
      %v8603 = vpack.c.b16 %v8571, %v8571
      %v8604 = vpack.c.b16 %v8572, %v8572
      %v8605 = vpack.c.b16 %v8573, %v8573
      %v8606 = vpack.c.b16 %v8574, %v8574
      %v8607 = vpack.c.b16 %v8575, %v8575
      %v8608 = vpack.c.b16 %v8576, %v8576
      %v8609 = vpack.c.b16 %v8577, %v8577
      %v8610 = vpack.c.b16 %v8578, %v8578
      %v8611 = vpack.c.b16 %v8579, %v8579
      %v8612 = vpack.c.b16 %v8580, %v8580
      %v8613 = vpack.c.b16 %v8581, %v8581
      %v8614 = vpack.c.b16 %v8582, %v8582
      %vm8647 = vcmask 519168
      %8648 = vst.msk [vmem:[%s170] sm:$0xf] %vm8647, %v8583
      %8649 = vst.msk [vmem:[%s170 + $0x4] sm:$0xf] %vm8647, %v8584
      %8650 = vst.msk [vmem:[%s170 + $0x8] sm:$0xf] %vm8647, %v8585
      %8651 = vst.msk [vmem:[%s170 + $0xc] sm:$0xf] %vm8647, %v8586
      %8652 = vst.msk [vmem:[%s170 + $0x10] sm:$0xf] %vm8647, %v8587
      %8653 = vst.msk [vmem:[%s170 + $0x14] sm:$0xf] %vm8647, %v8588
      %8654 = vst.msk [vmem:[%s170 + $0x18] sm:$0xf] %vm8647, %v8589
      %8655 = vst.msk [vmem:[%s170 + $0x1c] sm:$0xf] %vm8647, %v8590
      %8656 = vst.msk [vmem:[%s170 + $0x20] sm:$0xf] %vm8647, %v8591
      %8657 = vst.msk [vmem:[%s170 + $0x24] sm:$0xf] %vm8647, %v8592
      %8658 = vst.msk [vmem:[%s170 + $0x28] sm:$0xf] %vm8647, %v8593
      %8659 = vst.msk [vmem:[%s170 + $0x2c] sm:$0xf] %vm8647, %v8594
      %8660 = vst.msk [vmem:[%s170 + $0x30] sm:$0xf] %vm8647, %v8595
      %8661 = vst.msk [vmem:[%s170 + $0x34] sm:$0xf] %vm8647, %v8596
      %8662 = vst.msk [vmem:[%s170 + $0x38] sm:$0xf] %vm8647, %v8597
      %8663 = vst.msk [vmem:[%s170 + $0x3c] sm:$0xf] %vm8647, %v8598
      %8664 = vst.msk [vmem:[%s170 + $0x40] sm:$0xf] %vm8647, %v8599
      %8665 = vst.msk [vmem:[%s170 + $0x44] sm:$0xf] %vm8647, %v8600
      %8666 = vst.msk [vmem:[%s170 + $0x48] sm:$0xf] %vm8647, %v8601
      %8667 = vst.msk [vmem:[%s170 + $0x4c] sm:$0xf] %vm8647, %v8602
      %8668 = vst.msk [vmem:[%s170 + $0x50] sm:$0xf] %vm8647, %v8603
      %8669 = vst.msk [vmem:[%s170 + $0x54] sm:$0xf] %vm8647, %v8604
      %8670 = vst.msk [vmem:[%s170 + $0x58] sm:$0xf] %vm8647, %v8605
      %8671 = vst.msk [vmem:[%s170 + $0x5c] sm:$0xf] %vm8647, %v8606
      %8672 = vst.msk [vmem:[%s170 + $0x60] sm:$0xf] %vm8647, %v8607
      %8673 = vst.msk [vmem:[%s170 + $0x64] sm:$0xf] %vm8647, %v8608
      %8674 = vst.msk [vmem:[%s170 + $0x68] sm:$0xf] %vm8647, %v8609
      %8675 = vst.msk [vmem:[%s170 + $0x6c] sm:$0xf] %vm8647, %v8610
      %8676 = vst.msk [vmem:[%s170 + $0x70] sm:$0xf] %vm8647, %v8611
      %8677 = vst.msk [vmem:[%s170 + $0x74] sm:$0xf] %vm8647, %v8612
      %8678 = vst.msk [vmem:[%s170 + $0x78] sm:$0xf] %vm8647, %v8613
      %8679 = vst.msk [vmem:[%s170 + $0x7c] sm:$0xf] %vm8647, %v8614
      %p8680 = scmp.lt.s32.totalorder %s14, 1
      %s8681 = scalar_select %p8680, %s14, 1
      %s8682 = smul.addr %s8681, 32
      %s8683 = smul.addr %s8682, 4
      %s8684 = scalar_lea.vmem %s3, %s8683
      // Predicated region
      $region33: #{forward.2} parent=31 // pred_check
        %p8685 = pneg %p100
      $region34: #{forward.2} parent=31 // pred_check_branch
        %8687 = sbr.rel (%p8685) target = $region36
      $region35: #{forward.2} parent=31 // pred_region
        _
      $region36: #{forward.2} parent=31 // pred_fallthru
        _
    $region32: #{forward.2} parent=5 // pred_fallthru
      _
    %p8688 = scmp.le.s32.totalorder 2, %s9
    // Predicated region
    $region37: #{forward.2} parent=5 // pred_check
      %p8689 = pneg %p8688
    $region38: #{forward.2} parent=5 // pred_check_branch
      %8691 = sbr.rel (%p8689) target = $region40
    $region39: #{forward.2} parent=5 // pred_region
      %s8692 = ssub.s32 %s9, 2
      // Predicated region
      $region41: #{forward.2} parent=39 // pred_check
        %p8693 = pneg %p106
      $region42: #{forward.2} parent=39 // pred_check_branch
        %8695 = sbr.rel (%p8693) target = $region44
      $region43: #{forward.2} parent=39 // pred_region
        %p8696 = scmp.lt.s32.totalorder %s15, 1
        %s8697 = scalar_select %p8696, %s15, 1
        %s8698 = smul.addr %s8697, 32
        %s8699 = smul.addr %s8698, 4
        %s8700 = scalar_lea.vmem %s3, %s8699
      $region44: #{forward.2} parent=39 // pred_fallthru
        _
    $region40: #{forward.2} parent=5 // pred_fallthru
      _
  $region6: #{forward.2} parent=0 // loop_footer
    %s13 = sadd.s32 1, %s9
  $region7: #{forward.2} parent=0 // loop_footer_branch
    %8 = sbr.rel target = $region3
  $region8: #{forward.2} parent=0 // loop_exit
    _

</llo_original>
